<compile_context>
chip_gen: v6e
topology: v6e:2x2x1
jax: 0.10.0
libtpu: 0.0.40
codegen_flags: <defaults>
</compile_context>

<pallas_src>
from functools import partial

import numpy as np
import jax
import jax.numpy as jnp
from jax.experimental import pallas as pl
from jax.experimental.pallas import tpu as pltpu

# ---- per-sample row budget (rows are 4x4 spatial blocks, position-major) ----
_BLOCKS = 64       # 8x8 grid of 4x4 input blocks per 32x32 image
_M1_BLOCKS = 58    # conv1/pool1 block rows computed per sample
_M2_BLOCKS = 40    # conv2/pool2 block rows computed per sample
_X_BLOCKS = 67     # input block rows incl. zero pad for shifted tap loads

# Margin checks (review correctness concern: make the slack constants explicit).
# conv2 valid outputs read pool1 block positions <= 54, and conv2's trailing
# garbage rows read up to (_M2_BLOCKS - 1) + 18; conv1 reads x up to +9 blocks;
# the fc1 gather reads pool2 block positions <= 36.
assert 37 <= _M2_BLOCKS <= 46
assert max(55, _M2_BLOCKS + 18) <= _M1_BLOCKS <= _BLOCKS
assert _X_BLOCKS >= _M1_BLOCKS + 9


def _lenet_kernel(x_ref, w1_ref, b1_ref, w2_ref, b2_ref,
                  wf1_ref, bf1_ref, wf2_ref, bf2_ref, wf3_ref, bf3_ref,
                  o_ref, p1_ref, q_ref):
    nt = o_ref.shape[0]          # samples in this grid step
    m1 = p1_ref.shape[0]         # _M1_BLOCKS * nt
    m2 = q_ref.shape[0]          # _M2_BLOCKS * nt

    # ---- conv1 (5x5, 3->6) + ReLU + 2x2 maxpool ------------------------------
    # 4 aligned block-offset loads, each contracted against a packed (48, 96)
    # weight slab (25 taps x 3 ch folded into K; output lanes = 4 conv-phase
    # groups of (2x2 pool parity x 6 ch)).
    acc1 = None
    for t, off in enumerate((0, 1, 8, 9)):          # (block-row, block-col) offsets
        d = jnp.dot(x_ref[pl.ds(off * nt, m1), :], w1_ref[t],
                    preferred_element_type=jnp.float32)
        acc1 = d if acc1 is None else acc1 + d
    y1 = jnp.maximum(acc1 + b1_ref[...], 0.0)                       # (m1, 96)
    # fused pool1: the 4 pool mates are the 4 contiguous 24-lane groups
    p1_ref[...] = jnp.maximum(jnp.maximum(y1[:, 0:24], y1[:, 24:48]),
                              jnp.maximum(y1[:, 48:72], y1[:, 72:96]))

    # ---- conv2 (5x5, 6->16) + ReLU + 2x2 maxpool -----------------------------
    acc2 = None
    t = 0
    for ou in range(3):
        for ov in range(3):
            d = jnp.dot(p1_ref[pl.ds((ou * 8 + ov) * nt, m2), :], w2_ref[t],
                        preferred_element_type=jnp.float32)
            acc2 = d if acc2 is None else acc2 + d
            t += 1
    y2 = jnp.maximum(acc2 + b2_ref[...], 0.0)                       # (m2, 64)
    # fused pool2: 4 contiguous 16-lane groups are the pool mates
    q_ref[...] = jnp.maximum(jnp.maximum(y2[:, 0:16], y2[:, 16:32]),
                             jnp.maximum(y2[:, 32:48], y2[:, 48:64]))

    # ---- flatten folded into FC1 ---------------------------------------------
    # Rows are position-major, so each pooled position is a contiguous, aligned
    # (nt, 16) block; torch's channel-major flatten order lives in wf1's packing.
    h = None
    for pos in range(25):
        hp, wp = divmod(pos, 5)
        rows = q_ref[pl.ds((hp * 8 + wp) * nt, nt), :]              # (nt, 16)
        d = jnp.dot(rows, wf1_ref[pos], preferred_element_type=jnp.float32)
        h = d if h is None else h + d
    h = jnp.maximum(h + bf1_ref[...], 0.0)                          # (nt, 128)
    h = jnp.maximum(jnp.dot(h, wf2_ref[...],
                            preferred_element_type=jnp.float32) + bf2_ref[...], 0.0)
    o_ref[...] = (jnp.dot(h, wf3_ref[...],
                          preferred_element_type=jnp.float32) + bf3_ref[...])


def init_params(key):
    """Raw params in the PyTorch layout/init convention."""
    ks = jax.random.split(key, 10)

    def u(k, shape, fan_in):
        bound = 1.0 / jnp.sqrt(jnp.float32(fan_in))
        return jax.random.uniform(k, shape, jnp.float32, -bound, bound)

    return {
        "w_c1": u(ks[0], (6, 3, 5, 5), 3 * 25),  "b_c1": u(ks[1], (6,), 3 * 25),
        "w_c2": u(ks[2], (16, 6, 5, 5), 6 * 25), "b_c2": u(ks[3], (16,), 6 * 25),
        "w_f1": u(ks[4], (400, 120), 400),       "b_f1": u(ks[5], (1, 120), 400),
        "w_f2": u(ks[6], (120, 60), 120),        "b_f2": u(ks[7], (1, 60), 120),
        "w_f3": u(ks[8], (60, 10), 60),          "b_f3": u(ks[9], (1, 10), 60),
    }


def prepare_params(raw):
    """One-time weight packing (outside the hot path)."""
    w1 = np.asarray(raw["w_c1"], np.float32)     # (6, 3, 5, 5)  [co, c, i, j]
    w2 = np.asarray(raw["w_c2"], np.float32)     # (16, 6, 5, 5)
    b1 = np.asarray(raw["b_c1"], np.float32)
    b2 = np.asarray(raw["b_c2"], np.float32)

    # conv1: 4 block-offset slabs of shape (48, 96).
    #   input lane  = (qh*4 + qw)*3 + c                     (4x4 block, 3 ch)
    #   output lane = (d*2 + e)*24 + (alpha*2 + beta)*6 + co, with the output
    #   pixel (u, v) = (2*alpha + d, 2*beta + e) inside the 4x4 block, so the
    #   4 pool mates (d, e) are contiguous 24-lane groups.
    w1p = np.zeros((4, 48, 96), np.float32)
    for co in range(6):
        for c in range(3):
            for i in range(5):
                for j in range(5):
                    for u in range(4):
                        for v in range(4):
                            ou, qh = divmod(u + i, 4)
                            ov, qw = divmod(v + j, 4)
                            lane_in = (qh * 4 + qw) * 3 + c
                            lane_out = ((u % 2) * 2 + (v % 2)) * 24 + \
                                       ((u // 2) * 2 + (v // 2)) * 6 + co
                            w1p[ou * 2 + ov, lane_in, lane_out] = w1[co, c, i, j]
    b1p = np.tile(b1, 16).reshape(1, 96)

    # conv2: 9 block-offset slabs of shape (24, 64).
    #   input lane  = (alpha*2 + beta)*6 + c   (pool1 2x2 parity x 6 ch)
    #   output lane = (ph*2 + pw)*16 + co      (pool2 mates contiguous)
    w2p = np.zeros((9, 24, 64), np.float32)
    for co in range(16):
        for c in range(6):
            for i in range(5):
                for j in range(5):
                    for ph in range(2):
                        for pw in range(2):
                            ou, al = divmod(ph + i, 2)
                            ov, be = divmod(pw + j, 2)
                            lane_in = (al * 2 + be) * 6 + c
                            lane_out = (ph * 2 + pw) * 16 + co
                            w2p[ou * 3 + ov, lane_in, lane_out] = w2[co, c, i, j]
    b2p = np.tile(b2, 4).reshape(1, 64)

    # fc1 regrouped so the torch channel-major flatten (f = co*25 + hp*5 + wp)
    # folds into 25 per-position (16, 128) blocks; FC widths padded to 128 lanes.
    wf1 = np.asarray(raw["w_f1"], np.float32)                    # (400, 120)
    wf1p = wf1.reshape(16, 25, 120).transpose(1, 0, 2)           # (25, 16, 120)
    wf1p = np.pad(wf1p, ((0, 0), (0, 0), (0, 8)))                # (25, 16, 128)
    bf1p = np.pad(np.asarray(raw["b_f1"], np.float32), ((0, 0), (0, 8)))
    wf2p = np.pad(np.asarray(raw["w_f2"], np.float32), ((0, 8), (0, 68)))
    bf2p = np.pad(np.asarray(raw["b_f2"], np.float32), ((0, 0), (0, 68)))
    wf3p = np.pad(np.asarray(raw["w_f3"], np.float32), ((0, 68), (0, 0)))
    bf3p = np.asarray(raw["b_f3"], np.float32)

    return tuple(jnp.asarray(a) for a in
                 (w1p, b1p, w2p, b2p, wf1p, bf1p, wf2p, bf2p, wf3p, bf3p))


@partial(jax.jit, static_argnames=("nt",))
def lenet_forward(prep, x_nchw, nt=8):
    N = x_nchw.shape[0]
    assert nt % 8 == 0 and N % nt == 0, "batch tile must be a multiple of 8"
    g = N // nt

    # NCHW -> rows = (4x4 block position)-major / sample-minor, 48 lanes:
    # row (A*8 + B)*nt + n holds x[n, :, 4A+qh, 4B+qw] at lane (qh*4+qw)*3 + c.
    # One cheap XLA pass over the input; zero-padded so every shifted tap load
    # stays in bounds (pad rows only feed garbage output rows, never read).
    xt = jnp.transpose(x_nchw, (0, 2, 3, 1)).astype(jnp.float32)      # (N,32,32,3)
    xb = xt.reshape(g, nt, 8, 4, 8, 4, 3).transpose(0, 2, 4, 1, 3, 5, 6)
    xb = xb.reshape(g, _BLOCKS * nt, 48)
    xb = jnp.pad(xb, ((0, 0), (0, (_X_BLOCKS - _BLOCKS) * nt), (0, 0)))

    lxp = _X_BLOCKS * nt
    m1 = _M1_BLOCKS * nt
    m2 = _M2_BLOCKS * nt
    const2 = lambda i: (0, 0)
    const3 = lambda i: (0, 0, 0)

    return pl.pallas_call(
        _lenet_kernel,
        out_shape=jax.ShapeDtypeStruct((N, 10), jnp.float32),
        grid_spec=pltpu.PrefetchScalarGridSpec(
            num_scalar_prefetch=0,
            grid=(g,),
            in_specs=[
                pl.BlockSpec((None, lxp, 48), lambda i: (i, 0, 0)),   # x tile
                pl.BlockSpec((4, 48, 96), const3),                    # conv1 w
                pl.BlockSpec((1, 96), const2),                        # conv1 b
                pl.BlockSpec((9, 24, 64), const3),                    # conv2 w
                pl.BlockSpec((1, 64), const2),                        # conv2 b
                pl.BlockSpec((25, 16, 128), const3),                  # fc1 w
                pl.BlockSpec((1, 128), const2),                       # fc1 b
                pl.BlockSpec((128, 128), const2),                     # fc2 w
                pl.BlockSpec((1, 128), const2),                       # fc2 b
                pl.BlockSpec((128, 10), const2),                      # fc3 w
                pl.BlockSpec((1, 10), const2),                        # fc3 b
            ],
            out_specs=pl.BlockSpec((nt, 10), lambda i: (i, 0)),
            scratch_shapes=[
                pltpu.VMEM((m1, 24), jnp.float32),   # pooled conv1 (per tile)
                pltpu.VMEM((m2, 16), jnp.float32),   # pooled conv2 (per tile)
            ],
        ),
        compiler_params=pltpu.CompilerParams(
            dimension_semantics=("parallel",),       # batch tiles independent
        ),
    )(xb, *prep)


def lenet_reference(raw, x_nchw):
    """Pure-JAX reference of the PyTorch LeNet forward (for self-check)."""
    x = x_nchw.astype(jnp.float32)
    y = jax.lax.conv_general_dilated(
        x, raw["w_c1"], window_strides=(1, 1), padding="VALID",
        dimension_numbers=("NCHW", "OIHW", "NCHW"),
        precision=jax.lax.Precision.HIGHEST)
    y = jnp.maximum(y + raw["b_c1"][None, :, None, None], 0.0)
    y = y.reshape(y.shape[0], 6, 14, 2, 14, 2).max(axis=(3, 5))
    y = jax.lax.conv_general_dilated(
        y, raw["w_c2"], window_strides=(1, 1), padding="VALID",
        dimension_numbers=("NCHW", "OIHW", "NCHW"),
        precision=jax.lax.Precision.HIGHEST)
    y = jnp.maximum(y + raw["b_c2"][None, :, None, None], 0.0)
    y = y.reshape(y.shape[0], 16, 5, 2, 5, 2).max(axis=(3, 5))
    f = y.reshape(y.shape[0], 400)                       # torch channel-major flatten
    h = jnp.maximum(f @ raw["w_f1"] + raw["b_f1"], 0.0)
    h = jnp.maximum(h @ raw["w_f2"] + raw["b_f2"], 0.0)
    return h @ raw["w_f3"] + raw["b_f3"]


if __name__ == "__main__":
    key = jax.random.PRNGKey(0)
    pkey, xkey = jax.random.split(key)
    raw = init_params(pkey)
    prep = prepare_params(raw)

    # LeNet's Linear(16*5*5, ...) forces 3x32x32 inputs; batch 16 with an
    # 8-sample tile exercises the 2-step "parallel" batch grid.
    x = jax.random.normal(xkey, (16, 3, 32, 32), dtype=jnp.float32)

    y = lenet_forward(prep, x)
    jax.block_until_ready(y)
    assert y.shape == (16, 10) and y.dtype == jnp.float32

    y_ref = lenet_reference(raw, x)
    jax.block_until_ready(y_ref)
    assert jnp.allclose(y, y_ref, rtol=5e-2, atol=5e-2), (
        "max abs diff %f" % float(jnp.max(jnp.abs(y - y_ref))))

    print("KERNEL_OK")
</pallas_src>

<mosaic_0001>
module attributes {stable_mosaic.version = 11 : i64} {
  func.func @_lenet_kernel(%arg0: i32, %arg1: memref<1x536x48xf32, #tpu.memory_space<vmem>>, %arg2: memref<4x48x96xf32, #tpu.memory_space<vmem>>, %arg3: memref<1x96xf32, #tpu.memory_space<vmem>>, %arg4: memref<9x24x64xf32, #tpu.memory_space<vmem>>, %arg5: memref<1x64xf32, #tpu.memory_space<vmem>>, %arg6: memref<25x16x128xf32, #tpu.memory_space<vmem>>, %arg7: memref<1x128xf32, #tpu.memory_space<vmem>>, %arg8: memref<128x128xf32, #tpu.memory_space<vmem>>, %arg9: memref<1x128xf32, #tpu.memory_space<vmem>>, %arg10: memref<128x10xf32, #tpu.memory_space<vmem>>, %arg11: memref<1x10xf32, #tpu.memory_space<vmem>>, %arg12: memref<8x10xf32, #tpu.memory_space<vmem>>, %arg13: memref<464x24xf32, #tpu.memory_space<vmem>>, %arg14: memref<320x16xf32, #tpu.memory_space<vmem>>) attributes {dimension_semantics = [#tpu.dimension_semantics<parallel>], iteration_bounds = array<i64: 2>, scalar_prefetch = 0 : i64, scratch_operands = 2 : i64, tpu.core_type = #tpu.core_type<tc>, window_params = [{transform_indices = @transform_0, window_bounds = array<i64: 1, 536, 48>}, {pipeline_mode = #tpu.pipeline_mode<synchronous>, transform_indices = @transform_1, window_bounds = array<i64: 4, 48, 96>}, {pipeline_mode = #tpu.pipeline_mode<synchronous>, transform_indices = @transform_2, window_bounds = array<i64: 1, 96>}, {pipeline_mode = #tpu.pipeline_mode<synchronous>, transform_indices = @transform_3, window_bounds = array<i64: 9, 24, 64>}, {pipeline_mode = #tpu.pipeline_mode<synchronous>, transform_indices = @transform_4, window_bounds = array<i64: 1, 64>}, {pipeline_mode = #tpu.pipeline_mode<synchronous>, transform_indices = @transform_5, window_bounds = array<i64: 25, 16, 128>}, {pipeline_mode = #tpu.pipeline_mode<synchronous>, transform_indices = @transform_6, window_bounds = array<i64: 1, 128>}, {pipeline_mode = #tpu.pipeline_mode<synchronous>, transform_indices = @transform_7, window_bounds = array<i64: 128, 128>}, {pipeline_mode = #tpu.pipeline_mode<synchronous>, transform_indices = @transform_8, window_bounds = array<i64: 1, 128>}, {pipeline_mode = #tpu.pipeline_mode<synchronous>, transform_indices = @transform_9, window_bounds = array<i64: 128, 10>}, {pipeline_mode = #tpu.pipeline_mode<synchronous>, transform_indices = @transform_10, window_bounds = array<i64: 1, 10>}, {transform_indices = @transform_11, window_bounds = array<i64: 8, 10>}]} {
    %c0 = arith.constant 0 : index
    %c0_0 = arith.constant 0 : index
    %c0_1 = arith.constant 0 : index
    %0 = vector.load %arg1[%c0, %c0_0, %c0_1] : memref<1x536x48xf32, #tpu.memory_space<vmem>>, vector<1x464x48xf32>
    %1 = vector.shape_cast %0 : vector<1x464x48xf32> to vector<464x48xf32>
    %c0_2 = arith.constant 0 : index
    %c0_3 = arith.constant 0 : index
    %c0_4 = arith.constant 0 : index
    %2 = vector.load %arg2[%c0_2, %c0_3, %c0_4] : memref<4x48x96xf32, #tpu.memory_space<vmem>>, vector<1x48x96xf32>
    %3 = vector.shape_cast %2 : vector<1x48x96xf32> to vector<48x96xf32>
    %cst = arith.constant dense<0.000000e+00> : vector<464x96xf32>
    %4 = tpu.matmul %1, %3, %cst {dimension_numbers = #tpu.dot_dimension_numbers<[1], [0], [0], [1], [0, 0, 1, 1], [], []>} : vector<464x48xf32>, vector<48x96xf32>, vector<464x96xf32> -> vector<464x96xf32>
    %c0_5 = arith.constant 0 : index
    %c8 = arith.constant 8 : index
    %c0_6 = arith.constant 0 : index
    %5 = vector.load %arg1[%c0_5, %c8, %c0_6] : memref<1x536x48xf32, #tpu.memory_space<vmem>>, vector<1x464x48xf32>
    %6 = vector.shape_cast %5 : vector<1x464x48xf32> to vector<464x48xf32>
    %c1 = arith.constant 1 : index
    %c0_7 = arith.constant 0 : index
    %c0_8 = arith.constant 0 : index
    %7 = vector.load %arg2[%c1, %c0_7, %c0_8] : memref<4x48x96xf32, #tpu.memory_space<vmem>>, vector<1x48x96xf32>
    %8 = vector.shape_cast %7 : vector<1x48x96xf32> to vector<48x96xf32>
    %cst_9 = arith.constant dense<0.000000e+00> : vector<464x96xf32>
    %9 = tpu.matmul %6, %8, %cst_9 {dimension_numbers = #tpu.dot_dimension_numbers<[1], [0], [0], [1], [0, 0, 1, 1], [], []>} : vector<464x48xf32>, vector<48x96xf32>, vector<464x96xf32> -> vector<464x96xf32>
    %10 = arith.addf %4, %9 : vector<464x96xf32>
    %c0_10 = arith.constant 0 : index
    %c64 = arith.constant 64 : index
    %c0_11 = arith.constant 0 : index
    %11 = vector.load %arg1[%c0_10, %c64, %c0_11] : memref<1x536x48xf32, #tpu.memory_space<vmem>>, vector<1x464x48xf32>
    %12 = vector.shape_cast %11 : vector<1x464x48xf32> to vector<464x48xf32>
    %c2 = arith.constant 2 : index
    %c0_12 = arith.constant 0 : index
    %c0_13 = arith.constant 0 : index
    %13 = vector.load %arg2[%c2, %c0_12, %c0_13] : memref<4x48x96xf32, #tpu.memory_space<vmem>>, vector<1x48x96xf32>
    %14 = vector.shape_cast %13 : vector<1x48x96xf32> to vector<48x96xf32>
    %cst_14 = arith.constant dense<0.000000e+00> : vector<464x96xf32>
    %15 = tpu.matmul %12, %14, %cst_14 {dimension_numbers = #tpu.dot_dimension_numbers<[1], [0], [0], [1], [0, 0, 1, 1], [], []>} : vector<464x48xf32>, vector<48x96xf32>, vector<464x96xf32> -> vector<464x96xf32>
    %16 = arith.addf %10, %15 : vector<464x96xf32>
    %c0_15 = arith.constant 0 : index
    %c72 = arith.constant 72 : index
    %c0_16 = arith.constant 0 : index
    %17 = vector.load %arg1[%c0_15, %c72, %c0_16] : memref<1x536x48xf32, #tpu.memory_space<vmem>>, vector<1x464x48xf32>
    %18 = vector.shape_cast %17 : vector<1x464x48xf32> to vector<464x48xf32>
    %c3 = arith.constant 3 : index
    %c0_17 = arith.constant 0 : index
    %c0_18 = arith.constant 0 : index
    %19 = vector.load %arg2[%c3, %c0_17, %c0_18] : memref<4x48x96xf32, #tpu.memory_space<vmem>>, vector<1x48x96xf32>
    %20 = vector.shape_cast %19 : vector<1x48x96xf32> to vector<48x96xf32>
    %cst_19 = arith.constant dense<0.000000e+00> : vector<464x96xf32>
    %21 = tpu.matmul %18, %20, %cst_19 {dimension_numbers = #tpu.dot_dimension_numbers<[1], [0], [0], [1], [0, 0, 1, 1], [], []>} : vector<464x48xf32>, vector<48x96xf32>, vector<464x96xf32> -> vector<464x96xf32>
    %22 = arith.addf %16, %21 : vector<464x96xf32>
    %c0_20 = arith.constant 0 : index
    %c0_21 = arith.constant 0 : index
    %23 = vector.load %arg3[%c0_20, %c0_21] : memref<1x96xf32, #tpu.memory_space<vmem>>, vector<1x96xf32>
    %24 = vector.broadcast %23 : vector<1x96xf32> to vector<464x96xf32>
    %25 = arith.addf %22, %24 : vector<464x96xf32>
    %cst_22 = arith.constant 0.000000e+00 : f32
    %26 = vector.broadcast %cst_22 : f32 to vector<464x96xf32>
    %27 = arith.maximumf %25, %26 : vector<464x96xf32>
    %28 = vector.extract_strided_slice %27 {offsets = [0, 0], sizes = [464, 24], strides = [1, 1]} : vector<464x96xf32> to vector<464x24xf32>
    %29 = vector.extract_strided_slice %27 {offsets = [0, 24], sizes = [464, 24], strides = [1, 1]} : vector<464x96xf32> to vector<464x24xf32>
    %30 = arith.maximumf %28, %29 : vector<464x24xf32>
    %31 = vector.extract_strided_slice %27 {offsets = [0, 48], sizes = [464, 24], strides = [1, 1]} : vector<464x96xf32> to vector<464x24xf32>
    %32 = vector.extract_strided_slice %27 {offsets = [0, 72], sizes = [464, 24], strides = [1, 1]} : vector<464x96xf32> to vector<464x24xf32>
    %33 = arith.maximumf %31, %32 : vector<464x24xf32>
    %34 = arith.maximumf %30, %33 : vector<464x24xf32>
    %c0_23 = arith.constant 0 : index
    %c0_24 = arith.constant 0 : index
    %35 = vector.load %arg13[%c0_23, %c0_24] : memref<464x24xf32, #tpu.memory_space<vmem>>, vector<464x24xf32>
    tpu.vector_store %arg13[%c0_23, %c0_24], %34 {strides = array<i32>} : memref<464x24xf32, #tpu.memory_space<vmem>>, vector<464x24xf32>,
    %c0_25 = arith.constant 0 : index
    %c0_26 = arith.constant 0 : index
    %36 = vector.load %arg13[%c0_25, %c0_26] : memref<464x24xf32, #tpu.memory_space<vmem>>, vector<320x24xf32>
    %c0_27 = arith.constant 0 : index
    %c0_28 = arith.constant 0 : index
    %c0_29 = arith.constant 0 : index
    %37 = vector.load %arg4[%c0_27, %c0_28, %c0_29] : memref<9x24x64xf32, #tpu.memory_space<vmem>>, vector<1x24x64xf32>
    %38 = vector.shape_cast %37 : vector<1x24x64xf32> to vector<24x64xf32>
    %cst_30 = arith.constant dense<0.000000e+00> : vector<320x64xf32>
    %39 = tpu.matmul %36, %38, %cst_30 {dimension_numbers = #tpu.dot_dimension_numbers<[1], [0], [0], [1], [0, 0, 1, 1], [], []>} : vector<320x24xf32>, vector<24x64xf32>, vector<320x64xf32> -> vector<320x64xf32>
    %c8_31 = arith.constant 8 : index
    %c0_32 = arith.constant 0 : index
    %40 = vector.load %arg13[%c8_31, %c0_32] : memref<464x24xf32, #tpu.memory_space<vmem>>, vector<320x24xf32>
    %c1_33 = arith.constant 1 : index
    %c0_34 = arith.constant 0 : index
    %c0_35 = arith.constant 0 : index
    %41 = vector.load %arg4[%c1_33, %c0_34, %c0_35] : memref<9x24x64xf32, #tpu.memory_space<vmem>>, vector<1x24x64xf32>
    %42 = vector.shape_cast %41 : vector<1x24x64xf32> to vector<24x64xf32>
    %cst_36 = arith.constant dense<0.000000e+00> : vector<320x64xf32>
    %43 = tpu.matmul %40, %42, %cst_36 {dimension_numbers = #tpu.dot_dimension_numbers<[1], [0], [0], [1], [0, 0, 1, 1], [], []>} : vector<320x24xf32>, vector<24x64xf32>, vector<320x64xf32> -> vector<320x64xf32>
    %44 = arith.addf %39, %43 : vector<320x64xf32>
    %c16 = arith.constant 16 : index
    %c0_37 = arith.constant 0 : index
    %45 = vector.load %arg13[%c16, %c0_37] : memref<464x24xf32, #tpu.memory_space<vmem>>, vector<320x24xf32>
    %c2_38 = arith.constant 2 : index
    %c0_39 = arith.constant 0 : index
    %c0_40 = arith.constant 0 : index
    %46 = vector.load %arg4[%c2_38, %c0_39, %c0_40] : memref<9x24x64xf32, #tpu.memory_space<vmem>>, vector<1x24x64xf32>
    %47 = vector.shape_cast %46 : vector<1x24x64xf32> to vector<24x64xf32>
    %cst_41 = arith.constant dense<0.000000e+00> : vector<320x64xf32>
    %48 = tpu.matmul %45, %47, %cst_41 {dimension_numbers = #tpu.dot_dimension_numbers<[1], [0], [0], [1], [0, 0, 1, 1], [], []>} : vector<320x24xf32>, vector<24x64xf32>, vector<320x64xf32> -> vector<320x64xf32>
    %49 = arith.addf %44, %48 : vector<320x64xf32>
    %c64_42 = arith.constant 64 : index
    %c0_43 = arith.constant 0 : index
    %50 = vector.load %arg13[%c64_42, %c0_43] : memref<464x24xf32, #tpu.memory_space<vmem>>, vector<320x24xf32>
    %c3_44 = arith.constant 3 : index
    %c0_45 = arith.constant 0 : index
    %c0_46 = arith.constant 0 : index
    %51 = vector.load %arg4[%c3_44, %c0_45, %c0_46] : memref<9x24x64xf32, #tpu.memory_space<vmem>>, vector<1x24x64xf32>
    %52 = vector.shape_cast %51 : vector<1x24x64xf32> to vector<24x64xf32>
    %cst_47 = arith.constant dense<0.000000e+00> : vector<320x64xf32>
    %53 = tpu.matmul %50, %52, %cst_47 {dimension_numbers = #tpu.dot_dimension_numbers<[1], [0], [0], [1], [0, 0, 1, 1], [], []>} : vector<320x24xf32>, vector<24x64xf32>, vector<320x64xf32> -> vector<320x64xf32>
    %54 = arith.addf %49, %53 : vector<320x64xf32>
    %c72_48 = arith.constant 72 : index
    %c0_49 = arith.constant 0 : index
    %55 = vector.load %arg13[%c72_48, %c0_49] : memref<464x24xf32, #tpu.memory_space<vmem>>, vector<320x24xf32>
    %c4 = arith.constant 4 : index
    %c0_50 = arith.constant 0 : index
    %c0_51 = arith.constant 0 : index
    %56 = vector.load %arg4[%c4, %c0_50, %c0_51] : memref<9x24x64xf32, #tpu.memory_space<vmem>>, vector<1x24x64xf32>
    %57 = vector.shape_cast %56 : vector<1x24x64xf32> to vector<24x64xf32>
    %cst_52 = arith.constant dense<0.000000e+00> : vector<320x64xf32>
    %58 = tpu.matmul %55, %57, %cst_52 {dimension_numbers = #tpu.dot_dimension_numbers<[1], [0], [0], [1], [0, 0, 1, 1], [], []>} : vector<320x24xf32>, vector<24x64xf32>, vector<320x64xf32> -> vector<320x64xf32>
    %59 = arith.addf %54, %58 : vector<320x64xf32>
    %c80 = arith.constant 80 : index
    %c0_53 = arith.constant 0 : index
    %60 = vector.load %arg13[%c80, %c0_53] : memref<464x24xf32, #tpu.memory_space<vmem>>, vector<320x24xf32>
    %c5 = arith.constant 5 : index
    %c0_54 = arith.constant 0 : index
    %c0_55 = arith.constant 0 : index
    %61 = vector.load %arg4[%c5, %c0_54, %c0_55] : memref<9x24x64xf32, #tpu.memory_space<vmem>>, vector<1x24x64xf32>
    %62 = vector.shape_cast %61 : vector<1x24x64xf32> to vector<24x64xf32>
    %cst_56 = arith.constant dense<0.000000e+00> : vector<320x64xf32>
    %63 = tpu.matmul %60, %62, %cst_56 {dimension_numbers = #tpu.dot_dimension_numbers<[1], [0], [0], [1], [0, 0, 1, 1], [], []>} : vector<320x24xf32>, vector<24x64xf32>, vector<320x64xf32> -> vector<320x64xf32>
    %64 = arith.addf %59, %63 : vector<320x64xf32>
    %c128 = arith.constant 128 : index
    %c0_57 = arith.constant 0 : index
    %65 = vector.load %arg13[%c128, %c0_57] : memref<464x24xf32, #tpu.memory_space<vmem>>, vector<320x24xf32>
    %c6 = arith.constant 6 : index
    %c0_58 = arith.constant 0 : index
    %c0_59 = arith.constant 0 : index
    %66 = vector.load %arg4[%c6, %c0_58, %c0_59] : memref<9x24x64xf32, #tpu.memory_space<vmem>>, vector<1x24x64xf32>
    %67 = vector.shape_cast %66 : vector<1x24x64xf32> to vector<24x64xf32>
    %cst_60 = arith.constant dense<0.000000e+00> : vector<320x64xf32>
    %68 = tpu.matmul %65, %67, %cst_60 {dimension_numbers = #tpu.dot_dimension_numbers<[1], [0], [0], [1], [0, 0, 1, 1], [], []>} : vector<320x24xf32>, vector<24x64xf32>, vector<320x64xf32> -> vector<320x64xf32>
    %69 = arith.addf %64, %68 : vector<320x64xf32>
    %c136 = arith.constant 136 : index
    %c0_61 = arith.constant 0 : index
    %70 = vector.load %arg13[%c136, %c0_61] : memref<464x24xf32, #tpu.memory_space<vmem>>, vector<320x24xf32>
    %c7 = arith.constant 7 : index
    %c0_62 = arith.constant 0 : index
    %c0_63 = arith.constant 0 : index
    %71 = vector.load %arg4[%c7, %c0_62, %c0_63] : memref<9x24x64xf32, #tpu.memory_space<vmem>>, vector<1x24x64xf32>
    %72 = vector.shape_cast %71 : vector<1x24x64xf32> to vector<24x64xf32>
    %cst_64 = arith.constant dense<0.000000e+00> : vector<320x64xf32>
    %73 = tpu.matmul %70, %72, %cst_64 {dimension_numbers = #tpu.dot_dimension_numbers<[1], [0], [0], [1], [0, 0, 1, 1], [], []>} : vector<320x24xf32>, vector<24x64xf32>, vector<320x64xf32> -> vector<320x64xf32>
    %74 = arith.addf %69, %73 : vector<320x64xf32>
    %c144 = arith.constant 144 : index
    %c0_65 = arith.constant 0 : index
    %75 = vector.load %arg13[%c144, %c0_65] : memref<464x24xf32, #tpu.memory_space<vmem>>, vector<320x24xf32>
    %c8_66 = arith.constant 8 : index
    %c0_67 = arith.constant 0 : index
    %c0_68 = arith.constant 0 : index
    %76 = vector.load %arg4[%c8_66, %c0_67, %c0_68] : memref<9x24x64xf32, #tpu.memory_space<vmem>>, vector<1x24x64xf32>
    %77 = vector.shape_cast %76 : vector<1x24x64xf32> to vector<24x64xf32>
    %cst_69 = arith.constant dense<0.000000e+00> : vector<320x64xf32>
    %78 = tpu.matmul %75, %77, %cst_69 {dimension_numbers = #tpu.dot_dimension_numbers<[1], [0], [0], [1], [0, 0, 1, 1], [], []>} : vector<320x24xf32>, vector<24x64xf32>, vector<320x64xf32> -> vector<320x64xf32>
    %79 = arith.addf %74, %78 : vector<320x64xf32>
    %c0_70 = arith.constant 0 : index
    %c0_71 = arith.constant 0 : index
    %80 = vector.load %arg5[%c0_70, %c0_71] : memref<1x64xf32, #tpu.memory_space<vmem>>, vector<1x64xf32>
    %81 = vector.broadcast %80 : vector<1x64xf32> to vector<320x64xf32>
    %82 = arith.addf %79, %81 : vector<320x64xf32>
    %cst_72 = arith.constant 0.000000e+00 : f32
    %83 = vector.broadcast %cst_72 : f32 to vector<320x64xf32>
    %84 = arith.maximumf %82, %83 : vector<320x64xf32>
    %85 = vector.extract_strided_slice %84 {offsets = [0, 0], sizes = [320, 16], strides = [1, 1]} : vector<320x64xf32> to vector<320x16xf32>
    %86 = vector.extract_strided_slice %84 {offsets = [0, 16], sizes = [320, 16], strides = [1, 1]} : vector<320x64xf32> to vector<320x16xf32>
    %87 = arith.maximumf %85, %86 : vector<320x16xf32>
    %88 = vector.extract_strided_slice %84 {offsets = [0, 32], sizes = [320, 16], strides = [1, 1]} : vector<320x64xf32> to vector<320x16xf32>
    %89 = vector.extract_strided_slice %84 {offsets = [0, 48], sizes = [320, 16], strides = [1, 1]} : vector<320x64xf32> to vector<320x16xf32>
    %90 = arith.maximumf %88, %89 : vector<320x16xf32>
    %91 = arith.maximumf %87, %90 : vector<320x16xf32>
    %c0_73 = arith.constant 0 : index
    %c0_74 = arith.constant 0 : index
    %92 = vector.load %arg14[%c0_73, %c0_74] : memref<320x16xf32, #tpu.memory_space<vmem>>, vector<320x16xf32>
    tpu.vector_store %arg14[%c0_73, %c0_74], %91 {strides = array<i32>} : memref<320x16xf32, #tpu.memory_space<vmem>>, vector<320x16xf32>,
    %c0_75 = arith.constant 0 : index
    %c0_76 = arith.constant 0 : index
    %93 = vector.load %arg14[%c0_75, %c0_76] : memref<320x16xf32, #tpu.memory_space<vmem>>, vector<8x16xf32>
    %c0_77 = arith.constant 0 : index
    %c0_78 = arith.constant 0 : index
    %c0_79 = arith.constant 0 : index
    %94 = vector.load %arg6[%c0_77, %c0_78, %c0_79] : memref<25x16x128xf32, #tpu.memory_space<vmem>>, vector<1x16x128xf32>
    %95 = vector.shape_cast %94 : vector<1x16x128xf32> to vector<16x128xf32>
    %cst_80 = arith.constant dense<0.000000e+00> : vector<8x128xf32>
    %96 = tpu.matmul %93, %95, %cst_80 {dimension_numbers = #tpu.dot_dimension_numbers<[1], [0], [0], [1], [0, 0, 1, 1], [], []>} : vector<8x16xf32>, vector<16x128xf32>, vector<8x128xf32> -> vector<8x128xf32>
    %c8_81 = arith.constant 8 : index
    %c0_82 = arith.constant 0 : index
    %97 = vector.load %arg14[%c8_81, %c0_82] : memref<320x16xf32, #tpu.memory_space<vmem>>, vector<8x16xf32>
    %c1_83 = arith.constant 1 : index
    %c0_84 = arith.constant 0 : index
    %c0_85 = arith.constant 0 : index
    %98 = vector.load %arg6[%c1_83, %c0_84, %c0_85] : memref<25x16x128xf32, #tpu.memory_space<vmem>>, vector<1x16x128xf32>
    %99 = vector.shape_cast %98 : vector<1x16x128xf32> to vector<16x128xf32>
    %cst_86 = arith.constant dense<0.000000e+00> : vector<8x128xf32>
    %100 = tpu.matmul %97, %99, %cst_86 {dimension_numbers = #tpu.dot_dimension_numbers<[1], [0], [0], [1], [0, 0, 1, 1], [], []>} : vector<8x16xf32>, vector<16x128xf32>, vector<8x128xf32> -> vector<8x128xf32>
    %101 = arith.addf %96, %100 : vector<8x128xf32>
    %c16_87 = arith.constant 16 : index
    %c0_88 = arith.constant 0 : index
    %102 = vector.load %arg14[%c16_87, %c0_88] : memref<320x16xf32, #tpu.memory_space<vmem>>, vector<8x16xf32>
    %c2_89 = arith.constant 2 : index
    %c0_90 = arith.constant 0 : index
    %c0_91 = arith.constant 0 : index
    %103 = vector.load %arg6[%c2_89, %c0_90, %c0_91] : memref<25x16x128xf32, #tpu.memory_space<vmem>>, vector<1x16x128xf32>
    %104 = vector.shape_cast %103 : vector<1x16x128xf32> to vector<16x128xf32>
    %cst_92 = arith.constant dense<0.000000e+00> : vector<8x128xf32>
    %105 = tpu.matmul %102, %104, %cst_92 {dimension_numbers = #tpu.dot_dimension_numbers<[1], [0], [0], [1], [0, 0, 1, 1], [], []>} : vector<8x16xf32>, vector<16x128xf32>, vector<8x128xf32> -> vector<8x128xf32>
    %106 = arith.addf %101, %105 : vector<8x128xf32>
    %c24 = arith.constant 24 : index
    %c0_93 = arith.constant 0 : index
    %107 = vector.load %arg14[%c24, %c0_93] : memref<320x16xf32, #tpu.memory_space<vmem>>, vector<8x16xf32>
    %c3_94 = arith.constant 3 : index
    %c0_95 = arith.constant 0 : index
    %c0_96 = arith.constant 0 : index
    %108 = vector.load %arg6[%c3_94, %c0_95, %c0_96] : memref<25x16x128xf32, #tpu.memory_space<vmem>>, vector<1x16x128xf32>
    %109 = vector.shape_cast %108 : vector<1x16x128xf32> to vector<16x128xf32>
    %cst_97 = arith.constant dense<0.000000e+00> : vector<8x128xf32>
    %110 = tpu.matmul %107, %109, %cst_97 {dimension_numbers = #tpu.dot_dimension_numbers<[1], [0], [0], [1], [0, 0, 1, 1], [], []>} : vector<8x16xf32>, vector<16x128xf32>, vector<8x128xf32> -> vector<8x128xf32>
    %111 = arith.addf %106, %110 : vector<8x128xf32>
    %c32 = arith.constant 32 : index
    %c0_98 = arith.constant 0 : index
    %112 = vector.load %arg14[%c32, %c0_98] : memref<320x16xf32, #tpu.memory_space<vmem>>, vector<8x16xf32>
    %c4_99 = arith.constant 4 : index
    %c0_100 = arith.constant 0 : index
    %c0_101 = arith.constant 0 : index
    %113 = vector.load %arg6[%c4_99, %c0_100, %c0_101] : memref<25x16x128xf32, #tpu.memory_space<vmem>>, vector<1x16x128xf32>
    %114 = vector.shape_cast %113 : vector<1x16x128xf32> to vector<16x128xf32>
    %cst_102 = arith.constant dense<0.000000e+00> : vector<8x128xf32>
    %115 = tpu.matmul %112, %114, %cst_102 {dimension_numbers = #tpu.dot_dimension_numbers<[1], [0], [0], [1], [0, 0, 1, 1], [], []>} : vector<8x16xf32>, vector<16x128xf32>, vector<8x128xf32> -> vector<8x128xf32>
    %116 = arith.addf %111, %115 : vector<8x128xf32>
    %c64_103 = arith.constant 64 : index
    %c0_104 = arith.constant 0 : index
    %117 = vector.load %arg14[%c64_103, %c0_104] : memref<320x16xf32, #tpu.memory_space<vmem>>, vector<8x16xf32>
    %c5_105 = arith.constant 5 : index
    %c0_106 = arith.constant 0 : index
    %c0_107 = arith.constant 0 : index
    %118 = vector.load %arg6[%c5_105, %c0_106, %c0_107] : memref<25x16x128xf32, #tpu.memory_space<vmem>>, vector<1x16x128xf32>
    %119 = vector.shape_cast %118 : vector<1x16x128xf32> to vector<16x128xf32>
    %cst_108 = arith.constant dense<0.000000e+00> : vector<8x128xf32>
    %120 = tpu.matmul %117, %119, %cst_108 {dimension_numbers = #tpu.dot_dimension_numbers<[1], [0], [0], [1], [0, 0, 1, 1], [], []>} : vector<8x16xf32>, vector<16x128xf32>, vector<8x128xf32> -> vector<8x128xf32>
    %121 = arith.addf %116, %120 : vector<8x128xf32>
    %c72_109 = arith.constant 72 : index
    %c0_110 = arith.constant 0 : index
    %122 = vector.load %arg14[%c72_109, %c0_110] : memref<320x16xf32, #tpu.memory_space<vmem>>, vector<8x16xf32>
    %c6_111 = arith.constant 6 : index
    %c0_112 = arith.constant 0 : index
    %c0_113 = arith.constant 0 : index
    %123 = vector.load %arg6[%c6_111, %c0_112, %c0_113] : memref<25x16x128xf32, #tpu.memory_space<vmem>>, vector<1x16x128xf32>
    %124 = vector.shape_cast %123 : vector<1x16x128xf32> to vector<16x128xf32>
    %cst_114 = arith.constant dense<0.000000e+00> : vector<8x128xf32>
    %125 = tpu.matmul %122, %124, %cst_114 {dimension_numbers = #tpu.dot_dimension_numbers<[1], [0], [0], [1], [0, 0, 1, 1], [], []>} : vector<8x16xf32>, vector<16x128xf32>, vector<8x128xf32> -> vector<8x128xf32>
    %126 = arith.addf %121, %125 : vector<8x128xf32>
    %c80_115 = arith.constant 80 : index
    %c0_116 = arith.constant 0 : index
    %127 = vector.load %arg14[%c80_115, %c0_116] : memref<320x16xf32, #tpu.memory_space<vmem>>, vector<8x16xf32>
    %c7_117 = arith.constant 7 : index
    %c0_118 = arith.constant 0 : index
    %c0_119 = arith.constant 0 : index
    %128 = vector.load %arg6[%c7_117, %c0_118, %c0_119] : memref<25x16x128xf32, #tpu.memory_space<vmem>>, vector<1x16x128xf32>
    %129 = vector.shape_cast %128 : vector<1x16x128xf32> to vector<16x128xf32>
    %cst_120 = arith.constant dense<0.000000e+00> : vector<8x128xf32>
    %130 = tpu.matmul %127, %129, %cst_120 {dimension_numbers = #tpu.dot_dimension_numbers<[1], [0], [0], [1], [0, 0, 1, 1], [], []>} : vector<8x16xf32>, vector<16x128xf32>, vector<8x128xf32> -> vector<8x128xf32>
    %131 = arith.addf %126, %130 : vector<8x128xf32>
    %c88 = arith.constant 88 : index
    %c0_121 = arith.constant 0 : index
    %132 = vector.load %arg14[%c88, %c0_121] : memref<320x16xf32, #tpu.memory_space<vmem>>, vector<8x16xf32>
    %c8_122 = arith.constant 8 : index
    %c0_123 = arith.constant 0 : index
    %c0_124 = arith.constant 0 : index
    %133 = vector.load %arg6[%c8_122, %c0_123, %c0_124] : memref<25x16x128xf32, #tpu.memory_space<vmem>>, vector<1x16x128xf32>
    %134 = vector.shape_cast %133 : vector<1x16x128xf32> to vector<16x128xf32>
    %cst_125 = arith.constant dense<0.000000e+00> : vector<8x128xf32>
    %135 = tpu.matmul %132, %134, %cst_125 {dimension_numbers = #tpu.dot_dimension_numbers<[1], [0], [0], [1], [0, 0, 1, 1], [], []>} : vector<8x16xf32>, vector<16x128xf32>, vector<8x128xf32> -> vector<8x128xf32>
    %136 = arith.addf %131, %135 : vector<8x128xf32>
    %c96 = arith.constant 96 : index
    %c0_126 = arith.constant 0 : index
    %137 = vector.load %arg14[%c96, %c0_126] : memref<320x16xf32, #tpu.memory_space<vmem>>, vector<8x16xf32>
    %c9 = arith.constant 9 : index
    %c0_127 = arith.constant 0 : index
    %c0_128 = arith.constant 0 : index
    %138 = vector.load %arg6[%c9, %c0_127, %c0_128] : memref<25x16x128xf32, #tpu.memory_space<vmem>>, vector<1x16x128xf32>
    %139 = vector.shape_cast %138 : vector<1x16x128xf32> to vector<16x128xf32>
    %cst_129 = arith.constant dense<0.000000e+00> : vector<8x128xf32>
    %140 = tpu.matmul %137, %139, %cst_129 {dimension_numbers = #tpu.dot_dimension_numbers<[1], [0], [0], [1], [0, 0, 1, 1], [], []>} : vector<8x16xf32>, vector<16x128xf32>, vector<8x128xf32> -> vector<8x128xf32>
    %141 = arith.addf %136, %140 : vector<8x128xf32>
    %c128_130 = arith.constant 128 : index
    %c0_131 = arith.constant 0 : index
    %142 = vector.load %arg14[%c128_130, %c0_131] : memref<320x16xf32, #tpu.memory_space<vmem>>, vector<8x16xf32>
    %c10 = arith.constant 10 : index
    %c0_132 = arith.constant 0 : index
    %c0_133 = arith.constant 0 : index
    %143 = vector.load %arg6[%c10, %c0_132, %c0_133] : memref<25x16x128xf32, #tpu.memory_space<vmem>>, vector<1x16x128xf32>
    %144 = vector.shape_cast %143 : vector<1x16x128xf32> to vector<16x128xf32>
    %cst_134 = arith.constant dense<0.000000e+00> : vector<8x128xf32>
    %145 = tpu.matmul %142, %144, %cst_134 {dimension_numbers = #tpu.dot_dimension_numbers<[1], [0], [0], [1], [0, 0, 1, 1], [], []>} : vector<8x16xf32>, vector<16x128xf32>, vector<8x128xf32> -> vector<8x128xf32>
    %146 = arith.addf %141, %145 : vector<8x128xf32>
    %c136_135 = arith.constant 136 : index
    %c0_136 = arith.constant 0 : index
    %147 = vector.load %arg14[%c136_135, %c0_136] : memref<320x16xf32, #tpu.memory_space<vmem>>, vector<8x16xf32>
    %c11 = arith.constant 11 : index
    %c0_137 = arith.constant 0 : index
    %c0_138 = arith.constant 0 : index
    %148 = vector.load %arg6[%c11, %c0_137, %c0_138] : memref<25x16x128xf32, #tpu.memory_space<vmem>>, vector<1x16x128xf32>
    %149 = vector.shape_cast %148 : vector<1x16x128xf32> to vector<16x128xf32>
    %cst_139 = arith.constant dense<0.000000e+00> : vector<8x128xf32>
    %150 = tpu.matmul %147, %149, %cst_139 {dimension_numbers = #tpu.dot_dimension_numbers<[1], [0], [0], [1], [0, 0, 1, 1], [], []>} : vector<8x16xf32>, vector<16x128xf32>, vector<8x128xf32> -> vector<8x128xf32>
    %151 = arith.addf %146, %150 : vector<8x128xf32>
    %c144_140 = arith.constant 144 : index
    %c0_141 = arith.constant 0 : index
    %152 = vector.load %arg14[%c144_140, %c0_141] : memref<320x16xf32, #tpu.memory_space<vmem>>, vector<8x16xf32>
    %c12 = arith.constant 12 : index
    %c0_142 = arith.constant 0 : index
    %c0_143 = arith.constant 0 : index
    %153 = vector.load %arg6[%c12, %c0_142, %c0_143] : memref<25x16x128xf32, #tpu.memory_space<vmem>>, vector<1x16x128xf32>
    %154 = vector.shape_cast %153 : vector<1x16x128xf32> to vector<16x128xf32>
    %cst_144 = arith.constant dense<0.000000e+00> : vector<8x128xf32>
    %155 = tpu.matmul %152, %154, %cst_144 {dimension_numbers = #tpu.dot_dimension_numbers<[1], [0], [0], [1], [0, 0, 1, 1], [], []>} : vector<8x16xf32>, vector<16x128xf32>, vector<8x128xf32> -> vector<8x128xf32>
    %156 = arith.addf %151, %155 : vector<8x128xf32>
    %c152 = arith.constant 152 : index
    %c0_145 = arith.constant 0 : index
    %157 = vector.load %arg14[%c152, %c0_145] : memref<320x16xf32, #tpu.memory_space<vmem>>, vector<8x16xf32>
    %c13 = arith.constant 13 : index
    %c0_146 = arith.constant 0 : index
    %c0_147 = arith.constant 0 : index
    %158 = vector.load %arg6[%c13, %c0_146, %c0_147] : memref<25x16x128xf32, #tpu.memory_space<vmem>>, vector<1x16x128xf32>
    %159 = vector.shape_cast %158 : vector<1x16x128xf32> to vector<16x128xf32>
    %cst_148 = arith.constant dense<0.000000e+00> : vector<8x128xf32>
    %160 = tpu.matmul %157, %159, %cst_148 {dimension_numbers = #tpu.dot_dimension_numbers<[1], [0], [0], [1], [0, 0, 1, 1], [], []>} : vector<8x16xf32>, vector<16x128xf32>, vector<8x128xf32> -> vector<8x128xf32>
    %161 = arith.addf %156, %160 : vector<8x128xf32>
    %c160 = arith.constant 160 : index
    %c0_149 = arith.constant 0 : index
    %162 = vector.load %arg14[%c160, %c0_149] : memref<320x16xf32, #tpu.memory_space<vmem>>, vector<8x16xf32>
    %c14 = arith.constant 14 : index
    %c0_150 = arith.constant 0 : index
    %c0_151 = arith.constant 0 : index
    %163 = vector.load %arg6[%c14, %c0_150, %c0_151] : memref<25x16x128xf32, #tpu.memory_space<vmem>>, vector<1x16x128xf32>
    %164 = vector.shape_cast %163 : vector<1x16x128xf32> to vector<16x128xf32>
    %cst_152 = arith.constant dense<0.000000e+00> : vector<8x128xf32>
    %165 = tpu.matmul %162, %164, %cst_152 {dimension_numbers = #tpu.dot_dimension_numbers<[1], [0], [0], [1], [0, 0, 1, 1], [], []>} : vector<8x16xf32>, vector<16x128xf32>, vector<8x128xf32> -> vector<8x128xf32>
    %166 = arith.addf %161, %165 : vector<8x128xf32>
    %c192 = arith.constant 192 : index
    %c0_153 = arith.constant 0 : index
    %167 = vector.load %arg14[%c192, %c0_153] : memref<320x16xf32, #tpu.memory_space<vmem>>, vector<8x16xf32>
    %c15 = arith.constant 15 : index
    %c0_154 = arith.constant 0 : index
    %c0_155 = arith.constant 0 : index
    %168 = vector.load %arg6[%c15, %c0_154, %c0_155] : memref<25x16x128xf32, #tpu.memory_space<vmem>>, vector<1x16x128xf32>
    %169 = vector.shape_cast %168 : vector<1x16x128xf32> to vector<16x128xf32>
    %cst_156 = arith.constant dense<0.000000e+00> : vector<8x128xf32>
    %170 = tpu.matmul %167, %169, %cst_156 {dimension_numbers = #tpu.dot_dimension_numbers<[1], [0], [0], [1], [0, 0, 1, 1], [], []>} : vector<8x16xf32>, vector<16x128xf32>, vector<8x128xf32> -> vector<8x128xf32>
    %171 = arith.addf %166, %170 : vector<8x128xf32>
    %c200 = arith.constant 200 : index
    %c0_157 = arith.constant 0 : index
    %172 = vector.load %arg14[%c200, %c0_157] : memref<320x16xf32, #tpu.memory_space<vmem>>, vector<8x16xf32>
    %c16_158 = arith.constant 16 : index
    %c0_159 = arith.constant 0 : index
    %c0_160 = arith.constant 0 : index
    %173 = vector.load %arg6[%c16_158, %c0_159, %c0_160] : memref<25x16x128xf32, #tpu.memory_space<vmem>>, vector<1x16x128xf32>
    %174 = vector.shape_cast %173 : vector<1x16x128xf32> to vector<16x128xf32>
    %cst_161 = arith.constant dense<0.000000e+00> : vector<8x128xf32>
    %175 = tpu.matmul %172, %174, %cst_161 {dimension_numbers = #tpu.dot_dimension_numbers<[1], [0], [0], [1], [0, 0, 1, 1], [], []>} : vector<8x16xf32>, vector<16x128xf32>, vector<8x128xf32> -> vector<8x128xf32>
    %176 = arith.addf %171, %175 : vector<8x128xf32>
    %c208 = arith.constant 208 : index
    %c0_162 = arith.constant 0 : index
    %177 = vector.load %arg14[%c208, %c0_162] : memref<320x16xf32, #tpu.memory_space<vmem>>, vector<8x16xf32>
    %c17 = arith.constant 17 : index
    %c0_163 = arith.constant 0 : index
    %c0_164 = arith.constant 0 : index
    %178 = vector.load %arg6[%c17, %c0_163, %c0_164] : memref<25x16x128xf32, #tpu.memory_space<vmem>>, vector<1x16x128xf32>
    %179 = vector.shape_cast %178 : vector<1x16x128xf32> to vector<16x128xf32>
    %cst_165 = arith.constant dense<0.000000e+00> : vector<8x128xf32>
    %180 = tpu.matmul %177, %179, %cst_165 {dimension_numbers = #tpu.dot_dimension_numbers<[1], [0], [0], [1], [0, 0, 1, 1], [], []>} : vector<8x16xf32>, vector<16x128xf32>, vector<8x128xf32> -> vector<8x128xf32>
    %181 = arith.addf %176, %180 : vector<8x128xf32>
    %c216 = arith.constant 216 : index
    %c0_166 = arith.constant 0 : index
    %182 = vector.load %arg14[%c216, %c0_166] : memref<320x16xf32, #tpu.memory_space<vmem>>, vector<8x16xf32>
    %c18 = arith.constant 18 : index
    %c0_167 = arith.constant 0 : index
    %c0_168 = arith.constant 0 : index
    %183 = vector.load %arg6[%c18, %c0_167, %c0_168] : memref<25x16x128xf32, #tpu.memory_space<vmem>>, vector<1x16x128xf32>
    %184 = vector.shape_cast %183 : vector<1x16x128xf32> to vector<16x128xf32>
    %cst_169 = arith.constant dense<0.000000e+00> : vector<8x128xf32>
    %185 = tpu.matmul %182, %184, %cst_169 {dimension_numbers = #tpu.dot_dimension_numbers<[1], [0], [0], [1], [0, 0, 1, 1], [], []>} : vector<8x16xf32>, vector<16x128xf32>, vector<8x128xf32> -> vector<8x128xf32>
    %186 = arith.addf %181, %185 : vector<8x128xf32>
    %c224 = arith.constant 224 : index
    %c0_170 = arith.constant 0 : index
    %187 = vector.load %arg14[%c224, %c0_170] : memref<320x16xf32, #tpu.memory_space<vmem>>, vector<8x16xf32>
    %c19 = arith.constant 19 : index
    %c0_171 = arith.constant 0 : index
    %c0_172 = arith.constant 0 : index
    %188 = vector.load %arg6[%c19, %c0_171, %c0_172] : memref<25x16x128xf32, #tpu.memory_space<vmem>>, vector<1x16x128xf32>
    %189 = vector.shape_cast %188 : vector<1x16x128xf32> to vector<16x128xf32>
    %cst_173 = arith.constant dense<0.000000e+00> : vector<8x128xf32>
    %190 = tpu.matmul %187, %189, %cst_173 {dimension_numbers = #tpu.dot_dimension_numbers<[1], [0], [0], [1], [0, 0, 1, 1], [], []>} : vector<8x16xf32>, vector<16x128xf32>, vector<8x128xf32> -> vector<8x128xf32>
    %191 = arith.addf %186, %190 : vector<8x128xf32>
    %c256 = arith.constant 256 : index
    %c0_174 = arith.constant 0 : index
    %192 = vector.load %arg14[%c256, %c0_174] : memref<320x16xf32, #tpu.memory_space<vmem>>, vector<8x16xf32>
    %c20 = arith.constant 20 : index
    %c0_175 = arith.constant 0 : index
    %c0_176 = arith.constant 0 : index
    %193 = vector.load %arg6[%c20, %c0_175, %c0_176] : memref<25x16x128xf32, #tpu.memory_space<vmem>>, vector<1x16x128xf32>
    %194 = vector.shape_cast %193 : vector<1x16x128xf32> to vector<16x128xf32>
    %cst_177 = arith.constant dense<0.000000e+00> : vector<8x128xf32>
    %195 = tpu.matmul %192, %194, %cst_177 {dimension_numbers = #tpu.dot_dimension_numbers<[1], [0], [0], [1], [0, 0, 1, 1], [], []>} : vector<8x16xf32>, vector<16x128xf32>, vector<8x128xf32> -> vector<8x128xf32>
    %196 = arith.addf %191, %195 : vector<8x128xf32>
    %c264 = arith.constant 264 : index
    %c0_178 = arith.constant 0 : index
    %197 = vector.load %arg14[%c264, %c0_178] : memref<320x16xf32, #tpu.memory_space<vmem>>, vector<8x16xf32>
    %c21 = arith.constant 21 : index
    %c0_179 = arith.constant 0 : index
    %c0_180 = arith.constant 0 : index
    %198 = vector.load %arg6[%c21, %c0_179, %c0_180] : memref<25x16x128xf32, #tpu.memory_space<vmem>>, vector<1x16x128xf32>
    %199 = vector.shape_cast %198 : vector<1x16x128xf32> to vector<16x128xf32>
    %cst_181 = arith.constant dense<0.000000e+00> : vector<8x128xf32>
    %200 = tpu.matmul %197, %199, %cst_181 {dimension_numbers = #tpu.dot_dimension_numbers<[1], [0], [0], [1], [0, 0, 1, 1], [], []>} : vector<8x16xf32>, vector<16x128xf32>, vector<8x128xf32> -> vector<8x128xf32>
    %201 = arith.addf %196, %200 : vector<8x128xf32>
    %c272 = arith.constant 272 : index
    %c0_182 = arith.constant 0 : index
    %202 = vector.load %arg14[%c272, %c0_182] : memref<320x16xf32, #tpu.memory_space<vmem>>, vector<8x16xf32>
    %c22 = arith.constant 22 : index
    %c0_183 = arith.constant 0 : index
    %c0_184 = arith.constant 0 : index
    %203 = vector.load %arg6[%c22, %c0_183, %c0_184] : memref<25x16x128xf32, #tpu.memory_space<vmem>>, vector<1x16x128xf32>
    %204 = vector.shape_cast %203 : vector<1x16x128xf32> to vector<16x128xf32>
    %cst_185 = arith.constant dense<0.000000e+00> : vector<8x128xf32>
    %205 = tpu.matmul %202, %204, %cst_185 {dimension_numbers = #tpu.dot_dimension_numbers<[1], [0], [0], [1], [0, 0, 1, 1], [], []>} : vector<8x16xf32>, vector<16x128xf32>, vector<8x128xf32> -> vector<8x128xf32>
    %206 = arith.addf %201, %205 : vector<8x128xf32>
    %c280 = arith.constant 280 : index
    %c0_186 = arith.constant 0 : index
    %207 = vector.load %arg14[%c280, %c0_186] : memref<320x16xf32, #tpu.memory_space<vmem>>, vector<8x16xf32>
    %c23 = arith.constant 23 : index
    %c0_187 = arith.constant 0 : index
    %c0_188 = arith.constant 0 : index
    %208 = vector.load %arg6[%c23, %c0_187, %c0_188] : memref<25x16x128xf32, #tpu.memory_space<vmem>>, vector<1x16x128xf32>
    %209 = vector.shape_cast %208 : vector<1x16x128xf32> to vector<16x128xf32>
    %cst_189 = arith.constant dense<0.000000e+00> : vector<8x128xf32>
    %210 = tpu.matmul %207, %209, %cst_189 {dimension_numbers = #tpu.dot_dimension_numbers<[1], [0], [0], [1], [0, 0, 1, 1], [], []>} : vector<8x16xf32>, vector<16x128xf32>, vector<8x128xf32> -> vector<8x128xf32>
    %211 = arith.addf %206, %210 : vector<8x128xf32>
    %c288 = arith.constant 288 : index
    %c0_190 = arith.constant 0 : index
    %212 = vector.load %arg14[%c288, %c0_190] : memref<320x16xf32, #tpu.memory_space<vmem>>, vector<8x16xf32>
    %c24_191 = arith.constant 24 : index
    %c0_192 = arith.constant 0 : index
    %c0_193 = arith.constant 0 : index
    %213 = vector.load %arg6[%c24_191, %c0_192, %c0_193] : memref<25x16x128xf32, #tpu.memory_space<vmem>>, vector<1x16x128xf32>
    %214 = vector.shape_cast %213 : vector<1x16x128xf32> to vector<16x128xf32>
    %cst_194 = arith.constant dense<0.000000e+00> : vector<8x128xf32>
    %215 = tpu.matmul %212, %214, %cst_194 {dimension_numbers = #tpu.dot_dimension_numbers<[1], [0], [0], [1], [0, 0, 1, 1], [], []>} : vector<8x16xf32>, vector<16x128xf32>, vector<8x128xf32> -> vector<8x128xf32>
    %216 = arith.addf %211, %215 : vector<8x128xf32>
    %c0_195 = arith.constant 0 : index
    %c0_196 = arith.constant 0 : index
    %217 = vector.load %arg7[%c0_195, %c0_196] : memref<1x128xf32, #tpu.memory_space<vmem>>, vector<1x128xf32>
    %218 = vector.broadcast %217 : vector<1x128xf32> to vector<8x128xf32>
    %219 = arith.addf %216, %218 : vector<8x128xf32>
    %cst_197 = arith.constant 0.000000e+00 : f32
    %220 = vector.broadcast %cst_197 : f32 to vector<8x128xf32>
    %221 = arith.maximumf %219, %220 : vector<8x128xf32>
    %c0_198 = arith.constant 0 : index
    %c0_199 = arith.constant 0 : index
    %222 = vector.load %arg8[%c0_198, %c0_199] : memref<128x128xf32, #tpu.memory_space<vmem>>, vector<128x128xf32>
    %cst_200 = arith.constant dense<0.000000e+00> : vector<8x128xf32>
    %223 = tpu.matmul %221, %222, %cst_200 {dimension_numbers = #tpu.dot_dimension_numbers<[1], [0], [0], [1], [0, 0, 1, 1], [], []>} : vector<8x128xf32>, vector<128x128xf32>, vector<8x128xf32> -> vector<8x128xf32>
    %c0_201 = arith.constant 0 : index
    %c0_202 = arith.constant 0 : index
    %224 = vector.load %arg9[%c0_201, %c0_202] : memref<1x128xf32, #tpu.memory_space<vmem>>, vector<1x128xf32>
    %225 = vector.broadcast %224 : vector<1x128xf32> to vector<8x128xf32>
    %226 = arith.addf %223, %225 : vector<8x128xf32>
    %cst_203 = arith.constant 0.000000e+00 : f32
    %227 = vector.broadcast %cst_203 : f32 to vector<8x128xf32>
    %228 = arith.maximumf %226, %227 : vector<8x128xf32>
    %c0_204 = arith.constant 0 : index
    %c0_205 = arith.constant 0 : index
    %229 = vector.load %arg10[%c0_204, %c0_205] : memref<128x10xf32, #tpu.memory_space<vmem>>, vector<128x10xf32>
    %cst_206 = arith.constant dense<0.000000e+00> : vector<8x10xf32>
    %230 = tpu.matmul %228, %229, %cst_206 {dimension_numbers = #tpu.dot_dimension_numbers<[1], [0], [0], [1], [0, 0, 1, 1], [], []>} : vector<8x128xf32>, vector<128x10xf32>, vector<8x10xf32> -> vector<8x10xf32>
    %c0_207 = arith.constant 0 : index
    %c0_208 = arith.constant 0 : index
    %231 = vector.load %arg11[%c0_207, %c0_208] : memref<1x10xf32, #tpu.memory_space<vmem>>, vector<1x10xf32>
    %232 = vector.broadcast %231 : vector<1x10xf32> to vector<8x10xf32>
    %233 = arith.addf %230, %232 : vector<8x10xf32>
    %c0_209 = arith.constant 0 : index
    %c0_210 = arith.constant 0 : index
    %234 = vector.load %arg12[%c0_209, %c0_210] : memref<8x10xf32, #tpu.memory_space<vmem>>, vector<8x10xf32>
    tpu.vector_store %arg12[%c0_209, %c0_210], %233 {strides = array<i32>} : memref<8x10xf32, #tpu.memory_space<vmem>>, vector<8x10xf32>,
    return
  }
  func.func @transform_0(%arg0: i32) -> (i32, i32, i32) {
    %c0_i32 = arith.constant 0 : i32
    %c0_i32_0 = arith.constant 0 : i32
    %c0_i32_1 = arith.constant 0 : i32
    return %arg0, %c0_i32, %c0_i32_0 : i32, i32, i32
  }
  func.func @transform_1(%arg0: i32) -> (i32, i32, i32) {
    %c0_i32 = arith.constant 0 : i32
    %c0_i32_0 = arith.constant 0 : i32
    %c0_i32_1 = arith.constant 0 : i32
    %c0_i32_2 = arith.constant 0 : i32
    return %c0_i32, %c0_i32_0, %c0_i32_1 : i32, i32, i32
  }
  func.func @transform_2(%arg0: i32) -> (i32, i32) {
    %c0_i32 = arith.constant 0 : i32
    %c0_i32_0 = arith.constant 0 : i32
    %c0_i32_1 = arith.constant 0 : i32
    return %c0_i32, %c0_i32_0 : i32, i32
  }
  func.func @transform_3(%arg0: i32) -> (i32, i32, i32) {
    %c0_i32 = arith.constant 0 : i32
    %c0_i32_0 = arith.constant 0 : i32
    %c0_i32_1 = arith.constant 0 : i32
    %c0_i32_2 = arith.constant 0 : i32
    return %c0_i32, %c0_i32_0, %c0_i32_1 : i32, i32, i32
  }
  func.func @transform_4(%arg0: i32) -> (i32, i32) {
    %c0_i32 = arith.constant 0 : i32
    %c0_i32_0 = arith.constant 0 : i32
    %c0_i32_1 = arith.constant 0 : i32
    return %c0_i32, %c0_i32_0 : i32, i32
  }
  func.func @transform_5(%arg0: i32) -> (i32, i32, i32) {
    %c0_i32 = arith.constant 0 : i32
    %c0_i32_0 = arith.constant 0 : i32
    %c0_i32_1 = arith.constant 0 : i32
    %c0_i32_2 = arith.constant 0 : i32
    return %c0_i32, %c0_i32_0, %c0_i32_1 : i32, i32, i32
  }
  func.func @transform_6(%arg0: i32) -> (i32, i32) {
    %c0_i32 = arith.constant 0 : i32
    %c0_i32_0 = arith.constant 0 : i32
    %c0_i32_1 = arith.constant 0 : i32
    return %c0_i32, %c0_i32_0 : i32, i32
  }
  func.func @transform_7(%arg0: i32) -> (i32, i32) {
    %c0_i32 = arith.constant 0 : i32
    %c0_i32_0 = arith.constant 0 : i32
    %c0_i32_1 = arith.constant 0 : i32
    return %c0_i32, %c0_i32_0 : i32, i32
  }
  func.func @transform_8(%arg0: i32) -> (i32, i32) {
    %c0_i32 = arith.constant 0 : i32
    %c0_i32_0 = arith.constant 0 : i32
    %c0_i32_1 = arith.constant 0 : i32
    return %c0_i32, %c0_i32_0 : i32, i32
  }
  func.func @transform_9(%arg0: i32) -> (i32, i32) {
    %c0_i32 = arith.constant 0 : i32
    %c0_i32_0 = arith.constant 0 : i32
    %c0_i32_1 = arith.constant 0 : i32
    return %c0_i32, %c0_i32_0 : i32, i32
  }
  func.func @transform_10(%arg0: i32) -> (i32, i32) {
    %c0_i32 = arith.constant 0 : i32
    %c0_i32_0 = arith.constant 0 : i32
    %c0_i32_1 = arith.constant 0 : i32
    return %c0_i32, %c0_i32_0 : i32, i32
  }
  func.func @transform_11(%arg0: i32) -> (i32, i32) {
    %c0_i32 = arith.constant 0 : i32
    %c0_i32_0 = arith.constant 0 : i32
    return %arg0, %c0_i32 : i32, i32
  }
}

</mosaic_0001>

<llo_original>
// kernel: lenet_forward.1
$region0: #{lenet_forward.1}
  #allocation0 [shape = 'u32[]', space=smem, size = 0x4, offset = 0x4, fixed_abs, tag = 'smem constant byte address 0x4 - core index']
  #allocation1 [shape = 'u32[144,128]{1,0:T(1,128)}', space=vmem, size = 0x12000, scoped, tag = 'internal scratch']
  #allocation2 [shape = 'f32[464,24]{1,0:T(8,128)}', space=vmem, size = 0x3a000, scoped, tag = 'scratch operand']
  #allocation3 [shape = 'f32[320,16]{1,0:T(8,128)}', space=vmem, size = 0x28000, scoped, tag = 'scratch operand']
  %s0 = inlined_call_operand.vmem [shape: f32[2,536,48], index: 0, kind: input, shape index: {}]
  %s1 = inlined_call_operand.vmem [shape: f32[4,48,96], index: 1, kind: input, shape index: {}]
  %s2 = inlined_call_operand.vmem [shape: f32[1,96], index: 2, kind: input, shape index: {}]
  %s3 = inlined_call_operand.vmem [shape: f32[9,24,64], index: 3, kind: input, shape index: {}]
  %s4 = inlined_call_operand.vmem [shape: f32[1,64], index: 4, kind: input, shape index: {}]
  %s5 = inlined_call_operand.vmem [shape: f32[25,16,128], index: 5, kind: input, shape index: {}]
  %s6 = inlined_call_operand.vmem [shape: f32[1,128], index: 6, kind: input, shape index: {}]
  %s7 = inlined_call_operand.vmem [shape: f32[128,128], index: 7, kind: input, shape index: {}]
  %s8 = inlined_call_operand.vmem [shape: f32[1,128], index: 8, kind: input, shape index: {}]
  %s9 = inlined_call_operand.vmem [shape: f32[128,10], index: 9, kind: input, shape index: {}]
  %s10 = inlined_call_operand.vmem [shape: f32[1,10], index: 10, kind: input, shape index: {}]
  %s11 = inlined_call_operand.hbm [shape: f32[16,10], index: 11, kind: output, shape index: {}]
  %s12 = sld [smem:[#allocation0]]
  $region77: #{lenet_forward.1} parent=0
    _
  %s14 = ssub.s32 1, %s12
  %s15 = scalar_select 0, %s14, %s12
  $region1: #{lenet_forward.1} parent=0
    #allocation4 [shape = 'u8[8192]{0}', space=vmem, size = 0x2000, scoped, tag = 'output window, operand 0']
    #allocation5 [shape = 's32[2]{0}', space=sflag, size = 0x8, scoped, tag = 'scoped memory for lenet_forward.1']
    %16 = vsyncpa [#allocation5], 0
    %s17 = scalar_lea.sflag [#allocation5], 1
    %18 = vsyncpa %s17, 0
    loop: start=0, step=1, limit=4
    $region2: #{lenet_forward.1} parent=1 // loop_pre_header
      _
    $region3: #{lenet_forward.1} parent=1 // loop_header
      %s20 = sphi 0, %s24
      %p21 = scmp.ge.s32.totalorder %s20, 4
      %s30 = sphi 0, %s32
      %s33 = sphi 0, %s30
      %s34 = sphi 0, %s33
      %s50 = sphi 0, %s34
      %s54 = sphi 0, %s54
      %s56 = sphi 0, %s54
      %s57 = sphi 0, %s56
      %s71 = sphi 0, %s57
      %s75 = sphi 0, %s75
      %s77 = sphi 0, %s75
      %s78 = sphi 0, %s77
      %s92 = sphi 0, %s78
      %s96 = sphi 0, %s96
      %s98 = sphi 0, %s96
      %s99 = sphi 0, %s98
      %s113 = sphi 0, %s99
      %s117 = sphi 0, %s117
      %s119 = sphi 0, %s117
      %s120 = sphi 0, %s119
      %s134 = sphi 0, %s120
      %s138 = sphi 0, %s138
      %s140 = sphi 0, %s138
      %s141 = sphi 0, %s140
      %s155 = sphi 0, %s141
      %s159 = sphi 0, %s159
      %s161 = sphi 0, %s159
      %s162 = sphi 0, %s161
      %s176 = sphi 0, %s162
      %s180 = sphi 0, %s180
      %s182 = sphi 0, %s180
      %s183 = sphi 0, %s182
      %s197 = sphi 0, %s183
      %s201 = sphi 0, %s201
      %s203 = sphi 0, %s201
      %s204 = sphi 0, %s203
      %s218 = sphi 0, %s204
      %s222 = sphi 0, %s222
      %s224 = sphi 0, %s222
      %s225 = sphi 0, %s224
      %s239 = sphi 0, %s225
      %s243 = sphi 0, %s243
      %s245 = sphi 0, %s243
      %s246 = sphi 0, %s245
      %s260 = sphi 0, %s246
      %s266 = sphi 0, %s268
      %s269 = sphi 0, %s266
      %s270 = sphi 0, %s269
      %s286 = sphi 0, %s270
    $region4: #{lenet_forward.1} parent=1 // loop_header_branch
      %23 = sbr.rel (%p21) target = $region8
    $region5: #{lenet_forward.1} parent=1 // loop_body
      %s25 = ssub.s32 %s20, 1
      %s26 = ssub.s32 %s20, 2
      %s27 = sadd.s32 %s20, 1
      %s28 = ssub.s32 %s20, %s27
      %p29 = scmp.eq.s32.totalorder %s28, 0
      %s31 = sadd.s32 %s30, 1
      %s32 = scalar_select %p29, %s30, %s31
      %p35 = pneg %p29
      %p36 = scmp.eq.s32.totalorder %s20, 1
      %p37 = por %p35, %p36
      %p38 = scmp.ne.s32.totalorder %s30, %s33
      %p39 = scmp.eq.s32.totalorder %s20, 0
      %p40 = por %p38, %p39
      %p41 = scmp.ne.s32.totalorder %s30, %s33
      %p42 = scmp.eq.s32.totalorder %s25, 1
      %p43 = por %p41, %p42
      %p44 = scmp.ne.s32.totalorder %s33, %s34
      %p45 = scmp.eq.s32.totalorder %s25, 0
      %p46 = por %p44, %p45
      %p47 = scmp.ne.s32.totalorder %s33, %s34
      %p48 = scmp.eq.s32.totalorder %s26, 1
      %p49 = por %p47, %p48
      %p51 = scmp.ne.s32.totalorder %s34, %s50
      %p52 = scmp.eq.s32.totalorder %s26, 0
      %p53 = por %p51, %p52
      %s55 = sadd.s32 %s54, 1
      %p58 = scmp.eq.s32.totalorder %s20, 1
      %p59 = scmp.ne.s32.totalorder %s54, %s56
      %p60 = scmp.eq.s32.totalorder %s20, 0
      %p61 = por %p59, %p60
      %p62 = scmp.ne.s32.totalorder %s54, %s56
      %p63 = scmp.eq.s32.totalorder %s25, 1
      %p64 = por %p62, %p63
      %p65 = scmp.ne.s32.totalorder %s56, %s57
      %p66 = scmp.eq.s32.totalorder %s25, 0
      %p67 = por %p65, %p66
      %p68 = scmp.ne.s32.totalorder %s56, %s57
      %p69 = scmp.eq.s32.totalorder %s26, 1
      %p70 = por %p68, %p69
      %p72 = scmp.ne.s32.totalorder %s57, %s71
      %p73 = scmp.eq.s32.totalorder %s26, 0
      %p74 = por %p72, %p73
      %s76 = sadd.s32 %s75, 1
      %p79 = scmp.eq.s32.totalorder %s20, 1
      %p80 = scmp.ne.s32.totalorder %s75, %s77
      %p81 = scmp.eq.s32.totalorder %s20, 0
      %p82 = por %p80, %p81
      %p83 = scmp.ne.s32.totalorder %s75, %s77
      %p84 = scmp.eq.s32.totalorder %s25, 1
      %p85 = por %p83, %p84
      %p86 = scmp.ne.s32.totalorder %s77, %s78
      %p87 = scmp.eq.s32.totalorder %s25, 0
      %p88 = por %p86, %p87
      %p89 = scmp.ne.s32.totalorder %s77, %s78
      %p90 = scmp.eq.s32.totalorder %s26, 1
      %p91 = por %p89, %p90
      %p93 = scmp.ne.s32.totalorder %s78, %s92
      %p94 = scmp.eq.s32.totalorder %s26, 0
      %p95 = por %p93, %p94
      %s97 = sadd.s32 %s96, 1
      %p100 = scmp.eq.s32.totalorder %s20, 1
      %p101 = scmp.ne.s32.totalorder %s96, %s98
      %p102 = scmp.eq.s32.totalorder %s20, 0
      %p103 = por %p101, %p102
      %p104 = scmp.ne.s32.totalorder %s96, %s98
      %p105 = scmp.eq.s32.totalorder %s25, 1
      %p106 = por %p104, %p105
      %p107 = scmp.ne.s32.totalorder %s98, %s99
      %p108 = scmp.eq.s32.totalorder %s25, 0
      %p109 = por %p107, %p108
      %p110 = scmp.ne.s32.totalorder %s98, %s99
      %p111 = scmp.eq.s32.totalorder %s26, 1
      %p112 = por %p110, %p111
      %p114 = scmp.ne.s32.totalorder %s99, %s113
      %p115 = scmp.eq.s32.totalorder %s26, 0
      %p116 = por %p114, %p115
      %s118 = sadd.s32 %s117, 1
      %p121 = scmp.eq.s32.totalorder %s20, 1
      %p122 = scmp.ne.s32.totalorder %s117, %s119
      %p123 = scmp.eq.s32.totalorder %s20, 0
      %p124 = por %p122, %p123
      %p125 = scmp.ne.s32.totalorder %s117, %s119
      %p126 = scmp.eq.s32.totalorder %s25, 1
      %p127 = por %p125, %p126
      %p128 = scmp.ne.s32.totalorder %s119, %s120
      %p129 = scmp.eq.s32.totalorder %s25, 0
      %p130 = por %p128, %p129
      %p131 = scmp.ne.s32.totalorder %s119, %s120
      %p132 = scmp.eq.s32.totalorder %s26, 1
      %p133 = por %p131, %p132
      %p135 = scmp.ne.s32.totalorder %s120, %s134
      %p136 = scmp.eq.s32.totalorder %s26, 0
      %p137 = por %p135, %p136
      %s139 = sadd.s32 %s138, 1
      %p142 = scmp.eq.s32.totalorder %s20, 1
      %p143 = scmp.ne.s32.totalorder %s138, %s140
      %p144 = scmp.eq.s32.totalorder %s20, 0
      %p145 = por %p143, %p144
      %p146 = scmp.ne.s32.totalorder %s138, %s140
      %p147 = scmp.eq.s32.totalorder %s25, 1
      %p148 = por %p146, %p147
      %p149 = scmp.ne.s32.totalorder %s140, %s141
      %p150 = scmp.eq.s32.totalorder %s25, 0
      %p151 = por %p149, %p150
      %p152 = scmp.ne.s32.totalorder %s140, %s141
      %p153 = scmp.eq.s32.totalorder %s26, 1
      %p154 = por %p152, %p153
      %p156 = scmp.ne.s32.totalorder %s141, %s155
      %p157 = scmp.eq.s32.totalorder %s26, 0
      %p158 = por %p156, %p157
      %s160 = sadd.s32 %s159, 1
      %p163 = scmp.eq.s32.totalorder %s20, 1
      %p164 = scmp.ne.s32.totalorder %s159, %s161
      %p165 = scmp.eq.s32.totalorder %s20, 0
      %p166 = por %p164, %p165
      %p167 = scmp.ne.s32.totalorder %s159, %s161
      %p168 = scmp.eq.s32.totalorder %s25, 1
      %p169 = por %p167, %p168
      %p170 = scmp.ne.s32.totalorder %s161, %s162
      %p171 = scmp.eq.s32.totalorder %s25, 0
      %p172 = por %p170, %p171
      %p173 = scmp.ne.s32.totalorder %s161, %s162
      %p174 = scmp.eq.s32.totalorder %s26, 1
      %p175 = por %p173, %p174
      %p177 = scmp.ne.s32.totalorder %s162, %s176
      %p178 = scmp.eq.s32.totalorder %s26, 0
      %p179 = por %p177, %p178
      %s181 = sadd.s32 %s180, 1
      %p184 = scmp.eq.s32.totalorder %s20, 1
      %p185 = scmp.ne.s32.totalorder %s180, %s182
      %p186 = scmp.eq.s32.totalorder %s20, 0
      %p187 = por %p185, %p186
      %p188 = scmp.ne.s32.totalorder %s180, %s182
      %p189 = scmp.eq.s32.totalorder %s25, 1
      %p190 = por %p188, %p189
      %p191 = scmp.ne.s32.totalorder %s182, %s183
      %p192 = scmp.eq.s32.totalorder %s25, 0
      %p193 = por %p191, %p192
      %p194 = scmp.ne.s32.totalorder %s182, %s183
      %p195 = scmp.eq.s32.totalorder %s26, 1
      %p196 = por %p194, %p195
      %p198 = scmp.ne.s32.totalorder %s183, %s197
      %p199 = scmp.eq.s32.totalorder %s26, 0
      %p200 = por %p198, %p199
      %s202 = sadd.s32 %s201, 1
      %p205 = scmp.eq.s32.totalorder %s20, 1
      %p206 = scmp.ne.s32.totalorder %s201, %s203
      %p207 = scmp.eq.s32.totalorder %s20, 0
      %p208 = por %p206, %p207
      %p209 = scmp.ne.s32.totalorder %s201, %s203
      %p210 = scmp.eq.s32.totalorder %s25, 1
      %p211 = por %p209, %p210
      %p212 = scmp.ne.s32.totalorder %s203, %s204
      %p213 = scmp.eq.s32.totalorder %s25, 0
      %p214 = por %p212, %p213
      %p215 = scmp.ne.s32.totalorder %s203, %s204
      %p216 = scmp.eq.s32.totalorder %s26, 1
      %p217 = por %p215, %p216
      %p219 = scmp.ne.s32.totalorder %s204, %s218
      %p220 = scmp.eq.s32.totalorder %s26, 0
      %p221 = por %p219, %p220
      %s223 = sadd.s32 %s222, 1
      %p226 = scmp.eq.s32.totalorder %s20, 1
      %p227 = scmp.ne.s32.totalorder %s222, %s224
      %p228 = scmp.eq.s32.totalorder %s20, 0
      %p229 = por %p227, %p228
      %p230 = scmp.ne.s32.totalorder %s222, %s224
      %p231 = scmp.eq.s32.totalorder %s25, 1
      %p232 = por %p230, %p231
      %p233 = scmp.ne.s32.totalorder %s224, %s225
      %p234 = scmp.eq.s32.totalorder %s25, 0
      %p235 = por %p233, %p234
      %p236 = scmp.ne.s32.totalorder %s224, %s225
      %p237 = scmp.eq.s32.totalorder %s26, 1
      %p238 = por %p236, %p237
      %p240 = scmp.ne.s32.totalorder %s225, %s239
      %p241 = scmp.eq.s32.totalorder %s26, 0
      %p242 = por %p240, %p241
      %s244 = sadd.s32 %s243, 1
      %p247 = scmp.eq.s32.totalorder %s20, 1
      %p248 = scmp.ne.s32.totalorder %s243, %s245
      %p249 = scmp.eq.s32.totalorder %s20, 0
      %p250 = por %p248, %p249
      %p251 = scmp.ne.s32.totalorder %s243, %s245
      %p252 = scmp.eq.s32.totalorder %s25, 1
      %p253 = por %p251, %p252
      %p254 = scmp.ne.s32.totalorder %s245, %s246
      %p255 = scmp.eq.s32.totalorder %s25, 0
      %p256 = por %p254, %p255
      %p257 = scmp.ne.s32.totalorder %s245, %s246
      %p258 = scmp.eq.s32.totalorder %s26, 1
      %p259 = por %p257, %p258
      %p261 = scmp.ne.s32.totalorder %s246, %s260
      %p262 = scmp.eq.s32.totalorder %s26, 0
      %p263 = por %p261, %p262
      %s264 = ssub.s32 %s20, %s27
      %p265 = scmp.eq.s32.totalorder %s264, 0
      %s267 = sadd.s32 %s266, 1
      %s268 = scalar_select %p265, %s266, %s267
      %p271 = pneg %p265
      %p272 = scmp.eq.s32.totalorder %s20, 1
      %p273 = por %p271, %p272
      %p274 = scmp.ne.s32.totalorder %s266, %s269
      %p275 = scmp.eq.s32.totalorder %s20, 0
      %p276 = por %p274, %p275
      %p277 = scmp.ne.s32.totalorder %s266, %s269
      %p278 = scmp.eq.s32.totalorder %s25, 1
      %p279 = por %p277, %p278
      %p280 = scmp.ne.s32.totalorder %s269, %s270
      %p281 = scmp.eq.s32.totalorder %s25, 0
      %p282 = por %p280, %p281
      %p283 = scmp.ne.s32.totalorder %s269, %s270
      %p284 = scmp.eq.s32.totalorder %s26, 1
      %p285 = por %p283, %p284
      %p287 = scmp.ne.s32.totalorder %s270, %s286
      %p288 = scmp.eq.s32.totalorder %s26, 0
      %p289 = por %p287, %p288
      %p290 = scmp.le.s32.totalorder 1, %s20
      %p291 = scmp.lt.s32.totalorder %s20, 3
      %p292 = pnand %p290, %p291
      %p293 = pneg %p292
      // Predicated region
      $region9: #{lenet_forward.1} parent=5 // pred_check
        _
      $region10: #{lenet_forward.1} parent=5 // pred_check_branch
        %295 = sbr.rel (%p292) target = $region12
      $region11: #{lenet_forward.1} parent=5 // pred_region
        %s296 = ssub.s32 %s20, 1
        // Predicated region
        $region13: #{lenet_forward.1} parent=11 // pred_check
          %p297 = pneg %p67
        $region14: #{lenet_forward.1} parent=11 // pred_check_branch
          %299 = sbr.rel (%p297) target = $region16
        $region15: #{lenet_forward.1} parent=11 // pred_region
          _
        $region16: #{lenet_forward.1} parent=11 // pred_fallthru
          _
        // Predicated region
        $region17: #{lenet_forward.1} parent=11 // pred_check
          %p300 = pneg %p88
        $region18: #{lenet_forward.1} parent=11 // pred_check_branch
          %302 = sbr.rel (%p300) target = $region20
        $region19: #{lenet_forward.1} parent=11 // pred_region
          _
        $region20: #{lenet_forward.1} parent=11 // pred_fallthru
          _
        // Predicated region
        $region21: #{lenet_forward.1} parent=11 // pred_check
          %p303 = pneg %p109
        $region22: #{lenet_forward.1} parent=11 // pred_check_branch
          %305 = sbr.rel (%p303) target = $region24
        $region23: #{lenet_forward.1} parent=11 // pred_region
          _
        $region24: #{lenet_forward.1} parent=11 // pred_fallthru
          _
        // Predicated region
        $region25: #{lenet_forward.1} parent=11 // pred_check
          %p306 = pneg %p130
        $region26: #{lenet_forward.1} parent=11 // pred_check_branch
          %308 = sbr.rel (%p306) target = $region28
        $region27: #{lenet_forward.1} parent=11 // pred_region
          _
        $region28: #{lenet_forward.1} parent=11 // pred_fallthru
          _
        // Predicated region
        $region29: #{lenet_forward.1} parent=11 // pred_check
          %p309 = pneg %p151
        $region30: #{lenet_forward.1} parent=11 // pred_check_branch
          %311 = sbr.rel (%p309) target = $region32
        $region31: #{lenet_forward.1} parent=11 // pred_region
          _
        $region32: #{lenet_forward.1} parent=11 // pred_fallthru
          _
        // Predicated region
        $region33: #{lenet_forward.1} parent=11 // pred_check
          %p312 = pneg %p172
        $region34: #{lenet_forward.1} parent=11 // pred_check_branch
          %314 = sbr.rel (%p312) target = $region36
        $region35: #{lenet_forward.1} parent=11 // pred_region
          _
        $region36: #{lenet_forward.1} parent=11 // pred_fallthru
          _
        // Predicated region
        $region37: #{lenet_forward.1} parent=11 // pred_check
          %p315 = pneg %p193
        $region38: #{lenet_forward.1} parent=11 // pred_check_branch
          %317 = sbr.rel (%p315) target = $region40
        $region39: #{lenet_forward.1} parent=11 // pred_region
          _
        $region40: #{lenet_forward.1} parent=11 // pred_fallthru
          _
        // Predicated region
        $region41: #{lenet_forward.1} parent=11 // pred_check
          %p318 = pneg %p214
        $region42: #{lenet_forward.1} parent=11 // pred_check_branch
          %320 = sbr.rel (%p318) target = $region44
        $region43: #{lenet_forward.1} parent=11 // pred_region
          _
        $region44: #{lenet_forward.1} parent=11 // pred_fallthru
          _
        // Predicated region
        $region45: #{lenet_forward.1} parent=11 // pred_check
          %p321 = pneg %p235
        $region46: #{lenet_forward.1} parent=11 // pred_check_branch
          %323 = sbr.rel (%p321) target = $region48
        $region47: #{lenet_forward.1} parent=11 // pred_region
          _
        $region48: #{lenet_forward.1} parent=11 // pred_fallthru
          _
        // Predicated region
        $region49: #{lenet_forward.1} parent=11 // pred_check
          %p324 = pneg %p256
        $region50: #{lenet_forward.1} parent=11 // pred_check_branch
          %326 = sbr.rel (%p324) target = $region52
        $region51: #{lenet_forward.1} parent=11 // pred_region
          _
        $region52: #{lenet_forward.1} parent=11 // pred_fallthru
          _
      $region12: #{lenet_forward.1} parent=5 // pred_fallthru
        _
      %p327 = scmp.lt.s32.totalorder %s20, 2
      // Predicated region
      $region53: #{lenet_forward.1} parent=5 // pred_check
        %p328 = pneg %p327
      $region54: #{lenet_forward.1} parent=5 // pred_check_branch
        %330 = sbr.rel (%p328) target = $region56
      $region55: #{lenet_forward.1} parent=5 // pred_region
        // Predicated region
        $region57: #{lenet_forward.1} parent=55 // pred_check
          %p331 = pneg %p40
        $region58: #{lenet_forward.1} parent=55 // pred_check_branch
          %333 = sbr.rel (%p331) target = $region60
        $region59: #{lenet_forward.1} parent=55 // pred_region
          %p334 = scmp.lt.s32.totalorder %s20, 1
          %s335 = scalar_select %p334, %s20, 1
          %s336 = smul.addr %s335, 67
          %s337 = smul.addr %s336, 8
          %s338 = scalar_lea.vmem %s0, %s337
        $region60: #{lenet_forward.1} parent=55 // pred_fallthru
          _
      $region56: #{lenet_forward.1} parent=5 // pred_fallthru
        _
      %p339 = scmp.le.s32.totalorder 1, %s20
      %p340 = scmp.lt.s32.totalorder %s20, 3
      %p341 = pnand %p339, %p340
      %p342 = pneg %p341
      // Predicated region
      $region61: #{lenet_forward.1} parent=5 // pred_check
        _
      $region62: #{lenet_forward.1} parent=5 // pred_check_branch
        %344 = sbr.rel (%p341) target = $region64
      $region63: #{lenet_forward.1} parent=5 // pred_region
        %s345 = ssub.s32 %s20, 1
        %p346 = scmp.lt.s32.totalorder %s25, 1
        %s347 = scalar_select %p346, %s25, 1
        %s348 = smul.addr %s347, 67
        %s349 = smul.addr %s348, 8
        %s350 = scalar_lea.vmem %s0, %s349
        %p351 = pneg %p46
        %p352 = pneg %p43
        %p353 = pneg %p67
        %p354 = pneg %p64
        %p355 = pneg %p88
        %p356 = pneg %p85
        %p357 = pneg %p109
        %p358 = pneg %p106
        %p359 = pneg %p130
        %p360 = pneg %p127
        %p361 = pneg %p151
        %p362 = pneg %p148
        %p363 = pneg %p172
        %p364 = pneg %p169
        %p365 = pneg %p193
        %p366 = pneg %p190
        %p367 = pneg %p214
        %p368 = pneg %p211
        %p369 = pneg %p235
        %p370 = pneg %p232
        %p371 = pneg %p256
        %p372 = pneg %p253
        %p373 = pneg %p282
        %p374 = pneg %p279
        %s375 = sand.u32 %s269, 1
        %s376 = scalar_lea.sflag [#allocation5], %s375
        %s377 = sand.u32 %s269, 1
        %s378 = smul.addr %s377, 8
        %s379 = scalar_lea.vmem [#allocation4], %s378
        %p380 = scmp.lt.s32.totalorder %s25, 1
        %s381 = scalar_select %p380, %s25, 1
        %s382 = smul.addr %s381, 67
        %s383 = smul.addr %s382, 8
        %s384 = scalar_lea.vmem %s0, %s383
        %v385 = vld [vmem:[%s384] sm:$0xff]
        %v386 = vld [vmem:[%s384 + $0x8] sm:$0xff]
        %v387 = vld [vmem:[%s384 + $0x10] sm:$0xff]
        %v388 = vld [vmem:[%s384 + $0x18] sm:$0xff]
        %v389 = vld [vmem:[%s384 + $0x20] sm:$0xff]
        %v390 = vld [vmem:[%s384 + $0x28] sm:$0xff]
        %v391 = vld [vmem:[%s384 + $0x30] sm:$0xff]
        %v392 = vld [vmem:[%s384 + $0x38] sm:$0xff]
        %v393 = vld [vmem:[%s384 + $0x40] sm:$0xff]
        %v394 = vld [vmem:[%s384 + $0x48] sm:$0xff]
        %v395 = vld [vmem:[%s384 + $0x50] sm:$0xff]
        %v396 = vld [vmem:[%s384 + $0x58] sm:$0xff]
        %v397 = vld [vmem:[%s384 + $0x60] sm:$0xff]
        %v398 = vld [vmem:[%s384 + $0x68] sm:$0xff]
        %v399 = vld [vmem:[%s384 + $0x70] sm:$0xff]
        %v400 = vld [vmem:[%s384 + $0x78] sm:$0xff]
        %v401 = vld [vmem:[%s384 + $0x80] sm:$0xff]
        %v402 = vld [vmem:[%s384 + $0x88] sm:$0xff]
        %v403 = vld [vmem:[%s384 + $0x90] sm:$0xff]
        %v404 = vld [vmem:[%s384 + $0x98] sm:$0xff]
        %v405 = vld [vmem:[%s384 + $0xa0] sm:$0xff]
        %v406 = vld [vmem:[%s384 + $0xa8] sm:$0xff]
        %v407 = vld [vmem:[%s384 + $0xb0] sm:$0xff]
        %v408 = vld [vmem:[%s384 + $0xb8] sm:$0xff]
        %v409 = vld [vmem:[%s384 + $0xc0] sm:$0xff]
        %v410 = vld [vmem:[%s384 + $0xc8] sm:$0xff]
        %v411 = vld [vmem:[%s384 + $0xd0] sm:$0xff]
        %v412 = vld [vmem:[%s384 + $0xd8] sm:$0xff]
        %v413 = vld [vmem:[%s384 + $0xe0] sm:$0xff]
        %v414 = vld [vmem:[%s384 + $0xe8] sm:$0xff]
        %v415 = vld [vmem:[%s384 + $0xf0] sm:$0xff]
        %v416 = vld [vmem:[%s384 + $0xf8] sm:$0xff]
        %v417 = vld [vmem:[%s384 + $0x100] sm:$0xff]
        %v418 = vld [vmem:[%s384 + $0x108] sm:$0xff]
        %v419 = vld [vmem:[%s384 + $0x110] sm:$0xff]
        %v420 = vld [vmem:[%s384 + $0x118] sm:$0xff]
        %v421 = vld [vmem:[%s384 + $0x120] sm:$0xff]
        %v422 = vld [vmem:[%s384 + $0x128] sm:$0xff]
        %v423 = vld [vmem:[%s384 + $0x130] sm:$0xff]
        %v424 = vld [vmem:[%s384 + $0x138] sm:$0xff]
        %v425 = vld [vmem:[%s384 + $0x140] sm:$0xff]
        %v426 = vld [vmem:[%s384 + $0x148] sm:$0xff]
        %v427 = vld [vmem:[%s384 + $0x150] sm:$0xff]
        %v428 = vld [vmem:[%s384 + $0x158] sm:$0xff]
        %v429 = vld [vmem:[%s384 + $0x160] sm:$0xff]
        %v430 = vld [vmem:[%s384 + $0x168] sm:$0xff]
        %v431 = vld [vmem:[%s384 + $0x170] sm:$0xff]
        %v432 = vld [vmem:[%s384 + $0x178] sm:$0xff]
        %v433 = vld [vmem:[%s384 + $0x180] sm:$0xff]
        %v434 = vld [vmem:[%s384 + $0x188] sm:$0xff]
        %v435 = vld [vmem:[%s384 + $0x190] sm:$0xff]
        %v436 = vld [vmem:[%s384 + $0x198] sm:$0xff]
        %v437 = vld [vmem:[%s384 + $0x1a0] sm:$0xff]
        %v438 = vld [vmem:[%s384 + $0x1a8] sm:$0xff]
        %v439 = vld [vmem:[%s384 + $0x1b0] sm:$0xff]
        %v440 = vld [vmem:[%s384 + $0x1b8] sm:$0xff]
        %v441 = vld [vmem:[%s384 + $0x1c0] sm:$0xff]
        %v442 = vld [vmem:[%s384 + $0x1c8] sm:$0xff]
        %v443 = vld [vmem:[%s1] sm:$0xff]
        %v444 = vld [vmem:[%s1 + $0x8] sm:$0xff]
        %v445 = vld [vmem:[%s1 + $0x10] sm:$0xff]
        %v446 = vld [vmem:[%s1 + $0x18] sm:$0xff]
        %v447 = vld [vmem:[%s1 + $0x20] sm:$0xff]
        %v448 = vld [vmem:[%s1 + $0x28] sm:$0xff]
        %v449 = vld [vmem:[%s384 + $0x1d0] sm:$0xff]
        %s450 = scalar_lea.vmem %s1, 48
        %v451 = vld [vmem:[%s450] sm:$0xff]
        %v452 = vld [vmem:[%s450 + $0x8] sm:$0xff]
        %v453 = vld [vmem:[%s450 + $0x10] sm:$0xff]
        %v454 = vld [vmem:[%s450 + $0x18] sm:$0xff]
        %v455 = vld [vmem:[%s450 + $0x20] sm:$0xff]
        %v456 = vld [vmem:[%s450 + $0x28] sm:$0xff]
        %vm457 = vcmask 392192
        %v459 = vsel %vm457, %v386, 0
        %v462 = vsel %vm457, %v387, 0
        %v465 = vsel %vm457, %v388, 0
        %v468 = vsel %vm457, %v389, 0
        %v471 = vsel %vm457, %v390, 0
        %v474 = vsel %vm457, %v391, 0
        %v477 = vsel %vm457, %v392, 0
        %v480 = vsel %vm457, %v393, 0
        %v483 = vsel %vm457, %v394, 0
        %v486 = vsel %vm457, %v395, 0
        %v489 = vsel %vm457, %v396, 0
        %v492 = vsel %vm457, %v397, 0
        %v495 = vsel %vm457, %v398, 0
        %v498 = vsel %vm457, %v399, 0
        %v501 = vsel %vm457, %v400, 0
        %v504 = vsel %vm457, %v401, 0
        %v507 = vsel %vm457, %v402, 0
        %v510 = vsel %vm457, %v403, 0
        %v513 = vsel %vm457, %v404, 0
        %v516 = vsel %vm457, %v405, 0
        %v519 = vsel %vm457, %v406, 0
        %v522 = vsel %vm457, %v407, 0
        %v525 = vsel %vm457, %v408, 0
        %v528 = vsel %vm457, %v409, 0
        %v531 = vsel %vm457, %v410, 0
        %v534 = vsel %vm457, %v411, 0
        %v537 = vsel %vm457, %v412, 0
        %v540 = vsel %vm457, %v413, 0
        %v543 = vsel %vm457, %v414, 0
        %v546 = vsel %vm457, %v415, 0
        %v549 = vsel %vm457, %v416, 0
        %v552 = vsel %vm457, %v417, 0
        %v555 = vsel %vm457, %v418, 0
        %v558 = vsel %vm457, %v419, 0
        %v561 = vsel %vm457, %v420, 0
        %v564 = vsel %vm457, %v421, 0
        %v567 = vsel %vm457, %v422, 0
        %v570 = vsel %vm457, %v423, 0
        %v573 = vsel %vm457, %v424, 0
        %v576 = vsel %vm457, %v425, 0
        %v579 = vsel %vm457, %v426, 0
        %v582 = vsel %vm457, %v427, 0
        %v585 = vsel %vm457, %v428, 0
        %v588 = vsel %vm457, %v429, 0
        %v591 = vsel %vm457, %v430, 0
        %v594 = vsel %vm457, %v431, 0
        %v597 = vsel %vm457, %v432, 0
        %v600 = vsel %vm457, %v433, 0
        %v603 = vsel %vm457, %v434, 0
        %v606 = vsel %vm457, %v435, 0
        %v609 = vsel %vm457, %v436, 0
        %v612 = vsel %vm457, %v437, 0
        %v615 = vsel %vm457, %v438, 0
        %v618 = vsel %vm457, %v439, 0
        %v621 = vsel %vm457, %v440, 0
        %v624 = vsel %vm457, %v441, 0
        %v627 = vsel %vm457, %v442, 0
        %v630 = vsel %vm457, %v449, 0
        %632 = vmatprep.subr.mxu0 0.0
        %633 = vmatpush1.msra.mxu0 0.0
        %634 = vmatprep.subr.mxu0 0.0
        %635 = vmatpush1.msra.mxu0 0.0
        %636 = vmatprep.subr.mxu0 0.0
        %637 = vmatpush1.msra.mxu0 0.0
        %638 = vmatprep.subr.mxu0 0.0
        %639 = vmatpush1.msra.mxu0 0.0
        %640 = vmatprep.subr.mxu0 0.0
        %641 = vmatpush1.msra.mxu0 0.0
        %642 = vmatprep.subr.mxu0 0.0
        %643 = vmatpush1.msra.mxu0 0.0
        %644 = vmatprep.subr.mxu0 0.0
        %645 = vmatpush1.msra.mxu0 0.0
        %646 = vmatprep.subr.mxu0 0.0
        %647 = vmatpush1.msra.mxu0 0.0
        %648 = vmatprep.subr.mxu0 0.0
        %649 = vmatpush1.msra.mxu0 0.0
        %650 = vmatprep.subr.mxu0 0.0
        %651 = vmatpush1.msra.mxu0 0.0
        %652 = vmatprep.subr.mxu0 0.0
        %653 = vmatpush1.msra.mxu0 %v456
        %654 = vmatprep.subr.mxu0 0.0
        %655 = vmatpush1.msra.mxu0 %v455
        %656 = vmatprep.subr.mxu0 0.0
        %657 = vmatpush1.msra.mxu0 %v454
        %658 = vmatprep.subr.mxu0 0.0
        %659 = vmatpush1.msra.mxu0 %v453
        %660 = vmatprep.subr.mxu0 0.0
        %661 = vmatpush1.msra.mxu0 %v452
        %662 = vmatprep.subr.mxu0 0.0
        %663 = vmatpush1.msra.mxu0 %v451
        %664 = vmatprep.subr.mxu0 0.0
        %665 = vmatpush2.msra.mxu0 0.0
        %666 = vmatprep.subr.mxu0 0.0
        %667 = vmatpush2.msra.mxu0 0.0
        %668 = vmatprep.subr.mxu0 0.0
        %669 = vmatpush2.msra.mxu0 0.0
        %670 = vmatprep.subr.mxu0 0.0
        %671 = vmatpush2.msra.mxu0 0.0
        %672 = vmatprep.subr.mxu0 0.0
        %673 = vmatpush2.msra.mxu0 0.0
        %674 = vmatprep.subr.mxu0 0.0
        %675 = vmatpush2.msra.mxu0 0.0
        %676 = vmatprep.subr.mxu0 0.0
        %677 = vmatpush2.msra.mxu0 0.0
        %678 = vmatprep.subr.mxu0 0.0
        %679 = vmatpush2.msra.mxu0 0.0
        %680 = vmatprep.subr.mxu0 0.0
        %681 = vmatpush2.msra.mxu0 0.0
        %682 = vmatprep.subr.mxu0 0.0
        %683 = vmatpush2.msra.mxu0 0.0
        %684 = vmatprep.subr.mxu0 0.0
        %685 = vmatpush2.msra.mxu0 0.0
        %686 = vmatprep.subr.mxu0 0.0
        %687 = vmatpush2.msra.mxu0 0.0
        %688 = vmatprep.subr.mxu0 0.0
        %689 = vmatpush2.msra.mxu0 0.0
        %690 = vmatprep.subr.mxu0 0.0
        %691 = vmatpush2.msra.mxu0 0.0
        %692 = vmatprep.subr.mxu0 0.0
        %693 = vmatpush2.msra.mxu0 0.0
        %694 = vmatprep.subr.mxu0 0.0
        %695 = vmatpush2.msra.mxu0 0.0
        %696 = vmatprep.mubr.f32.mxu0 0.0
        %697 = vmatmul.mubr.f32.gmra.mxu0 %v459
        %v698 = vpop.f32.mrf.mxu0
        %v699 = vadd.f32 0.0, %v698
        %v700 = vpop.f32.mrf.mxu0
        %701 = vmatprep.mubr.f32.mxu0 0.0
        %702 = vmatmul.mubr.f32.gmra.mxu0 %v462
        %v703 = vpop.f32.mrf.mxu0
        %v704 = vadd.f32 0.0, %v703
        %v705 = vpop.f32.mrf.mxu0
        %706 = vmatprep.mubr.f32.mxu0 0.0
        %707 = vmatmul.mubr.f32.gmra.mxu0 %v465
        %v708 = vpop.f32.mrf.mxu0
        %v709 = vadd.f32 0.0, %v708
        %v710 = vpop.f32.mrf.mxu0
        %711 = vmatprep.mubr.f32.mxu0 0.0
        %712 = vmatmul.mubr.f32.gmra.mxu0 %v468
        %v713 = vpop.f32.mrf.mxu0
        %v714 = vadd.f32 0.0, %v713
        %v715 = vpop.f32.mrf.mxu0
        %716 = vmatprep.mubr.f32.mxu0 0.0
        %717 = vmatmul.mubr.f32.gmra.mxu0 %v471
        %v718 = vpop.f32.mrf.mxu0
        %v719 = vadd.f32 0.0, %v718
        %v720 = vpop.f32.mrf.mxu0
        %721 = vmatprep.mubr.f32.mxu0 0.0
        %722 = vmatmul.mubr.f32.gmra.mxu0 %v474
        %v723 = vpop.f32.mrf.mxu0
        %v724 = vadd.f32 0.0, %v723
        %v725 = vpop.f32.mrf.mxu0
        %726 = vmatprep.mubr.f32.mxu0 0.0
        %727 = vmatmul.mubr.f32.gmra.mxu0 %v477
        %v728 = vpop.f32.mrf.mxu0
        %v729 = vadd.f32 0.0, %v728
        %v730 = vpop.f32.mrf.mxu0
        %731 = vmatprep.mubr.f32.mxu0 0.0
        %732 = vmatmul.mubr.f32.gmra.mxu0 %v480
        %v733 = vpop.f32.mrf.mxu0
        %v734 = vadd.f32 0.0, %v733
        %v735 = vpop.f32.mrf.mxu0
        %736 = vmatprep.mubr.f32.mxu0 0.0
        %737 = vmatmul.mubr.f32.gmra.mxu0 %v483
        %v738 = vpop.f32.mrf.mxu0
        %v739 = vadd.f32 0.0, %v738
        %v740 = vpop.f32.mrf.mxu0
        %741 = vmatprep.mubr.f32.mxu0 0.0
        %742 = vmatmul.mubr.f32.gmra.mxu0 %v486
        %v743 = vpop.f32.mrf.mxu0
        %v744 = vadd.f32 0.0, %v743
        %v745 = vpop.f32.mrf.mxu0
        %746 = vmatprep.mubr.f32.mxu0 0.0
        %747 = vmatmul.mubr.f32.gmra.mxu0 %v489
        %v748 = vpop.f32.mrf.mxu0
        %v749 = vadd.f32 0.0, %v748
        %v750 = vpop.f32.mrf.mxu0
        %751 = vmatprep.mubr.f32.mxu0 0.0
        %752 = vmatmul.mubr.f32.gmra.mxu0 %v492
        %v753 = vpop.f32.mrf.mxu0
        %v754 = vadd.f32 0.0, %v753
        %v755 = vpop.f32.mrf.mxu0
        %756 = vmatprep.mubr.f32.mxu0 0.0
        %757 = vmatmul.mubr.f32.gmra.mxu0 %v495
        %v758 = vpop.f32.mrf.mxu0
        %v759 = vadd.f32 0.0, %v758
        %v760 = vpop.f32.mrf.mxu0
        %761 = vmatprep.mubr.f32.mxu0 0.0
        %762 = vmatmul.mubr.f32.gmra.mxu0 %v498
        %v763 = vpop.f32.mrf.mxu0
        %v764 = vadd.f32 0.0, %v763
        %v765 = vpop.f32.mrf.mxu0
        %766 = vmatprep.mubr.f32.mxu0 0.0
        %767 = vmatmul.mubr.f32.gmra.mxu0 %v501
        %v768 = vpop.f32.mrf.mxu0
        %v769 = vadd.f32 0.0, %v768
        %v770 = vpop.f32.mrf.mxu0
        %771 = vmatprep.mubr.f32.mxu0 0.0
        %772 = vmatmul.mubr.f32.gmra.mxu0 %v504
        %v773 = vpop.f32.mrf.mxu0
        %v774 = vadd.f32 0.0, %v773
        %v775 = vpop.f32.mrf.mxu0
        %776 = vmatprep.mubr.f32.mxu0 0.0
        %777 = vmatmul.mubr.f32.gmra.mxu0 %v507
        %v778 = vpop.f32.mrf.mxu0
        %v779 = vadd.f32 0.0, %v778
        %v780 = vpop.f32.mrf.mxu0
        %781 = vmatprep.mubr.f32.mxu0 0.0
        %782 = vmatmul.mubr.f32.gmra.mxu0 %v510
        %v783 = vpop.f32.mrf.mxu0
        %v784 = vadd.f32 0.0, %v783
        %v785 = vpop.f32.mrf.mxu0
        %786 = vmatprep.mubr.f32.mxu0 0.0
        %787 = vmatmul.mubr.f32.gmra.mxu0 %v513
        %v788 = vpop.f32.mrf.mxu0
        %v789 = vadd.f32 0.0, %v788
        %v790 = vpop.f32.mrf.mxu0
        %791 = vmatprep.mubr.f32.mxu0 0.0
        %792 = vmatmul.mubr.f32.gmra.mxu0 %v516
        %v793 = vpop.f32.mrf.mxu0
        %v794 = vadd.f32 0.0, %v793
        %v795 = vpop.f32.mrf.mxu0
        %796 = vmatprep.mubr.f32.mxu0 0.0
        %797 = vmatmul.mubr.f32.gmra.mxu0 %v519
        %v798 = vpop.f32.mrf.mxu0
        %v799 = vadd.f32 0.0, %v798
        %v800 = vpop.f32.mrf.mxu0
        %801 = vmatprep.mubr.f32.mxu0 0.0
        %802 = vmatmul.mubr.f32.gmra.mxu0 %v522
        %v803 = vpop.f32.mrf.mxu0
        %v804 = vadd.f32 0.0, %v803
        %v805 = vpop.f32.mrf.mxu0
        %806 = vmatprep.mubr.f32.mxu0 0.0
        %807 = vmatmul.mubr.f32.gmra.mxu0 %v525
        %v808 = vpop.f32.mrf.mxu0
        %v809 = vadd.f32 0.0, %v808
        %v810 = vpop.f32.mrf.mxu0
        %811 = vmatprep.mubr.f32.mxu0 0.0
        %812 = vmatmul.mubr.f32.gmra.mxu0 %v528
        %v813 = vpop.f32.mrf.mxu0
        %v814 = vadd.f32 0.0, %v813
        %v815 = vpop.f32.mrf.mxu0
        %816 = vmatprep.mubr.f32.mxu0 0.0
        %817 = vmatmul.mubr.f32.gmra.mxu0 %v531
        %v818 = vpop.f32.mrf.mxu0
        %v819 = vadd.f32 0.0, %v818
        %v820 = vpop.f32.mrf.mxu0
        %821 = vmatprep.mubr.f32.mxu0 0.0
        %822 = vmatmul.mubr.f32.gmra.mxu0 %v534
        %v823 = vpop.f32.mrf.mxu0
        %v824 = vadd.f32 0.0, %v823
        %v825 = vpop.f32.mrf.mxu0
        %826 = vmatprep.mubr.f32.mxu0 0.0
        %827 = vmatmul.mubr.f32.gmra.mxu0 %v537
        %v828 = vpop.f32.mrf.mxu0
        %v829 = vadd.f32 0.0, %v828
        %v830 = vpop.f32.mrf.mxu0
        %831 = vmatprep.mubr.f32.mxu0 0.0
        %832 = vmatmul.mubr.f32.gmra.mxu0 %v540
        %v833 = vpop.f32.mrf.mxu0
        %v834 = vadd.f32 0.0, %v833
        %v835 = vpop.f32.mrf.mxu0
        %836 = vmatprep.mubr.f32.mxu0 0.0
        %837 = vmatmul.mubr.f32.gmra.mxu0 %v543
        %v838 = vpop.f32.mrf.mxu0
        %v839 = vadd.f32 0.0, %v838
        %v840 = vpop.f32.mrf.mxu0
        %841 = vmatprep.mubr.f32.mxu0 0.0
        %842 = vmatmul.mubr.f32.gmra.mxu0 %v546
        %v843 = vpop.f32.mrf.mxu0
        %v844 = vadd.f32 0.0, %v843
        %v845 = vpop.f32.mrf.mxu0
        %846 = vmatprep.mubr.f32.mxu0 0.0
        %847 = vmatmul.mubr.f32.gmra.mxu0 %v549
        %v848 = vpop.f32.mrf.mxu0
        %v849 = vadd.f32 0.0, %v848
        %v850 = vpop.f32.mrf.mxu0
        %851 = vmatprep.mubr.f32.mxu0 0.0
        %852 = vmatmul.mubr.f32.gmra.mxu0 %v552
        %v853 = vpop.f32.mrf.mxu0
        %v854 = vadd.f32 0.0, %v853
        %v855 = vpop.f32.mrf.mxu0
        %856 = vmatprep.mubr.f32.mxu0 0.0
        %857 = vmatmul.mubr.f32.gmra.mxu0 %v555
        %v858 = vpop.f32.mrf.mxu0
        %v859 = vadd.f32 0.0, %v858
        %v860 = vpop.f32.mrf.mxu0
        %861 = vmatprep.mubr.f32.mxu0 0.0
        %862 = vmatmul.mubr.f32.gmra.mxu0 %v558
        %v863 = vpop.f32.mrf.mxu0
        %v864 = vadd.f32 0.0, %v863
        %v865 = vpop.f32.mrf.mxu0
        %866 = vmatprep.mubr.f32.mxu0 0.0
        %867 = vmatmul.mubr.f32.gmra.mxu0 %v561
        %v868 = vpop.f32.mrf.mxu0
        %v869 = vadd.f32 0.0, %v868
        %v870 = vpop.f32.mrf.mxu0
        %871 = vmatprep.mubr.f32.mxu0 0.0
        %872 = vmatmul.mubr.f32.gmra.mxu0 %v564
        %v873 = vpop.f32.mrf.mxu0
        %v874 = vadd.f32 0.0, %v873
        %v875 = vpop.f32.mrf.mxu0
        %876 = vmatprep.mubr.f32.mxu0 0.0
        %877 = vmatmul.mubr.f32.gmra.mxu0 %v567
        %v878 = vpop.f32.mrf.mxu0
        %v879 = vadd.f32 0.0, %v878
        %v880 = vpop.f32.mrf.mxu0
        %881 = vmatprep.mubr.f32.mxu0 0.0
        %882 = vmatmul.mubr.f32.gmra.mxu0 %v570
        %v883 = vpop.f32.mrf.mxu0
        %v884 = vadd.f32 0.0, %v883
        %v885 = vpop.f32.mrf.mxu0
        %886 = vmatprep.mubr.f32.mxu0 0.0
        %887 = vmatmul.mubr.f32.gmra.mxu0 %v573
        %v888 = vpop.f32.mrf.mxu0
        %v889 = vadd.f32 0.0, %v888
        %v890 = vpop.f32.mrf.mxu0
        %891 = vmatprep.mubr.f32.mxu0 0.0
        %892 = vmatmul.mubr.f32.gmra.mxu0 %v576
        %v893 = vpop.f32.mrf.mxu0
        %v894 = vadd.f32 0.0, %v893
        %v895 = vpop.f32.mrf.mxu0
        %896 = vmatprep.mubr.f32.mxu0 0.0
        %897 = vmatmul.mubr.f32.gmra.mxu0 %v579
        %v898 = vpop.f32.mrf.mxu0
        %v899 = vadd.f32 0.0, %v898
        %v900 = vpop.f32.mrf.mxu0
        %901 = vmatprep.mubr.f32.mxu0 0.0
        %902 = vmatmul.mubr.f32.gmra.mxu0 %v582
        %v903 = vpop.f32.mrf.mxu0
        %v904 = vadd.f32 0.0, %v903
        %v905 = vpop.f32.mrf.mxu0
        %906 = vmatprep.mubr.f32.mxu0 0.0
        %907 = vmatmul.mubr.f32.gmra.mxu0 %v585
        %v908 = vpop.f32.mrf.mxu0
        %v909 = vadd.f32 0.0, %v908
        %v910 = vpop.f32.mrf.mxu0
        %911 = vmatprep.mubr.f32.mxu0 0.0
        %912 = vmatmul.mubr.f32.gmra.mxu0 %v588
        %v913 = vpop.f32.mrf.mxu0
        %v914 = vadd.f32 0.0, %v913
        %v915 = vpop.f32.mrf.mxu0
        %916 = vmatprep.mubr.f32.mxu0 0.0
        %917 = vmatmul.mubr.f32.gmra.mxu0 %v591
        %v918 = vpop.f32.mrf.mxu0
        %v919 = vadd.f32 0.0, %v918
        %v920 = vpop.f32.mrf.mxu0
        %921 = vmatprep.mubr.f32.mxu0 0.0
        %922 = vmatmul.mubr.f32.gmra.mxu0 %v594
        %v923 = vpop.f32.mrf.mxu0
        %v924 = vadd.f32 0.0, %v923
        %v925 = vpop.f32.mrf.mxu0
        %926 = vmatprep.mubr.f32.mxu0 0.0
        %927 = vmatmul.mubr.f32.gmra.mxu0 %v597
        %v928 = vpop.f32.mrf.mxu0
        %v929 = vadd.f32 0.0, %v928
        %v930 = vpop.f32.mrf.mxu0
        %931 = vmatprep.mubr.f32.mxu0 0.0
        %932 = vmatmul.mubr.f32.gmra.mxu0 %v600
        %v933 = vpop.f32.mrf.mxu0
        %v934 = vadd.f32 0.0, %v933
        %v935 = vpop.f32.mrf.mxu0
        %936 = vmatprep.mubr.f32.mxu0 0.0
        %937 = vmatmul.mubr.f32.gmra.mxu0 %v603
        %v938 = vpop.f32.mrf.mxu0
        %v939 = vadd.f32 0.0, %v938
        %v940 = vpop.f32.mrf.mxu0
        %941 = vmatprep.mubr.f32.mxu0 0.0
        %942 = vmatmul.mubr.f32.gmra.mxu0 %v606
        %v943 = vpop.f32.mrf.mxu0
        %v944 = vadd.f32 0.0, %v943
        %v945 = vpop.f32.mrf.mxu0
        %946 = vmatprep.mubr.f32.mxu0 0.0
        %947 = vmatmul.mubr.f32.gmra.mxu0 %v609
        %v948 = vpop.f32.mrf.mxu0
        %v949 = vadd.f32 0.0, %v948
        %v950 = vpop.f32.mrf.mxu0
        %951 = vmatprep.mubr.f32.mxu0 0.0
        %952 = vmatmul.mubr.f32.gmra.mxu0 %v612
        %v953 = vpop.f32.mrf.mxu0
        %v954 = vadd.f32 0.0, %v953
        %v955 = vpop.f32.mrf.mxu0
        %956 = vmatprep.mubr.f32.mxu0 0.0
        %957 = vmatmul.mubr.f32.gmra.mxu0 %v615
        %v958 = vpop.f32.mrf.mxu0
        %v959 = vadd.f32 0.0, %v958
        %v960 = vpop.f32.mrf.mxu0
        %961 = vmatprep.mubr.f32.mxu0 0.0
        %962 = vmatmul.mubr.f32.gmra.mxu0 %v618
        %v963 = vpop.f32.mrf.mxu0
        %v964 = vadd.f32 0.0, %v963
        %v965 = vpop.f32.mrf.mxu0
        %966 = vmatprep.mubr.f32.mxu0 0.0
        %967 = vmatmul.mubr.f32.gmra.mxu0 %v621
        %v968 = vpop.f32.mrf.mxu0
        %v969 = vadd.f32 0.0, %v968
        %v970 = vpop.f32.mrf.mxu0
        %971 = vmatprep.mubr.f32.mxu0 0.0
        %972 = vmatmul.mubr.f32.gmra.mxu0 %v624
        %v973 = vpop.f32.mrf.mxu0
        %v974 = vadd.f32 0.0, %v973
        %v975 = vpop.f32.mrf.mxu0
        %976 = vmatprep.mubr.f32.mxu0 0.0
        %977 = vmatmul.mubr.f32.gmra.mxu0 %v627
        %v978 = vpop.f32.mrf.mxu0
        %v979 = vadd.f32 0.0, %v978
        %v980 = vpop.f32.mrf.mxu0
        %981 = vmatprep.mubr.f32.mxu0 0.0
        %982 = vmatmul.mubr.f32.gmra.mxu0 %v630
        %v983 = vpop.f32.mrf.mxu0
        %v984 = vadd.f32 0.0, %v983
        %v985 = vpop.f32.mrf.mxu0
        %986 = vdwg.mxu0
        %v988 = vsel %vm457, %v385, 0
        %990 = vmatprep.subr.mxu0 0.0
        %991 = vmatpush1.msra.mxu0 0.0
        %992 = vmatprep.subr.mxu0 0.0
        %993 = vmatpush1.msra.mxu0 0.0
        %994 = vmatprep.subr.mxu0 0.0
        %995 = vmatpush1.msra.mxu0 0.0
        %996 = vmatprep.subr.mxu0 0.0
        %997 = vmatpush1.msra.mxu0 0.0
        %998 = vmatprep.subr.mxu0 0.0
        %999 = vmatpush1.msra.mxu0 0.0
        %1000 = vmatprep.subr.mxu0 0.0
        %1001 = vmatpush1.msra.mxu0 0.0
        %1002 = vmatprep.subr.mxu0 0.0
        %1003 = vmatpush1.msra.mxu0 0.0
        %1004 = vmatprep.subr.mxu0 0.0
        %1005 = vmatpush1.msra.mxu0 0.0
        %1006 = vmatprep.subr.mxu0 0.0
        %1007 = vmatpush1.msra.mxu0 0.0
        %1008 = vmatprep.subr.mxu0 0.0
        %1009 = vmatpush1.msra.mxu0 0.0
        %1010 = vmatprep.subr.mxu0 0.0
        %1011 = vmatpush1.msra.mxu0 %v448
        %1012 = vmatprep.subr.mxu0 0.0
        %1013 = vmatpush1.msra.mxu0 %v447
        %1014 = vmatprep.subr.mxu0 0.0
        %1015 = vmatpush1.msra.mxu0 %v446
        %1016 = vmatprep.subr.mxu0 0.0
        %1017 = vmatpush1.msra.mxu0 %v445
        %1018 = vmatprep.subr.mxu0 0.0
        %1019 = vmatpush1.msra.mxu0 %v444
        %1020 = vmatprep.subr.mxu0 0.0
        %1021 = vmatpush1.msra.mxu0 %v443
        %1022 = vmatprep.subr.mxu0 0.0
        %1023 = vmatpush2.msra.mxu0 0.0
        %1024 = vmatprep.subr.mxu0 0.0
        %1025 = vmatpush2.msra.mxu0 0.0
        %1026 = vmatprep.subr.mxu0 0.0
        %1027 = vmatpush2.msra.mxu0 0.0
        %1028 = vmatprep.subr.mxu0 0.0
        %1029 = vmatpush2.msra.mxu0 0.0
        %1030 = vmatprep.subr.mxu0 0.0
        %1031 = vmatpush2.msra.mxu0 0.0
        %1032 = vmatprep.subr.mxu0 0.0
        %1033 = vmatpush2.msra.mxu0 0.0
        %1034 = vmatprep.subr.mxu0 0.0
        %1035 = vmatpush2.msra.mxu0 0.0
        %1036 = vmatprep.subr.mxu0 0.0
        %1037 = vmatpush2.msra.mxu0 0.0
        %1038 = vmatprep.subr.mxu0 0.0
        %1039 = vmatpush2.msra.mxu0 0.0
        %1040 = vmatprep.subr.mxu0 0.0
        %1041 = vmatpush2.msra.mxu0 0.0
        %1042 = vmatprep.subr.mxu0 0.0
        %1043 = vmatpush2.msra.mxu0 0.0
        %1044 = vmatprep.subr.mxu0 0.0
        %1045 = vmatpush2.msra.mxu0 0.0
        %1046 = vmatprep.subr.mxu0 0.0
        %1047 = vmatpush2.msra.mxu0 0.0
        %1048 = vmatprep.subr.mxu0 0.0
        %1049 = vmatpush2.msra.mxu0 0.0
        %1050 = vmatprep.subr.mxu0 0.0
        %1051 = vmatpush2.msra.mxu0 0.0
        %1052 = vmatprep.subr.mxu0 0.0
        %1053 = vmatpush2.msra.mxu0 0.0
        %1054 = vmatprep.mubr.f32.mxu0 0.0
        %1055 = vmatmul.mubr.f32.gmra.mxu0 %v988
        %v1056 = vpop.f32.mrf.mxu0
        %v1057 = vadd.f32 %v699, %v1056
        %v1058 = vpop.f32.mrf.mxu0
        %1059 = vmatprep.mubr.f32.mxu0 0.0
        %1060 = vmatmul.mubr.f32.gmra.mxu0 %v459
        %v1061 = vpop.f32.mrf.mxu0
        %v1062 = vadd.f32 %v704, %v1061
        %v1063 = vpop.f32.mrf.mxu0
        %1064 = vmatprep.mubr.f32.mxu0 0.0
        %1065 = vmatmul.mubr.f32.gmra.mxu0 %v462
        %v1066 = vpop.f32.mrf.mxu0
        %v1067 = vadd.f32 %v709, %v1066
        %v1068 = vpop.f32.mrf.mxu0
        %1069 = vmatprep.mubr.f32.mxu0 0.0
        %1070 = vmatmul.mubr.f32.gmra.mxu0 %v465
        %v1071 = vpop.f32.mrf.mxu0
        %v1072 = vadd.f32 %v714, %v1071
        %v1073 = vpop.f32.mrf.mxu0
        %1074 = vmatprep.mubr.f32.mxu0 0.0
        %1075 = vmatmul.mubr.f32.gmra.mxu0 %v468
        %v1076 = vpop.f32.mrf.mxu0
        %v1077 = vadd.f32 %v719, %v1076
        %v1078 = vpop.f32.mrf.mxu0
        %1079 = vmatprep.mubr.f32.mxu0 0.0
        %1080 = vmatmul.mubr.f32.gmra.mxu0 %v471
        %v1081 = vpop.f32.mrf.mxu0
        %v1082 = vadd.f32 %v724, %v1081
        %v1083 = vpop.f32.mrf.mxu0
        %1084 = vmatprep.mubr.f32.mxu0 0.0
        %1085 = vmatmul.mubr.f32.gmra.mxu0 %v474
        %v1086 = vpop.f32.mrf.mxu0
        %v1087 = vadd.f32 %v729, %v1086
        %v1088 = vpop.f32.mrf.mxu0
        %1089 = vmatprep.mubr.f32.mxu0 0.0
        %1090 = vmatmul.mubr.f32.gmra.mxu0 %v477
        %v1091 = vpop.f32.mrf.mxu0
        %v1092 = vadd.f32 %v734, %v1091
        %v1093 = vpop.f32.mrf.mxu0
        %1094 = vmatprep.mubr.f32.mxu0 0.0
        %1095 = vmatmul.mubr.f32.gmra.mxu0 %v480
        %v1096 = vpop.f32.mrf.mxu0
        %v1097 = vadd.f32 %v739, %v1096
        %v1098 = vpop.f32.mrf.mxu0
        %1099 = vmatprep.mubr.f32.mxu0 0.0
        %1100 = vmatmul.mubr.f32.gmra.mxu0 %v483
        %v1101 = vpop.f32.mrf.mxu0
        %v1102 = vadd.f32 %v744, %v1101
        %v1103 = vpop.f32.mrf.mxu0
        %1104 = vmatprep.mubr.f32.mxu0 0.0
        %1105 = vmatmul.mubr.f32.gmra.mxu0 %v486
        %v1106 = vpop.f32.mrf.mxu0
        %v1107 = vadd.f32 %v749, %v1106
        %v1108 = vpop.f32.mrf.mxu0
        %1109 = vmatprep.mubr.f32.mxu0 0.0
        %1110 = vmatmul.mubr.f32.gmra.mxu0 %v489
        %v1111 = vpop.f32.mrf.mxu0
        %v1112 = vadd.f32 %v754, %v1111
        %v1113 = vpop.f32.mrf.mxu0
        %1114 = vmatprep.mubr.f32.mxu0 0.0
        %1115 = vmatmul.mubr.f32.gmra.mxu0 %v492
        %v1116 = vpop.f32.mrf.mxu0
        %v1117 = vadd.f32 %v759, %v1116
        %v1118 = vpop.f32.mrf.mxu0
        %1119 = vmatprep.mubr.f32.mxu0 0.0
        %1120 = vmatmul.mubr.f32.gmra.mxu0 %v495
        %v1121 = vpop.f32.mrf.mxu0
        %v1122 = vadd.f32 %v764, %v1121
        %v1123 = vpop.f32.mrf.mxu0
        %1124 = vmatprep.mubr.f32.mxu0 0.0
        %1125 = vmatmul.mubr.f32.gmra.mxu0 %v498
        %v1126 = vpop.f32.mrf.mxu0
        %v1127 = vadd.f32 %v769, %v1126
        %v1128 = vpop.f32.mrf.mxu0
        %1129 = vmatprep.mubr.f32.mxu0 0.0
        %1130 = vmatmul.mubr.f32.gmra.mxu0 %v501
        %v1131 = vpop.f32.mrf.mxu0
        %v1132 = vadd.f32 %v774, %v1131
        %v1133 = vpop.f32.mrf.mxu0
        %1134 = vmatprep.mubr.f32.mxu0 0.0
        %1135 = vmatmul.mubr.f32.gmra.mxu0 %v504
        %v1136 = vpop.f32.mrf.mxu0
        %v1137 = vadd.f32 %v779, %v1136
        %v1138 = vpop.f32.mrf.mxu0
        %1139 = vmatprep.mubr.f32.mxu0 0.0
        %1140 = vmatmul.mubr.f32.gmra.mxu0 %v507
        %v1141 = vpop.f32.mrf.mxu0
        %v1142 = vadd.f32 %v784, %v1141
        %v1143 = vpop.f32.mrf.mxu0
        %1144 = vmatprep.mubr.f32.mxu0 0.0
        %1145 = vmatmul.mubr.f32.gmra.mxu0 %v510
        %v1146 = vpop.f32.mrf.mxu0
        %v1147 = vadd.f32 %v789, %v1146
        %v1148 = vpop.f32.mrf.mxu0
        %1149 = vmatprep.mubr.f32.mxu0 0.0
        %1150 = vmatmul.mubr.f32.gmra.mxu0 %v513
        %v1151 = vpop.f32.mrf.mxu0
        %v1152 = vadd.f32 %v794, %v1151
        %v1153 = vpop.f32.mrf.mxu0
        %1154 = vmatprep.mubr.f32.mxu0 0.0
        %1155 = vmatmul.mubr.f32.gmra.mxu0 %v516
        %v1156 = vpop.f32.mrf.mxu0
        %v1157 = vadd.f32 %v799, %v1156
        %v1158 = vpop.f32.mrf.mxu0
        %1159 = vmatprep.mubr.f32.mxu0 0.0
        %1160 = vmatmul.mubr.f32.gmra.mxu0 %v519
        %v1161 = vpop.f32.mrf.mxu0
        %v1162 = vadd.f32 %v804, %v1161
        %v1163 = vpop.f32.mrf.mxu0
        %1164 = vmatprep.mubr.f32.mxu0 0.0
        %1165 = vmatmul.mubr.f32.gmra.mxu0 %v522
        %v1166 = vpop.f32.mrf.mxu0
        %v1167 = vadd.f32 %v809, %v1166
        %v1168 = vpop.f32.mrf.mxu0
        %1169 = vmatprep.mubr.f32.mxu0 0.0
        %1170 = vmatmul.mubr.f32.gmra.mxu0 %v525
        %v1171 = vpop.f32.mrf.mxu0
        %v1172 = vadd.f32 %v814, %v1171
        %v1173 = vpop.f32.mrf.mxu0
        %1174 = vmatprep.mubr.f32.mxu0 0.0
        %1175 = vmatmul.mubr.f32.gmra.mxu0 %v528
        %v1176 = vpop.f32.mrf.mxu0
        %v1177 = vadd.f32 %v819, %v1176
        %v1178 = vpop.f32.mrf.mxu0
        %1179 = vmatprep.mubr.f32.mxu0 0.0
        %1180 = vmatmul.mubr.f32.gmra.mxu0 %v531
        %v1181 = vpop.f32.mrf.mxu0
        %v1182 = vadd.f32 %v824, %v1181
        %v1183 = vpop.f32.mrf.mxu0
        %1184 = vmatprep.mubr.f32.mxu0 0.0
        %1185 = vmatmul.mubr.f32.gmra.mxu0 %v534
        %v1186 = vpop.f32.mrf.mxu0
        %v1187 = vadd.f32 %v829, %v1186
        %v1188 = vpop.f32.mrf.mxu0
        %1189 = vmatprep.mubr.f32.mxu0 0.0
        %1190 = vmatmul.mubr.f32.gmra.mxu0 %v537
        %v1191 = vpop.f32.mrf.mxu0
        %v1192 = vadd.f32 %v834, %v1191
        %v1193 = vpop.f32.mrf.mxu0
        %1194 = vmatprep.mubr.f32.mxu0 0.0
        %1195 = vmatmul.mubr.f32.gmra.mxu0 %v540
        %v1196 = vpop.f32.mrf.mxu0
        %v1197 = vadd.f32 %v839, %v1196
        %v1198 = vpop.f32.mrf.mxu0
        %1199 = vmatprep.mubr.f32.mxu0 0.0
        %1200 = vmatmul.mubr.f32.gmra.mxu0 %v543
        %v1201 = vpop.f32.mrf.mxu0
        %v1202 = vadd.f32 %v844, %v1201
        %v1203 = vpop.f32.mrf.mxu0
        %1204 = vmatprep.mubr.f32.mxu0 0.0
        %1205 = vmatmul.mubr.f32.gmra.mxu0 %v546
        %v1206 = vpop.f32.mrf.mxu0
        %v1207 = vadd.f32 %v849, %v1206
        %v1208 = vpop.f32.mrf.mxu0
        %1209 = vmatprep.mubr.f32.mxu0 0.0
        %1210 = vmatmul.mubr.f32.gmra.mxu0 %v549
        %v1211 = vpop.f32.mrf.mxu0
        %v1212 = vadd.f32 %v854, %v1211
        %v1213 = vpop.f32.mrf.mxu0
        %1214 = vmatprep.mubr.f32.mxu0 0.0
        %1215 = vmatmul.mubr.f32.gmra.mxu0 %v552
        %v1216 = vpop.f32.mrf.mxu0
        %v1217 = vadd.f32 %v859, %v1216
        %v1218 = vpop.f32.mrf.mxu0
        %1219 = vmatprep.mubr.f32.mxu0 0.0
        %1220 = vmatmul.mubr.f32.gmra.mxu0 %v555
        %v1221 = vpop.f32.mrf.mxu0
        %v1222 = vadd.f32 %v864, %v1221
        %v1223 = vpop.f32.mrf.mxu0
        %1224 = vmatprep.mubr.f32.mxu0 0.0
        %1225 = vmatmul.mubr.f32.gmra.mxu0 %v558
        %v1226 = vpop.f32.mrf.mxu0
        %v1227 = vadd.f32 %v869, %v1226
        %v1228 = vpop.f32.mrf.mxu0
        %1229 = vmatprep.mubr.f32.mxu0 0.0
        %1230 = vmatmul.mubr.f32.gmra.mxu0 %v561
        %v1231 = vpop.f32.mrf.mxu0
        %v1232 = vadd.f32 %v874, %v1231
        %v1233 = vpop.f32.mrf.mxu0
        %1234 = vmatprep.mubr.f32.mxu0 0.0
        %1235 = vmatmul.mubr.f32.gmra.mxu0 %v564
        %v1236 = vpop.f32.mrf.mxu0
        %v1237 = vadd.f32 %v879, %v1236
        %v1238 = vpop.f32.mrf.mxu0
        %1239 = vmatprep.mubr.f32.mxu0 0.0
        %1240 = vmatmul.mubr.f32.gmra.mxu0 %v567
        %v1241 = vpop.f32.mrf.mxu0
        %v1242 = vadd.f32 %v884, %v1241
        %v1243 = vpop.f32.mrf.mxu0
        %1244 = vmatprep.mubr.f32.mxu0 0.0
        %1245 = vmatmul.mubr.f32.gmra.mxu0 %v570
        %v1246 = vpop.f32.mrf.mxu0
        %v1247 = vadd.f32 %v889, %v1246
        %v1248 = vpop.f32.mrf.mxu0
        %1249 = vmatprep.mubr.f32.mxu0 0.0
        %1250 = vmatmul.mubr.f32.gmra.mxu0 %v573
        %v1251 = vpop.f32.mrf.mxu0
        %v1252 = vadd.f32 %v894, %v1251
        %v1253 = vpop.f32.mrf.mxu0
        %1254 = vmatprep.mubr.f32.mxu0 0.0
        %1255 = vmatmul.mubr.f32.gmra.mxu0 %v576
        %v1256 = vpop.f32.mrf.mxu0
        %v1257 = vadd.f32 %v899, %v1256
        %v1258 = vpop.f32.mrf.mxu0
        %1259 = vmatprep.mubr.f32.mxu0 0.0
        %1260 = vmatmul.mubr.f32.gmra.mxu0 %v579
        %v1261 = vpop.f32.mrf.mxu0
        %v1262 = vadd.f32 %v904, %v1261
        %v1263 = vpop.f32.mrf.mxu0
        %1264 = vmatprep.mubr.f32.mxu0 0.0
        %1265 = vmatmul.mubr.f32.gmra.mxu0 %v582
        %v1266 = vpop.f32.mrf.mxu0
        %v1267 = vadd.f32 %v909, %v1266
        %v1268 = vpop.f32.mrf.mxu0
        %1269 = vmatprep.mubr.f32.mxu0 0.0
        %1270 = vmatmul.mubr.f32.gmra.mxu0 %v585
        %v1271 = vpop.f32.mrf.mxu0
        %v1272 = vadd.f32 %v914, %v1271
        %v1273 = vpop.f32.mrf.mxu0
        %1274 = vmatprep.mubr.f32.mxu0 0.0
        %1275 = vmatmul.mubr.f32.gmra.mxu0 %v588
        %v1276 = vpop.f32.mrf.mxu0
        %v1277 = vadd.f32 %v919, %v1276
        %v1278 = vpop.f32.mrf.mxu0
        %1279 = vmatprep.mubr.f32.mxu0 0.0
        %1280 = vmatmul.mubr.f32.gmra.mxu0 %v591
        %v1281 = vpop.f32.mrf.mxu0
        %v1282 = vadd.f32 %v924, %v1281
        %v1283 = vpop.f32.mrf.mxu0
        %1284 = vmatprep.mubr.f32.mxu0 0.0
        %1285 = vmatmul.mubr.f32.gmra.mxu0 %v594
        %v1286 = vpop.f32.mrf.mxu0
        %v1287 = vadd.f32 %v929, %v1286
        %v1288 = vpop.f32.mrf.mxu0
        %1289 = vmatprep.mubr.f32.mxu0 0.0
        %1290 = vmatmul.mubr.f32.gmra.mxu0 %v597
        %v1291 = vpop.f32.mrf.mxu0
        %v1292 = vadd.f32 %v934, %v1291
        %v1293 = vpop.f32.mrf.mxu0
        %1294 = vmatprep.mubr.f32.mxu0 0.0
        %1295 = vmatmul.mubr.f32.gmra.mxu0 %v600
        %v1296 = vpop.f32.mrf.mxu0
        %v1297 = vadd.f32 %v939, %v1296
        %v1298 = vpop.f32.mrf.mxu0
        %1299 = vmatprep.mubr.f32.mxu0 0.0
        %1300 = vmatmul.mubr.f32.gmra.mxu0 %v603
        %v1301 = vpop.f32.mrf.mxu0
        %v1302 = vadd.f32 %v944, %v1301
        %v1303 = vpop.f32.mrf.mxu0
        %1304 = vmatprep.mubr.f32.mxu0 0.0
        %1305 = vmatmul.mubr.f32.gmra.mxu0 %v606
        %v1306 = vpop.f32.mrf.mxu0
        %v1307 = vadd.f32 %v949, %v1306
        %v1308 = vpop.f32.mrf.mxu0
        %1309 = vmatprep.mubr.f32.mxu0 0.0
        %1310 = vmatmul.mubr.f32.gmra.mxu0 %v609
        %v1311 = vpop.f32.mrf.mxu0
        %v1312 = vadd.f32 %v954, %v1311
        %v1313 = vpop.f32.mrf.mxu0
        %1314 = vmatprep.mubr.f32.mxu0 0.0
        %1315 = vmatmul.mubr.f32.gmra.mxu0 %v612
        %v1316 = vpop.f32.mrf.mxu0
        %v1317 = vadd.f32 %v959, %v1316
        %v1318 = vpop.f32.mrf.mxu0
        %1319 = vmatprep.mubr.f32.mxu0 0.0
        %1320 = vmatmul.mubr.f32.gmra.mxu0 %v615
        %v1321 = vpop.f32.mrf.mxu0
        %v1322 = vadd.f32 %v964, %v1321
        %v1323 = vpop.f32.mrf.mxu0
        %1324 = vmatprep.mubr.f32.mxu0 0.0
        %1325 = vmatmul.mubr.f32.gmra.mxu0 %v618
        %v1326 = vpop.f32.mrf.mxu0
        %v1327 = vadd.f32 %v969, %v1326
        %v1328 = vpop.f32.mrf.mxu0
        %1329 = vmatprep.mubr.f32.mxu0 0.0
        %1330 = vmatmul.mubr.f32.gmra.mxu0 %v621
        %v1331 = vpop.f32.mrf.mxu0
        %v1332 = vadd.f32 %v974, %v1331
        %v1333 = vpop.f32.mrf.mxu0
        %1334 = vmatprep.mubr.f32.mxu0 0.0
        %1335 = vmatmul.mubr.f32.gmra.mxu0 %v624
        %v1336 = vpop.f32.mrf.mxu0
        %v1337 = vadd.f32 %v979, %v1336
        %v1338 = vpop.f32.mrf.mxu0
        %1339 = vmatprep.mubr.f32.mxu0 0.0
        %1340 = vmatmul.mubr.f32.gmra.mxu0 %v627
        %v1341 = vpop.f32.mrf.mxu0
        %v1342 = vadd.f32 %v984, %v1341
        %v1343 = vpop.f32.mrf.mxu0
        %1344 = vdwg.mxu0
        %v1345 = vld [vmem:[%s384 + $0x40] sm:$0xff]
        %v1346 = vld [vmem:[%s384 + $0x48] sm:$0xff]
        %v1347 = vld [vmem:[%s384 + $0x50] sm:$0xff]
        %v1348 = vld [vmem:[%s384 + $0x58] sm:$0xff]
        %v1349 = vld [vmem:[%s384 + $0x60] sm:$0xff]
        %v1350 = vld [vmem:[%s384 + $0x68] sm:$0xff]
        %v1351 = vld [vmem:[%s384 + $0x70] sm:$0xff]
        %v1352 = vld [vmem:[%s384 + $0x78] sm:$0xff]
        %v1353 = vld [vmem:[%s384 + $0x80] sm:$0xff]
        %v1354 = vld [vmem:[%s384 + $0x88] sm:$0xff]
        %v1355 = vld [vmem:[%s384 + $0x90] sm:$0xff]
        %v1356 = vld [vmem:[%s384 + $0x98] sm:$0xff]
        %v1357 = vld [vmem:[%s384 + $0xa0] sm:$0xff]
        %v1358 = vld [vmem:[%s384 + $0xa8] sm:$0xff]
        %v1359 = vld [vmem:[%s384 + $0xb0] sm:$0xff]
        %v1360 = vld [vmem:[%s384 + $0xb8] sm:$0xff]
        %v1361 = vld [vmem:[%s384 + $0xc0] sm:$0xff]
        %v1362 = vld [vmem:[%s384 + $0xc8] sm:$0xff]
        %v1363 = vld [vmem:[%s384 + $0xd0] sm:$0xff]
        %v1364 = vld [vmem:[%s384 + $0xd8] sm:$0xff]
        %v1365 = vld [vmem:[%s384 + $0xe0] sm:$0xff]
        %v1366 = vld [vmem:[%s384 + $0xe8] sm:$0xff]
        %v1367 = vld [vmem:[%s384 + $0xf0] sm:$0xff]
        %v1368 = vld [vmem:[%s384 + $0xf8] sm:$0xff]
        %v1369 = vld [vmem:[%s384 + $0x100] sm:$0xff]
        %v1370 = vld [vmem:[%s384 + $0x108] sm:$0xff]
        %v1371 = vld [vmem:[%s384 + $0x110] sm:$0xff]
        %v1372 = vld [vmem:[%s384 + $0x118] sm:$0xff]
        %v1373 = vld [vmem:[%s384 + $0x120] sm:$0xff]
        %v1374 = vld [vmem:[%s384 + $0x128] sm:$0xff]
        %v1375 = vld [vmem:[%s384 + $0x130] sm:$0xff]
        %v1376 = vld [vmem:[%s384 + $0x138] sm:$0xff]
        %v1377 = vld [vmem:[%s384 + $0x140] sm:$0xff]
        %v1378 = vld [vmem:[%s384 + $0x148] sm:$0xff]
        %v1379 = vld [vmem:[%s384 + $0x150] sm:$0xff]
        %v1380 = vld [vmem:[%s384 + $0x158] sm:$0xff]
        %v1381 = vld [vmem:[%s384 + $0x160] sm:$0xff]
        %v1382 = vld [vmem:[%s384 + $0x168] sm:$0xff]
        %v1383 = vld [vmem:[%s384 + $0x170] sm:$0xff]
        %v1384 = vld [vmem:[%s384 + $0x178] sm:$0xff]
        %v1385 = vld [vmem:[%s384 + $0x180] sm:$0xff]
        %v1386 = vld [vmem:[%s384 + $0x188] sm:$0xff]
        %v1387 = vld [vmem:[%s384 + $0x190] sm:$0xff]
        %v1388 = vld [vmem:[%s384 + $0x198] sm:$0xff]
        %v1389 = vld [vmem:[%s384 + $0x1a0] sm:$0xff]
        %v1390 = vld [vmem:[%s384 + $0x1a8] sm:$0xff]
        %v1391 = vld [vmem:[%s384 + $0x1b0] sm:$0xff]
        %v1392 = vld [vmem:[%s384 + $0x1b8] sm:$0xff]
        %v1393 = vld [vmem:[%s384 + $0x1c0] sm:$0xff]
        %v1394 = vld [vmem:[%s384 + $0x1c8] sm:$0xff]
        %v1395 = vld [vmem:[%s384 + $0x1d0] sm:$0xff]
        %v1396 = vld [vmem:[%s384 + $0x1d8] sm:$0xff]
        %v1397 = vld [vmem:[%s384 + $0x1e0] sm:$0xff]
        %v1398 = vld [vmem:[%s384 + $0x1e8] sm:$0xff]
        %v1399 = vld [vmem:[%s384 + $0x1f0] sm:$0xff]
        %v1400 = vld [vmem:[%s384 + $0x1f8] sm:$0xff]
        %v1401 = vld [vmem:[%s384 + $0x200] sm:$0xff]
        %v1402 = vld [vmem:[%s384 + $0x208] sm:$0xff]
        %s1403 = scalar_lea.vmem %s1, 96
        %v1404 = vld [vmem:[%s1403] sm:$0xff]
        %v1405 = vld [vmem:[%s1403 + $0x8] sm:$0xff]
        %v1406 = vld [vmem:[%s1403 + $0x10] sm:$0xff]
        %v1407 = vld [vmem:[%s1403 + $0x18] sm:$0xff]
        %v1408 = vld [vmem:[%s1403 + $0x20] sm:$0xff]
        %v1409 = vld [vmem:[%s1403 + $0x28] sm:$0xff]
        %v1411 = vsel %vm457, %v1345, 0
        %v1414 = vsel %vm457, %v1346, 0
        %v1417 = vsel %vm457, %v1347, 0
        %v1420 = vsel %vm457, %v1348, 0
        %v1423 = vsel %vm457, %v1349, 0
        %v1426 = vsel %vm457, %v1350, 0
        %v1429 = vsel %vm457, %v1351, 0
        %v1432 = vsel %vm457, %v1352, 0
        %v1435 = vsel %vm457, %v1353, 0
        %v1438 = vsel %vm457, %v1354, 0
        %v1441 = vsel %vm457, %v1355, 0
        %v1444 = vsel %vm457, %v1356, 0
        %v1447 = vsel %vm457, %v1357, 0
        %v1450 = vsel %vm457, %v1358, 0
        %v1453 = vsel %vm457, %v1359, 0
        %v1456 = vsel %vm457, %v1360, 0
        %v1459 = vsel %vm457, %v1361, 0
        %v1462 = vsel %vm457, %v1362, 0
        %v1465 = vsel %vm457, %v1363, 0
        %v1468 = vsel %vm457, %v1364, 0
        %v1471 = vsel %vm457, %v1365, 0
        %v1474 = vsel %vm457, %v1366, 0
        %v1477 = vsel %vm457, %v1367, 0
        %v1480 = vsel %vm457, %v1368, 0
        %v1483 = vsel %vm457, %v1369, 0
        %v1486 = vsel %vm457, %v1370, 0
        %v1489 = vsel %vm457, %v1371, 0
        %v1492 = vsel %vm457, %v1372, 0
        %v1495 = vsel %vm457, %v1373, 0
        %v1498 = vsel %vm457, %v1374, 0
        %v1501 = vsel %vm457, %v1375, 0
        %v1504 = vsel %vm457, %v1376, 0
        %v1507 = vsel %vm457, %v1377, 0
        %v1510 = vsel %vm457, %v1378, 0
        %v1513 = vsel %vm457, %v1379, 0
        %v1516 = vsel %vm457, %v1380, 0
        %v1519 = vsel %vm457, %v1381, 0
        %v1522 = vsel %vm457, %v1382, 0
        %v1525 = vsel %vm457, %v1383, 0
        %v1528 = vsel %vm457, %v1384, 0
        %v1531 = vsel %vm457, %v1385, 0
        %v1534 = vsel %vm457, %v1386, 0
        %v1537 = vsel %vm457, %v1387, 0
        %v1540 = vsel %vm457, %v1388, 0
        %v1543 = vsel %vm457, %v1389, 0
        %v1546 = vsel %vm457, %v1390, 0
        %v1549 = vsel %vm457, %v1391, 0
        %v1552 = vsel %vm457, %v1392, 0
        %v1555 = vsel %vm457, %v1393, 0
        %v1558 = vsel %vm457, %v1394, 0
        %v1561 = vsel %vm457, %v1395, 0
        %v1564 = vsel %vm457, %v1396, 0
        %v1567 = vsel %vm457, %v1397, 0
        %v1570 = vsel %vm457, %v1398, 0
        %v1573 = vsel %vm457, %v1399, 0
        %v1576 = vsel %vm457, %v1400, 0
        %v1579 = vsel %vm457, %v1401, 0
        %v1582 = vsel %vm457, %v1402, 0
        %1584 = vmatprep.subr.mxu0 0.0
        %1585 = vmatpush1.msra.mxu0 0.0
        %1586 = vmatprep.subr.mxu0 0.0
        %1587 = vmatpush1.msra.mxu0 0.0
        %1588 = vmatprep.subr.mxu0 0.0
        %1589 = vmatpush1.msra.mxu0 0.0
        %1590 = vmatprep.subr.mxu0 0.0
        %1591 = vmatpush1.msra.mxu0 0.0
        %1592 = vmatprep.subr.mxu0 0.0
        %1593 = vmatpush1.msra.mxu0 0.0
        %1594 = vmatprep.subr.mxu0 0.0
        %1595 = vmatpush1.msra.mxu0 0.0
        %1596 = vmatprep.subr.mxu0 0.0
        %1597 = vmatpush1.msra.mxu0 0.0
        %1598 = vmatprep.subr.mxu0 0.0
        %1599 = vmatpush1.msra.mxu0 0.0
        %1600 = vmatprep.subr.mxu0 0.0
        %1601 = vmatpush1.msra.mxu0 0.0
        %1602 = vmatprep.subr.mxu0 0.0
        %1603 = vmatpush1.msra.mxu0 0.0
        %1604 = vmatprep.subr.mxu0 0.0
        %1605 = vmatpush1.msra.mxu0 %v1409
        %1606 = vmatprep.subr.mxu0 0.0
        %1607 = vmatpush1.msra.mxu0 %v1408
        %1608 = vmatprep.subr.mxu0 0.0
        %1609 = vmatpush1.msra.mxu0 %v1407
        %1610 = vmatprep.subr.mxu0 0.0
        %1611 = vmatpush1.msra.mxu0 %v1406
        %1612 = vmatprep.subr.mxu0 0.0
        %1613 = vmatpush1.msra.mxu0 %v1405
        %1614 = vmatprep.subr.mxu0 0.0
        %1615 = vmatpush1.msra.mxu0 %v1404
        %1616 = vmatprep.subr.mxu0 0.0
        %1617 = vmatpush2.msra.mxu0 0.0
        %1618 = vmatprep.subr.mxu0 0.0
        %1619 = vmatpush2.msra.mxu0 0.0
        %1620 = vmatprep.subr.mxu0 0.0
        %1621 = vmatpush2.msra.mxu0 0.0
        %1622 = vmatprep.subr.mxu0 0.0
        %1623 = vmatpush2.msra.mxu0 0.0
        %1624 = vmatprep.subr.mxu0 0.0
        %1625 = vmatpush2.msra.mxu0 0.0
        %1626 = vmatprep.subr.mxu0 0.0
        %1627 = vmatpush2.msra.mxu0 0.0
        %1628 = vmatprep.subr.mxu0 0.0
        %1629 = vmatpush2.msra.mxu0 0.0
        %1630 = vmatprep.subr.mxu0 0.0
        %1631 = vmatpush2.msra.mxu0 0.0
        %1632 = vmatprep.subr.mxu0 0.0
        %1633 = vmatpush2.msra.mxu0 0.0
        %1634 = vmatprep.subr.mxu0 0.0
        %1635 = vmatpush2.msra.mxu0 0.0
        %1636 = vmatprep.subr.mxu0 0.0
        %1637 = vmatpush2.msra.mxu0 0.0
        %1638 = vmatprep.subr.mxu0 0.0
        %1639 = vmatpush2.msra.mxu0 0.0
        %1640 = vmatprep.subr.mxu0 0.0
        %1641 = vmatpush2.msra.mxu0 0.0
        %1642 = vmatprep.subr.mxu0 0.0
        %1643 = vmatpush2.msra.mxu0 0.0
        %1644 = vmatprep.subr.mxu0 0.0
        %1645 = vmatpush2.msra.mxu0 0.0
        %1646 = vmatprep.subr.mxu0 0.0
        %1647 = vmatpush2.msra.mxu0 0.0
        %1648 = vmatprep.mubr.f32.mxu0 0.0
        %1649 = vmatmul.mubr.f32.gmra.mxu0 %v1411
        %v1650 = vpop.f32.mrf.mxu0
        %v1651 = vadd.f32 0.0, %v1650
        %v1652 = vpop.f32.mrf.mxu0
        %1653 = vmatprep.mubr.f32.mxu0 0.0
        %1654 = vmatmul.mubr.f32.gmra.mxu0 %v1414
        %v1655 = vpop.f32.mrf.mxu0
        %v1656 = vadd.f32 0.0, %v1655
        %v1657 = vpop.f32.mrf.mxu0
        %1658 = vmatprep.mubr.f32.mxu0 0.0
        %1659 = vmatmul.mubr.f32.gmra.mxu0 %v1417
        %v1660 = vpop.f32.mrf.mxu0
        %v1661 = vadd.f32 0.0, %v1660
        %v1662 = vpop.f32.mrf.mxu0
        %1663 = vmatprep.mubr.f32.mxu0 0.0
        %1664 = vmatmul.mubr.f32.gmra.mxu0 %v1420
        %v1665 = vpop.f32.mrf.mxu0
        %v1666 = vadd.f32 0.0, %v1665
        %v1667 = vpop.f32.mrf.mxu0
        %1668 = vmatprep.mubr.f32.mxu0 0.0
        %1669 = vmatmul.mubr.f32.gmra.mxu0 %v1423
        %v1670 = vpop.f32.mrf.mxu0
        %v1671 = vadd.f32 0.0, %v1670
        %v1672 = vpop.f32.mrf.mxu0
        %1673 = vmatprep.mubr.f32.mxu0 0.0
        %1674 = vmatmul.mubr.f32.gmra.mxu0 %v1426
        %v1675 = vpop.f32.mrf.mxu0
        %v1676 = vadd.f32 0.0, %v1675
        %v1677 = vpop.f32.mrf.mxu0
        %1678 = vmatprep.mubr.f32.mxu0 0.0
        %1679 = vmatmul.mubr.f32.gmra.mxu0 %v1429
        %v1680 = vpop.f32.mrf.mxu0
        %v1681 = vadd.f32 0.0, %v1680
        %v1682 = vpop.f32.mrf.mxu0
        %1683 = vmatprep.mubr.f32.mxu0 0.0
        %1684 = vmatmul.mubr.f32.gmra.mxu0 %v1432
        %v1685 = vpop.f32.mrf.mxu0
        %v1686 = vadd.f32 0.0, %v1685
        %v1687 = vpop.f32.mrf.mxu0
        %1688 = vmatprep.mubr.f32.mxu0 0.0
        %1689 = vmatmul.mubr.f32.gmra.mxu0 %v1435
        %v1690 = vpop.f32.mrf.mxu0
        %v1691 = vadd.f32 0.0, %v1690
        %v1692 = vpop.f32.mrf.mxu0
        %1693 = vmatprep.mubr.f32.mxu0 0.0
        %1694 = vmatmul.mubr.f32.gmra.mxu0 %v1438
        %v1695 = vpop.f32.mrf.mxu0
        %v1696 = vadd.f32 0.0, %v1695
        %v1697 = vpop.f32.mrf.mxu0
        %1698 = vmatprep.mubr.f32.mxu0 0.0
        %1699 = vmatmul.mubr.f32.gmra.mxu0 %v1441
        %v1700 = vpop.f32.mrf.mxu0
        %v1701 = vadd.f32 0.0, %v1700
        %v1702 = vpop.f32.mrf.mxu0
        %1703 = vmatprep.mubr.f32.mxu0 0.0
        %1704 = vmatmul.mubr.f32.gmra.mxu0 %v1444
        %v1705 = vpop.f32.mrf.mxu0
        %v1706 = vadd.f32 0.0, %v1705
        %v1707 = vpop.f32.mrf.mxu0
        %1708 = vmatprep.mubr.f32.mxu0 0.0
        %1709 = vmatmul.mubr.f32.gmra.mxu0 %v1447
        %v1710 = vpop.f32.mrf.mxu0
        %v1711 = vadd.f32 0.0, %v1710
        %v1712 = vpop.f32.mrf.mxu0
        %1713 = vmatprep.mubr.f32.mxu0 0.0
        %1714 = vmatmul.mubr.f32.gmra.mxu0 %v1450
        %v1715 = vpop.f32.mrf.mxu0
        %v1716 = vadd.f32 0.0, %v1715
        %v1717 = vpop.f32.mrf.mxu0
        %1718 = vmatprep.mubr.f32.mxu0 0.0
        %1719 = vmatmul.mubr.f32.gmra.mxu0 %v1453
        %v1720 = vpop.f32.mrf.mxu0
        %v1721 = vadd.f32 0.0, %v1720
        %v1722 = vpop.f32.mrf.mxu0
        %1723 = vmatprep.mubr.f32.mxu0 0.0
        %1724 = vmatmul.mubr.f32.gmra.mxu0 %v1456
        %v1725 = vpop.f32.mrf.mxu0
        %v1726 = vadd.f32 0.0, %v1725
        %v1727 = vpop.f32.mrf.mxu0
        %1728 = vmatprep.mubr.f32.mxu0 0.0
        %1729 = vmatmul.mubr.f32.gmra.mxu0 %v1459
        %v1730 = vpop.f32.mrf.mxu0
        %v1731 = vadd.f32 0.0, %v1730
        %v1732 = vpop.f32.mrf.mxu0
        %1733 = vmatprep.mubr.f32.mxu0 0.0
        %1734 = vmatmul.mubr.f32.gmra.mxu0 %v1462
        %v1735 = vpop.f32.mrf.mxu0
        %v1736 = vadd.f32 0.0, %v1735
        %v1737 = vpop.f32.mrf.mxu0
        %1738 = vmatprep.mubr.f32.mxu0 0.0
        %1739 = vmatmul.mubr.f32.gmra.mxu0 %v1465
        %v1740 = vpop.f32.mrf.mxu0
        %v1741 = vadd.f32 0.0, %v1740
        %v1742 = vpop.f32.mrf.mxu0
        %1743 = vmatprep.mubr.f32.mxu0 0.0
        %1744 = vmatmul.mubr.f32.gmra.mxu0 %v1468
        %v1745 = vpop.f32.mrf.mxu0
        %v1746 = vadd.f32 0.0, %v1745
        %v1747 = vpop.f32.mrf.mxu0
        %1748 = vmatprep.mubr.f32.mxu0 0.0
        %1749 = vmatmul.mubr.f32.gmra.mxu0 %v1471
        %v1750 = vpop.f32.mrf.mxu0
        %v1751 = vadd.f32 0.0, %v1750
        %v1752 = vpop.f32.mrf.mxu0
        %1753 = vmatprep.mubr.f32.mxu0 0.0
        %1754 = vmatmul.mubr.f32.gmra.mxu0 %v1474
        %v1755 = vpop.f32.mrf.mxu0
        %v1756 = vadd.f32 0.0, %v1755
        %v1757 = vpop.f32.mrf.mxu0
        %1758 = vmatprep.mubr.f32.mxu0 0.0
        %1759 = vmatmul.mubr.f32.gmra.mxu0 %v1477
        %v1760 = vpop.f32.mrf.mxu0
        %v1761 = vadd.f32 0.0, %v1760
        %v1762 = vpop.f32.mrf.mxu0
        %1763 = vmatprep.mubr.f32.mxu0 0.0
        %1764 = vmatmul.mubr.f32.gmra.mxu0 %v1480
        %v1765 = vpop.f32.mrf.mxu0
        %v1766 = vadd.f32 0.0, %v1765
        %v1767 = vpop.f32.mrf.mxu0
        %1768 = vmatprep.mubr.f32.mxu0 0.0
        %1769 = vmatmul.mubr.f32.gmra.mxu0 %v1483
        %v1770 = vpop.f32.mrf.mxu0
        %v1771 = vadd.f32 0.0, %v1770
        %v1772 = vpop.f32.mrf.mxu0
        %1773 = vmatprep.mubr.f32.mxu0 0.0
        %1774 = vmatmul.mubr.f32.gmra.mxu0 %v1486
        %v1775 = vpop.f32.mrf.mxu0
        %v1776 = vadd.f32 0.0, %v1775
        %v1777 = vpop.f32.mrf.mxu0
        %1778 = vmatprep.mubr.f32.mxu0 0.0
        %1779 = vmatmul.mubr.f32.gmra.mxu0 %v1489
        %v1780 = vpop.f32.mrf.mxu0
        %v1781 = vadd.f32 0.0, %v1780
        %v1782 = vpop.f32.mrf.mxu0
        %1783 = vmatprep.mubr.f32.mxu0 0.0
        %1784 = vmatmul.mubr.f32.gmra.mxu0 %v1492
        %v1785 = vpop.f32.mrf.mxu0
        %v1786 = vadd.f32 0.0, %v1785
        %v1787 = vpop.f32.mrf.mxu0
        %1788 = vmatprep.mubr.f32.mxu0 0.0
        %1789 = vmatmul.mubr.f32.gmra.mxu0 %v1495
        %v1790 = vpop.f32.mrf.mxu0
        %v1791 = vadd.f32 0.0, %v1790
        %v1792 = vpop.f32.mrf.mxu0
        %1793 = vmatprep.mubr.f32.mxu0 0.0
        %1794 = vmatmul.mubr.f32.gmra.mxu0 %v1498
        %v1795 = vpop.f32.mrf.mxu0
        %v1796 = vadd.f32 0.0, %v1795
        %v1797 = vpop.f32.mrf.mxu0
        %1798 = vmatprep.mubr.f32.mxu0 0.0
        %1799 = vmatmul.mubr.f32.gmra.mxu0 %v1501
        %v1800 = vpop.f32.mrf.mxu0
        %v1801 = vadd.f32 0.0, %v1800
        %v1802 = vpop.f32.mrf.mxu0
        %1803 = vmatprep.mubr.f32.mxu0 0.0
        %1804 = vmatmul.mubr.f32.gmra.mxu0 %v1504
        %v1805 = vpop.f32.mrf.mxu0
        %v1806 = vadd.f32 0.0, %v1805
        %v1807 = vpop.f32.mrf.mxu0
        %1808 = vmatprep.mubr.f32.mxu0 0.0
        %1809 = vmatmul.mubr.f32.gmra.mxu0 %v1507
        %v1810 = vpop.f32.mrf.mxu0
        %v1811 = vadd.f32 0.0, %v1810
        %v1812 = vpop.f32.mrf.mxu0
        %1813 = vmatprep.mubr.f32.mxu0 0.0
        %1814 = vmatmul.mubr.f32.gmra.mxu0 %v1510
        %v1815 = vpop.f32.mrf.mxu0
        %v1816 = vadd.f32 0.0, %v1815
        %v1817 = vpop.f32.mrf.mxu0
        %1818 = vmatprep.mubr.f32.mxu0 0.0
        %1819 = vmatmul.mubr.f32.gmra.mxu0 %v1513
        %v1820 = vpop.f32.mrf.mxu0
        %v1821 = vadd.f32 0.0, %v1820
        %v1822 = vpop.f32.mrf.mxu0
        %1823 = vmatprep.mubr.f32.mxu0 0.0
        %1824 = vmatmul.mubr.f32.gmra.mxu0 %v1516
        %v1825 = vpop.f32.mrf.mxu0
        %v1826 = vadd.f32 0.0, %v1825
        %v1827 = vpop.f32.mrf.mxu0
        %1828 = vmatprep.mubr.f32.mxu0 0.0
        %1829 = vmatmul.mubr.f32.gmra.mxu0 %v1519
        %v1830 = vpop.f32.mrf.mxu0
        %v1831 = vadd.f32 0.0, %v1830
        %v1832 = vpop.f32.mrf.mxu0
        %1833 = vmatprep.mubr.f32.mxu0 0.0
        %1834 = vmatmul.mubr.f32.gmra.mxu0 %v1522
        %v1835 = vpop.f32.mrf.mxu0
        %v1836 = vadd.f32 0.0, %v1835
        %v1837 = vpop.f32.mrf.mxu0
        %1838 = vmatprep.mubr.f32.mxu0 0.0
        %1839 = vmatmul.mubr.f32.gmra.mxu0 %v1525
        %v1840 = vpop.f32.mrf.mxu0
        %v1841 = vadd.f32 0.0, %v1840
        %v1842 = vpop.f32.mrf.mxu0
        %1843 = vmatprep.mubr.f32.mxu0 0.0
        %1844 = vmatmul.mubr.f32.gmra.mxu0 %v1528
        %v1845 = vpop.f32.mrf.mxu0
        %v1846 = vadd.f32 0.0, %v1845
        %v1847 = vpop.f32.mrf.mxu0
        %1848 = vmatprep.mubr.f32.mxu0 0.0
        %1849 = vmatmul.mubr.f32.gmra.mxu0 %v1531
        %v1850 = vpop.f32.mrf.mxu0
        %v1851 = vadd.f32 0.0, %v1850
        %v1852 = vpop.f32.mrf.mxu0
        %1853 = vmatprep.mubr.f32.mxu0 0.0
        %1854 = vmatmul.mubr.f32.gmra.mxu0 %v1534
        %v1855 = vpop.f32.mrf.mxu0
        %v1856 = vadd.f32 0.0, %v1855
        %v1857 = vpop.f32.mrf.mxu0
        %1858 = vmatprep.mubr.f32.mxu0 0.0
        %1859 = vmatmul.mubr.f32.gmra.mxu0 %v1537
        %v1860 = vpop.f32.mrf.mxu0
        %v1861 = vadd.f32 0.0, %v1860
        %v1862 = vpop.f32.mrf.mxu0
        %1863 = vmatprep.mubr.f32.mxu0 0.0
        %1864 = vmatmul.mubr.f32.gmra.mxu0 %v1540
        %v1865 = vpop.f32.mrf.mxu0
        %v1866 = vadd.f32 0.0, %v1865
        %v1867 = vpop.f32.mrf.mxu0
        %1868 = vmatprep.mubr.f32.mxu0 0.0
        %1869 = vmatmul.mubr.f32.gmra.mxu0 %v1543
        %v1870 = vpop.f32.mrf.mxu0
        %v1871 = vadd.f32 0.0, %v1870
        %v1872 = vpop.f32.mrf.mxu0
        %1873 = vmatprep.mubr.f32.mxu0 0.0
        %1874 = vmatmul.mubr.f32.gmra.mxu0 %v1546
        %v1875 = vpop.f32.mrf.mxu0
        %v1876 = vadd.f32 0.0, %v1875
        %v1877 = vpop.f32.mrf.mxu0
        %1878 = vmatprep.mubr.f32.mxu0 0.0
        %1879 = vmatmul.mubr.f32.gmra.mxu0 %v1549
        %v1880 = vpop.f32.mrf.mxu0
        %v1881 = vadd.f32 0.0, %v1880
        %v1882 = vpop.f32.mrf.mxu0
        %1883 = vmatprep.mubr.f32.mxu0 0.0
        %1884 = vmatmul.mubr.f32.gmra.mxu0 %v1552
        %v1885 = vpop.f32.mrf.mxu0
        %v1886 = vadd.f32 0.0, %v1885
        %v1887 = vpop.f32.mrf.mxu0
        %1888 = vmatprep.mubr.f32.mxu0 0.0
        %1889 = vmatmul.mubr.f32.gmra.mxu0 %v1555
        %v1890 = vpop.f32.mrf.mxu0
        %v1891 = vadd.f32 0.0, %v1890
        %v1892 = vpop.f32.mrf.mxu0
        %1893 = vmatprep.mubr.f32.mxu0 0.0
        %1894 = vmatmul.mubr.f32.gmra.mxu0 %v1558
        %v1895 = vpop.f32.mrf.mxu0
        %v1896 = vadd.f32 0.0, %v1895
        %v1897 = vpop.f32.mrf.mxu0
        %1898 = vmatprep.mubr.f32.mxu0 0.0
        %1899 = vmatmul.mubr.f32.gmra.mxu0 %v1561
        %v1900 = vpop.f32.mrf.mxu0
        %v1901 = vadd.f32 0.0, %v1900
        %v1902 = vpop.f32.mrf.mxu0
        %1903 = vmatprep.mubr.f32.mxu0 0.0
        %1904 = vmatmul.mubr.f32.gmra.mxu0 %v1564
        %v1905 = vpop.f32.mrf.mxu0
        %v1906 = vadd.f32 0.0, %v1905
        %v1907 = vpop.f32.mrf.mxu0
        %1908 = vmatprep.mubr.f32.mxu0 0.0
        %1909 = vmatmul.mubr.f32.gmra.mxu0 %v1567
        %v1910 = vpop.f32.mrf.mxu0
        %v1911 = vadd.f32 0.0, %v1910
        %v1912 = vpop.f32.mrf.mxu0
        %1913 = vmatprep.mubr.f32.mxu0 0.0
        %1914 = vmatmul.mubr.f32.gmra.mxu0 %v1570
        %v1915 = vpop.f32.mrf.mxu0
        %v1916 = vadd.f32 0.0, %v1915
        %v1917 = vpop.f32.mrf.mxu0
        %1918 = vmatprep.mubr.f32.mxu0 0.0
        %1919 = vmatmul.mubr.f32.gmra.mxu0 %v1573
        %v1920 = vpop.f32.mrf.mxu0
        %v1921 = vadd.f32 0.0, %v1920
        %v1922 = vpop.f32.mrf.mxu0
        %1923 = vmatprep.mubr.f32.mxu0 0.0
        %1924 = vmatmul.mubr.f32.gmra.mxu0 %v1576
        %v1925 = vpop.f32.mrf.mxu0
        %v1926 = vadd.f32 0.0, %v1925
        %v1927 = vpop.f32.mrf.mxu0
        %1928 = vmatprep.mubr.f32.mxu0 0.0
        %1929 = vmatmul.mubr.f32.gmra.mxu0 %v1579
        %v1930 = vpop.f32.mrf.mxu0
        %v1931 = vadd.f32 0.0, %v1930
        %v1932 = vpop.f32.mrf.mxu0
        %1933 = vmatprep.mubr.f32.mxu0 0.0
        %1934 = vmatmul.mubr.f32.gmra.mxu0 %v1582
        %v1935 = vpop.f32.mrf.mxu0
        %v1936 = vadd.f32 0.0, %v1935
        %v1937 = vpop.f32.mrf.mxu0
        %1938 = vdwg.mxu0
        %v1939 = vadd.f32 %v1057, %v1651
        %v1940 = vadd.f32 %v1062, %v1656
        %v1941 = vadd.f32 %v1067, %v1661
        %v1942 = vadd.f32 %v1072, %v1666
        %v1943 = vadd.f32 %v1077, %v1671
        %v1944 = vadd.f32 %v1082, %v1676
        %v1945 = vadd.f32 %v1087, %v1681
        %v1946 = vadd.f32 %v1092, %v1686
        %v1947 = vadd.f32 %v1097, %v1691
        %v1948 = vadd.f32 %v1102, %v1696
        %v1949 = vadd.f32 %v1107, %v1701
        %v1950 = vadd.f32 %v1112, %v1706
        %v1951 = vadd.f32 %v1117, %v1711
        %v1952 = vadd.f32 %v1122, %v1716
        %v1953 = vadd.f32 %v1127, %v1721
        %v1954 = vadd.f32 %v1132, %v1726
        %v1955 = vadd.f32 %v1137, %v1731
        %v1956 = vadd.f32 %v1142, %v1736
        %v1957 = vadd.f32 %v1147, %v1741
        %v1958 = vadd.f32 %v1152, %v1746
        %v1959 = vadd.f32 %v1157, %v1751
        %v1960 = vadd.f32 %v1162, %v1756
        %v1961 = vadd.f32 %v1167, %v1761
        %v1962 = vadd.f32 %v1172, %v1766
        %v1963 = vadd.f32 %v1177, %v1771
        %v1964 = vadd.f32 %v1182, %v1776
        %v1965 = vadd.f32 %v1187, %v1781
        %v1966 = vadd.f32 %v1192, %v1786
        %v1967 = vadd.f32 %v1197, %v1791
        %v1968 = vadd.f32 %v1202, %v1796
        %v1969 = vadd.f32 %v1207, %v1801
        %v1970 = vadd.f32 %v1212, %v1806
        %v1971 = vadd.f32 %v1217, %v1811
        %v1972 = vadd.f32 %v1222, %v1816
        %v1973 = vadd.f32 %v1227, %v1821
        %v1974 = vadd.f32 %v1232, %v1826
        %v1975 = vadd.f32 %v1237, %v1831
        %v1976 = vadd.f32 %v1242, %v1836
        %v1977 = vadd.f32 %v1247, %v1841
        %v1978 = vadd.f32 %v1252, %v1846
        %v1979 = vadd.f32 %v1257, %v1851
        %v1980 = vadd.f32 %v1262, %v1856
        %v1981 = vadd.f32 %v1267, %v1861
        %v1982 = vadd.f32 %v1272, %v1866
        %v1983 = vadd.f32 %v1277, %v1871
        %v1984 = vadd.f32 %v1282, %v1876
        %v1985 = vadd.f32 %v1287, %v1881
        %v1986 = vadd.f32 %v1292, %v1886
        %v1987 = vadd.f32 %v1297, %v1891
        %v1988 = vadd.f32 %v1302, %v1896
        %v1989 = vadd.f32 %v1307, %v1901
        %v1990 = vadd.f32 %v1312, %v1906
        %v1991 = vadd.f32 %v1317, %v1911
        %v1992 = vadd.f32 %v1322, %v1916
        %v1993 = vadd.f32 %v1327, %v1921
        %v1994 = vadd.f32 %v1332, %v1926
        %v1995 = vadd.f32 %v1337, %v1931
        %v1996 = vadd.f32 %v1342, %v1936
        %v1997 = vld [vmem:[%s384 + $0x48] sm:$0xff]
        %v1998 = vld [vmem:[%s384 + $0x50] sm:$0xff]
        %v1999 = vld [vmem:[%s384 + $0x58] sm:$0xff]
        %v2000 = vld [vmem:[%s384 + $0x60] sm:$0xff]
        %v2001 = vld [vmem:[%s384 + $0x68] sm:$0xff]
        %v2002 = vld [vmem:[%s384 + $0x70] sm:$0xff]
        %v2003 = vld [vmem:[%s384 + $0x78] sm:$0xff]
        %v2004 = vld [vmem:[%s384 + $0x80] sm:$0xff]
        %v2005 = vld [vmem:[%s384 + $0x88] sm:$0xff]
        %v2006 = vld [vmem:[%s384 + $0x90] sm:$0xff]
        %v2007 = vld [vmem:[%s384 + $0x98] sm:$0xff]
        %v2008 = vld [vmem:[%s384 + $0xa0] sm:$0xff]
        %v2009 = vld [vmem:[%s384 + $0xa8] sm:$0xff]
        %v2010 = vld [vmem:[%s384 + $0xb0] sm:$0xff]
        %v2011 = vld [vmem:[%s384 + $0xb8] sm:$0xff]
        %v2012 = vld [vmem:[%s384 + $0xc0] sm:$0xff]
        %v2013 = vld [vmem:[%s384 + $0xc8] sm:$0xff]
        %v2014 = vld [vmem:[%s384 + $0xd0] sm:$0xff]
        %v2015 = vld [vmem:[%s384 + $0xd8] sm:$0xff]
        %v2016 = vld [vmem:[%s384 + $0xe0] sm:$0xff]
        %v2017 = vld [vmem:[%s384 + $0xe8] sm:$0xff]
        %v2018 = vld [vmem:[%s384 + $0xf0] sm:$0xff]
        %v2019 = vld [vmem:[%s384 + $0xf8] sm:$0xff]
        %v2020 = vld [vmem:[%s384 + $0x100] sm:$0xff]
        %v2021 = vld [vmem:[%s384 + $0x108] sm:$0xff]
        %v2022 = vld [vmem:[%s384 + $0x110] sm:$0xff]
        %v2023 = vld [vmem:[%s384 + $0x118] sm:$0xff]
        %v2024 = vld [vmem:[%s384 + $0x120] sm:$0xff]
        %v2025 = vld [vmem:[%s384 + $0x128] sm:$0xff]
        %v2026 = vld [vmem:[%s384 + $0x130] sm:$0xff]
        %v2027 = vld [vmem:[%s384 + $0x138] sm:$0xff]
        %v2028 = vld [vmem:[%s384 + $0x140] sm:$0xff]
        %v2029 = vld [vmem:[%s384 + $0x148] sm:$0xff]
        %v2030 = vld [vmem:[%s384 + $0x150] sm:$0xff]
        %v2031 = vld [vmem:[%s384 + $0x158] sm:$0xff]
        %v2032 = vld [vmem:[%s384 + $0x160] sm:$0xff]
        %v2033 = vld [vmem:[%s384 + $0x168] sm:$0xff]
        %v2034 = vld [vmem:[%s384 + $0x170] sm:$0xff]
        %v2035 = vld [vmem:[%s384 + $0x178] sm:$0xff]
        %v2036 = vld [vmem:[%s384 + $0x180] sm:$0xff]
        %v2037 = vld [vmem:[%s384 + $0x188] sm:$0xff]
        %v2038 = vld [vmem:[%s384 + $0x190] sm:$0xff]
        %v2039 = vld [vmem:[%s384 + $0x198] sm:$0xff]
        %v2040 = vld [vmem:[%s384 + $0x1a0] sm:$0xff]
        %v2041 = vld [vmem:[%s384 + $0x1a8] sm:$0xff]
        %v2042 = vld [vmem:[%s384 + $0x1b0] sm:$0xff]
        %v2043 = vld [vmem:[%s384 + $0x1b8] sm:$0xff]
        %v2044 = vld [vmem:[%s384 + $0x1c0] sm:$0xff]
        %v2045 = vld [vmem:[%s384 + $0x1c8] sm:$0xff]
        %v2046 = vld [vmem:[%s384 + $0x1d0] sm:$0xff]
        %v2047 = vld [vmem:[%s384 + $0x1d8] sm:$0xff]
        %v2048 = vld [vmem:[%s384 + $0x1e0] sm:$0xff]
        %v2049 = vld [vmem:[%s384 + $0x1e8] sm:$0xff]
        %v2050 = vld [vmem:[%s384 + $0x1f0] sm:$0xff]
        %v2051 = vld [vmem:[%s384 + $0x1f8] sm:$0xff]
        %v2052 = vld [vmem:[%s384 + $0x200] sm:$0xff]
        %v2053 = vld [vmem:[%s384 + $0x208] sm:$0xff]
        %v2054 = vld [vmem:[%s384 + $0x210] sm:$0xff]
        %s2055 = scalar_lea.vmem %s1, 144
        %v2056 = vld [vmem:[%s2055] sm:$0xff]
        %v2057 = vld [vmem:[%s2055 + $0x8] sm:$0xff]
        %v2058 = vld [vmem:[%s2055 + $0x10] sm:$0xff]
        %v2059 = vld [vmem:[%s2055 + $0x18] sm:$0xff]
        %v2060 = vld [vmem:[%s2055 + $0x20] sm:$0xff]
        %v2061 = vld [vmem:[%s2055 + $0x28] sm:$0xff]
        %v2063 = vsel %vm457, %v1997, 0
        %v2066 = vsel %vm457, %v1998, 0
        %v2069 = vsel %vm457, %v1999, 0
        %v2072 = vsel %vm457, %v2000, 0
        %v2075 = vsel %vm457, %v2001, 0
        %v2078 = vsel %vm457, %v2002, 0
        %v2081 = vsel %vm457, %v2003, 0
        %v2084 = vsel %vm457, %v2004, 0
        %v2087 = vsel %vm457, %v2005, 0
        %v2090 = vsel %vm457, %v2006, 0
        %v2093 = vsel %vm457, %v2007, 0
        %v2096 = vsel %vm457, %v2008, 0
        %v2099 = vsel %vm457, %v2009, 0
        %v2102 = vsel %vm457, %v2010, 0
        %v2105 = vsel %vm457, %v2011, 0
        %v2108 = vsel %vm457, %v2012, 0
        %v2111 = vsel %vm457, %v2013, 0
        %v2114 = vsel %vm457, %v2014, 0
        %v2117 = vsel %vm457, %v2015, 0
        %v2120 = vsel %vm457, %v2016, 0
        %v2123 = vsel %vm457, %v2017, 0
        %v2126 = vsel %vm457, %v2018, 0
        %v2129 = vsel %vm457, %v2019, 0
        %v2132 = vsel %vm457, %v2020, 0
        %v2135 = vsel %vm457, %v2021, 0
        %v2138 = vsel %vm457, %v2022, 0
        %v2141 = vsel %vm457, %v2023, 0
        %v2144 = vsel %vm457, %v2024, 0
        %v2147 = vsel %vm457, %v2025, 0
        %v2150 = vsel %vm457, %v2026, 0
        %v2153 = vsel %vm457, %v2027, 0
        %v2156 = vsel %vm457, %v2028, 0
        %v2159 = vsel %vm457, %v2029, 0
        %v2162 = vsel %vm457, %v2030, 0
        %v2165 = vsel %vm457, %v2031, 0
        %v2168 = vsel %vm457, %v2032, 0
        %v2171 = vsel %vm457, %v2033, 0
        %v2174 = vsel %vm457, %v2034, 0
        %v2177 = vsel %vm457, %v2035, 0
        %v2180 = vsel %vm457, %v2036, 0
        %v2183 = vsel %vm457, %v2037, 0
        %v2186 = vsel %vm457, %v2038, 0
        %v2189 = vsel %vm457, %v2039, 0
        %v2192 = vsel %vm457, %v2040, 0
        %v2195 = vsel %vm457, %v2041, 0
        %v2198 = vsel %vm457, %v2042, 0
        %v2201 = vsel %vm457, %v2043, 0
        %v2204 = vsel %vm457, %v2044, 0
        %v2207 = vsel %vm457, %v2045, 0
        %v2210 = vsel %vm457, %v2046, 0
        %v2213 = vsel %vm457, %v2047, 0
        %v2216 = vsel %vm457, %v2048, 0
        %v2219 = vsel %vm457, %v2049, 0
        %v2222 = vsel %vm457, %v2050, 0
        %v2225 = vsel %vm457, %v2051, 0
        %v2228 = vsel %vm457, %v2052, 0
        %v2231 = vsel %vm457, %v2053, 0
        %v2234 = vsel %vm457, %v2054, 0
        %2236 = vmatprep.subr.mxu0 0.0
        %2237 = vmatpush1.msra.mxu0 0.0
        %2238 = vmatprep.subr.mxu0 0.0
        %2239 = vmatpush1.msra.mxu0 0.0
        %2240 = vmatprep.subr.mxu0 0.0
        %2241 = vmatpush1.msra.mxu0 0.0
        %2242 = vmatprep.subr.mxu0 0.0
        %2243 = vmatpush1.msra.mxu0 0.0
        %2244 = vmatprep.subr.mxu0 0.0
        %2245 = vmatpush1.msra.mxu0 0.0
        %2246 = vmatprep.subr.mxu0 0.0
        %2247 = vmatpush1.msra.mxu0 0.0
        %2248 = vmatprep.subr.mxu0 0.0
        %2249 = vmatpush1.msra.mxu0 0.0
        %2250 = vmatprep.subr.mxu0 0.0
        %2251 = vmatpush1.msra.mxu0 0.0
        %2252 = vmatprep.subr.mxu0 0.0
        %2253 = vmatpush1.msra.mxu0 0.0
        %2254 = vmatprep.subr.mxu0 0.0
        %2255 = vmatpush1.msra.mxu0 0.0
        %2256 = vmatprep.subr.mxu0 0.0
        %2257 = vmatpush1.msra.mxu0 %v2061
        %2258 = vmatprep.subr.mxu0 0.0
        %2259 = vmatpush1.msra.mxu0 %v2060
        %2260 = vmatprep.subr.mxu0 0.0
        %2261 = vmatpush1.msra.mxu0 %v2059
        %2262 = vmatprep.subr.mxu0 0.0
        %2263 = vmatpush1.msra.mxu0 %v2058
        %2264 = vmatprep.subr.mxu0 0.0
        %2265 = vmatpush1.msra.mxu0 %v2057
        %2266 = vmatprep.subr.mxu0 0.0
        %2267 = vmatpush1.msra.mxu0 %v2056
        %2268 = vmatprep.subr.mxu0 0.0
        %2269 = vmatpush2.msra.mxu0 0.0
        %2270 = vmatprep.subr.mxu0 0.0
        %2271 = vmatpush2.msra.mxu0 0.0
        %2272 = vmatprep.subr.mxu0 0.0
        %2273 = vmatpush2.msra.mxu0 0.0
        %2274 = vmatprep.subr.mxu0 0.0
        %2275 = vmatpush2.msra.mxu0 0.0
        %2276 = vmatprep.subr.mxu0 0.0
        %2277 = vmatpush2.msra.mxu0 0.0
        %2278 = vmatprep.subr.mxu0 0.0
        %2279 = vmatpush2.msra.mxu0 0.0
        %2280 = vmatprep.subr.mxu0 0.0
        %2281 = vmatpush2.msra.mxu0 0.0
        %2282 = vmatprep.subr.mxu0 0.0
        %2283 = vmatpush2.msra.mxu0 0.0
        %2284 = vmatprep.subr.mxu0 0.0
        %2285 = vmatpush2.msra.mxu0 0.0
        %2286 = vmatprep.subr.mxu0 0.0
        %2287 = vmatpush2.msra.mxu0 0.0
        %2288 = vmatprep.subr.mxu0 0.0
        %2289 = vmatpush2.msra.mxu0 0.0
        %2290 = vmatprep.subr.mxu0 0.0
        %2291 = vmatpush2.msra.mxu0 0.0
        %2292 = vmatprep.subr.mxu0 0.0
        %2293 = vmatpush2.msra.mxu0 0.0
        %2294 = vmatprep.subr.mxu0 0.0
        %2295 = vmatpush2.msra.mxu0 0.0
        %2296 = vmatprep.subr.mxu0 0.0
        %2297 = vmatpush2.msra.mxu0 0.0
        %2298 = vmatprep.subr.mxu0 0.0
        %2299 = vmatpush2.msra.mxu0 0.0
        %2300 = vmatprep.mubr.f32.mxu0 0.0
        %2301 = vmatmul.mubr.f32.gmra.mxu0 %v2063
        %v2302 = vpop.f32.mrf.mxu0
        %v2303 = vadd.f32 0.0, %v2302
        %v2304 = vpop.f32.mrf.mxu0
        %2305 = vmatprep.mubr.f32.mxu0 0.0
        %2306 = vmatmul.mubr.f32.gmra.mxu0 %v2066
        %v2307 = vpop.f32.mrf.mxu0
        %v2308 = vadd.f32 0.0, %v2307
        %v2309 = vpop.f32.mrf.mxu0
        %2310 = vmatprep.mubr.f32.mxu0 0.0
        %2311 = vmatmul.mubr.f32.gmra.mxu0 %v2069
        %v2312 = vpop.f32.mrf.mxu0
        %v2313 = vadd.f32 0.0, %v2312
        %v2314 = vpop.f32.mrf.mxu0
        %2315 = vmatprep.mubr.f32.mxu0 0.0
        %2316 = vmatmul.mubr.f32.gmra.mxu0 %v2072
        %v2317 = vpop.f32.mrf.mxu0
        %v2318 = vadd.f32 0.0, %v2317
        %v2319 = vpop.f32.mrf.mxu0
        %2320 = vmatprep.mubr.f32.mxu0 0.0
        %2321 = vmatmul.mubr.f32.gmra.mxu0 %v2075
        %v2322 = vpop.f32.mrf.mxu0
        %v2323 = vadd.f32 0.0, %v2322
        %v2324 = vpop.f32.mrf.mxu0
        %2325 = vmatprep.mubr.f32.mxu0 0.0
        %2326 = vmatmul.mubr.f32.gmra.mxu0 %v2078
        %v2327 = vpop.f32.mrf.mxu0
        %v2328 = vadd.f32 0.0, %v2327
        %v2329 = vpop.f32.mrf.mxu0
        %2330 = vmatprep.mubr.f32.mxu0 0.0
        %2331 = vmatmul.mubr.f32.gmra.mxu0 %v2081
        %v2332 = vpop.f32.mrf.mxu0
        %v2333 = vadd.f32 0.0, %v2332
        %v2334 = vpop.f32.mrf.mxu0
        %2335 = vmatprep.mubr.f32.mxu0 0.0
        %2336 = vmatmul.mubr.f32.gmra.mxu0 %v2084
        %v2337 = vpop.f32.mrf.mxu0
        %v2338 = vadd.f32 0.0, %v2337
        %v2339 = vpop.f32.mrf.mxu0
        %2340 = vmatprep.mubr.f32.mxu0 0.0
        %2341 = vmatmul.mubr.f32.gmra.mxu0 %v2087
        %v2342 = vpop.f32.mrf.mxu0
        %v2343 = vadd.f32 0.0, %v2342
        %v2344 = vpop.f32.mrf.mxu0
        %2345 = vmatprep.mubr.f32.mxu0 0.0
        %2346 = vmatmul.mubr.f32.gmra.mxu0 %v2090
        %v2347 = vpop.f32.mrf.mxu0
        %v2348 = vadd.f32 0.0, %v2347
        %v2349 = vpop.f32.mrf.mxu0
        %2350 = vmatprep.mubr.f32.mxu0 0.0
        %2351 = vmatmul.mubr.f32.gmra.mxu0 %v2093
        %v2352 = vpop.f32.mrf.mxu0
        %v2353 = vadd.f32 0.0, %v2352
        %v2354 = vpop.f32.mrf.mxu0
        %2355 = vmatprep.mubr.f32.mxu0 0.0
        %2356 = vmatmul.mubr.f32.gmra.mxu0 %v2096
        %v2357 = vpop.f32.mrf.mxu0
        %v2358 = vadd.f32 0.0, %v2357
        %v2359 = vpop.f32.mrf.mxu0
        %2360 = vmatprep.mubr.f32.mxu0 0.0
        %2361 = vmatmul.mubr.f32.gmra.mxu0 %v2099
        %v2362 = vpop.f32.mrf.mxu0
        %v2363 = vadd.f32 0.0, %v2362
        %v2364 = vpop.f32.mrf.mxu0
        %2365 = vmatprep.mubr.f32.mxu0 0.0
        %2366 = vmatmul.mubr.f32.gmra.mxu0 %v2102
        %v2367 = vpop.f32.mrf.mxu0
        %v2368 = vadd.f32 0.0, %v2367
        %v2369 = vpop.f32.mrf.mxu0
        %2370 = vmatprep.mubr.f32.mxu0 0.0
        %2371 = vmatmul.mubr.f32.gmra.mxu0 %v2105
        %v2372 = vpop.f32.mrf.mxu0
        %v2373 = vadd.f32 0.0, %v2372
        %v2374 = vpop.f32.mrf.mxu0
        %2375 = vmatprep.mubr.f32.mxu0 0.0
        %2376 = vmatmul.mubr.f32.gmra.mxu0 %v2108
        %v2377 = vpop.f32.mrf.mxu0
        %v2378 = vadd.f32 0.0, %v2377
        %v2379 = vpop.f32.mrf.mxu0
        %2380 = vmatprep.mubr.f32.mxu0 0.0
        %2381 = vmatmul.mubr.f32.gmra.mxu0 %v2111
        %v2382 = vpop.f32.mrf.mxu0
        %v2383 = vadd.f32 0.0, %v2382
        %v2384 = vpop.f32.mrf.mxu0
        %2385 = vmatprep.mubr.f32.mxu0 0.0
        %2386 = vmatmul.mubr.f32.gmra.mxu0 %v2114
        %v2387 = vpop.f32.mrf.mxu0
        %v2388 = vadd.f32 0.0, %v2387
        %v2389 = vpop.f32.mrf.mxu0
        %2390 = vmatprep.mubr.f32.mxu0 0.0
        %2391 = vmatmul.mubr.f32.gmra.mxu0 %v2117
        %v2392 = vpop.f32.mrf.mxu0
        %v2393 = vadd.f32 0.0, %v2392
        %v2394 = vpop.f32.mrf.mxu0
        %2395 = vmatprep.mubr.f32.mxu0 0.0
        %2396 = vmatmul.mubr.f32.gmra.mxu0 %v2120
        %v2397 = vpop.f32.mrf.mxu0
        %v2398 = vadd.f32 0.0, %v2397
        %v2399 = vpop.f32.mrf.mxu0
        %2400 = vmatprep.mubr.f32.mxu0 0.0
        %2401 = vmatmul.mubr.f32.gmra.mxu0 %v2123
        %v2402 = vpop.f32.mrf.mxu0
        %v2403 = vadd.f32 0.0, %v2402
        %v2404 = vpop.f32.mrf.mxu0
        %2405 = vmatprep.mubr.f32.mxu0 0.0
        %2406 = vmatmul.mubr.f32.gmra.mxu0 %v2126
        %v2407 = vpop.f32.mrf.mxu0
        %v2408 = vadd.f32 0.0, %v2407
        %v2409 = vpop.f32.mrf.mxu0
        %2410 = vmatprep.mubr.f32.mxu0 0.0
        %2411 = vmatmul.mubr.f32.gmra.mxu0 %v2129
        %v2412 = vpop.f32.mrf.mxu0
        %v2413 = vadd.f32 0.0, %v2412
        %v2414 = vpop.f32.mrf.mxu0
        %2415 = vmatprep.mubr.f32.mxu0 0.0
        %2416 = vmatmul.mubr.f32.gmra.mxu0 %v2132
        %v2417 = vpop.f32.mrf.mxu0
        %v2418 = vadd.f32 0.0, %v2417
        %v2419 = vpop.f32.mrf.mxu0
        %2420 = vmatprep.mubr.f32.mxu0 0.0
        %2421 = vmatmul.mubr.f32.gmra.mxu0 %v2135
        %v2422 = vpop.f32.mrf.mxu0
        %v2423 = vadd.f32 0.0, %v2422
        %v2424 = vpop.f32.mrf.mxu0
        %2425 = vmatprep.mubr.f32.mxu0 0.0
        %2426 = vmatmul.mubr.f32.gmra.mxu0 %v2138
        %v2427 = vpop.f32.mrf.mxu0
        %v2428 = vadd.f32 0.0, %v2427
        %v2429 = vpop.f32.mrf.mxu0
        %2430 = vmatprep.mubr.f32.mxu0 0.0
        %2431 = vmatmul.mubr.f32.gmra.mxu0 %v2141
        %v2432 = vpop.f32.mrf.mxu0
        %v2433 = vadd.f32 0.0, %v2432
        %v2434 = vpop.f32.mrf.mxu0
        %2435 = vmatprep.mubr.f32.mxu0 0.0
        %2436 = vmatmul.mubr.f32.gmra.mxu0 %v2144
        %v2437 = vpop.f32.mrf.mxu0
        %v2438 = vadd.f32 0.0, %v2437
        %v2439 = vpop.f32.mrf.mxu0
        %2440 = vmatprep.mubr.f32.mxu0 0.0
        %2441 = vmatmul.mubr.f32.gmra.mxu0 %v2147
        %v2442 = vpop.f32.mrf.mxu0
        %v2443 = vadd.f32 0.0, %v2442
        %v2444 = vpop.f32.mrf.mxu0
        %2445 = vmatprep.mubr.f32.mxu0 0.0
        %2446 = vmatmul.mubr.f32.gmra.mxu0 %v2150
        %v2447 = vpop.f32.mrf.mxu0
        %v2448 = vadd.f32 0.0, %v2447
        %v2449 = vpop.f32.mrf.mxu0
        %2450 = vmatprep.mubr.f32.mxu0 0.0
        %2451 = vmatmul.mubr.f32.gmra.mxu0 %v2153
        %v2452 = vpop.f32.mrf.mxu0
        %v2453 = vadd.f32 0.0, %v2452
        %v2454 = vpop.f32.mrf.mxu0
        %2455 = vmatprep.mubr.f32.mxu0 0.0
        %2456 = vmatmul.mubr.f32.gmra.mxu0 %v2156
        %v2457 = vpop.f32.mrf.mxu0
        %v2458 = vadd.f32 0.0, %v2457
        %v2459 = vpop.f32.mrf.mxu0
        %2460 = vmatprep.mubr.f32.mxu0 0.0
        %2461 = vmatmul.mubr.f32.gmra.mxu0 %v2159
        %v2462 = vpop.f32.mrf.mxu0
        %v2463 = vadd.f32 0.0, %v2462
        %v2464 = vpop.f32.mrf.mxu0
        %2465 = vmatprep.mubr.f32.mxu0 0.0
        %2466 = vmatmul.mubr.f32.gmra.mxu0 %v2162
        %v2467 = vpop.f32.mrf.mxu0
        %v2468 = vadd.f32 0.0, %v2467
        %v2469 = vpop.f32.mrf.mxu0
        %2470 = vmatprep.mubr.f32.mxu0 0.0
        %2471 = vmatmul.mubr.f32.gmra.mxu0 %v2165
        %v2472 = vpop.f32.mrf.mxu0
        %v2473 = vadd.f32 0.0, %v2472
        %v2474 = vpop.f32.mrf.mxu0
        %2475 = vmatprep.mubr.f32.mxu0 0.0
        %2476 = vmatmul.mubr.f32.gmra.mxu0 %v2168
        %v2477 = vpop.f32.mrf.mxu0
        %v2478 = vadd.f32 0.0, %v2477
        %v2479 = vpop.f32.mrf.mxu0
        %2480 = vmatprep.mubr.f32.mxu0 0.0
        %2481 = vmatmul.mubr.f32.gmra.mxu0 %v2171
        %v2482 = vpop.f32.mrf.mxu0
        %v2483 = vadd.f32 0.0, %v2482
        %v2484 = vpop.f32.mrf.mxu0
        %2485 = vmatprep.mubr.f32.mxu0 0.0
        %2486 = vmatmul.mubr.f32.gmra.mxu0 %v2174
        %v2487 = vpop.f32.mrf.mxu0
        %v2488 = vadd.f32 0.0, %v2487
        %v2489 = vpop.f32.mrf.mxu0
        %2490 = vmatprep.mubr.f32.mxu0 0.0
        %2491 = vmatmul.mubr.f32.gmra.mxu0 %v2177
        %v2492 = vpop.f32.mrf.mxu0
        %v2493 = vadd.f32 0.0, %v2492
        %v2494 = vpop.f32.mrf.mxu0
        %2495 = vmatprep.mubr.f32.mxu0 0.0
        %2496 = vmatmul.mubr.f32.gmra.mxu0 %v2180
        %v2497 = vpop.f32.mrf.mxu0
        %v2498 = vadd.f32 0.0, %v2497
        %v2499 = vpop.f32.mrf.mxu0
        %2500 = vmatprep.mubr.f32.mxu0 0.0
        %2501 = vmatmul.mubr.f32.gmra.mxu0 %v2183
        %v2502 = vpop.f32.mrf.mxu0
        %v2503 = vadd.f32 0.0, %v2502
        %v2504 = vpop.f32.mrf.mxu0
        %2505 = vmatprep.mubr.f32.mxu0 0.0
        %2506 = vmatmul.mubr.f32.gmra.mxu0 %v2186
        %v2507 = vpop.f32.mrf.mxu0
        %v2508 = vadd.f32 0.0, %v2507
        %v2509 = vpop.f32.mrf.mxu0
        %2510 = vmatprep.mubr.f32.mxu0 0.0
        %2511 = vmatmul.mubr.f32.gmra.mxu0 %v2189
        %v2512 = vpop.f32.mrf.mxu0
        %v2513 = vadd.f32 0.0, %v2512
        %v2514 = vpop.f32.mrf.mxu0
        %2515 = vmatprep.mubr.f32.mxu0 0.0
        %2516 = vmatmul.mubr.f32.gmra.mxu0 %v2192
        %v2517 = vpop.f32.mrf.mxu0
        %v2518 = vadd.f32 0.0, %v2517
        %v2519 = vpop.f32.mrf.mxu0
        %2520 = vmatprep.mubr.f32.mxu0 0.0
        %2521 = vmatmul.mubr.f32.gmra.mxu0 %v2195
        %v2522 = vpop.f32.mrf.mxu0
        %v2523 = vadd.f32 0.0, %v2522
        %v2524 = vpop.f32.mrf.mxu0
        %2525 = vmatprep.mubr.f32.mxu0 0.0
        %2526 = vmatmul.mubr.f32.gmra.mxu0 %v2198
        %v2527 = vpop.f32.mrf.mxu0
        %v2528 = vadd.f32 0.0, %v2527
        %v2529 = vpop.f32.mrf.mxu0
        %2530 = vmatprep.mubr.f32.mxu0 0.0
        %2531 = vmatmul.mubr.f32.gmra.mxu0 %v2201
        %v2532 = vpop.f32.mrf.mxu0
        %v2533 = vadd.f32 0.0, %v2532
        %v2534 = vpop.f32.mrf.mxu0
        %2535 = vmatprep.mubr.f32.mxu0 0.0
        %2536 = vmatmul.mubr.f32.gmra.mxu0 %v2204
        %v2537 = vpop.f32.mrf.mxu0
        %v2538 = vadd.f32 0.0, %v2537
        %v2539 = vpop.f32.mrf.mxu0
        %2540 = vmatprep.mubr.f32.mxu0 0.0
        %2541 = vmatmul.mubr.f32.gmra.mxu0 %v2207
        %v2542 = vpop.f32.mrf.mxu0
        %v2543 = vadd.f32 0.0, %v2542
        %v2544 = vpop.f32.mrf.mxu0
        %2545 = vmatprep.mubr.f32.mxu0 0.0
        %2546 = vmatmul.mubr.f32.gmra.mxu0 %v2210
        %v2547 = vpop.f32.mrf.mxu0
        %v2548 = vadd.f32 0.0, %v2547
        %v2549 = vpop.f32.mrf.mxu0
        %2550 = vmatprep.mubr.f32.mxu0 0.0
        %2551 = vmatmul.mubr.f32.gmra.mxu0 %v2213
        %v2552 = vpop.f32.mrf.mxu0
        %v2553 = vadd.f32 0.0, %v2552
        %v2554 = vpop.f32.mrf.mxu0
        %2555 = vmatprep.mubr.f32.mxu0 0.0
        %2556 = vmatmul.mubr.f32.gmra.mxu0 %v2216
        %v2557 = vpop.f32.mrf.mxu0
        %v2558 = vadd.f32 0.0, %v2557
        %v2559 = vpop.f32.mrf.mxu0
        %2560 = vmatprep.mubr.f32.mxu0 0.0
        %2561 = vmatmul.mubr.f32.gmra.mxu0 %v2219
        %v2562 = vpop.f32.mrf.mxu0
        %v2563 = vadd.f32 0.0, %v2562
        %v2564 = vpop.f32.mrf.mxu0
        %2565 = vmatprep.mubr.f32.mxu0 0.0
        %2566 = vmatmul.mubr.f32.gmra.mxu0 %v2222
        %v2567 = vpop.f32.mrf.mxu0
        %v2568 = vadd.f32 0.0, %v2567
        %v2569 = vpop.f32.mrf.mxu0
        %2570 = vmatprep.mubr.f32.mxu0 0.0
        %2571 = vmatmul.mubr.f32.gmra.mxu0 %v2225
        %v2572 = vpop.f32.mrf.mxu0
        %v2573 = vadd.f32 0.0, %v2572
        %v2574 = vpop.f32.mrf.mxu0
        %2575 = vmatprep.mubr.f32.mxu0 0.0
        %2576 = vmatmul.mubr.f32.gmra.mxu0 %v2228
        %v2577 = vpop.f32.mrf.mxu0
        %v2578 = vadd.f32 0.0, %v2577
        %v2579 = vpop.f32.mrf.mxu0
        %2580 = vmatprep.mubr.f32.mxu0 0.0
        %2581 = vmatmul.mubr.f32.gmra.mxu0 %v2231
        %v2582 = vpop.f32.mrf.mxu0
        %v2583 = vadd.f32 0.0, %v2582
        %v2584 = vpop.f32.mrf.mxu0
        %2585 = vmatprep.mubr.f32.mxu0 0.0
        %2586 = vmatmul.mubr.f32.gmra.mxu0 %v2234
        %v2587 = vpop.f32.mrf.mxu0
        %v2588 = vadd.f32 0.0, %v2587
        %v2589 = vpop.f32.mrf.mxu0
        %2590 = vdwg.mxu0
        %v2591 = vadd.f32 %v1939, %v2303
        %v2592 = vadd.f32 %v1940, %v2308
        %v2593 = vadd.f32 %v1941, %v2313
        %v2594 = vadd.f32 %v1942, %v2318
        %v2595 = vadd.f32 %v1943, %v2323
        %v2596 = vadd.f32 %v1944, %v2328
        %v2597 = vadd.f32 %v1945, %v2333
        %v2598 = vadd.f32 %v1946, %v2338
        %v2599 = vadd.f32 %v1947, %v2343
        %v2600 = vadd.f32 %v1948, %v2348
        %v2601 = vadd.f32 %v1949, %v2353
        %v2602 = vadd.f32 %v1950, %v2358
        %v2603 = vadd.f32 %v1951, %v2363
        %v2604 = vadd.f32 %v1952, %v2368
        %v2605 = vadd.f32 %v1953, %v2373
        %v2606 = vadd.f32 %v1954, %v2378
        %v2607 = vadd.f32 %v1955, %v2383
        %v2608 = vadd.f32 %v1956, %v2388
        %v2609 = vadd.f32 %v1957, %v2393
        %v2610 = vadd.f32 %v1958, %v2398
        %v2611 = vadd.f32 %v1959, %v2403
        %v2612 = vadd.f32 %v1960, %v2408
        %v2613 = vadd.f32 %v1961, %v2413
        %v2614 = vadd.f32 %v1962, %v2418
        %v2615 = vadd.f32 %v1963, %v2423
        %v2616 = vadd.f32 %v1964, %v2428
        %v2617 = vadd.f32 %v1965, %v2433
        %v2618 = vadd.f32 %v1966, %v2438
        %v2619 = vadd.f32 %v1967, %v2443
        %v2620 = vadd.f32 %v1968, %v2448
        %v2621 = vadd.f32 %v1969, %v2453
        %v2622 = vadd.f32 %v1970, %v2458
        %v2623 = vadd.f32 %v1971, %v2463
        %v2624 = vadd.f32 %v1972, %v2468
        %v2625 = vadd.f32 %v1973, %v2473
        %v2626 = vadd.f32 %v1974, %v2478
        %v2627 = vadd.f32 %v1975, %v2483
        %v2628 = vadd.f32 %v1976, %v2488
        %v2629 = vadd.f32 %v1977, %v2493
        %v2630 = vadd.f32 %v1978, %v2498
        %v2631 = vadd.f32 %v1979, %v2503
        %v2632 = vadd.f32 %v1980, %v2508
        %v2633 = vadd.f32 %v1981, %v2513
        %v2634 = vadd.f32 %v1982, %v2518
        %v2635 = vadd.f32 %v1983, %v2523
        %v2636 = vadd.f32 %v1984, %v2528
        %v2637 = vadd.f32 %v1985, %v2533
        %v2638 = vadd.f32 %v1986, %v2538
        %v2639 = vadd.f32 %v1987, %v2543
        %v2640 = vadd.f32 %v1988, %v2548
        %v2641 = vadd.f32 %v1989, %v2553
        %v2642 = vadd.f32 %v1990, %v2558
        %v2643 = vadd.f32 %v1991, %v2563
        %v2644 = vadd.f32 %v1992, %v2568
        %v2645 = vadd.f32 %v1993, %v2573
        %v2646 = vadd.f32 %v1994, %v2578
        %v2647 = vadd.f32 %v1995, %v2583
        %v2648 = vadd.f32 %v1996, %v2588
        %v2649 = vld [vmem:[%s2] sm:$0x1]
        %v2651 = vlaneseq
        %v2652 = vshrl.u32 %v2651, 7
        %v2653 = vsub.s32 0, %v2652
        %v2654 = vrot.slane %v2649, %v2653
        %v2656 = vadd.f32 %v2591, %v2654
        %v2657 = vadd.f32 %v2592, %v2654
        %v2658 = vadd.f32 %v2593, %v2654
        %v2659 = vadd.f32 %v2594, %v2654
        %v2660 = vadd.f32 %v2595, %v2654
        %v2661 = vadd.f32 %v2596, %v2654
        %v2662 = vadd.f32 %v2597, %v2654
        %v2663 = vadd.f32 %v2598, %v2654
        %v2664 = vadd.f32 %v2599, %v2654
        %v2665 = vadd.f32 %v2600, %v2654
        %v2666 = vadd.f32 %v2601, %v2654
        %v2667 = vadd.f32 %v2602, %v2654
        %v2668 = vadd.f32 %v2603, %v2654
        %v2669 = vadd.f32 %v2604, %v2654
        %v2670 = vadd.f32 %v2605, %v2654
        %v2671 = vadd.f32 %v2606, %v2654
        %v2672 = vadd.f32 %v2607, %v2654
        %v2673 = vadd.f32 %v2608, %v2654
        %v2674 = vadd.f32 %v2609, %v2654
        %v2675 = vadd.f32 %v2610, %v2654
        %v2676 = vadd.f32 %v2611, %v2654
        %v2677 = vadd.f32 %v2612, %v2654
        %v2678 = vadd.f32 %v2613, %v2654
        %v2679 = vadd.f32 %v2614, %v2654
        %v2680 = vadd.f32 %v2615, %v2654
        %v2681 = vadd.f32 %v2616, %v2654
        %v2682 = vadd.f32 %v2617, %v2654
        %v2683 = vadd.f32 %v2618, %v2654
        %v2684 = vadd.f32 %v2619, %v2654
        %v2685 = vadd.f32 %v2620, %v2654
        %v2686 = vadd.f32 %v2621, %v2654
        %v2687 = vadd.f32 %v2622, %v2654
        %v2688 = vadd.f32 %v2623, %v2654
        %v2689 = vadd.f32 %v2624, %v2654
        %v2690 = vadd.f32 %v2625, %v2654
        %v2691 = vadd.f32 %v2626, %v2654
        %v2692 = vadd.f32 %v2627, %v2654
        %v2693 = vadd.f32 %v2628, %v2654
        %v2694 = vadd.f32 %v2629, %v2654
        %v2695 = vadd.f32 %v2630, %v2654
        %v2696 = vadd.f32 %v2631, %v2654
        %v2697 = vadd.f32 %v2632, %v2654
        %v2698 = vadd.f32 %v2633, %v2654
        %v2699 = vadd.f32 %v2634, %v2654
        %v2700 = vadd.f32 %v2635, %v2654
        %v2701 = vadd.f32 %v2636, %v2654
        %v2702 = vadd.f32 %v2637, %v2654
        %v2703 = vadd.f32 %v2638, %v2654
        %v2704 = vadd.f32 %v2639, %v2654
        %v2705 = vadd.f32 %v2640, %v2654
        %v2706 = vadd.f32 %v2641, %v2654
        %v2707 = vadd.f32 %v2642, %v2654
        %v2708 = vadd.f32 %v2643, %v2654
        %v2709 = vadd.f32 %v2644, %v2654
        %v2710 = vadd.f32 %v2645, %v2654
        %v2711 = vadd.f32 %v2646, %v2654
        %v2712 = vadd.f32 %v2647, %v2654
        %v2713 = vadd.f32 %v2648, %v2654
        %v2714 = vmax.f32 %v2656, 0.0
        %v2715 = vmax.f32 %v2657, 0.0
        %v2716 = vmax.f32 %v2658, 0.0
        %v2717 = vmax.f32 %v2659, 0.0
        %v2718 = vmax.f32 %v2660, 0.0
        %v2719 = vmax.f32 %v2661, 0.0
        %v2720 = vmax.f32 %v2662, 0.0
        %v2721 = vmax.f32 %v2663, 0.0
        %v2722 = vmax.f32 %v2664, 0.0
        %v2723 = vmax.f32 %v2665, 0.0
        %v2724 = vmax.f32 %v2666, 0.0
        %v2725 = vmax.f32 %v2667, 0.0
        %v2726 = vmax.f32 %v2668, 0.0
        %v2727 = vmax.f32 %v2669, 0.0
        %v2728 = vmax.f32 %v2670, 0.0
        %v2729 = vmax.f32 %v2671, 0.0
        %v2730 = vmax.f32 %v2672, 0.0
        %v2731 = vmax.f32 %v2673, 0.0
        %v2732 = vmax.f32 %v2674, 0.0
        %v2733 = vmax.f32 %v2675, 0.0
        %v2734 = vmax.f32 %v2676, 0.0
        %v2735 = vmax.f32 %v2677, 0.0
        %v2736 = vmax.f32 %v2678, 0.0
        %v2737 = vmax.f32 %v2679, 0.0
        %v2738 = vmax.f32 %v2680, 0.0
        %v2739 = vmax.f32 %v2681, 0.0
        %v2740 = vmax.f32 %v2682, 0.0
        %v2741 = vmax.f32 %v2683, 0.0
        %v2742 = vmax.f32 %v2684, 0.0
        %v2743 = vmax.f32 %v2685, 0.0
        %v2744 = vmax.f32 %v2686, 0.0
        %v2745 = vmax.f32 %v2687, 0.0
        %v2746 = vmax.f32 %v2688, 0.0
        %v2747 = vmax.f32 %v2689, 0.0
        %v2748 = vmax.f32 %v2690, 0.0
        %v2749 = vmax.f32 %v2691, 0.0
        %v2750 = vmax.f32 %v2692, 0.0
        %v2751 = vmax.f32 %v2693, 0.0
        %v2752 = vmax.f32 %v2694, 0.0
        %v2753 = vmax.f32 %v2695, 0.0
        %v2754 = vmax.f32 %v2696, 0.0
        %v2755 = vmax.f32 %v2697, 0.0
        %v2756 = vmax.f32 %v2698, 0.0
        %v2757 = vmax.f32 %v2699, 0.0
        %v2758 = vmax.f32 %v2700, 0.0
        %v2759 = vmax.f32 %v2701, 0.0
        %v2760 = vmax.f32 %v2702, 0.0
        %v2761 = vmax.f32 %v2703, 0.0
        %v2762 = vmax.f32 %v2704, 0.0
        %v2763 = vmax.f32 %v2705, 0.0
        %v2764 = vmax.f32 %v2706, 0.0
        %v2765 = vmax.f32 %v2707, 0.0
        %v2766 = vmax.f32 %v2708, 0.0
        %v2767 = vmax.f32 %v2709, 0.0
        %v2768 = vmax.f32 %v2710, 0.0
        %v2769 = vmax.f32 %v2711, 0.0
        %v2770 = vmax.f32 %v2712, 0.0
        %v2771 = vmax.f32 %v2713, 0.0
        %2830 = vrot.lane.b32.xlu0 %v2714, 104
        %v2831 = vpop.permute.xlu0 %2830
        %2832 = vrot.lane.b32.xlu0 %v2715, 104
        %v2833 = vpop.permute.xlu0 %2832
        %2834 = vrot.lane.b32.xlu0 %v2716, 104
        %v2835 = vpop.permute.xlu0 %2834
        %2836 = vrot.lane.b32.xlu0 %v2717, 104
        %v2837 = vpop.permute.xlu0 %2836
        %2838 = vrot.lane.b32.xlu0 %v2718, 104
        %v2839 = vpop.permute.xlu0 %2838
        %2840 = vrot.lane.b32.xlu0 %v2719, 104
        %v2841 = vpop.permute.xlu0 %2840
        %2842 = vrot.lane.b32.xlu0 %v2720, 104
        %v2843 = vpop.permute.xlu0 %2842
        %2844 = vrot.lane.b32.xlu0 %v2721, 104
        %v2845 = vpop.permute.xlu0 %2844
        %2846 = vrot.lane.b32.xlu0 %v2722, 104
        %v2847 = vpop.permute.xlu0 %2846
        %2848 = vrot.lane.b32.xlu0 %v2723, 104
        %v2849 = vpop.permute.xlu0 %2848
        %2850 = vrot.lane.b32.xlu0 %v2724, 104
        %v2851 = vpop.permute.xlu0 %2850
        %2852 = vrot.lane.b32.xlu0 %v2725, 104
        %v2853 = vpop.permute.xlu0 %2852
        %2854 = vrot.lane.b32.xlu0 %v2726, 104
        %v2855 = vpop.permute.xlu0 %2854
        %2856 = vrot.lane.b32.xlu0 %v2727, 104
        %v2857 = vpop.permute.xlu0 %2856
        %2858 = vrot.lane.b32.xlu0 %v2728, 104
        %v2859 = vpop.permute.xlu0 %2858
        %2860 = vrot.lane.b32.xlu0 %v2729, 104
        %v2861 = vpop.permute.xlu0 %2860
        %2862 = vrot.lane.b32.xlu0 %v2730, 104
        %v2863 = vpop.permute.xlu0 %2862
        %2864 = vrot.lane.b32.xlu0 %v2731, 104
        %v2865 = vpop.permute.xlu0 %2864
        %2866 = vrot.lane.b32.xlu0 %v2732, 104
        %v2867 = vpop.permute.xlu0 %2866
        %2868 = vrot.lane.b32.xlu0 %v2733, 104
        %v2869 = vpop.permute.xlu0 %2868
        %2870 = vrot.lane.b32.xlu0 %v2734, 104
        %v2871 = vpop.permute.xlu0 %2870
        %2872 = vrot.lane.b32.xlu0 %v2735, 104
        %v2873 = vpop.permute.xlu0 %2872
        %2874 = vrot.lane.b32.xlu0 %v2736, 104
        %v2875 = vpop.permute.xlu0 %2874
        %2876 = vrot.lane.b32.xlu0 %v2737, 104
        %v2877 = vpop.permute.xlu0 %2876
        %2878 = vrot.lane.b32.xlu0 %v2738, 104
        %v2879 = vpop.permute.xlu0 %2878
        %2880 = vrot.lane.b32.xlu0 %v2739, 104
        %v2881 = vpop.permute.xlu0 %2880
        %2882 = vrot.lane.b32.xlu0 %v2740, 104
        %v2883 = vpop.permute.xlu0 %2882
        %2884 = vrot.lane.b32.xlu0 %v2741, 104
        %v2885 = vpop.permute.xlu0 %2884
        %2886 = vrot.lane.b32.xlu0 %v2742, 104
        %v2887 = vpop.permute.xlu0 %2886
        %2888 = vrot.lane.b32.xlu0 %v2743, 104
        %v2889 = vpop.permute.xlu0 %2888
        %2890 = vrot.lane.b32.xlu0 %v2744, 104
        %v2891 = vpop.permute.xlu0 %2890
        %2892 = vrot.lane.b32.xlu0 %v2745, 104
        %v2893 = vpop.permute.xlu0 %2892
        %2894 = vrot.lane.b32.xlu0 %v2746, 104
        %v2895 = vpop.permute.xlu0 %2894
        %2896 = vrot.lane.b32.xlu0 %v2747, 104
        %v2897 = vpop.permute.xlu0 %2896
        %2898 = vrot.lane.b32.xlu0 %v2748, 104
        %v2899 = vpop.permute.xlu0 %2898
        %2900 = vrot.lane.b32.xlu0 %v2749, 104
        %v2901 = vpop.permute.xlu0 %2900
        %2902 = vrot.lane.b32.xlu0 %v2750, 104
        %v2903 = vpop.permute.xlu0 %2902
        %2904 = vrot.lane.b32.xlu0 %v2751, 104
        %v2905 = vpop.permute.xlu0 %2904
        %2906 = vrot.lane.b32.xlu0 %v2752, 104
        %v2907 = vpop.permute.xlu0 %2906
        %2908 = vrot.lane.b32.xlu0 %v2753, 104
        %v2909 = vpop.permute.xlu0 %2908
        %2910 = vrot.lane.b32.xlu0 %v2754, 104
        %v2911 = vpop.permute.xlu0 %2910
        %2912 = vrot.lane.b32.xlu0 %v2755, 104
        %v2913 = vpop.permute.xlu0 %2912
        %2914 = vrot.lane.b32.xlu0 %v2756, 104
        %v2915 = vpop.permute.xlu0 %2914
        %2916 = vrot.lane.b32.xlu0 %v2757, 104
        %v2917 = vpop.permute.xlu0 %2916
        %2918 = vrot.lane.b32.xlu0 %v2758, 104
        %v2919 = vpop.permute.xlu0 %2918
        %2920 = vrot.lane.b32.xlu0 %v2759, 104
        %v2921 = vpop.permute.xlu0 %2920
        %2922 = vrot.lane.b32.xlu0 %v2760, 104
        %v2923 = vpop.permute.xlu0 %2922
        %2924 = vrot.lane.b32.xlu0 %v2761, 104
        %v2925 = vpop.permute.xlu0 %2924
        %2926 = vrot.lane.b32.xlu0 %v2762, 104
        %v2927 = vpop.permute.xlu0 %2926
        %2928 = vrot.lane.b32.xlu0 %v2763, 104
        %v2929 = vpop.permute.xlu0 %2928
        %2930 = vrot.lane.b32.xlu0 %v2764, 104
        %v2931 = vpop.permute.xlu0 %2930
        %2932 = vrot.lane.b32.xlu0 %v2765, 104
        %v2933 = vpop.permute.xlu0 %2932
        %2934 = vrot.lane.b32.xlu0 %v2766, 104
        %v2935 = vpop.permute.xlu0 %2934
        %2936 = vrot.lane.b32.xlu0 %v2767, 104
        %v2937 = vpop.permute.xlu0 %2936
        %2938 = vrot.lane.b32.xlu0 %v2768, 104
        %v2939 = vpop.permute.xlu0 %2938
        %2940 = vrot.lane.b32.xlu0 %v2769, 104
        %v2941 = vpop.permute.xlu0 %2940
        %2942 = vrot.lane.b32.xlu0 %v2770, 104
        %v2943 = vpop.permute.xlu0 %2942
        %2944 = vrot.lane.b32.xlu0 %v2771, 104
        %v2945 = vpop.permute.xlu0 %2944
        %v3004 = vmax.f32 %v2714, %v2831
        %v3005 = vmax.f32 %v2715, %v2833
        %v3006 = vmax.f32 %v2716, %v2835
        %v3007 = vmax.f32 %v2717, %v2837
        %v3008 = vmax.f32 %v2718, %v2839
        %v3009 = vmax.f32 %v2719, %v2841
        %v3010 = vmax.f32 %v2720, %v2843
        %v3011 = vmax.f32 %v2721, %v2845
        %v3012 = vmax.f32 %v2722, %v2847
        %v3013 = vmax.f32 %v2723, %v2849
        %v3014 = vmax.f32 %v2724, %v2851
        %v3015 = vmax.f32 %v2725, %v2853
        %v3016 = vmax.f32 %v2726, %v2855
        %v3017 = vmax.f32 %v2727, %v2857
        %v3018 = vmax.f32 %v2728, %v2859
        %v3019 = vmax.f32 %v2729, %v2861
        %v3020 = vmax.f32 %v2730, %v2863
        %v3021 = vmax.f32 %v2731, %v2865
        %v3022 = vmax.f32 %v2732, %v2867
        %v3023 = vmax.f32 %v2733, %v2869
        %v3024 = vmax.f32 %v2734, %v2871
        %v3025 = vmax.f32 %v2735, %v2873
        %v3026 = vmax.f32 %v2736, %v2875
        %v3027 = vmax.f32 %v2737, %v2877
        %v3028 = vmax.f32 %v2738, %v2879
        %v3029 = vmax.f32 %v2739, %v2881
        %v3030 = vmax.f32 %v2740, %v2883
        %v3031 = vmax.f32 %v2741, %v2885
        %v3032 = vmax.f32 %v2742, %v2887
        %v3033 = vmax.f32 %v2743, %v2889
        %v3034 = vmax.f32 %v2744, %v2891
        %v3035 = vmax.f32 %v2745, %v2893
        %v3036 = vmax.f32 %v2746, %v2895
        %v3037 = vmax.f32 %v2747, %v2897
        %v3038 = vmax.f32 %v2748, %v2899
        %v3039 = vmax.f32 %v2749, %v2901
        %v3040 = vmax.f32 %v2750, %v2903
        %v3041 = vmax.f32 %v2751, %v2905
        %v3042 = vmax.f32 %v2752, %v2907
        %v3043 = vmax.f32 %v2753, %v2909
        %v3044 = vmax.f32 %v2754, %v2911
        %v3045 = vmax.f32 %v2755, %v2913
        %v3046 = vmax.f32 %v2756, %v2915
        %v3047 = vmax.f32 %v2757, %v2917
        %v3048 = vmax.f32 %v2758, %v2919
        %v3049 = vmax.f32 %v2759, %v2921
        %v3050 = vmax.f32 %v2760, %v2923
        %v3051 = vmax.f32 %v2761, %v2925
        %v3052 = vmax.f32 %v2762, %v2927
        %v3053 = vmax.f32 %v2763, %v2929
        %v3054 = vmax.f32 %v2764, %v2931
        %v3055 = vmax.f32 %v2765, %v2933
        %v3056 = vmax.f32 %v2766, %v2935
        %v3057 = vmax.f32 %v2767, %v2937
        %v3058 = vmax.f32 %v2768, %v2939
        %v3059 = vmax.f32 %v2769, %v2941
        %v3060 = vmax.f32 %v2770, %v2943
        %v3061 = vmax.f32 %v2771, %v2945
        %3120 = vrot.lane.b32.xlu0 %v3004, 80
        %v3121 = vpop.permute.xlu0 %3120
        %3122 = vrot.lane.b32.xlu0 %v3005, 80
        %v3123 = vpop.permute.xlu0 %3122
        %3124 = vrot.lane.b32.xlu0 %v3006, 80
        %v3125 = vpop.permute.xlu0 %3124
        %3126 = vrot.lane.b32.xlu0 %v3007, 80
        %v3127 = vpop.permute.xlu0 %3126
        %3128 = vrot.lane.b32.xlu0 %v3008, 80
        %v3129 = vpop.permute.xlu0 %3128
        %3130 = vrot.lane.b32.xlu0 %v3009, 80
        %v3131 = vpop.permute.xlu0 %3130
        %3132 = vrot.lane.b32.xlu0 %v3010, 80
        %v3133 = vpop.permute.xlu0 %3132
        %3134 = vrot.lane.b32.xlu0 %v3011, 80
        %v3135 = vpop.permute.xlu0 %3134
        %3136 = vrot.lane.b32.xlu0 %v3012, 80
        %v3137 = vpop.permute.xlu0 %3136
        %3138 = vrot.lane.b32.xlu0 %v3013, 80
        %v3139 = vpop.permute.xlu0 %3138
        %3140 = vrot.lane.b32.xlu0 %v3014, 80
        %v3141 = vpop.permute.xlu0 %3140
        %3142 = vrot.lane.b32.xlu0 %v3015, 80
        %v3143 = vpop.permute.xlu0 %3142
        %3144 = vrot.lane.b32.xlu0 %v3016, 80
        %v3145 = vpop.permute.xlu0 %3144
        %3146 = vrot.lane.b32.xlu0 %v3017, 80
        %v3147 = vpop.permute.xlu0 %3146
        %3148 = vrot.lane.b32.xlu0 %v3018, 80
        %v3149 = vpop.permute.xlu0 %3148
        %3150 = vrot.lane.b32.xlu0 %v3019, 80
        %v3151 = vpop.permute.xlu0 %3150
        %3152 = vrot.lane.b32.xlu0 %v3020, 80
        %v3153 = vpop.permute.xlu0 %3152
        %3154 = vrot.lane.b32.xlu0 %v3021, 80
        %v3155 = vpop.permute.xlu0 %3154
        %3156 = vrot.lane.b32.xlu0 %v3022, 80
        %v3157 = vpop.permute.xlu0 %3156
        %3158 = vrot.lane.b32.xlu0 %v3023, 80
        %v3159 = vpop.permute.xlu0 %3158
        %3160 = vrot.lane.b32.xlu0 %v3024, 80
        %v3161 = vpop.permute.xlu0 %3160
        %3162 = vrot.lane.b32.xlu0 %v3025, 80
        %v3163 = vpop.permute.xlu0 %3162
        %3164 = vrot.lane.b32.xlu0 %v3026, 80
        %v3165 = vpop.permute.xlu0 %3164
        %3166 = vrot.lane.b32.xlu0 %v3027, 80
        %v3167 = vpop.permute.xlu0 %3166
        %3168 = vrot.lane.b32.xlu0 %v3028, 80
        %v3169 = vpop.permute.xlu0 %3168
        %3170 = vrot.lane.b32.xlu0 %v3029, 80
        %v3171 = vpop.permute.xlu0 %3170
        %3172 = vrot.lane.b32.xlu0 %v3030, 80
        %v3173 = vpop.permute.xlu0 %3172
        %3174 = vrot.lane.b32.xlu0 %v3031, 80
        %v3175 = vpop.permute.xlu0 %3174
        %3176 = vrot.lane.b32.xlu0 %v3032, 80
        %v3177 = vpop.permute.xlu0 %3176
        %3178 = vrot.lane.b32.xlu0 %v3033, 80
        %v3179 = vpop.permute.xlu0 %3178
        %3180 = vrot.lane.b32.xlu0 %v3034, 80
        %v3181 = vpop.permute.xlu0 %3180
        %3182 = vrot.lane.b32.xlu0 %v3035, 80
        %v3183 = vpop.permute.xlu0 %3182
        %3184 = vrot.lane.b32.xlu0 %v3036, 80
        %v3185 = vpop.permute.xlu0 %3184
        %3186 = vrot.lane.b32.xlu0 %v3037, 80
        %v3187 = vpop.permute.xlu0 %3186
        %3188 = vrot.lane.b32.xlu0 %v3038, 80
        %v3189 = vpop.permute.xlu0 %3188
        %3190 = vrot.lane.b32.xlu0 %v3039, 80
        %v3191 = vpop.permute.xlu0 %3190
        %3192 = vrot.lane.b32.xlu0 %v3040, 80
        %v3193 = vpop.permute.xlu0 %3192
        %3194 = vrot.lane.b32.xlu0 %v3041, 80
        %v3195 = vpop.permute.xlu0 %3194
        %3196 = vrot.lane.b32.xlu0 %v3042, 80
        %v3197 = vpop.permute.xlu0 %3196
        %3198 = vrot.lane.b32.xlu0 %v3043, 80
        %v3199 = vpop.permute.xlu0 %3198
        %3200 = vrot.lane.b32.xlu0 %v3044, 80
        %v3201 = vpop.permute.xlu0 %3200
        %3202 = vrot.lane.b32.xlu0 %v3045, 80
        %v3203 = vpop.permute.xlu0 %3202
        %3204 = vrot.lane.b32.xlu0 %v3046, 80
        %v3205 = vpop.permute.xlu0 %3204
        %3206 = vrot.lane.b32.xlu0 %v3047, 80
        %v3207 = vpop.permute.xlu0 %3206
        %3208 = vrot.lane.b32.xlu0 %v3048, 80
        %v3209 = vpop.permute.xlu0 %3208
        %3210 = vrot.lane.b32.xlu0 %v3049, 80
        %v3211 = vpop.permute.xlu0 %3210
        %3212 = vrot.lane.b32.xlu0 %v3050, 80
        %v3213 = vpop.permute.xlu0 %3212
        %3214 = vrot.lane.b32.xlu0 %v3051, 80
        %v3215 = vpop.permute.xlu0 %3214
        %3216 = vrot.lane.b32.xlu0 %v3052, 80
        %v3217 = vpop.permute.xlu0 %3216
        %3218 = vrot.lane.b32.xlu0 %v3053, 80
        %v3219 = vpop.permute.xlu0 %3218
        %3220 = vrot.lane.b32.xlu0 %v3054, 80
        %v3221 = vpop.permute.xlu0 %3220
        %3222 = vrot.lane.b32.xlu0 %v3055, 80
        %v3223 = vpop.permute.xlu0 %3222
        %3224 = vrot.lane.b32.xlu0 %v3056, 80
        %v3225 = vpop.permute.xlu0 %3224
        %3226 = vrot.lane.b32.xlu0 %v3057, 80
        %v3227 = vpop.permute.xlu0 %3226
        %3228 = vrot.lane.b32.xlu0 %v3058, 80
        %v3229 = vpop.permute.xlu0 %3228
        %3230 = vrot.lane.b32.xlu0 %v3059, 80
        %v3231 = vpop.permute.xlu0 %3230
        %3232 = vrot.lane.b32.xlu0 %v3060, 80
        %v3233 = vpop.permute.xlu0 %3232
        %3234 = vrot.lane.b32.xlu0 %v3061, 80
        %v3235 = vpop.permute.xlu0 %3234
        %v3294 = vmax.f32 %v3004, %v3121
        %v3295 = vmax.f32 %v3005, %v3123
        %v3296 = vmax.f32 %v3006, %v3125
        %v3297 = vmax.f32 %v3007, %v3127
        %v3298 = vmax.f32 %v3008, %v3129
        %v3299 = vmax.f32 %v3009, %v3131
        %v3300 = vmax.f32 %v3010, %v3133
        %v3301 = vmax.f32 %v3011, %v3135
        %v3302 = vmax.f32 %v3012, %v3137
        %v3303 = vmax.f32 %v3013, %v3139
        %v3304 = vmax.f32 %v3014, %v3141
        %v3305 = vmax.f32 %v3015, %v3143
        %v3306 = vmax.f32 %v3016, %v3145
        %v3307 = vmax.f32 %v3017, %v3147
        %v3308 = vmax.f32 %v3018, %v3149
        %v3309 = vmax.f32 %v3019, %v3151
        %v3310 = vmax.f32 %v3020, %v3153
        %v3311 = vmax.f32 %v3021, %v3155
        %v3312 = vmax.f32 %v3022, %v3157
        %v3313 = vmax.f32 %v3023, %v3159
        %v3314 = vmax.f32 %v3024, %v3161
        %v3315 = vmax.f32 %v3025, %v3163
        %v3316 = vmax.f32 %v3026, %v3165
        %v3317 = vmax.f32 %v3027, %v3167
        %v3318 = vmax.f32 %v3028, %v3169
        %v3319 = vmax.f32 %v3029, %v3171
        %v3320 = vmax.f32 %v3030, %v3173
        %v3321 = vmax.f32 %v3031, %v3175
        %v3322 = vmax.f32 %v3032, %v3177
        %v3323 = vmax.f32 %v3033, %v3179
        %v3324 = vmax.f32 %v3034, %v3181
        %v3325 = vmax.f32 %v3035, %v3183
        %v3326 = vmax.f32 %v3036, %v3185
        %v3327 = vmax.f32 %v3037, %v3187
        %v3328 = vmax.f32 %v3038, %v3189
        %v3329 = vmax.f32 %v3039, %v3191
        %v3330 = vmax.f32 %v3040, %v3193
        %v3331 = vmax.f32 %v3041, %v3195
        %v3332 = vmax.f32 %v3042, %v3197
        %v3333 = vmax.f32 %v3043, %v3199
        %v3334 = vmax.f32 %v3044, %v3201
        %v3335 = vmax.f32 %v3045, %v3203
        %v3336 = vmax.f32 %v3046, %v3205
        %v3337 = vmax.f32 %v3047, %v3207
        %v3338 = vmax.f32 %v3048, %v3209
        %v3339 = vmax.f32 %v3049, %v3211
        %v3340 = vmax.f32 %v3050, %v3213
        %v3341 = vmax.f32 %v3051, %v3215
        %v3342 = vmax.f32 %v3052, %v3217
        %v3343 = vmax.f32 %v3053, %v3219
        %v3344 = vmax.f32 %v3054, %v3221
        %v3345 = vmax.f32 %v3055, %v3223
        %v3346 = vmax.f32 %v3056, %v3225
        %v3347 = vmax.f32 %v3057, %v3227
        %v3348 = vmax.f32 %v3058, %v3229
        %v3349 = vmax.f32 %v3059, %v3231
        %v3350 = vmax.f32 %v3060, %v3233
        %v3351 = vmax.f32 %v3061, %v3235
        %vm3352 = vcmask 195584
        %3353 = vst.msk [vmem:[#allocation2] sm:$0xff] %vm3352, %v3294
        %3354 = vst.msk [vmem:[#allocation2 + $0x8] sm:$0xff] %vm3352, %v3295
        %3355 = vst.msk [vmem:[#allocation2 + $0x10] sm:$0xff] %vm3352, %v3296
        %3356 = vst.msk [vmem:[#allocation2 + $0x18] sm:$0xff] %vm3352, %v3297
        %3357 = vst.msk [vmem:[#allocation2 + $0x20] sm:$0xff] %vm3352, %v3298
        %3358 = vst.msk [vmem:[#allocation2 + $0x28] sm:$0xff] %vm3352, %v3299
        %3359 = vst.msk [vmem:[#allocation2 + $0x30] sm:$0xff] %vm3352, %v3300
        %3360 = vst.msk [vmem:[#allocation2 + $0x38] sm:$0xff] %vm3352, %v3301
        %3361 = vst.msk [vmem:[#allocation2 + $0x40] sm:$0xff] %vm3352, %v3302
        %3362 = vst.msk [vmem:[#allocation2 + $0x48] sm:$0xff] %vm3352, %v3303
        %3363 = vst.msk [vmem:[#allocation2 + $0x50] sm:$0xff] %vm3352, %v3304
        %3364 = vst.msk [vmem:[#allocation2 + $0x58] sm:$0xff] %vm3352, %v3305
        %3365 = vst.msk [vmem:[#allocation2 + $0x60] sm:$0xff] %vm3352, %v3306
        %3366 = vst.msk [vmem:[#allocation2 + $0x68] sm:$0xff] %vm3352, %v3307
        %3367 = vst.msk [vmem:[#allocation2 + $0x70] sm:$0xff] %vm3352, %v3308
        %3368 = vst.msk [vmem:[#allocation2 + $0x78] sm:$0xff] %vm3352, %v3309
        %3369 = vst.msk [vmem:[#allocation2 + $0x80] sm:$0xff] %vm3352, %v3310
        %3370 = vst.msk [vmem:[#allocation2 + $0x88] sm:$0xff] %vm3352, %v3311
        %3371 = vst.msk [vmem:[#allocation2 + $0x90] sm:$0xff] %vm3352, %v3312
        %3372 = vst.msk [vmem:[#allocation2 + $0x98] sm:$0xff] %vm3352, %v3313
        %3373 = vst.msk [vmem:[#allocation2 + $0xa0] sm:$0xff] %vm3352, %v3314
        %3374 = vst.msk [vmem:[#allocation2 + $0xa8] sm:$0xff] %vm3352, %v3315
        %3375 = vst.msk [vmem:[#allocation2 + $0xb0] sm:$0xff] %vm3352, %v3316
        %3376 = vst.msk [vmem:[#allocation2 + $0xb8] sm:$0xff] %vm3352, %v3317
        %3377 = vst.msk [vmem:[#allocation2 + $0xc0] sm:$0xff] %vm3352, %v3318
        %3378 = vst.msk [vmem:[#allocation2 + $0xc8] sm:$0xff] %vm3352, %v3319
        %3379 = vst.msk [vmem:[#allocation2 + $0xd0] sm:$0xff] %vm3352, %v3320
        %3380 = vst.msk [vmem:[#allocation2 + $0xd8] sm:$0xff] %vm3352, %v3321
        %3381 = vst.msk [vmem:[#allocation2 + $0xe0] sm:$0xff] %vm3352, %v3322
        %3382 = vst.msk [vmem:[#allocation2 + $0xe8] sm:$0xff] %vm3352, %v3323
        %3383 = vst.msk [vmem:[#allocation2 + $0xf0] sm:$0xff] %vm3352, %v3324
        %3384 = vst.msk [vmem:[#allocation2 + $0xf8] sm:$0xff] %vm3352, %v3325
        %3385 = vst.msk [vmem:[#allocation2 + $0x100] sm:$0xff] %vm3352, %v3326
        %3386 = vst.msk [vmem:[#allocation2 + $0x108] sm:$0xff] %vm3352, %v3327
        %3387 = vst.msk [vmem:[#allocation2 + $0x110] sm:$0xff] %vm3352, %v3328
        %3388 = vst.msk [vmem:[#allocation2 + $0x118] sm:$0xff] %vm3352, %v3329
        %3389 = vst.msk [vmem:[#allocation2 + $0x120] sm:$0xff] %vm3352, %v3330
        %3390 = vst.msk [vmem:[#allocation2 + $0x128] sm:$0xff] %vm3352, %v3331
        %3391 = vst.msk [vmem:[#allocation2 + $0x130] sm:$0xff] %vm3352, %v3332
        %3392 = vst.msk [vmem:[#allocation2 + $0x138] sm:$0xff] %vm3352, %v3333
        %3393 = vst.msk [vmem:[#allocation2 + $0x140] sm:$0xff] %vm3352, %v3334
        %3394 = vst.msk [vmem:[#allocation2 + $0x148] sm:$0xff] %vm3352, %v3335
        %3395 = vst.msk [vmem:[#allocation2 + $0x150] sm:$0xff] %vm3352, %v3336
        %3396 = vst.msk [vmem:[#allocation2 + $0x158] sm:$0xff] %vm3352, %v3337
        %3397 = vst.msk [vmem:[#allocation2 + $0x160] sm:$0xff] %vm3352, %v3338
        %3398 = vst.msk [vmem:[#allocation2 + $0x168] sm:$0xff] %vm3352, %v3339
        %3399 = vst.msk [vmem:[#allocation2 + $0x170] sm:$0xff] %vm3352, %v3340
        %3400 = vst.msk [vmem:[#allocation2 + $0x178] sm:$0xff] %vm3352, %v3341
        %3401 = vst.msk [vmem:[#allocation2 + $0x180] sm:$0xff] %vm3352, %v3342
        %3402 = vst.msk [vmem:[#allocation2 + $0x188] sm:$0xff] %vm3352, %v3343
        %3403 = vst.msk [vmem:[#allocation2 + $0x190] sm:$0xff] %vm3352, %v3344
        %3404 = vst.msk [vmem:[#allocation2 + $0x198] sm:$0xff] %vm3352, %v3345
        %3405 = vst.msk [vmem:[#allocation2 + $0x1a0] sm:$0xff] %vm3352, %v3346
        %3406 = vst.msk [vmem:[#allocation2 + $0x1a8] sm:$0xff] %vm3352, %v3347
        %3407 = vst.msk [vmem:[#allocation2 + $0x1b0] sm:$0xff] %vm3352, %v3348
        %3408 = vst.msk [vmem:[#allocation2 + $0x1b8] sm:$0xff] %vm3352, %v3349
        %3409 = vst.msk [vmem:[#allocation2 + $0x1c0] sm:$0xff] %vm3352, %v3350
        %3410 = vst.msk [vmem:[#allocation2 + $0x1c8] sm:$0xff] %vm3352, %v3351
        %v3411 = vld [vmem:[#allocation2] sm:$0xff]
        %v3412 = vld [vmem:[#allocation2 + $0x8] sm:$0xff]
        %v3413 = vld [vmem:[#allocation2 + $0x10] sm:$0xff]
        %v3414 = vld [vmem:[#allocation2 + $0x18] sm:$0xff]
        %v3415 = vld [vmem:[#allocation2 + $0x20] sm:$0xff]
        %v3416 = vld [vmem:[#allocation2 + $0x28] sm:$0xff]
        %v3417 = vld [vmem:[#allocation2 + $0x30] sm:$0xff]
        %v3418 = vld [vmem:[#allocation2 + $0x38] sm:$0xff]
        %v3419 = vld [vmem:[#allocation2 + $0x40] sm:$0xff]
        %v3420 = vld [vmem:[#allocation2 + $0x48] sm:$0xff]
        %v3421 = vld [vmem:[#allocation2 + $0x50] sm:$0xff]
        %v3422 = vld [vmem:[#allocation2 + $0x58] sm:$0xff]
        %v3423 = vld [vmem:[#allocation2 + $0x60] sm:$0xff]
        %v3424 = vld [vmem:[#allocation2 + $0x68] sm:$0xff]
        %v3425 = vld [vmem:[#allocation2 + $0x70] sm:$0xff]
        %v3426 = vld [vmem:[#allocation2 + $0x78] sm:$0xff]
        %v3427 = vld [vmem:[#allocation2 + $0x80] sm:$0xff]
        %v3428 = vld [vmem:[#allocation2 + $0x88] sm:$0xff]
        %v3429 = vld [vmem:[#allocation2 + $0x90] sm:$0xff]
        %v3430 = vld [vmem:[#allocation2 + $0x98] sm:$0xff]
        %v3431 = vld [vmem:[#allocation2 + $0xa0] sm:$0xff]
        %v3432 = vld [vmem:[#allocation2 + $0xa8] sm:$0xff]
        %v3433 = vld [vmem:[#allocation2 + $0xb0] sm:$0xff]
        %v3434 = vld [vmem:[#allocation2 + $0xb8] sm:$0xff]
        %v3435 = vld [vmem:[#allocation2 + $0xc0] sm:$0xff]
        %v3436 = vld [vmem:[#allocation2 + $0xc8] sm:$0xff]
        %v3437 = vld [vmem:[#allocation2 + $0xd0] sm:$0xff]
        %v3438 = vld [vmem:[#allocation2 + $0xd8] sm:$0xff]
        %v3439 = vld [vmem:[#allocation2 + $0xe0] sm:$0xff]
        %v3440 = vld [vmem:[#allocation2 + $0xe8] sm:$0xff]
        %v3441 = vld [vmem:[#allocation2 + $0xf0] sm:$0xff]
        %v3442 = vld [vmem:[#allocation2 + $0xf8] sm:$0xff]
        %v3443 = vld [vmem:[#allocation2 + $0x100] sm:$0xff]
        %v3444 = vld [vmem:[#allocation2 + $0x108] sm:$0xff]
        %v3445 = vld [vmem:[#allocation2 + $0x110] sm:$0xff]
        %v3446 = vld [vmem:[#allocation2 + $0x118] sm:$0xff]
        %v3447 = vld [vmem:[#allocation2 + $0x120] sm:$0xff]
        %v3448 = vld [vmem:[#allocation2 + $0x128] sm:$0xff]
        %v3449 = vld [vmem:[#allocation2 + $0x130] sm:$0xff]
        %v3450 = vld [vmem:[#allocation2 + $0x138] sm:$0xff]
        %v3451 = vld [vmem:[%s3] sm:$0xff]
        %v3452 = vld [vmem:[%s3 + $0x8] sm:$0xff]
        %v3453 = vld [vmem:[%s3 + $0x10] sm:$0xff]
        %v3454 = vld [vmem:[#allocation2 + $0x140] sm:$0xff]
        %s3455 = scalar_lea.vmem %s3, 24
        %v3456 = vld [vmem:[%s3455] sm:$0xff]
        %v3457 = vld [vmem:[%s3455 + $0x8] sm:$0xff]
        %v3458 = vld [vmem:[%s3455 + $0x10] sm:$0xff]
        %v3460 = vsel %vm3352, %v3412, 0
        %v3463 = vsel %vm3352, %v3413, 0
        %v3466 = vsel %vm3352, %v3414, 0
        %v3469 = vsel %vm3352, %v3415, 0
        %v3472 = vsel %vm3352, %v3416, 0
        %v3475 = vsel %vm3352, %v3417, 0
        %v3478 = vsel %vm3352, %v3418, 0
        %v3481 = vsel %vm3352, %v3419, 0
        %v3484 = vsel %vm3352, %v3420, 0
        %v3487 = vsel %vm3352, %v3421, 0
        %v3490 = vsel %vm3352, %v3422, 0
        %v3493 = vsel %vm3352, %v3423, 0
        %v3496 = vsel %vm3352, %v3424, 0
        %v3499 = vsel %vm3352, %v3425, 0
        %v3502 = vsel %vm3352, %v3426, 0
        %v3505 = vsel %vm3352, %v3427, 0
        %v3508 = vsel %vm3352, %v3428, 0
        %v3511 = vsel %vm3352, %v3429, 0
        %v3514 = vsel %vm3352, %v3430, 0
        %v3517 = vsel %vm3352, %v3431, 0
        %v3520 = vsel %vm3352, %v3432, 0
        %v3523 = vsel %vm3352, %v3433, 0
        %v3526 = vsel %vm3352, %v3434, 0
        %v3529 = vsel %vm3352, %v3435, 0
        %v3532 = vsel %vm3352, %v3436, 0
        %v3535 = vsel %vm3352, %v3437, 0
        %v3538 = vsel %vm3352, %v3438, 0
        %v3541 = vsel %vm3352, %v3439, 0
        %v3544 = vsel %vm3352, %v3440, 0
        %v3547 = vsel %vm3352, %v3441, 0
        %v3550 = vsel %vm3352, %v3442, 0
        %v3553 = vsel %vm3352, %v3443, 0
        %v3556 = vsel %vm3352, %v3444, 0
        %v3559 = vsel %vm3352, %v3445, 0
        %v3562 = vsel %vm3352, %v3446, 0
        %v3565 = vsel %vm3352, %v3447, 0
        %v3568 = vsel %vm3352, %v3448, 0
        %v3571 = vsel %vm3352, %v3449, 0
        %v3574 = vsel %vm3352, %v3450, 0
        %v3577 = vsel %vm3352, %v3454, 0
        %3579 = vmatprep.subr.mxu0 0.0
        %3580 = vmatpush1.msra.mxu0 0.0
        %3581 = vmatprep.subr.mxu0 0.0
        %3582 = vmatpush1.msra.mxu0 0.0
        %3583 = vmatprep.subr.mxu0 0.0
        %3584 = vmatpush1.msra.mxu0 0.0
        %3585 = vmatprep.subr.mxu0 0.0
        %3586 = vmatpush1.msra.mxu0 0.0
        %3587 = vmatprep.subr.mxu0 0.0
        %3588 = vmatpush1.msra.mxu0 0.0
        %3589 = vmatprep.subr.mxu0 0.0
        %3590 = vmatpush1.msra.mxu0 0.0
        %3591 = vmatprep.subr.mxu0 0.0
        %3592 = vmatpush1.msra.mxu0 0.0
        %3593 = vmatprep.subr.mxu0 0.0
        %3594 = vmatpush1.msra.mxu0 0.0
        %3595 = vmatprep.subr.mxu0 0.0
        %3596 = vmatpush1.msra.mxu0 0.0
        %3597 = vmatprep.subr.mxu0 0.0
        %3598 = vmatpush1.msra.mxu0 0.0
        %3599 = vmatprep.subr.mxu0 0.0
        %3600 = vmatpush1.msra.mxu0 0.0
        %3601 = vmatprep.subr.mxu0 0.0
        %3602 = vmatpush1.msra.mxu0 0.0
        %3603 = vmatprep.subr.mxu0 0.0
        %3604 = vmatpush1.msra.mxu0 0.0
        %3605 = vmatprep.subr.mxu0 0.0
        %3606 = vmatpush1.msra.mxu0 %v3458
        %3607 = vmatprep.subr.mxu0 0.0
        %3608 = vmatpush1.msra.mxu0 %v3457
        %3609 = vmatprep.subr.mxu0 0.0
        %3610 = vmatpush1.msra.mxu0 %v3456
        %3611 = vmatprep.subr.mxu0 0.0
        %3612 = vmatpush2.msra.mxu0 0.0
        %3613 = vmatprep.subr.mxu0 0.0
        %3614 = vmatpush2.msra.mxu0 0.0
        %3615 = vmatprep.subr.mxu0 0.0
        %3616 = vmatpush2.msra.mxu0 0.0
        %3617 = vmatprep.subr.mxu0 0.0
        %3618 = vmatpush2.msra.mxu0 0.0
        %3619 = vmatprep.subr.mxu0 0.0
        %3620 = vmatpush2.msra.mxu0 0.0
        %3621 = vmatprep.subr.mxu0 0.0
        %3622 = vmatpush2.msra.mxu0 0.0
        %3623 = vmatprep.subr.mxu0 0.0
        %3624 = vmatpush2.msra.mxu0 0.0
        %3625 = vmatprep.subr.mxu0 0.0
        %3626 = vmatpush2.msra.mxu0 0.0
        %3627 = vmatprep.subr.mxu0 0.0
        %3628 = vmatpush2.msra.mxu0 0.0
        %3629 = vmatprep.subr.mxu0 0.0
        %3630 = vmatpush2.msra.mxu0 0.0
        %3631 = vmatprep.subr.mxu0 0.0
        %3632 = vmatpush2.msra.mxu0 0.0
        %3633 = vmatprep.subr.mxu0 0.0
        %3634 = vmatpush2.msra.mxu0 0.0
        %3635 = vmatprep.subr.mxu0 0.0
        %3636 = vmatpush2.msra.mxu0 0.0
        %3637 = vmatprep.subr.mxu0 0.0
        %3638 = vmatpush2.msra.mxu0 0.0
        %3639 = vmatprep.subr.mxu0 0.0
        %3640 = vmatpush2.msra.mxu0 0.0
        %3641 = vmatprep.subr.mxu0 0.0
        %3642 = vmatpush2.msra.mxu0 0.0
        %3643 = vmatprep.mubr.f32.mxu0 0.0
        %3644 = vmatmul.mubr.f32.gmra.mxu0 %v3460
        %v3645 = vpop.f32.mrf.mxu0
        %v3646 = vadd.f32 0.0, %v3645
        %v3647 = vpop.f32.mrf.mxu0
        %3648 = vmatprep.mubr.f32.mxu0 0.0
        %3649 = vmatmul.mubr.f32.gmra.mxu0 %v3463
        %v3650 = vpop.f32.mrf.mxu0
        %v3651 = vadd.f32 0.0, %v3650
        %v3652 = vpop.f32.mrf.mxu0
        %3653 = vmatprep.mubr.f32.mxu0 0.0
        %3654 = vmatmul.mubr.f32.gmra.mxu0 %v3466
        %v3655 = vpop.f32.mrf.mxu0
        %v3656 = vadd.f32 0.0, %v3655
        %v3657 = vpop.f32.mrf.mxu0
        %3658 = vmatprep.mubr.f32.mxu0 0.0
        %3659 = vmatmul.mubr.f32.gmra.mxu0 %v3469
        %v3660 = vpop.f32.mrf.mxu0
        %v3661 = vadd.f32 0.0, %v3660
        %v3662 = vpop.f32.mrf.mxu0
        %3663 = vmatprep.mubr.f32.mxu0 0.0
        %3664 = vmatmul.mubr.f32.gmra.mxu0 %v3472
        %v3665 = vpop.f32.mrf.mxu0
        %v3666 = vadd.f32 0.0, %v3665
        %v3667 = vpop.f32.mrf.mxu0
        %3668 = vmatprep.mubr.f32.mxu0 0.0
        %3669 = vmatmul.mubr.f32.gmra.mxu0 %v3475
        %v3670 = vpop.f32.mrf.mxu0
        %v3671 = vadd.f32 0.0, %v3670
        %v3672 = vpop.f32.mrf.mxu0
        %3673 = vmatprep.mubr.f32.mxu0 0.0
        %3674 = vmatmul.mubr.f32.gmra.mxu0 %v3478
        %v3675 = vpop.f32.mrf.mxu0
        %v3676 = vadd.f32 0.0, %v3675
        %v3677 = vpop.f32.mrf.mxu0
        %3678 = vmatprep.mubr.f32.mxu0 0.0
        %3679 = vmatmul.mubr.f32.gmra.mxu0 %v3481
        %v3680 = vpop.f32.mrf.mxu0
        %v3681 = vadd.f32 0.0, %v3680
        %v3682 = vpop.f32.mrf.mxu0
        %3683 = vmatprep.mubr.f32.mxu0 0.0
        %3684 = vmatmul.mubr.f32.gmra.mxu0 %v3484
        %v3685 = vpop.f32.mrf.mxu0
        %v3686 = vadd.f32 0.0, %v3685
        %v3687 = vpop.f32.mrf.mxu0
        %3688 = vmatprep.mubr.f32.mxu0 0.0
        %3689 = vmatmul.mubr.f32.gmra.mxu0 %v3487
        %v3690 = vpop.f32.mrf.mxu0
        %v3691 = vadd.f32 0.0, %v3690
        %v3692 = vpop.f32.mrf.mxu0
        %3693 = vmatprep.mubr.f32.mxu0 0.0
        %3694 = vmatmul.mubr.f32.gmra.mxu0 %v3490
        %v3695 = vpop.f32.mrf.mxu0
        %v3696 = vadd.f32 0.0, %v3695
        %v3697 = vpop.f32.mrf.mxu0
        %3698 = vmatprep.mubr.f32.mxu0 0.0
        %3699 = vmatmul.mubr.f32.gmra.mxu0 %v3493
        %v3700 = vpop.f32.mrf.mxu0
        %v3701 = vadd.f32 0.0, %v3700
        %v3702 = vpop.f32.mrf.mxu0
        %3703 = vmatprep.mubr.f32.mxu0 0.0
        %3704 = vmatmul.mubr.f32.gmra.mxu0 %v3496
        %v3705 = vpop.f32.mrf.mxu0
        %v3706 = vadd.f32 0.0, %v3705
        %v3707 = vpop.f32.mrf.mxu0
        %3708 = vmatprep.mubr.f32.mxu0 0.0
        %3709 = vmatmul.mubr.f32.gmra.mxu0 %v3499
        %v3710 = vpop.f32.mrf.mxu0
        %v3711 = vadd.f32 0.0, %v3710
        %v3712 = vpop.f32.mrf.mxu0
        %3713 = vmatprep.mubr.f32.mxu0 0.0
        %3714 = vmatmul.mubr.f32.gmra.mxu0 %v3502
        %v3715 = vpop.f32.mrf.mxu0
        %v3716 = vadd.f32 0.0, %v3715
        %v3717 = vpop.f32.mrf.mxu0
        %3718 = vmatprep.mubr.f32.mxu0 0.0
        %3719 = vmatmul.mubr.f32.gmra.mxu0 %v3505
        %v3720 = vpop.f32.mrf.mxu0
        %v3721 = vadd.f32 0.0, %v3720
        %v3722 = vpop.f32.mrf.mxu0
        %3723 = vmatprep.mubr.f32.mxu0 0.0
        %3724 = vmatmul.mubr.f32.gmra.mxu0 %v3508
        %v3725 = vpop.f32.mrf.mxu0
        %v3726 = vadd.f32 0.0, %v3725
        %v3727 = vpop.f32.mrf.mxu0
        %3728 = vmatprep.mubr.f32.mxu0 0.0
        %3729 = vmatmul.mubr.f32.gmra.mxu0 %v3511
        %v3730 = vpop.f32.mrf.mxu0
        %v3731 = vadd.f32 0.0, %v3730
        %v3732 = vpop.f32.mrf.mxu0
        %3733 = vmatprep.mubr.f32.mxu0 0.0
        %3734 = vmatmul.mubr.f32.gmra.mxu0 %v3514
        %v3735 = vpop.f32.mrf.mxu0
        %v3736 = vadd.f32 0.0, %v3735
        %v3737 = vpop.f32.mrf.mxu0
        %3738 = vmatprep.mubr.f32.mxu0 0.0
        %3739 = vmatmul.mubr.f32.gmra.mxu0 %v3517
        %v3740 = vpop.f32.mrf.mxu0
        %v3741 = vadd.f32 0.0, %v3740
        %v3742 = vpop.f32.mrf.mxu0
        %3743 = vmatprep.mubr.f32.mxu0 0.0
        %3744 = vmatmul.mubr.f32.gmra.mxu0 %v3520
        %v3745 = vpop.f32.mrf.mxu0
        %v3746 = vadd.f32 0.0, %v3745
        %v3747 = vpop.f32.mrf.mxu0
        %3748 = vmatprep.mubr.f32.mxu0 0.0
        %3749 = vmatmul.mubr.f32.gmra.mxu0 %v3523
        %v3750 = vpop.f32.mrf.mxu0
        %v3751 = vadd.f32 0.0, %v3750
        %v3752 = vpop.f32.mrf.mxu0
        %3753 = vmatprep.mubr.f32.mxu0 0.0
        %3754 = vmatmul.mubr.f32.gmra.mxu0 %v3526
        %v3755 = vpop.f32.mrf.mxu0
        %v3756 = vadd.f32 0.0, %v3755
        %v3757 = vpop.f32.mrf.mxu0
        %3758 = vmatprep.mubr.f32.mxu0 0.0
        %3759 = vmatmul.mubr.f32.gmra.mxu0 %v3529
        %v3760 = vpop.f32.mrf.mxu0
        %v3761 = vadd.f32 0.0, %v3760
        %v3762 = vpop.f32.mrf.mxu0
        %3763 = vmatprep.mubr.f32.mxu0 0.0
        %3764 = vmatmul.mubr.f32.gmra.mxu0 %v3532
        %v3765 = vpop.f32.mrf.mxu0
        %v3766 = vadd.f32 0.0, %v3765
        %v3767 = vpop.f32.mrf.mxu0
        %3768 = vmatprep.mubr.f32.mxu0 0.0
        %3769 = vmatmul.mubr.f32.gmra.mxu0 %v3535
        %v3770 = vpop.f32.mrf.mxu0
        %v3771 = vadd.f32 0.0, %v3770
        %v3772 = vpop.f32.mrf.mxu0
        %3773 = vmatprep.mubr.f32.mxu0 0.0
        %3774 = vmatmul.mubr.f32.gmra.mxu0 %v3538
        %v3775 = vpop.f32.mrf.mxu0
        %v3776 = vadd.f32 0.0, %v3775
        %v3777 = vpop.f32.mrf.mxu0
        %3778 = vmatprep.mubr.f32.mxu0 0.0
        %3779 = vmatmul.mubr.f32.gmra.mxu0 %v3541
        %v3780 = vpop.f32.mrf.mxu0
        %v3781 = vadd.f32 0.0, %v3780
        %v3782 = vpop.f32.mrf.mxu0
        %3783 = vmatprep.mubr.f32.mxu0 0.0
        %3784 = vmatmul.mubr.f32.gmra.mxu0 %v3544
        %v3785 = vpop.f32.mrf.mxu0
        %v3786 = vadd.f32 0.0, %v3785
        %v3787 = vpop.f32.mrf.mxu0
        %3788 = vmatprep.mubr.f32.mxu0 0.0
        %3789 = vmatmul.mubr.f32.gmra.mxu0 %v3547
        %v3790 = vpop.f32.mrf.mxu0
        %v3791 = vadd.f32 0.0, %v3790
        %v3792 = vpop.f32.mrf.mxu0
        %3793 = vmatprep.mubr.f32.mxu0 0.0
        %3794 = vmatmul.mubr.f32.gmra.mxu0 %v3550
        %v3795 = vpop.f32.mrf.mxu0
        %v3796 = vadd.f32 0.0, %v3795
        %v3797 = vpop.f32.mrf.mxu0
        %3798 = vmatprep.mubr.f32.mxu0 0.0
        %3799 = vmatmul.mubr.f32.gmra.mxu0 %v3553
        %v3800 = vpop.f32.mrf.mxu0
        %v3801 = vadd.f32 0.0, %v3800
        %v3802 = vpop.f32.mrf.mxu0
        %3803 = vmatprep.mubr.f32.mxu0 0.0
        %3804 = vmatmul.mubr.f32.gmra.mxu0 %v3556
        %v3805 = vpop.f32.mrf.mxu0
        %v3806 = vadd.f32 0.0, %v3805
        %v3807 = vpop.f32.mrf.mxu0
        %3808 = vmatprep.mubr.f32.mxu0 0.0
        %3809 = vmatmul.mubr.f32.gmra.mxu0 %v3559
        %v3810 = vpop.f32.mrf.mxu0
        %v3811 = vadd.f32 0.0, %v3810
        %v3812 = vpop.f32.mrf.mxu0
        %3813 = vmatprep.mubr.f32.mxu0 0.0
        %3814 = vmatmul.mubr.f32.gmra.mxu0 %v3562
        %v3815 = vpop.f32.mrf.mxu0
        %v3816 = vadd.f32 0.0, %v3815
        %v3817 = vpop.f32.mrf.mxu0
        %3818 = vmatprep.mubr.f32.mxu0 0.0
        %3819 = vmatmul.mubr.f32.gmra.mxu0 %v3565
        %v3820 = vpop.f32.mrf.mxu0
        %v3821 = vadd.f32 0.0, %v3820
        %v3822 = vpop.f32.mrf.mxu0
        %3823 = vmatprep.mubr.f32.mxu0 0.0
        %3824 = vmatmul.mubr.f32.gmra.mxu0 %v3568
        %v3825 = vpop.f32.mrf.mxu0
        %v3826 = vadd.f32 0.0, %v3825
        %v3827 = vpop.f32.mrf.mxu0
        %3828 = vmatprep.mubr.f32.mxu0 0.0
        %3829 = vmatmul.mubr.f32.gmra.mxu0 %v3571
        %v3830 = vpop.f32.mrf.mxu0
        %v3831 = vadd.f32 0.0, %v3830
        %v3832 = vpop.f32.mrf.mxu0
        %3833 = vmatprep.mubr.f32.mxu0 0.0
        %3834 = vmatmul.mubr.f32.gmra.mxu0 %v3574
        %v3835 = vpop.f32.mrf.mxu0
        %v3836 = vadd.f32 0.0, %v3835
        %v3837 = vpop.f32.mrf.mxu0
        %3838 = vmatprep.mubr.f32.mxu0 0.0
        %3839 = vmatmul.mubr.f32.gmra.mxu0 %v3577
        %v3840 = vpop.f32.mrf.mxu0
        %v3841 = vadd.f32 0.0, %v3840
        %v3842 = vpop.f32.mrf.mxu0
        %3843 = vdwg.mxu0
        %v3845 = vsel %vm3352, %v3411, 0
        %3847 = vmatprep.subr.mxu0 0.0
        %3848 = vmatpush1.msra.mxu0 0.0
        %3849 = vmatprep.subr.mxu0 0.0
        %3850 = vmatpush1.msra.mxu0 0.0
        %3851 = vmatprep.subr.mxu0 0.0
        %3852 = vmatpush1.msra.mxu0 0.0
        %3853 = vmatprep.subr.mxu0 0.0
        %3854 = vmatpush1.msra.mxu0 0.0
        %3855 = vmatprep.subr.mxu0 0.0
        %3856 = vmatpush1.msra.mxu0 0.0
        %3857 = vmatprep.subr.mxu0 0.0
        %3858 = vmatpush1.msra.mxu0 0.0
        %3859 = vmatprep.subr.mxu0 0.0
        %3860 = vmatpush1.msra.mxu0 0.0
        %3861 = vmatprep.subr.mxu0 0.0
        %3862 = vmatpush1.msra.mxu0 0.0
        %3863 = vmatprep.subr.mxu0 0.0
        %3864 = vmatpush1.msra.mxu0 0.0
        %3865 = vmatprep.subr.mxu0 0.0
        %3866 = vmatpush1.msra.mxu0 0.0
        %3867 = vmatprep.subr.mxu0 0.0
        %3868 = vmatpush1.msra.mxu0 0.0
        %3869 = vmatprep.subr.mxu0 0.0
        %3870 = vmatpush1.msra.mxu0 0.0
        %3871 = vmatprep.subr.mxu0 0.0
        %3872 = vmatpush1.msra.mxu0 0.0
        %3873 = vmatprep.subr.mxu0 0.0
        %3874 = vmatpush1.msra.mxu0 %v3453
        %3875 = vmatprep.subr.mxu0 0.0
        %3876 = vmatpush1.msra.mxu0 %v3452
        %3877 = vmatprep.subr.mxu0 0.0
        %3878 = vmatpush1.msra.mxu0 %v3451
        %3879 = vmatprep.subr.mxu0 0.0
        %3880 = vmatpush2.msra.mxu0 0.0
        %3881 = vmatprep.subr.mxu0 0.0
        %3882 = vmatpush2.msra.mxu0 0.0
        %3883 = vmatprep.subr.mxu0 0.0
        %3884 = vmatpush2.msra.mxu0 0.0
        %3885 = vmatprep.subr.mxu0 0.0
        %3886 = vmatpush2.msra.mxu0 0.0
        %3887 = vmatprep.subr.mxu0 0.0
        %3888 = vmatpush2.msra.mxu0 0.0
        %3889 = vmatprep.subr.mxu0 0.0
        %3890 = vmatpush2.msra.mxu0 0.0
        %3891 = vmatprep.subr.mxu0 0.0
        %3892 = vmatpush2.msra.mxu0 0.0
        %3893 = vmatprep.subr.mxu0 0.0
        %3894 = vmatpush2.msra.mxu0 0.0
        %3895 = vmatprep.subr.mxu0 0.0
        %3896 = vmatpush2.msra.mxu0 0.0
        %3897 = vmatprep.subr.mxu0 0.0
        %3898 = vmatpush2.msra.mxu0 0.0
        %3899 = vmatprep.subr.mxu0 0.0
        %3900 = vmatpush2.msra.mxu0 0.0
        %3901 = vmatprep.subr.mxu0 0.0
        %3902 = vmatpush2.msra.mxu0 0.0
        %3903 = vmatprep.subr.mxu0 0.0
        %3904 = vmatpush2.msra.mxu0 0.0
        %3905 = vmatprep.subr.mxu0 0.0
        %3906 = vmatpush2.msra.mxu0 0.0
        %3907 = vmatprep.subr.mxu0 0.0
        %3908 = vmatpush2.msra.mxu0 0.0
        %3909 = vmatprep.subr.mxu0 0.0
        %3910 = vmatpush2.msra.mxu0 0.0
        %3911 = vmatprep.mubr.f32.mxu0 0.0
        %3912 = vmatmul.mubr.f32.gmra.mxu0 %v3845
        %v3913 = vpop.f32.mrf.mxu0
        %v3914 = vadd.f32 %v3646, %v3913
        %v3915 = vpop.f32.mrf.mxu0
        %3916 = vmatprep.mubr.f32.mxu0 0.0
        %3917 = vmatmul.mubr.f32.gmra.mxu0 %v3460
        %v3918 = vpop.f32.mrf.mxu0
        %v3919 = vadd.f32 %v3651, %v3918
        %v3920 = vpop.f32.mrf.mxu0
        %3921 = vmatprep.mubr.f32.mxu0 0.0
        %3922 = vmatmul.mubr.f32.gmra.mxu0 %v3463
        %v3923 = vpop.f32.mrf.mxu0
        %v3924 = vadd.f32 %v3656, %v3923
        %v3925 = vpop.f32.mrf.mxu0
        %3926 = vmatprep.mubr.f32.mxu0 0.0
        %3927 = vmatmul.mubr.f32.gmra.mxu0 %v3466
        %v3928 = vpop.f32.mrf.mxu0
        %v3929 = vadd.f32 %v3661, %v3928
        %v3930 = vpop.f32.mrf.mxu0
        %3931 = vmatprep.mubr.f32.mxu0 0.0
        %3932 = vmatmul.mubr.f32.gmra.mxu0 %v3469
        %v3933 = vpop.f32.mrf.mxu0
        %v3934 = vadd.f32 %v3666, %v3933
        %v3935 = vpop.f32.mrf.mxu0
        %3936 = vmatprep.mubr.f32.mxu0 0.0
        %3937 = vmatmul.mubr.f32.gmra.mxu0 %v3472
        %v3938 = vpop.f32.mrf.mxu0
        %v3939 = vadd.f32 %v3671, %v3938
        %v3940 = vpop.f32.mrf.mxu0
        %3941 = vmatprep.mubr.f32.mxu0 0.0
        %3942 = vmatmul.mubr.f32.gmra.mxu0 %v3475
        %v3943 = vpop.f32.mrf.mxu0
        %v3944 = vadd.f32 %v3676, %v3943
        %v3945 = vpop.f32.mrf.mxu0
        %3946 = vmatprep.mubr.f32.mxu0 0.0
        %3947 = vmatmul.mubr.f32.gmra.mxu0 %v3478
        %v3948 = vpop.f32.mrf.mxu0
        %v3949 = vadd.f32 %v3681, %v3948
        %v3950 = vpop.f32.mrf.mxu0
        %3951 = vmatprep.mubr.f32.mxu0 0.0
        %3952 = vmatmul.mubr.f32.gmra.mxu0 %v3481
        %v3953 = vpop.f32.mrf.mxu0
        %v3954 = vadd.f32 %v3686, %v3953
        %v3955 = vpop.f32.mrf.mxu0
        %3956 = vmatprep.mubr.f32.mxu0 0.0
        %3957 = vmatmul.mubr.f32.gmra.mxu0 %v3484
        %v3958 = vpop.f32.mrf.mxu0
        %v3959 = vadd.f32 %v3691, %v3958
        %v3960 = vpop.f32.mrf.mxu0
        %3961 = vmatprep.mubr.f32.mxu0 0.0
        %3962 = vmatmul.mubr.f32.gmra.mxu0 %v3487
        %v3963 = vpop.f32.mrf.mxu0
        %v3964 = vadd.f32 %v3696, %v3963
        %v3965 = vpop.f32.mrf.mxu0
        %3966 = vmatprep.mubr.f32.mxu0 0.0
        %3967 = vmatmul.mubr.f32.gmra.mxu0 %v3490
        %v3968 = vpop.f32.mrf.mxu0
        %v3969 = vadd.f32 %v3701, %v3968
        %v3970 = vpop.f32.mrf.mxu0
        %3971 = vmatprep.mubr.f32.mxu0 0.0
        %3972 = vmatmul.mubr.f32.gmra.mxu0 %v3493
        %v3973 = vpop.f32.mrf.mxu0
        %v3974 = vadd.f32 %v3706, %v3973
        %v3975 = vpop.f32.mrf.mxu0
        %3976 = vmatprep.mubr.f32.mxu0 0.0
        %3977 = vmatmul.mubr.f32.gmra.mxu0 %v3496
        %v3978 = vpop.f32.mrf.mxu0
        %v3979 = vadd.f32 %v3711, %v3978
        %v3980 = vpop.f32.mrf.mxu0
        %3981 = vmatprep.mubr.f32.mxu0 0.0
        %3982 = vmatmul.mubr.f32.gmra.mxu0 %v3499
        %v3983 = vpop.f32.mrf.mxu0
        %v3984 = vadd.f32 %v3716, %v3983
        %v3985 = vpop.f32.mrf.mxu0
        %3986 = vmatprep.mubr.f32.mxu0 0.0
        %3987 = vmatmul.mubr.f32.gmra.mxu0 %v3502
        %v3988 = vpop.f32.mrf.mxu0
        %v3989 = vadd.f32 %v3721, %v3988
        %v3990 = vpop.f32.mrf.mxu0
        %3991 = vmatprep.mubr.f32.mxu0 0.0
        %3992 = vmatmul.mubr.f32.gmra.mxu0 %v3505
        %v3993 = vpop.f32.mrf.mxu0
        %v3994 = vadd.f32 %v3726, %v3993
        %v3995 = vpop.f32.mrf.mxu0
        %3996 = vmatprep.mubr.f32.mxu0 0.0
        %3997 = vmatmul.mubr.f32.gmra.mxu0 %v3508
        %v3998 = vpop.f32.mrf.mxu0
        %v3999 = vadd.f32 %v3731, %v3998
        %v4000 = vpop.f32.mrf.mxu0
        %4001 = vmatprep.mubr.f32.mxu0 0.0
        %4002 = vmatmul.mubr.f32.gmra.mxu0 %v3511
        %v4003 = vpop.f32.mrf.mxu0
        %v4004 = vadd.f32 %v3736, %v4003
        %v4005 = vpop.f32.mrf.mxu0
        %4006 = vmatprep.mubr.f32.mxu0 0.0
        %4007 = vmatmul.mubr.f32.gmra.mxu0 %v3514
        %v4008 = vpop.f32.mrf.mxu0
        %v4009 = vadd.f32 %v3741, %v4008
        %v4010 = vpop.f32.mrf.mxu0
        %4011 = vmatprep.mubr.f32.mxu0 0.0
        %4012 = vmatmul.mubr.f32.gmra.mxu0 %v3517
        %v4013 = vpop.f32.mrf.mxu0
        %v4014 = vadd.f32 %v3746, %v4013
        %v4015 = vpop.f32.mrf.mxu0
        %4016 = vmatprep.mubr.f32.mxu0 0.0
        %4017 = vmatmul.mubr.f32.gmra.mxu0 %v3520
        %v4018 = vpop.f32.mrf.mxu0
        %v4019 = vadd.f32 %v3751, %v4018
        %v4020 = vpop.f32.mrf.mxu0
        %4021 = vmatprep.mubr.f32.mxu0 0.0
        %4022 = vmatmul.mubr.f32.gmra.mxu0 %v3523
        %v4023 = vpop.f32.mrf.mxu0
        %v4024 = vadd.f32 %v3756, %v4023
        %v4025 = vpop.f32.mrf.mxu0
        %4026 = vmatprep.mubr.f32.mxu0 0.0
        %4027 = vmatmul.mubr.f32.gmra.mxu0 %v3526
        %v4028 = vpop.f32.mrf.mxu0
        %v4029 = vadd.f32 %v3761, %v4028
        %v4030 = vpop.f32.mrf.mxu0
        %4031 = vmatprep.mubr.f32.mxu0 0.0
        %4032 = vmatmul.mubr.f32.gmra.mxu0 %v3529
        %v4033 = vpop.f32.mrf.mxu0
        %v4034 = vadd.f32 %v3766, %v4033
        %v4035 = vpop.f32.mrf.mxu0
        %4036 = vmatprep.mubr.f32.mxu0 0.0
        %4037 = vmatmul.mubr.f32.gmra.mxu0 %v3532
        %v4038 = vpop.f32.mrf.mxu0
        %v4039 = vadd.f32 %v3771, %v4038
        %v4040 = vpop.f32.mrf.mxu0
        %4041 = vmatprep.mubr.f32.mxu0 0.0
        %4042 = vmatmul.mubr.f32.gmra.mxu0 %v3535
        %v4043 = vpop.f32.mrf.mxu0
        %v4044 = vadd.f32 %v3776, %v4043
        %v4045 = vpop.f32.mrf.mxu0
        %4046 = vmatprep.mubr.f32.mxu0 0.0
        %4047 = vmatmul.mubr.f32.gmra.mxu0 %v3538
        %v4048 = vpop.f32.mrf.mxu0
        %v4049 = vadd.f32 %v3781, %v4048
        %v4050 = vpop.f32.mrf.mxu0
        %4051 = vmatprep.mubr.f32.mxu0 0.0
        %4052 = vmatmul.mubr.f32.gmra.mxu0 %v3541
        %v4053 = vpop.f32.mrf.mxu0
        %v4054 = vadd.f32 %v3786, %v4053
        %v4055 = vpop.f32.mrf.mxu0
        %4056 = vmatprep.mubr.f32.mxu0 0.0
        %4057 = vmatmul.mubr.f32.gmra.mxu0 %v3544
        %v4058 = vpop.f32.mrf.mxu0
        %v4059 = vadd.f32 %v3791, %v4058
        %v4060 = vpop.f32.mrf.mxu0
        %4061 = vmatprep.mubr.f32.mxu0 0.0
        %4062 = vmatmul.mubr.f32.gmra.mxu0 %v3547
        %v4063 = vpop.f32.mrf.mxu0
        %v4064 = vadd.f32 %v3796, %v4063
        %v4065 = vpop.f32.mrf.mxu0
        %4066 = vmatprep.mubr.f32.mxu0 0.0
        %4067 = vmatmul.mubr.f32.gmra.mxu0 %v3550
        %v4068 = vpop.f32.mrf.mxu0
        %v4069 = vadd.f32 %v3801, %v4068
        %v4070 = vpop.f32.mrf.mxu0
        %4071 = vmatprep.mubr.f32.mxu0 0.0
        %4072 = vmatmul.mubr.f32.gmra.mxu0 %v3553
        %v4073 = vpop.f32.mrf.mxu0
        %v4074 = vadd.f32 %v3806, %v4073
        %v4075 = vpop.f32.mrf.mxu0
        %4076 = vmatprep.mubr.f32.mxu0 0.0
        %4077 = vmatmul.mubr.f32.gmra.mxu0 %v3556
        %v4078 = vpop.f32.mrf.mxu0
        %v4079 = vadd.f32 %v3811, %v4078
        %v4080 = vpop.f32.mrf.mxu0
        %4081 = vmatprep.mubr.f32.mxu0 0.0
        %4082 = vmatmul.mubr.f32.gmra.mxu0 %v3559
        %v4083 = vpop.f32.mrf.mxu0
        %v4084 = vadd.f32 %v3816, %v4083
        %v4085 = vpop.f32.mrf.mxu0
        %4086 = vmatprep.mubr.f32.mxu0 0.0
        %4087 = vmatmul.mubr.f32.gmra.mxu0 %v3562
        %v4088 = vpop.f32.mrf.mxu0
        %v4089 = vadd.f32 %v3821, %v4088
        %v4090 = vpop.f32.mrf.mxu0
        %4091 = vmatprep.mubr.f32.mxu0 0.0
        %4092 = vmatmul.mubr.f32.gmra.mxu0 %v3565
        %v4093 = vpop.f32.mrf.mxu0
        %v4094 = vadd.f32 %v3826, %v4093
        %v4095 = vpop.f32.mrf.mxu0
        %4096 = vmatprep.mubr.f32.mxu0 0.0
        %4097 = vmatmul.mubr.f32.gmra.mxu0 %v3568
        %v4098 = vpop.f32.mrf.mxu0
        %v4099 = vadd.f32 %v3831, %v4098
        %v4100 = vpop.f32.mrf.mxu0
        %4101 = vmatprep.mubr.f32.mxu0 0.0
        %4102 = vmatmul.mubr.f32.gmra.mxu0 %v3571
        %v4103 = vpop.f32.mrf.mxu0
        %v4104 = vadd.f32 %v3836, %v4103
        %v4105 = vpop.f32.mrf.mxu0
        %4106 = vmatprep.mubr.f32.mxu0 0.0
        %4107 = vmatmul.mubr.f32.gmra.mxu0 %v3574
        %v4108 = vpop.f32.mrf.mxu0
        %v4109 = vadd.f32 %v3841, %v4108
        %v4110 = vpop.f32.mrf.mxu0
        %4111 = vdwg.mxu0
        %v4112 = vld [vmem:[#allocation2 + $0x10] sm:$0xff]
        %v4113 = vld [vmem:[#allocation2 + $0x18] sm:$0xff]
        %v4114 = vld [vmem:[#allocation2 + $0x20] sm:$0xff]
        %v4115 = vld [vmem:[#allocation2 + $0x28] sm:$0xff]
        %v4116 = vld [vmem:[#allocation2 + $0x30] sm:$0xff]
        %v4117 = vld [vmem:[#allocation2 + $0x38] sm:$0xff]
        %v4118 = vld [vmem:[#allocation2 + $0x40] sm:$0xff]
        %v4119 = vld [vmem:[#allocation2 + $0x48] sm:$0xff]
        %v4120 = vld [vmem:[#allocation2 + $0x50] sm:$0xff]
        %v4121 = vld [vmem:[#allocation2 + $0x58] sm:$0xff]
        %v4122 = vld [vmem:[#allocation2 + $0x60] sm:$0xff]
        %v4123 = vld [vmem:[#allocation2 + $0x68] sm:$0xff]
        %v4124 = vld [vmem:[#allocation2 + $0x70] sm:$0xff]
        %v4125 = vld [vmem:[#allocation2 + $0x78] sm:$0xff]
        %v4126 = vld [vmem:[#allocation2 + $0x80] sm:$0xff]
        %v4127 = vld [vmem:[#allocation2 + $0x88] sm:$0xff]
        %v4128 = vld [vmem:[#allocation2 + $0x90] sm:$0xff]
        %v4129 = vld [vmem:[#allocation2 + $0x98] sm:$0xff]
        %v4130 = vld [vmem:[#allocation2 + $0xa0] sm:$0xff]
        %v4131 = vld [vmem:[#allocation2 + $0xa8] sm:$0xff]
        %v4132 = vld [vmem:[#allocation2 + $0xb0] sm:$0xff]
        %v4133 = vld [vmem:[#allocation2 + $0xb8] sm:$0xff]
        %v4134 = vld [vmem:[#allocation2 + $0xc0] sm:$0xff]
        %v4135 = vld [vmem:[#allocation2 + $0xc8] sm:$0xff]
        %v4136 = vld [vmem:[#allocation2 + $0xd0] sm:$0xff]
        %v4137 = vld [vmem:[#allocation2 + $0xd8] sm:$0xff]
        %v4138 = vld [vmem:[#allocation2 + $0xe0] sm:$0xff]
        %v4139 = vld [vmem:[#allocation2 + $0xe8] sm:$0xff]
        %v4140 = vld [vmem:[#allocation2 + $0xf0] sm:$0xff]
        %v4141 = vld [vmem:[#allocation2 + $0xf8] sm:$0xff]
        %v4142 = vld [vmem:[#allocation2 + $0x100] sm:$0xff]
        %v4143 = vld [vmem:[#allocation2 + $0x108] sm:$0xff]
        %v4144 = vld [vmem:[#allocation2 + $0x110] sm:$0xff]
        %v4145 = vld [vmem:[#allocation2 + $0x118] sm:$0xff]
        %v4146 = vld [vmem:[#allocation2 + $0x120] sm:$0xff]
        %v4147 = vld [vmem:[#allocation2 + $0x128] sm:$0xff]
        %v4148 = vld [vmem:[#allocation2 + $0x130] sm:$0xff]
        %v4149 = vld [vmem:[#allocation2 + $0x138] sm:$0xff]
        %v4150 = vld [vmem:[#allocation2 + $0x140] sm:$0xff]
        %v4151 = vld [vmem:[#allocation2 + $0x148] sm:$0xff]
        %s4152 = scalar_lea.vmem %s3, 48
        %v4153 = vld [vmem:[%s4152] sm:$0xff]
        %v4154 = vld [vmem:[%s4152 + $0x8] sm:$0xff]
        %v4155 = vld [vmem:[%s4152 + $0x10] sm:$0xff]
        %v4157 = vsel %vm3352, %v4112, 0
        %v4160 = vsel %vm3352, %v4113, 0
        %v4163 = vsel %vm3352, %v4114, 0
        %v4166 = vsel %vm3352, %v4115, 0
        %v4169 = vsel %vm3352, %v4116, 0
        %v4172 = vsel %vm3352, %v4117, 0
        %v4175 = vsel %vm3352, %v4118, 0
        %v4178 = vsel %vm3352, %v4119, 0
        %v4181 = vsel %vm3352, %v4120, 0
        %v4184 = vsel %vm3352, %v4121, 0
        %v4187 = vsel %vm3352, %v4122, 0
        %v4190 = vsel %vm3352, %v4123, 0
        %v4193 = vsel %vm3352, %v4124, 0
        %v4196 = vsel %vm3352, %v4125, 0
        %v4199 = vsel %vm3352, %v4126, 0
        %v4202 = vsel %vm3352, %v4127, 0
        %v4205 = vsel %vm3352, %v4128, 0
        %v4208 = vsel %vm3352, %v4129, 0
        %v4211 = vsel %vm3352, %v4130, 0
        %v4214 = vsel %vm3352, %v4131, 0
        %v4217 = vsel %vm3352, %v4132, 0
        %v4220 = vsel %vm3352, %v4133, 0
        %v4223 = vsel %vm3352, %v4134, 0
        %v4226 = vsel %vm3352, %v4135, 0
        %v4229 = vsel %vm3352, %v4136, 0
        %v4232 = vsel %vm3352, %v4137, 0
        %v4235 = vsel %vm3352, %v4138, 0
        %v4238 = vsel %vm3352, %v4139, 0
        %v4241 = vsel %vm3352, %v4140, 0
        %v4244 = vsel %vm3352, %v4141, 0
        %v4247 = vsel %vm3352, %v4142, 0
        %v4250 = vsel %vm3352, %v4143, 0
        %v4253 = vsel %vm3352, %v4144, 0
        %v4256 = vsel %vm3352, %v4145, 0
        %v4259 = vsel %vm3352, %v4146, 0
        %v4262 = vsel %vm3352, %v4147, 0
        %v4265 = vsel %vm3352, %v4148, 0
        %v4268 = vsel %vm3352, %v4149, 0
        %v4271 = vsel %vm3352, %v4150, 0
        %v4274 = vsel %vm3352, %v4151, 0
        %4276 = vmatprep.subr.mxu0 0.0
        %4277 = vmatpush1.msra.mxu0 0.0
        %4278 = vmatprep.subr.mxu0 0.0
        %4279 = vmatpush1.msra.mxu0 0.0
        %4280 = vmatprep.subr.mxu0 0.0
        %4281 = vmatpush1.msra.mxu0 0.0
        %4282 = vmatprep.subr.mxu0 0.0
        %4283 = vmatpush1.msra.mxu0 0.0
        %4284 = vmatprep.subr.mxu0 0.0
        %4285 = vmatpush1.msra.mxu0 0.0
        %4286 = vmatprep.subr.mxu0 0.0
        %4287 = vmatpush1.msra.mxu0 0.0
        %4288 = vmatprep.subr.mxu0 0.0
        %4289 = vmatpush1.msra.mxu0 0.0
        %4290 = vmatprep.subr.mxu0 0.0
        %4291 = vmatpush1.msra.mxu0 0.0
        %4292 = vmatprep.subr.mxu0 0.0
        %4293 = vmatpush1.msra.mxu0 0.0
        %4294 = vmatprep.subr.mxu0 0.0
        %4295 = vmatpush1.msra.mxu0 0.0
        %4296 = vmatprep.subr.mxu0 0.0
        %4297 = vmatpush1.msra.mxu0 0.0
        %4298 = vmatprep.subr.mxu0 0.0
        %4299 = vmatpush1.msra.mxu0 0.0
        %4300 = vmatprep.subr.mxu0 0.0
        %4301 = vmatpush1.msra.mxu0 0.0
        %4302 = vmatprep.subr.mxu0 0.0
        %4303 = vmatpush1.msra.mxu0 %v4155
        %4304 = vmatprep.subr.mxu0 0.0
        %4305 = vmatpush1.msra.mxu0 %v4154
        %4306 = vmatprep.subr.mxu0 0.0
        %4307 = vmatpush1.msra.mxu0 %v4153
        %4308 = vmatprep.subr.mxu0 0.0
        %4309 = vmatpush2.msra.mxu0 0.0
        %4310 = vmatprep.subr.mxu0 0.0
        %4311 = vmatpush2.msra.mxu0 0.0
        %4312 = vmatprep.subr.mxu0 0.0
        %4313 = vmatpush2.msra.mxu0 0.0
        %4314 = vmatprep.subr.mxu0 0.0
        %4315 = vmatpush2.msra.mxu0 0.0
        %4316 = vmatprep.subr.mxu0 0.0
        %4317 = vmatpush2.msra.mxu0 0.0
        %4318 = vmatprep.subr.mxu0 0.0
        %4319 = vmatpush2.msra.mxu0 0.0
        %4320 = vmatprep.subr.mxu0 0.0
        %4321 = vmatpush2.msra.mxu0 0.0
        %4322 = vmatprep.subr.mxu0 0.0
        %4323 = vmatpush2.msra.mxu0 0.0
        %4324 = vmatprep.subr.mxu0 0.0
        %4325 = vmatpush2.msra.mxu0 0.0
        %4326 = vmatprep.subr.mxu0 0.0
        %4327 = vmatpush2.msra.mxu0 0.0
        %4328 = vmatprep.subr.mxu0 0.0
        %4329 = vmatpush2.msra.mxu0 0.0
        %4330 = vmatprep.subr.mxu0 0.0
        %4331 = vmatpush2.msra.mxu0 0.0
        %4332 = vmatprep.subr.mxu0 0.0
        %4333 = vmatpush2.msra.mxu0 0.0
        %4334 = vmatprep.subr.mxu0 0.0
        %4335 = vmatpush2.msra.mxu0 0.0
        %4336 = vmatprep.subr.mxu0 0.0
        %4337 = vmatpush2.msra.mxu0 0.0
        %4338 = vmatprep.subr.mxu0 0.0
        %4339 = vmatpush2.msra.mxu0 0.0
        %4340 = vmatprep.mubr.f32.mxu0 0.0
        %4341 = vmatmul.mubr.f32.gmra.mxu0 %v4157
        %v4342 = vpop.f32.mrf.mxu0
        %v4343 = vadd.f32 0.0, %v4342
        %v4344 = vpop.f32.mrf.mxu0
        %4345 = vmatprep.mubr.f32.mxu0 0.0
        %4346 = vmatmul.mubr.f32.gmra.mxu0 %v4160
        %v4347 = vpop.f32.mrf.mxu0
        %v4348 = vadd.f32 0.0, %v4347
        %v4349 = vpop.f32.mrf.mxu0
        %4350 = vmatprep.mubr.f32.mxu0 0.0
        %4351 = vmatmul.mubr.f32.gmra.mxu0 %v4163
        %v4352 = vpop.f32.mrf.mxu0
        %v4353 = vadd.f32 0.0, %v4352
        %v4354 = vpop.f32.mrf.mxu0
        %4355 = vmatprep.mubr.f32.mxu0 0.0
        %4356 = vmatmul.mubr.f32.gmra.mxu0 %v4166
        %v4357 = vpop.f32.mrf.mxu0
        %v4358 = vadd.f32 0.0, %v4357
        %v4359 = vpop.f32.mrf.mxu0
        %4360 = vmatprep.mubr.f32.mxu0 0.0
        %4361 = vmatmul.mubr.f32.gmra.mxu0 %v4169
        %v4362 = vpop.f32.mrf.mxu0
        %v4363 = vadd.f32 0.0, %v4362
        %v4364 = vpop.f32.mrf.mxu0
        %4365 = vmatprep.mubr.f32.mxu0 0.0
        %4366 = vmatmul.mubr.f32.gmra.mxu0 %v4172
        %v4367 = vpop.f32.mrf.mxu0
        %v4368 = vadd.f32 0.0, %v4367
        %v4369 = vpop.f32.mrf.mxu0
        %4370 = vmatprep.mubr.f32.mxu0 0.0
        %4371 = vmatmul.mubr.f32.gmra.mxu0 %v4175
        %v4372 = vpop.f32.mrf.mxu0
        %v4373 = vadd.f32 0.0, %v4372
        %v4374 = vpop.f32.mrf.mxu0
        %4375 = vmatprep.mubr.f32.mxu0 0.0
        %4376 = vmatmul.mubr.f32.gmra.mxu0 %v4178
        %v4377 = vpop.f32.mrf.mxu0
        %v4378 = vadd.f32 0.0, %v4377
        %v4379 = vpop.f32.mrf.mxu0
        %4380 = vmatprep.mubr.f32.mxu0 0.0
        %4381 = vmatmul.mubr.f32.gmra.mxu0 %v4181
        %v4382 = vpop.f32.mrf.mxu0
        %v4383 = vadd.f32 0.0, %v4382
        %v4384 = vpop.f32.mrf.mxu0
        %4385 = vmatprep.mubr.f32.mxu0 0.0
        %4386 = vmatmul.mubr.f32.gmra.mxu0 %v4184
        %v4387 = vpop.f32.mrf.mxu0
        %v4388 = vadd.f32 0.0, %v4387
        %v4389 = vpop.f32.mrf.mxu0
        %4390 = vmatprep.mubr.f32.mxu0 0.0
        %4391 = vmatmul.mubr.f32.gmra.mxu0 %v4187
        %v4392 = vpop.f32.mrf.mxu0
        %v4393 = vadd.f32 0.0, %v4392
        %v4394 = vpop.f32.mrf.mxu0
        %4395 = vmatprep.mubr.f32.mxu0 0.0
        %4396 = vmatmul.mubr.f32.gmra.mxu0 %v4190
        %v4397 = vpop.f32.mrf.mxu0
        %v4398 = vadd.f32 0.0, %v4397
        %v4399 = vpop.f32.mrf.mxu0
        %4400 = vmatprep.mubr.f32.mxu0 0.0
        %4401 = vmatmul.mubr.f32.gmra.mxu0 %v4193
        %v4402 = vpop.f32.mrf.mxu0
        %v4403 = vadd.f32 0.0, %v4402
        %v4404 = vpop.f32.mrf.mxu0
        %4405 = vmatprep.mubr.f32.mxu0 0.0
        %4406 = vmatmul.mubr.f32.gmra.mxu0 %v4196
        %v4407 = vpop.f32.mrf.mxu0
        %v4408 = vadd.f32 0.0, %v4407
        %v4409 = vpop.f32.mrf.mxu0
        %4410 = vmatprep.mubr.f32.mxu0 0.0
        %4411 = vmatmul.mubr.f32.gmra.mxu0 %v4199
        %v4412 = vpop.f32.mrf.mxu0
        %v4413 = vadd.f32 0.0, %v4412
        %v4414 = vpop.f32.mrf.mxu0
        %4415 = vmatprep.mubr.f32.mxu0 0.0
        %4416 = vmatmul.mubr.f32.gmra.mxu0 %v4202
        %v4417 = vpop.f32.mrf.mxu0
        %v4418 = vadd.f32 0.0, %v4417
        %v4419 = vpop.f32.mrf.mxu0
        %4420 = vmatprep.mubr.f32.mxu0 0.0
        %4421 = vmatmul.mubr.f32.gmra.mxu0 %v4205
        %v4422 = vpop.f32.mrf.mxu0
        %v4423 = vadd.f32 0.0, %v4422
        %v4424 = vpop.f32.mrf.mxu0
        %4425 = vmatprep.mubr.f32.mxu0 0.0
        %4426 = vmatmul.mubr.f32.gmra.mxu0 %v4208
        %v4427 = vpop.f32.mrf.mxu0
        %v4428 = vadd.f32 0.0, %v4427
        %v4429 = vpop.f32.mrf.mxu0
        %4430 = vmatprep.mubr.f32.mxu0 0.0
        %4431 = vmatmul.mubr.f32.gmra.mxu0 %v4211
        %v4432 = vpop.f32.mrf.mxu0
        %v4433 = vadd.f32 0.0, %v4432
        %v4434 = vpop.f32.mrf.mxu0
        %4435 = vmatprep.mubr.f32.mxu0 0.0
        %4436 = vmatmul.mubr.f32.gmra.mxu0 %v4214
        %v4437 = vpop.f32.mrf.mxu0
        %v4438 = vadd.f32 0.0, %v4437
        %v4439 = vpop.f32.mrf.mxu0
        %4440 = vmatprep.mubr.f32.mxu0 0.0
        %4441 = vmatmul.mubr.f32.gmra.mxu0 %v4217
        %v4442 = vpop.f32.mrf.mxu0
        %v4443 = vadd.f32 0.0, %v4442
        %v4444 = vpop.f32.mrf.mxu0
        %4445 = vmatprep.mubr.f32.mxu0 0.0
        %4446 = vmatmul.mubr.f32.gmra.mxu0 %v4220
        %v4447 = vpop.f32.mrf.mxu0
        %v4448 = vadd.f32 0.0, %v4447
        %v4449 = vpop.f32.mrf.mxu0
        %4450 = vmatprep.mubr.f32.mxu0 0.0
        %4451 = vmatmul.mubr.f32.gmra.mxu0 %v4223
        %v4452 = vpop.f32.mrf.mxu0
        %v4453 = vadd.f32 0.0, %v4452
        %v4454 = vpop.f32.mrf.mxu0
        %4455 = vmatprep.mubr.f32.mxu0 0.0
        %4456 = vmatmul.mubr.f32.gmra.mxu0 %v4226
        %v4457 = vpop.f32.mrf.mxu0
        %v4458 = vadd.f32 0.0, %v4457
        %v4459 = vpop.f32.mrf.mxu0
        %4460 = vmatprep.mubr.f32.mxu0 0.0
        %4461 = vmatmul.mubr.f32.gmra.mxu0 %v4229
        %v4462 = vpop.f32.mrf.mxu0
        %v4463 = vadd.f32 0.0, %v4462
        %v4464 = vpop.f32.mrf.mxu0
        %4465 = vmatprep.mubr.f32.mxu0 0.0
        %4466 = vmatmul.mubr.f32.gmra.mxu0 %v4232
        %v4467 = vpop.f32.mrf.mxu0
        %v4468 = vadd.f32 0.0, %v4467
        %v4469 = vpop.f32.mrf.mxu0
        %4470 = vmatprep.mubr.f32.mxu0 0.0
        %4471 = vmatmul.mubr.f32.gmra.mxu0 %v4235
        %v4472 = vpop.f32.mrf.mxu0
        %v4473 = vadd.f32 0.0, %v4472
        %v4474 = vpop.f32.mrf.mxu0
        %4475 = vmatprep.mubr.f32.mxu0 0.0
        %4476 = vmatmul.mubr.f32.gmra.mxu0 %v4238
        %v4477 = vpop.f32.mrf.mxu0
        %v4478 = vadd.f32 0.0, %v4477
        %v4479 = vpop.f32.mrf.mxu0
        %4480 = vmatprep.mubr.f32.mxu0 0.0
        %4481 = vmatmul.mubr.f32.gmra.mxu0 %v4241
        %v4482 = vpop.f32.mrf.mxu0
        %v4483 = vadd.f32 0.0, %v4482
        %v4484 = vpop.f32.mrf.mxu0
        %4485 = vmatprep.mubr.f32.mxu0 0.0
        %4486 = vmatmul.mubr.f32.gmra.mxu0 %v4244
        %v4487 = vpop.f32.mrf.mxu0
        %v4488 = vadd.f32 0.0, %v4487
        %v4489 = vpop.f32.mrf.mxu0
        %4490 = vmatprep.mubr.f32.mxu0 0.0
        %4491 = vmatmul.mubr.f32.gmra.mxu0 %v4247
        %v4492 = vpop.f32.mrf.mxu0
        %v4493 = vadd.f32 0.0, %v4492
        %v4494 = vpop.f32.mrf.mxu0
        %4495 = vmatprep.mubr.f32.mxu0 0.0
        %4496 = vmatmul.mubr.f32.gmra.mxu0 %v4250
        %v4497 = vpop.f32.mrf.mxu0
        %v4498 = vadd.f32 0.0, %v4497
        %v4499 = vpop.f32.mrf.mxu0
        %4500 = vmatprep.mubr.f32.mxu0 0.0
        %4501 = vmatmul.mubr.f32.gmra.mxu0 %v4253
        %v4502 = vpop.f32.mrf.mxu0
        %v4503 = vadd.f32 0.0, %v4502
        %v4504 = vpop.f32.mrf.mxu0
        %4505 = vmatprep.mubr.f32.mxu0 0.0
        %4506 = vmatmul.mubr.f32.gmra.mxu0 %v4256
        %v4507 = vpop.f32.mrf.mxu0
        %v4508 = vadd.f32 0.0, %v4507
        %v4509 = vpop.f32.mrf.mxu0
        %4510 = vmatprep.mubr.f32.mxu0 0.0
        %4511 = vmatmul.mubr.f32.gmra.mxu0 %v4259
        %v4512 = vpop.f32.mrf.mxu0
        %v4513 = vadd.f32 0.0, %v4512
        %v4514 = vpop.f32.mrf.mxu0
        %4515 = vmatprep.mubr.f32.mxu0 0.0
        %4516 = vmatmul.mubr.f32.gmra.mxu0 %v4262
        %v4517 = vpop.f32.mrf.mxu0
        %v4518 = vadd.f32 0.0, %v4517
        %v4519 = vpop.f32.mrf.mxu0
        %4520 = vmatprep.mubr.f32.mxu0 0.0
        %4521 = vmatmul.mubr.f32.gmra.mxu0 %v4265
        %v4522 = vpop.f32.mrf.mxu0
        %v4523 = vadd.f32 0.0, %v4522
        %v4524 = vpop.f32.mrf.mxu0
        %4525 = vmatprep.mubr.f32.mxu0 0.0
        %4526 = vmatmul.mubr.f32.gmra.mxu0 %v4268
        %v4527 = vpop.f32.mrf.mxu0
        %v4528 = vadd.f32 0.0, %v4527
        %v4529 = vpop.f32.mrf.mxu0
        %4530 = vmatprep.mubr.f32.mxu0 0.0
        %4531 = vmatmul.mubr.f32.gmra.mxu0 %v4271
        %v4532 = vpop.f32.mrf.mxu0
        %v4533 = vadd.f32 0.0, %v4532
        %v4534 = vpop.f32.mrf.mxu0
        %4535 = vmatprep.mubr.f32.mxu0 0.0
        %4536 = vmatmul.mubr.f32.gmra.mxu0 %v4274
        %v4537 = vpop.f32.mrf.mxu0
        %v4538 = vadd.f32 0.0, %v4537
        %v4539 = vpop.f32.mrf.mxu0
        %4540 = vdwg.mxu0
        %v4541 = vadd.f32 %v3914, %v4343
        %v4542 = vadd.f32 %v3919, %v4348
        %v4543 = vadd.f32 %v3924, %v4353
        %v4544 = vadd.f32 %v3929, %v4358
        %v4545 = vadd.f32 %v3934, %v4363
        %v4546 = vadd.f32 %v3939, %v4368
        %v4547 = vadd.f32 %v3944, %v4373
        %v4548 = vadd.f32 %v3949, %v4378
        %v4549 = vadd.f32 %v3954, %v4383
        %v4550 = vadd.f32 %v3959, %v4388
        %v4551 = vadd.f32 %v3964, %v4393
        %v4552 = vadd.f32 %v3969, %v4398
        %v4553 = vadd.f32 %v3974, %v4403
        %v4554 = vadd.f32 %v3979, %v4408
        %v4555 = vadd.f32 %v3984, %v4413
        %v4556 = vadd.f32 %v3989, %v4418
        %v4557 = vadd.f32 %v3994, %v4423
        %v4558 = vadd.f32 %v3999, %v4428
        %v4559 = vadd.f32 %v4004, %v4433
        %v4560 = vadd.f32 %v4009, %v4438
        %v4561 = vadd.f32 %v4014, %v4443
        %v4562 = vadd.f32 %v4019, %v4448
        %v4563 = vadd.f32 %v4024, %v4453
        %v4564 = vadd.f32 %v4029, %v4458
        %v4565 = vadd.f32 %v4034, %v4463
        %v4566 = vadd.f32 %v4039, %v4468
        %v4567 = vadd.f32 %v4044, %v4473
        %v4568 = vadd.f32 %v4049, %v4478
        %v4569 = vadd.f32 %v4054, %v4483
        %v4570 = vadd.f32 %v4059, %v4488
        %v4571 = vadd.f32 %v4064, %v4493
        %v4572 = vadd.f32 %v4069, %v4498
        %v4573 = vadd.f32 %v4074, %v4503
        %v4574 = vadd.f32 %v4079, %v4508
        %v4575 = vadd.f32 %v4084, %v4513
        %v4576 = vadd.f32 %v4089, %v4518
        %v4577 = vadd.f32 %v4094, %v4523
        %v4578 = vadd.f32 %v4099, %v4528
        %v4579 = vadd.f32 %v4104, %v4533
        %v4580 = vadd.f32 %v4109, %v4538
        %v4581 = vld [vmem:[#allocation2 + $0x40] sm:$0xff]
        %v4582 = vld [vmem:[#allocation2 + $0x48] sm:$0xff]
        %v4583 = vld [vmem:[#allocation2 + $0x50] sm:$0xff]
        %v4584 = vld [vmem:[#allocation2 + $0x58] sm:$0xff]
        %v4585 = vld [vmem:[#allocation2 + $0x60] sm:$0xff]
        %v4586 = vld [vmem:[#allocation2 + $0x68] sm:$0xff]
        %v4587 = vld [vmem:[#allocation2 + $0x70] sm:$0xff]
        %v4588 = vld [vmem:[#allocation2 + $0x78] sm:$0xff]
        %v4589 = vld [vmem:[#allocation2 + $0x80] sm:$0xff]
        %v4590 = vld [vmem:[#allocation2 + $0x88] sm:$0xff]
        %v4591 = vld [vmem:[#allocation2 + $0x90] sm:$0xff]
        %v4592 = vld [vmem:[#allocation2 + $0x98] sm:$0xff]
        %v4593 = vld [vmem:[#allocation2 + $0xa0] sm:$0xff]
        %v4594 = vld [vmem:[#allocation2 + $0xa8] sm:$0xff]
        %v4595 = vld [vmem:[#allocation2 + $0xb0] sm:$0xff]
        %v4596 = vld [vmem:[#allocation2 + $0xb8] sm:$0xff]
        %v4597 = vld [vmem:[#allocation2 + $0xc0] sm:$0xff]
        %v4598 = vld [vmem:[#allocation2 + $0xc8] sm:$0xff]
        %v4599 = vld [vmem:[#allocation2 + $0xd0] sm:$0xff]
        %v4600 = vld [vmem:[#allocation2 + $0xd8] sm:$0xff]
        %v4601 = vld [vmem:[#allocation2 + $0xe0] sm:$0xff]
        %v4602 = vld [vmem:[#allocation2 + $0xe8] sm:$0xff]
        %v4603 = vld [vmem:[#allocation2 + $0xf0] sm:$0xff]
        %v4604 = vld [vmem:[#allocation2 + $0xf8] sm:$0xff]
        %v4605 = vld [vmem:[#allocation2 + $0x100] sm:$0xff]
        %v4606 = vld [vmem:[#allocation2 + $0x108] sm:$0xff]
        %v4607 = vld [vmem:[#allocation2 + $0x110] sm:$0xff]
        %v4608 = vld [vmem:[#allocation2 + $0x118] sm:$0xff]
        %v4609 = vld [vmem:[#allocation2 + $0x120] sm:$0xff]
        %v4610 = vld [vmem:[#allocation2 + $0x128] sm:$0xff]
        %v4611 = vld [vmem:[#allocation2 + $0x130] sm:$0xff]
        %v4612 = vld [vmem:[#allocation2 + $0x138] sm:$0xff]
        %v4613 = vld [vmem:[#allocation2 + $0x140] sm:$0xff]
        %v4614 = vld [vmem:[#allocation2 + $0x148] sm:$0xff]
        %v4615 = vld [vmem:[#allocation2 + $0x150] sm:$0xff]
        %v4616 = vld [vmem:[#allocation2 + $0x158] sm:$0xff]
        %v4617 = vld [vmem:[#allocation2 + $0x160] sm:$0xff]
        %v4618 = vld [vmem:[#allocation2 + $0x168] sm:$0xff]
        %v4619 = vld [vmem:[#allocation2 + $0x170] sm:$0xff]
        %v4620 = vld [vmem:[#allocation2 + $0x178] sm:$0xff]
        %s4621 = scalar_lea.vmem %s3, 72
        %v4622 = vld [vmem:[%s4621] sm:$0xff]
        %v4623 = vld [vmem:[%s4621 + $0x8] sm:$0xff]
        %v4624 = vld [vmem:[%s4621 + $0x10] sm:$0xff]
        %v4626 = vsel %vm3352, %v4581, 0
        %v4629 = vsel %vm3352, %v4582, 0
        %v4632 = vsel %vm3352, %v4583, 0
        %v4635 = vsel %vm3352, %v4584, 0
        %v4638 = vsel %vm3352, %v4585, 0
        %v4641 = vsel %vm3352, %v4586, 0
        %v4644 = vsel %vm3352, %v4587, 0
        %v4647 = vsel %vm3352, %v4588, 0
        %v4650 = vsel %vm3352, %v4589, 0
        %v4653 = vsel %vm3352, %v4590, 0
        %v4656 = vsel %vm3352, %v4591, 0
        %v4659 = vsel %vm3352, %v4592, 0
        %v4662 = vsel %vm3352, %v4593, 0
        %v4665 = vsel %vm3352, %v4594, 0
        %v4668 = vsel %vm3352, %v4595, 0
        %v4671 = vsel %vm3352, %v4596, 0
        %v4674 = vsel %vm3352, %v4597, 0
        %v4677 = vsel %vm3352, %v4598, 0
        %v4680 = vsel %vm3352, %v4599, 0
        %v4683 = vsel %vm3352, %v4600, 0
        %v4686 = vsel %vm3352, %v4601, 0
        %v4689 = vsel %vm3352, %v4602, 0
        %v4692 = vsel %vm3352, %v4603, 0
        %v4695 = vsel %vm3352, %v4604, 0
        %v4698 = vsel %vm3352, %v4605, 0
        %v4701 = vsel %vm3352, %v4606, 0
        %v4704 = vsel %vm3352, %v4607, 0
        %v4707 = vsel %vm3352, %v4608, 0
        %v4710 = vsel %vm3352, %v4609, 0
        %v4713 = vsel %vm3352, %v4610, 0
        %v4716 = vsel %vm3352, %v4611, 0
        %v4719 = vsel %vm3352, %v4612, 0
        %v4722 = vsel %vm3352, %v4613, 0
        %v4725 = vsel %vm3352, %v4614, 0
        %v4728 = vsel %vm3352, %v4615, 0
        %v4731 = vsel %vm3352, %v4616, 0
        %v4734 = vsel %vm3352, %v4617, 0
        %v4737 = vsel %vm3352, %v4618, 0
        %v4740 = vsel %vm3352, %v4619, 0
        %v4743 = vsel %vm3352, %v4620, 0
        %4745 = vmatprep.subr.mxu0 0.0
        %4746 = vmatpush1.msra.mxu0 0.0
        %4747 = vmatprep.subr.mxu0 0.0
        %4748 = vmatpush1.msra.mxu0 0.0
        %4749 = vmatprep.subr.mxu0 0.0
        %4750 = vmatpush1.msra.mxu0 0.0
        %4751 = vmatprep.subr.mxu0 0.0
        %4752 = vmatpush1.msra.mxu0 0.0
        %4753 = vmatprep.subr.mxu0 0.0
        %4754 = vmatpush1.msra.mxu0 0.0
        %4755 = vmatprep.subr.mxu0 0.0
        %4756 = vmatpush1.msra.mxu0 0.0
        %4757 = vmatprep.subr.mxu0 0.0
        %4758 = vmatpush1.msra.mxu0 0.0
        %4759 = vmatprep.subr.mxu0 0.0
        %4760 = vmatpush1.msra.mxu0 0.0
        %4761 = vmatprep.subr.mxu0 0.0
        %4762 = vmatpush1.msra.mxu0 0.0
        %4763 = vmatprep.subr.mxu0 0.0
        %4764 = vmatpush1.msra.mxu0 0.0
        %4765 = vmatprep.subr.mxu0 0.0
        %4766 = vmatpush1.msra.mxu0 0.0
        %4767 = vmatprep.subr.mxu0 0.0
        %4768 = vmatpush1.msra.mxu0 0.0
        %4769 = vmatprep.subr.mxu0 0.0
        %4770 = vmatpush1.msra.mxu0 0.0
        %4771 = vmatprep.subr.mxu0 0.0
        %4772 = vmatpush1.msra.mxu0 %v4624
        %4773 = vmatprep.subr.mxu0 0.0
        %4774 = vmatpush1.msra.mxu0 %v4623
        %4775 = vmatprep.subr.mxu0 0.0
        %4776 = vmatpush1.msra.mxu0 %v4622
        %4777 = vmatprep.subr.mxu0 0.0
        %4778 = vmatpush2.msra.mxu0 0.0
        %4779 = vmatprep.subr.mxu0 0.0
        %4780 = vmatpush2.msra.mxu0 0.0
        %4781 = vmatprep.subr.mxu0 0.0
        %4782 = vmatpush2.msra.mxu0 0.0
        %4783 = vmatprep.subr.mxu0 0.0
        %4784 = vmatpush2.msra.mxu0 0.0
        %4785 = vmatprep.subr.mxu0 0.0
        %4786 = vmatpush2.msra.mxu0 0.0
        %4787 = vmatprep.subr.mxu0 0.0
        %4788 = vmatpush2.msra.mxu0 0.0
        %4789 = vmatprep.subr.mxu0 0.0
        %4790 = vmatpush2.msra.mxu0 0.0
        %4791 = vmatprep.subr.mxu0 0.0
        %4792 = vmatpush2.msra.mxu0 0.0
        %4793 = vmatprep.subr.mxu0 0.0
        %4794 = vmatpush2.msra.mxu0 0.0
        %4795 = vmatprep.subr.mxu0 0.0
        %4796 = vmatpush2.msra.mxu0 0.0
        %4797 = vmatprep.subr.mxu0 0.0
        %4798 = vmatpush2.msra.mxu0 0.0
        %4799 = vmatprep.subr.mxu0 0.0
        %4800 = vmatpush2.msra.mxu0 0.0
        %4801 = vmatprep.subr.mxu0 0.0
        %4802 = vmatpush2.msra.mxu0 0.0
        %4803 = vmatprep.subr.mxu0 0.0
        %4804 = vmatpush2.msra.mxu0 0.0
        %4805 = vmatprep.subr.mxu0 0.0
        %4806 = vmatpush2.msra.mxu0 0.0
        %4807 = vmatprep.subr.mxu0 0.0
        %4808 = vmatpush2.msra.mxu0 0.0
        %4809 = vmatprep.mubr.f32.mxu0 0.0
        %4810 = vmatmul.mubr.f32.gmra.mxu0 %v4626
        %v4811 = vpop.f32.mrf.mxu0
        %v4812 = vadd.f32 0.0, %v4811
        %v4813 = vpop.f32.mrf.mxu0
        %4814 = vmatprep.mubr.f32.mxu0 0.0
        %4815 = vmatmul.mubr.f32.gmra.mxu0 %v4629
        %v4816 = vpop.f32.mrf.mxu0
        %v4817 = vadd.f32 0.0, %v4816
        %v4818 = vpop.f32.mrf.mxu0
        %4819 = vmatprep.mubr.f32.mxu0 0.0
        %4820 = vmatmul.mubr.f32.gmra.mxu0 %v4632
        %v4821 = vpop.f32.mrf.mxu0
        %v4822 = vadd.f32 0.0, %v4821
        %v4823 = vpop.f32.mrf.mxu0
        %4824 = vmatprep.mubr.f32.mxu0 0.0
        %4825 = vmatmul.mubr.f32.gmra.mxu0 %v4635
        %v4826 = vpop.f32.mrf.mxu0
        %v4827 = vadd.f32 0.0, %v4826
        %v4828 = vpop.f32.mrf.mxu0
        %4829 = vmatprep.mubr.f32.mxu0 0.0
        %4830 = vmatmul.mubr.f32.gmra.mxu0 %v4638
        %v4831 = vpop.f32.mrf.mxu0
        %v4832 = vadd.f32 0.0, %v4831
        %v4833 = vpop.f32.mrf.mxu0
        %4834 = vmatprep.mubr.f32.mxu0 0.0
        %4835 = vmatmul.mubr.f32.gmra.mxu0 %v4641
        %v4836 = vpop.f32.mrf.mxu0
        %v4837 = vadd.f32 0.0, %v4836
        %v4838 = vpop.f32.mrf.mxu0
        %4839 = vmatprep.mubr.f32.mxu0 0.0
        %4840 = vmatmul.mubr.f32.gmra.mxu0 %v4644
        %v4841 = vpop.f32.mrf.mxu0
        %v4842 = vadd.f32 0.0, %v4841
        %v4843 = vpop.f32.mrf.mxu0
        %4844 = vmatprep.mubr.f32.mxu0 0.0
        %4845 = vmatmul.mubr.f32.gmra.mxu0 %v4647
        %v4846 = vpop.f32.mrf.mxu0
        %v4847 = vadd.f32 0.0, %v4846
        %v4848 = vpop.f32.mrf.mxu0
        %4849 = vmatprep.mubr.f32.mxu0 0.0
        %4850 = vmatmul.mubr.f32.gmra.mxu0 %v4650
        %v4851 = vpop.f32.mrf.mxu0
        %v4852 = vadd.f32 0.0, %v4851
        %v4853 = vpop.f32.mrf.mxu0
        %4854 = vmatprep.mubr.f32.mxu0 0.0
        %4855 = vmatmul.mubr.f32.gmra.mxu0 %v4653
        %v4856 = vpop.f32.mrf.mxu0
        %v4857 = vadd.f32 0.0, %v4856
        %v4858 = vpop.f32.mrf.mxu0
        %4859 = vmatprep.mubr.f32.mxu0 0.0
        %4860 = vmatmul.mubr.f32.gmra.mxu0 %v4656
        %v4861 = vpop.f32.mrf.mxu0
        %v4862 = vadd.f32 0.0, %v4861
        %v4863 = vpop.f32.mrf.mxu0
        %4864 = vmatprep.mubr.f32.mxu0 0.0
        %4865 = vmatmul.mubr.f32.gmra.mxu0 %v4659
        %v4866 = vpop.f32.mrf.mxu0
        %v4867 = vadd.f32 0.0, %v4866
        %v4868 = vpop.f32.mrf.mxu0
        %4869 = vmatprep.mubr.f32.mxu0 0.0
        %4870 = vmatmul.mubr.f32.gmra.mxu0 %v4662
        %v4871 = vpop.f32.mrf.mxu0
        %v4872 = vadd.f32 0.0, %v4871
        %v4873 = vpop.f32.mrf.mxu0
        %4874 = vmatprep.mubr.f32.mxu0 0.0
        %4875 = vmatmul.mubr.f32.gmra.mxu0 %v4665
        %v4876 = vpop.f32.mrf.mxu0
        %v4877 = vadd.f32 0.0, %v4876
        %v4878 = vpop.f32.mrf.mxu0
        %4879 = vmatprep.mubr.f32.mxu0 0.0
        %4880 = vmatmul.mubr.f32.gmra.mxu0 %v4668
        %v4881 = vpop.f32.mrf.mxu0
        %v4882 = vadd.f32 0.0, %v4881
        %v4883 = vpop.f32.mrf.mxu0
        %4884 = vmatprep.mubr.f32.mxu0 0.0
        %4885 = vmatmul.mubr.f32.gmra.mxu0 %v4671
        %v4886 = vpop.f32.mrf.mxu0
        %v4887 = vadd.f32 0.0, %v4886
        %v4888 = vpop.f32.mrf.mxu0
        %4889 = vmatprep.mubr.f32.mxu0 0.0
        %4890 = vmatmul.mubr.f32.gmra.mxu0 %v4674
        %v4891 = vpop.f32.mrf.mxu0
        %v4892 = vadd.f32 0.0, %v4891
        %v4893 = vpop.f32.mrf.mxu0
        %4894 = vmatprep.mubr.f32.mxu0 0.0
        %4895 = vmatmul.mubr.f32.gmra.mxu0 %v4677
        %v4896 = vpop.f32.mrf.mxu0
        %v4897 = vadd.f32 0.0, %v4896
        %v4898 = vpop.f32.mrf.mxu0
        %4899 = vmatprep.mubr.f32.mxu0 0.0
        %4900 = vmatmul.mubr.f32.gmra.mxu0 %v4680
        %v4901 = vpop.f32.mrf.mxu0
        %v4902 = vadd.f32 0.0, %v4901
        %v4903 = vpop.f32.mrf.mxu0
        %4904 = vmatprep.mubr.f32.mxu0 0.0
        %4905 = vmatmul.mubr.f32.gmra.mxu0 %v4683
        %v4906 = vpop.f32.mrf.mxu0
        %v4907 = vadd.f32 0.0, %v4906
        %v4908 = vpop.f32.mrf.mxu0
        %4909 = vmatprep.mubr.f32.mxu0 0.0
        %4910 = vmatmul.mubr.f32.gmra.mxu0 %v4686
        %v4911 = vpop.f32.mrf.mxu0
        %v4912 = vadd.f32 0.0, %v4911
        %v4913 = vpop.f32.mrf.mxu0
        %4914 = vmatprep.mubr.f32.mxu0 0.0
        %4915 = vmatmul.mubr.f32.gmra.mxu0 %v4689
        %v4916 = vpop.f32.mrf.mxu0
        %v4917 = vadd.f32 0.0, %v4916
        %v4918 = vpop.f32.mrf.mxu0
        %4919 = vmatprep.mubr.f32.mxu0 0.0
        %4920 = vmatmul.mubr.f32.gmra.mxu0 %v4692
        %v4921 = vpop.f32.mrf.mxu0
        %v4922 = vadd.f32 0.0, %v4921
        %v4923 = vpop.f32.mrf.mxu0
        %4924 = vmatprep.mubr.f32.mxu0 0.0
        %4925 = vmatmul.mubr.f32.gmra.mxu0 %v4695
        %v4926 = vpop.f32.mrf.mxu0
        %v4927 = vadd.f32 0.0, %v4926
        %v4928 = vpop.f32.mrf.mxu0
        %4929 = vmatprep.mubr.f32.mxu0 0.0
        %4930 = vmatmul.mubr.f32.gmra.mxu0 %v4698
        %v4931 = vpop.f32.mrf.mxu0
        %v4932 = vadd.f32 0.0, %v4931
        %v4933 = vpop.f32.mrf.mxu0
        %4934 = vmatprep.mubr.f32.mxu0 0.0
        %4935 = vmatmul.mubr.f32.gmra.mxu0 %v4701
        %v4936 = vpop.f32.mrf.mxu0
        %v4937 = vadd.f32 0.0, %v4936
        %v4938 = vpop.f32.mrf.mxu0
        %4939 = vmatprep.mubr.f32.mxu0 0.0
        %4940 = vmatmul.mubr.f32.gmra.mxu0 %v4704
        %v4941 = vpop.f32.mrf.mxu0
        %v4942 = vadd.f32 0.0, %v4941
        %v4943 = vpop.f32.mrf.mxu0
        %4944 = vmatprep.mubr.f32.mxu0 0.0
        %4945 = vmatmul.mubr.f32.gmra.mxu0 %v4707
        %v4946 = vpop.f32.mrf.mxu0
        %v4947 = vadd.f32 0.0, %v4946
        %v4948 = vpop.f32.mrf.mxu0
        %4949 = vmatprep.mubr.f32.mxu0 0.0
        %4950 = vmatmul.mubr.f32.gmra.mxu0 %v4710
        %v4951 = vpop.f32.mrf.mxu0
        %v4952 = vadd.f32 0.0, %v4951
        %v4953 = vpop.f32.mrf.mxu0
        %4954 = vmatprep.mubr.f32.mxu0 0.0
        %4955 = vmatmul.mubr.f32.gmra.mxu0 %v4713
        %v4956 = vpop.f32.mrf.mxu0
        %v4957 = vadd.f32 0.0, %v4956
        %v4958 = vpop.f32.mrf.mxu0
        %4959 = vmatprep.mubr.f32.mxu0 0.0
        %4960 = vmatmul.mubr.f32.gmra.mxu0 %v4716
        %v4961 = vpop.f32.mrf.mxu0
        %v4962 = vadd.f32 0.0, %v4961
        %v4963 = vpop.f32.mrf.mxu0
        %4964 = vmatprep.mubr.f32.mxu0 0.0
        %4965 = vmatmul.mubr.f32.gmra.mxu0 %v4719
        %v4966 = vpop.f32.mrf.mxu0
        %v4967 = vadd.f32 0.0, %v4966
        %v4968 = vpop.f32.mrf.mxu0
        %4969 = vmatprep.mubr.f32.mxu0 0.0
        %4970 = vmatmul.mubr.f32.gmra.mxu0 %v4722
        %v4971 = vpop.f32.mrf.mxu0
        %v4972 = vadd.f32 0.0, %v4971
        %v4973 = vpop.f32.mrf.mxu0
        %4974 = vmatprep.mubr.f32.mxu0 0.0
        %4975 = vmatmul.mubr.f32.gmra.mxu0 %v4725
        %v4976 = vpop.f32.mrf.mxu0
        %v4977 = vadd.f32 0.0, %v4976
        %v4978 = vpop.f32.mrf.mxu0
        %4979 = vmatprep.mubr.f32.mxu0 0.0
        %4980 = vmatmul.mubr.f32.gmra.mxu0 %v4728
        %v4981 = vpop.f32.mrf.mxu0
        %v4982 = vadd.f32 0.0, %v4981
        %v4983 = vpop.f32.mrf.mxu0
        %4984 = vmatprep.mubr.f32.mxu0 0.0
        %4985 = vmatmul.mubr.f32.gmra.mxu0 %v4731
        %v4986 = vpop.f32.mrf.mxu0
        %v4987 = vadd.f32 0.0, %v4986
        %v4988 = vpop.f32.mrf.mxu0
        %4989 = vmatprep.mubr.f32.mxu0 0.0
        %4990 = vmatmul.mubr.f32.gmra.mxu0 %v4734
        %v4991 = vpop.f32.mrf.mxu0
        %v4992 = vadd.f32 0.0, %v4991
        %v4993 = vpop.f32.mrf.mxu0
        %4994 = vmatprep.mubr.f32.mxu0 0.0
        %4995 = vmatmul.mubr.f32.gmra.mxu0 %v4737
        %v4996 = vpop.f32.mrf.mxu0
        %v4997 = vadd.f32 0.0, %v4996
        %v4998 = vpop.f32.mrf.mxu0
        %4999 = vmatprep.mubr.f32.mxu0 0.0
        %5000 = vmatmul.mubr.f32.gmra.mxu0 %v4740
        %v5001 = vpop.f32.mrf.mxu0
        %v5002 = vadd.f32 0.0, %v5001
        %v5003 = vpop.f32.mrf.mxu0
        %5004 = vmatprep.mubr.f32.mxu0 0.0
        %5005 = vmatmul.mubr.f32.gmra.mxu0 %v4743
        %v5006 = vpop.f32.mrf.mxu0
        %v5007 = vadd.f32 0.0, %v5006
        %v5008 = vpop.f32.mrf.mxu0
        %5009 = vdwg.mxu0
        %v5010 = vadd.f32 %v4541, %v4812
        %v5011 = vadd.f32 %v4542, %v4817
        %v5012 = vadd.f32 %v4543, %v4822
        %v5013 = vadd.f32 %v4544, %v4827
        %v5014 = vadd.f32 %v4545, %v4832
        %v5015 = vadd.f32 %v4546, %v4837
        %v5016 = vadd.f32 %v4547, %v4842
        %v5017 = vadd.f32 %v4548, %v4847
        %v5018 = vadd.f32 %v4549, %v4852
        %v5019 = vadd.f32 %v4550, %v4857
        %v5020 = vadd.f32 %v4551, %v4862
        %v5021 = vadd.f32 %v4552, %v4867
        %v5022 = vadd.f32 %v4553, %v4872
        %v5023 = vadd.f32 %v4554, %v4877
        %v5024 = vadd.f32 %v4555, %v4882
        %v5025 = vadd.f32 %v4556, %v4887
        %v5026 = vadd.f32 %v4557, %v4892
        %v5027 = vadd.f32 %v4558, %v4897
        %v5028 = vadd.f32 %v4559, %v4902
        %v5029 = vadd.f32 %v4560, %v4907
        %v5030 = vadd.f32 %v4561, %v4912
        %v5031 = vadd.f32 %v4562, %v4917
        %v5032 = vadd.f32 %v4563, %v4922
        %v5033 = vadd.f32 %v4564, %v4927
        %v5034 = vadd.f32 %v4565, %v4932
        %v5035 = vadd.f32 %v4566, %v4937
        %v5036 = vadd.f32 %v4567, %v4942
        %v5037 = vadd.f32 %v4568, %v4947
        %v5038 = vadd.f32 %v4569, %v4952
        %v5039 = vadd.f32 %v4570, %v4957
        %v5040 = vadd.f32 %v4571, %v4962
        %v5041 = vadd.f32 %v4572, %v4967
        %v5042 = vadd.f32 %v4573, %v4972
        %v5043 = vadd.f32 %v4574, %v4977
        %v5044 = vadd.f32 %v4575, %v4982
        %v5045 = vadd.f32 %v4576, %v4987
        %v5046 = vadd.f32 %v4577, %v4992
        %v5047 = vadd.f32 %v4578, %v4997
        %v5048 = vadd.f32 %v4579, %v5002
        %v5049 = vadd.f32 %v4580, %v5007
        %v5050 = vld [vmem:[#allocation2 + $0x48] sm:$0xff]
        %v5051 = vld [vmem:[#allocation2 + $0x50] sm:$0xff]
        %v5052 = vld [vmem:[#allocation2 + $0x58] sm:$0xff]
        %v5053 = vld [vmem:[#allocation2 + $0x60] sm:$0xff]
        %v5054 = vld [vmem:[#allocation2 + $0x68] sm:$0xff]
        %v5055 = vld [vmem:[#allocation2 + $0x70] sm:$0xff]
        %v5056 = vld [vmem:[#allocation2 + $0x78] sm:$0xff]
        %v5057 = vld [vmem:[#allocation2 + $0x80] sm:$0xff]
        %v5058 = vld [vmem:[#allocation2 + $0x88] sm:$0xff]
        %v5059 = vld [vmem:[#allocation2 + $0x90] sm:$0xff]
        %v5060 = vld [vmem:[#allocation2 + $0x98] sm:$0xff]
        %v5061 = vld [vmem:[#allocation2 + $0xa0] sm:$0xff]
        %v5062 = vld [vmem:[#allocation2 + $0xa8] sm:$0xff]
        %v5063 = vld [vmem:[#allocation2 + $0xb0] sm:$0xff]
        %v5064 = vld [vmem:[#allocation2 + $0xb8] sm:$0xff]
        %v5065 = vld [vmem:[#allocation2 + $0xc0] sm:$0xff]
        %v5066 = vld [vmem:[#allocation2 + $0xc8] sm:$0xff]
        %v5067 = vld [vmem:[#allocation2 + $0xd0] sm:$0xff]
        %v5068 = vld [vmem:[#allocation2 + $0xd8] sm:$0xff]
        %v5069 = vld [vmem:[#allocation2 + $0xe0] sm:$0xff]
        %v5070 = vld [vmem:[#allocation2 + $0xe8] sm:$0xff]
        %v5071 = vld [vmem:[#allocation2 + $0xf0] sm:$0xff]
        %v5072 = vld [vmem:[#allocation2 + $0xf8] sm:$0xff]
        %v5073 = vld [vmem:[#allocation2 + $0x100] sm:$0xff]
        %v5074 = vld [vmem:[#allocation2 + $0x108] sm:$0xff]
        %v5075 = vld [vmem:[#allocation2 + $0x110] sm:$0xff]
        %v5076 = vld [vmem:[#allocation2 + $0x118] sm:$0xff]
        %v5077 = vld [vmem:[#allocation2 + $0x120] sm:$0xff]
        %v5078 = vld [vmem:[#allocation2 + $0x128] sm:$0xff]
        %v5079 = vld [vmem:[#allocation2 + $0x130] sm:$0xff]
        %v5080 = vld [vmem:[#allocation2 + $0x138] sm:$0xff]
        %v5081 = vld [vmem:[#allocation2 + $0x140] sm:$0xff]
        %v5082 = vld [vmem:[#allocation2 + $0x148] sm:$0xff]
        %v5083 = vld [vmem:[#allocation2 + $0x150] sm:$0xff]
        %v5084 = vld [vmem:[#allocation2 + $0x158] sm:$0xff]
        %v5085 = vld [vmem:[#allocation2 + $0x160] sm:$0xff]
        %v5086 = vld [vmem:[#allocation2 + $0x168] sm:$0xff]
        %v5087 = vld [vmem:[#allocation2 + $0x170] sm:$0xff]
        %v5088 = vld [vmem:[#allocation2 + $0x178] sm:$0xff]
        %v5089 = vld [vmem:[#allocation2 + $0x180] sm:$0xff]
        %s5090 = scalar_lea.vmem %s3, 96
        %v5091 = vld [vmem:[%s5090] sm:$0xff]
        %v5092 = vld [vmem:[%s5090 + $0x8] sm:$0xff]
        %v5093 = vld [vmem:[%s5090 + $0x10] sm:$0xff]
        %v5095 = vsel %vm3352, %v5050, 0
        %v5098 = vsel %vm3352, %v5051, 0
        %v5101 = vsel %vm3352, %v5052, 0
        %v5104 = vsel %vm3352, %v5053, 0
        %v5107 = vsel %vm3352, %v5054, 0
        %v5110 = vsel %vm3352, %v5055, 0
        %v5113 = vsel %vm3352, %v5056, 0
        %v5116 = vsel %vm3352, %v5057, 0
        %v5119 = vsel %vm3352, %v5058, 0
        %v5122 = vsel %vm3352, %v5059, 0
        %v5125 = vsel %vm3352, %v5060, 0
        %v5128 = vsel %vm3352, %v5061, 0
        %v5131 = vsel %vm3352, %v5062, 0
        %v5134 = vsel %vm3352, %v5063, 0
        %v5137 = vsel %vm3352, %v5064, 0
        %v5140 = vsel %vm3352, %v5065, 0
        %v5143 = vsel %vm3352, %v5066, 0
        %v5146 = vsel %vm3352, %v5067, 0
        %v5149 = vsel %vm3352, %v5068, 0
        %v5152 = vsel %vm3352, %v5069, 0
        %v5155 = vsel %vm3352, %v5070, 0
        %v5158 = vsel %vm3352, %v5071, 0
        %v5161 = vsel %vm3352, %v5072, 0
        %v5164 = vsel %vm3352, %v5073, 0
        %v5167 = vsel %vm3352, %v5074, 0
        %v5170 = vsel %vm3352, %v5075, 0
        %v5173 = vsel %vm3352, %v5076, 0
        %v5176 = vsel %vm3352, %v5077, 0
        %v5179 = vsel %vm3352, %v5078, 0
        %v5182 = vsel %vm3352, %v5079, 0
        %v5185 = vsel %vm3352, %v5080, 0
        %v5188 = vsel %vm3352, %v5081, 0
        %v5191 = vsel %vm3352, %v5082, 0
        %v5194 = vsel %vm3352, %v5083, 0
        %v5197 = vsel %vm3352, %v5084, 0
        %v5200 = vsel %vm3352, %v5085, 0
        %v5203 = vsel %vm3352, %v5086, 0
        %v5206 = vsel %vm3352, %v5087, 0
        %v5209 = vsel %vm3352, %v5088, 0
        %v5212 = vsel %vm3352, %v5089, 0
        %5214 = vmatprep.subr.mxu0 0.0
        %5215 = vmatpush1.msra.mxu0 0.0
        %5216 = vmatprep.subr.mxu0 0.0
        %5217 = vmatpush1.msra.mxu0 0.0
        %5218 = vmatprep.subr.mxu0 0.0
        %5219 = vmatpush1.msra.mxu0 0.0
        %5220 = vmatprep.subr.mxu0 0.0
        %5221 = vmatpush1.msra.mxu0 0.0
        %5222 = vmatprep.subr.mxu0 0.0
        %5223 = vmatpush1.msra.mxu0 0.0
        %5224 = vmatprep.subr.mxu0 0.0
        %5225 = vmatpush1.msra.mxu0 0.0
        %5226 = vmatprep.subr.mxu0 0.0
        %5227 = vmatpush1.msra.mxu0 0.0
        %5228 = vmatprep.subr.mxu0 0.0
        %5229 = vmatpush1.msra.mxu0 0.0
        %5230 = vmatprep.subr.mxu0 0.0
        %5231 = vmatpush1.msra.mxu0 0.0
        %5232 = vmatprep.subr.mxu0 0.0
        %5233 = vmatpush1.msra.mxu0 0.0
        %5234 = vmatprep.subr.mxu0 0.0
        %5235 = vmatpush1.msra.mxu0 0.0
        %5236 = vmatprep.subr.mxu0 0.0
        %5237 = vmatpush1.msra.mxu0 0.0
        %5238 = vmatprep.subr.mxu0 0.0
        %5239 = vmatpush1.msra.mxu0 0.0
        %5240 = vmatprep.subr.mxu0 0.0
        %5241 = vmatpush1.msra.mxu0 %v5093
        %5242 = vmatprep.subr.mxu0 0.0
        %5243 = vmatpush1.msra.mxu0 %v5092
        %5244 = vmatprep.subr.mxu0 0.0
        %5245 = vmatpush1.msra.mxu0 %v5091
        %5246 = vmatprep.subr.mxu0 0.0
        %5247 = vmatpush2.msra.mxu0 0.0
        %5248 = vmatprep.subr.mxu0 0.0
        %5249 = vmatpush2.msra.mxu0 0.0
        %5250 = vmatprep.subr.mxu0 0.0
        %5251 = vmatpush2.msra.mxu0 0.0
        %5252 = vmatprep.subr.mxu0 0.0
        %5253 = vmatpush2.msra.mxu0 0.0
        %5254 = vmatprep.subr.mxu0 0.0
        %5255 = vmatpush2.msra.mxu0 0.0
        %5256 = vmatprep.subr.mxu0 0.0
        %5257 = vmatpush2.msra.mxu0 0.0
        %5258 = vmatprep.subr.mxu0 0.0
        %5259 = vmatpush2.msra.mxu0 0.0
        %5260 = vmatprep.subr.mxu0 0.0
        %5261 = vmatpush2.msra.mxu0 0.0
        %5262 = vmatprep.subr.mxu0 0.0
        %5263 = vmatpush2.msra.mxu0 0.0
        %5264 = vmatprep.subr.mxu0 0.0
        %5265 = vmatpush2.msra.mxu0 0.0
        %5266 = vmatprep.subr.mxu0 0.0
        %5267 = vmatpush2.msra.mxu0 0.0
        %5268 = vmatprep.subr.mxu0 0.0
        %5269 = vmatpush2.msra.mxu0 0.0
        %5270 = vmatprep.subr.mxu0 0.0
        %5271 = vmatpush2.msra.mxu0 0.0
        %5272 = vmatprep.subr.mxu0 0.0
        %5273 = vmatpush2.msra.mxu0 0.0
        %5274 = vmatprep.subr.mxu0 0.0
        %5275 = vmatpush2.msra.mxu0 0.0
        %5276 = vmatprep.subr.mxu0 0.0
        %5277 = vmatpush2.msra.mxu0 0.0
        %5278 = vmatprep.mubr.f32.mxu0 0.0
        %5279 = vmatmul.mubr.f32.gmra.mxu0 %v5095
        %v5280 = vpop.f32.mrf.mxu0
        %v5281 = vadd.f32 0.0, %v5280
        %v5282 = vpop.f32.mrf.mxu0
        %5283 = vmatprep.mubr.f32.mxu0 0.0
        %5284 = vmatmul.mubr.f32.gmra.mxu0 %v5098
        %v5285 = vpop.f32.mrf.mxu0
        %v5286 = vadd.f32 0.0, %v5285
        %v5287 = vpop.f32.mrf.mxu0
        %5288 = vmatprep.mubr.f32.mxu0 0.0
        %5289 = vmatmul.mubr.f32.gmra.mxu0 %v5101
        %v5290 = vpop.f32.mrf.mxu0
        %v5291 = vadd.f32 0.0, %v5290
        %v5292 = vpop.f32.mrf.mxu0
        %5293 = vmatprep.mubr.f32.mxu0 0.0
        %5294 = vmatmul.mubr.f32.gmra.mxu0 %v5104
        %v5295 = vpop.f32.mrf.mxu0
        %v5296 = vadd.f32 0.0, %v5295
        %v5297 = vpop.f32.mrf.mxu0
        %5298 = vmatprep.mubr.f32.mxu0 0.0
        %5299 = vmatmul.mubr.f32.gmra.mxu0 %v5107
        %v5300 = vpop.f32.mrf.mxu0
        %v5301 = vadd.f32 0.0, %v5300
        %v5302 = vpop.f32.mrf.mxu0
        %5303 = vmatprep.mubr.f32.mxu0 0.0
        %5304 = vmatmul.mubr.f32.gmra.mxu0 %v5110
        %v5305 = vpop.f32.mrf.mxu0
        %v5306 = vadd.f32 0.0, %v5305
        %v5307 = vpop.f32.mrf.mxu0
        %5308 = vmatprep.mubr.f32.mxu0 0.0
        %5309 = vmatmul.mubr.f32.gmra.mxu0 %v5113
        %v5310 = vpop.f32.mrf.mxu0
        %v5311 = vadd.f32 0.0, %v5310
        %v5312 = vpop.f32.mrf.mxu0
        %5313 = vmatprep.mubr.f32.mxu0 0.0
        %5314 = vmatmul.mubr.f32.gmra.mxu0 %v5116
        %v5315 = vpop.f32.mrf.mxu0
        %v5316 = vadd.f32 0.0, %v5315
        %v5317 = vpop.f32.mrf.mxu0
        %5318 = vmatprep.mubr.f32.mxu0 0.0
        %5319 = vmatmul.mubr.f32.gmra.mxu0 %v5119
        %v5320 = vpop.f32.mrf.mxu0
        %v5321 = vadd.f32 0.0, %v5320
        %v5322 = vpop.f32.mrf.mxu0
        %5323 = vmatprep.mubr.f32.mxu0 0.0
        %5324 = vmatmul.mubr.f32.gmra.mxu0 %v5122
        %v5325 = vpop.f32.mrf.mxu0
        %v5326 = vadd.f32 0.0, %v5325
        %v5327 = vpop.f32.mrf.mxu0
        %5328 = vmatprep.mubr.f32.mxu0 0.0
        %5329 = vmatmul.mubr.f32.gmra.mxu0 %v5125
        %v5330 = vpop.f32.mrf.mxu0
        %v5331 = vadd.f32 0.0, %v5330
        %v5332 = vpop.f32.mrf.mxu0
        %5333 = vmatprep.mubr.f32.mxu0 0.0
        %5334 = vmatmul.mubr.f32.gmra.mxu0 %v5128
        %v5335 = vpop.f32.mrf.mxu0
        %v5336 = vadd.f32 0.0, %v5335
        %v5337 = vpop.f32.mrf.mxu0
        %5338 = vmatprep.mubr.f32.mxu0 0.0
        %5339 = vmatmul.mubr.f32.gmra.mxu0 %v5131
        %v5340 = vpop.f32.mrf.mxu0
        %v5341 = vadd.f32 0.0, %v5340
        %v5342 = vpop.f32.mrf.mxu0
        %5343 = vmatprep.mubr.f32.mxu0 0.0
        %5344 = vmatmul.mubr.f32.gmra.mxu0 %v5134
        %v5345 = vpop.f32.mrf.mxu0
        %v5346 = vadd.f32 0.0, %v5345
        %v5347 = vpop.f32.mrf.mxu0
        %5348 = vmatprep.mubr.f32.mxu0 0.0
        %5349 = vmatmul.mubr.f32.gmra.mxu0 %v5137
        %v5350 = vpop.f32.mrf.mxu0
        %v5351 = vadd.f32 0.0, %v5350
        %v5352 = vpop.f32.mrf.mxu0
        %5353 = vmatprep.mubr.f32.mxu0 0.0
        %5354 = vmatmul.mubr.f32.gmra.mxu0 %v5140
        %v5355 = vpop.f32.mrf.mxu0
        %v5356 = vadd.f32 0.0, %v5355
        %v5357 = vpop.f32.mrf.mxu0
        %5358 = vmatprep.mubr.f32.mxu0 0.0
        %5359 = vmatmul.mubr.f32.gmra.mxu0 %v5143
        %v5360 = vpop.f32.mrf.mxu0
        %v5361 = vadd.f32 0.0, %v5360
        %v5362 = vpop.f32.mrf.mxu0
        %5363 = vmatprep.mubr.f32.mxu0 0.0
        %5364 = vmatmul.mubr.f32.gmra.mxu0 %v5146
        %v5365 = vpop.f32.mrf.mxu0
        %v5366 = vadd.f32 0.0, %v5365
        %v5367 = vpop.f32.mrf.mxu0
        %5368 = vmatprep.mubr.f32.mxu0 0.0
        %5369 = vmatmul.mubr.f32.gmra.mxu0 %v5149
        %v5370 = vpop.f32.mrf.mxu0
        %v5371 = vadd.f32 0.0, %v5370
        %v5372 = vpop.f32.mrf.mxu0
        %5373 = vmatprep.mubr.f32.mxu0 0.0
        %5374 = vmatmul.mubr.f32.gmra.mxu0 %v5152
        %v5375 = vpop.f32.mrf.mxu0
        %v5376 = vadd.f32 0.0, %v5375
        %v5377 = vpop.f32.mrf.mxu0
        %5378 = vmatprep.mubr.f32.mxu0 0.0
        %5379 = vmatmul.mubr.f32.gmra.mxu0 %v5155
        %v5380 = vpop.f32.mrf.mxu0
        %v5381 = vadd.f32 0.0, %v5380
        %v5382 = vpop.f32.mrf.mxu0
        %5383 = vmatprep.mubr.f32.mxu0 0.0
        %5384 = vmatmul.mubr.f32.gmra.mxu0 %v5158
        %v5385 = vpop.f32.mrf.mxu0
        %v5386 = vadd.f32 0.0, %v5385
        %v5387 = vpop.f32.mrf.mxu0
        %5388 = vmatprep.mubr.f32.mxu0 0.0
        %5389 = vmatmul.mubr.f32.gmra.mxu0 %v5161
        %v5390 = vpop.f32.mrf.mxu0
        %v5391 = vadd.f32 0.0, %v5390
        %v5392 = vpop.f32.mrf.mxu0
        %5393 = vmatprep.mubr.f32.mxu0 0.0
        %5394 = vmatmul.mubr.f32.gmra.mxu0 %v5164
        %v5395 = vpop.f32.mrf.mxu0
        %v5396 = vadd.f32 0.0, %v5395
        %v5397 = vpop.f32.mrf.mxu0
        %5398 = vmatprep.mubr.f32.mxu0 0.0
        %5399 = vmatmul.mubr.f32.gmra.mxu0 %v5167
        %v5400 = vpop.f32.mrf.mxu0
        %v5401 = vadd.f32 0.0, %v5400
        %v5402 = vpop.f32.mrf.mxu0
        %5403 = vmatprep.mubr.f32.mxu0 0.0
        %5404 = vmatmul.mubr.f32.gmra.mxu0 %v5170
        %v5405 = vpop.f32.mrf.mxu0
        %v5406 = vadd.f32 0.0, %v5405
        %v5407 = vpop.f32.mrf.mxu0
        %5408 = vmatprep.mubr.f32.mxu0 0.0
        %5409 = vmatmul.mubr.f32.gmra.mxu0 %v5173
        %v5410 = vpop.f32.mrf.mxu0
        %v5411 = vadd.f32 0.0, %v5410
        %v5412 = vpop.f32.mrf.mxu0
        %5413 = vmatprep.mubr.f32.mxu0 0.0
        %5414 = vmatmul.mubr.f32.gmra.mxu0 %v5176
        %v5415 = vpop.f32.mrf.mxu0
        %v5416 = vadd.f32 0.0, %v5415
        %v5417 = vpop.f32.mrf.mxu0
        %5418 = vmatprep.mubr.f32.mxu0 0.0
        %5419 = vmatmul.mubr.f32.gmra.mxu0 %v5179
        %v5420 = vpop.f32.mrf.mxu0
        %v5421 = vadd.f32 0.0, %v5420
        %v5422 = vpop.f32.mrf.mxu0
        %5423 = vmatprep.mubr.f32.mxu0 0.0
        %5424 = vmatmul.mubr.f32.gmra.mxu0 %v5182
        %v5425 = vpop.f32.mrf.mxu0
        %v5426 = vadd.f32 0.0, %v5425
        %v5427 = vpop.f32.mrf.mxu0
        %5428 = vmatprep.mubr.f32.mxu0 0.0
        %5429 = vmatmul.mubr.f32.gmra.mxu0 %v5185
        %v5430 = vpop.f32.mrf.mxu0
        %v5431 = vadd.f32 0.0, %v5430
        %v5432 = vpop.f32.mrf.mxu0
        %5433 = vmatprep.mubr.f32.mxu0 0.0
        %5434 = vmatmul.mubr.f32.gmra.mxu0 %v5188
        %v5435 = vpop.f32.mrf.mxu0
        %v5436 = vadd.f32 0.0, %v5435
        %v5437 = vpop.f32.mrf.mxu0
        %5438 = vmatprep.mubr.f32.mxu0 0.0
        %5439 = vmatmul.mubr.f32.gmra.mxu0 %v5191
        %v5440 = vpop.f32.mrf.mxu0
        %v5441 = vadd.f32 0.0, %v5440
        %v5442 = vpop.f32.mrf.mxu0
        %5443 = vmatprep.mubr.f32.mxu0 0.0
        %5444 = vmatmul.mubr.f32.gmra.mxu0 %v5194
        %v5445 = vpop.f32.mrf.mxu0
        %v5446 = vadd.f32 0.0, %v5445
        %v5447 = vpop.f32.mrf.mxu0
        %5448 = vmatprep.mubr.f32.mxu0 0.0
        %5449 = vmatmul.mubr.f32.gmra.mxu0 %v5197
        %v5450 = vpop.f32.mrf.mxu0
        %v5451 = vadd.f32 0.0, %v5450
        %v5452 = vpop.f32.mrf.mxu0
        %5453 = vmatprep.mubr.f32.mxu0 0.0
        %5454 = vmatmul.mubr.f32.gmra.mxu0 %v5200
        %v5455 = vpop.f32.mrf.mxu0
        %v5456 = vadd.f32 0.0, %v5455
        %v5457 = vpop.f32.mrf.mxu0
        %5458 = vmatprep.mubr.f32.mxu0 0.0
        %5459 = vmatmul.mubr.f32.gmra.mxu0 %v5203
        %v5460 = vpop.f32.mrf.mxu0
        %v5461 = vadd.f32 0.0, %v5460
        %v5462 = vpop.f32.mrf.mxu0
        %5463 = vmatprep.mubr.f32.mxu0 0.0
        %5464 = vmatmul.mubr.f32.gmra.mxu0 %v5206
        %v5465 = vpop.f32.mrf.mxu0
        %v5466 = vadd.f32 0.0, %v5465
        %v5467 = vpop.f32.mrf.mxu0
        %5468 = vmatprep.mubr.f32.mxu0 0.0
        %5469 = vmatmul.mubr.f32.gmra.mxu0 %v5209
        %v5470 = vpop.f32.mrf.mxu0
        %v5471 = vadd.f32 0.0, %v5470
        %v5472 = vpop.f32.mrf.mxu0
        %5473 = vmatprep.mubr.f32.mxu0 0.0
        %5474 = vmatmul.mubr.f32.gmra.mxu0 %v5212
        %v5475 = vpop.f32.mrf.mxu0
        %v5476 = vadd.f32 0.0, %v5475
        %v5477 = vpop.f32.mrf.mxu0
        %5478 = vdwg.mxu0
        %v5479 = vadd.f32 %v5010, %v5281
        %v5480 = vadd.f32 %v5011, %v5286
        %v5481 = vadd.f32 %v5012, %v5291
        %v5482 = vadd.f32 %v5013, %v5296
        %v5483 = vadd.f32 %v5014, %v5301
        %v5484 = vadd.f32 %v5015, %v5306
        %v5485 = vadd.f32 %v5016, %v5311
        %v5486 = vadd.f32 %v5017, %v5316
        %v5487 = vadd.f32 %v5018, %v5321
        %v5488 = vadd.f32 %v5019, %v5326
        %v5489 = vadd.f32 %v5020, %v5331
        %v5490 = vadd.f32 %v5021, %v5336
        %v5491 = vadd.f32 %v5022, %v5341
        %v5492 = vadd.f32 %v5023, %v5346
        %v5493 = vadd.f32 %v5024, %v5351
        %v5494 = vadd.f32 %v5025, %v5356
        %v5495 = vadd.f32 %v5026, %v5361
        %v5496 = vadd.f32 %v5027, %v5366
        %v5497 = vadd.f32 %v5028, %v5371
        %v5498 = vadd.f32 %v5029, %v5376
        %v5499 = vadd.f32 %v5030, %v5381
        %v5500 = vadd.f32 %v5031, %v5386
        %v5501 = vadd.f32 %v5032, %v5391
        %v5502 = vadd.f32 %v5033, %v5396
        %v5503 = vadd.f32 %v5034, %v5401
        %v5504 = vadd.f32 %v5035, %v5406
        %v5505 = vadd.f32 %v5036, %v5411
        %v5506 = vadd.f32 %v5037, %v5416
        %v5507 = vadd.f32 %v5038, %v5421
        %v5508 = vadd.f32 %v5039, %v5426
        %v5509 = vadd.f32 %v5040, %v5431
        %v5510 = vadd.f32 %v5041, %v5436
        %v5511 = vadd.f32 %v5042, %v5441
        %v5512 = vadd.f32 %v5043, %v5446
        %v5513 = vadd.f32 %v5044, %v5451
        %v5514 = vadd.f32 %v5045, %v5456
        %v5515 = vadd.f32 %v5046, %v5461
        %v5516 = vadd.f32 %v5047, %v5466
        %v5517 = vadd.f32 %v5048, %v5471
        %v5518 = vadd.f32 %v5049, %v5476
        %v5519 = vld [vmem:[#allocation2 + $0x50] sm:$0xff]
        %v5520 = vld [vmem:[#allocation2 + $0x58] sm:$0xff]
        %v5521 = vld [vmem:[#allocation2 + $0x60] sm:$0xff]
        %v5522 = vld [vmem:[#allocation2 + $0x68] sm:$0xff]
        %v5523 = vld [vmem:[#allocation2 + $0x70] sm:$0xff]
        %v5524 = vld [vmem:[#allocation2 + $0x78] sm:$0xff]
        %v5525 = vld [vmem:[#allocation2 + $0x80] sm:$0xff]
        %v5526 = vld [vmem:[#allocation2 + $0x88] sm:$0xff]
        %v5527 = vld [vmem:[#allocation2 + $0x90] sm:$0xff]
        %v5528 = vld [vmem:[#allocation2 + $0x98] sm:$0xff]
        %v5529 = vld [vmem:[#allocation2 + $0xa0] sm:$0xff]
        %v5530 = vld [vmem:[#allocation2 + $0xa8] sm:$0xff]
        %v5531 = vld [vmem:[#allocation2 + $0xb0] sm:$0xff]
        %v5532 = vld [vmem:[#allocation2 + $0xb8] sm:$0xff]
        %v5533 = vld [vmem:[#allocation2 + $0xc0] sm:$0xff]
        %v5534 = vld [vmem:[#allocation2 + $0xc8] sm:$0xff]
        %v5535 = vld [vmem:[#allocation2 + $0xd0] sm:$0xff]
        %v5536 = vld [vmem:[#allocation2 + $0xd8] sm:$0xff]
        %v5537 = vld [vmem:[#allocation2 + $0xe0] sm:$0xff]
        %v5538 = vld [vmem:[#allocation2 + $0xe8] sm:$0xff]
        %v5539 = vld [vmem:[#allocation2 + $0xf0] sm:$0xff]
        %v5540 = vld [vmem:[#allocation2 + $0xf8] sm:$0xff]
        %v5541 = vld [vmem:[#allocation2 + $0x100] sm:$0xff]
        %v5542 = vld [vmem:[#allocation2 + $0x108] sm:$0xff]
        %v5543 = vld [vmem:[#allocation2 + $0x110] sm:$0xff]
        %v5544 = vld [vmem:[#allocation2 + $0x118] sm:$0xff]
        %v5545 = vld [vmem:[#allocation2 + $0x120] sm:$0xff]
        %v5546 = vld [vmem:[#allocation2 + $0x128] sm:$0xff]
        %v5547 = vld [vmem:[#allocation2 + $0x130] sm:$0xff]
        %v5548 = vld [vmem:[#allocation2 + $0x138] sm:$0xff]
        %v5549 = vld [vmem:[#allocation2 + $0x140] sm:$0xff]
        %v5550 = vld [vmem:[#allocation2 + $0x148] sm:$0xff]
        %v5551 = vld [vmem:[#allocation2 + $0x150] sm:$0xff]
        %v5552 = vld [vmem:[#allocation2 + $0x158] sm:$0xff]
        %v5553 = vld [vmem:[#allocation2 + $0x160] sm:$0xff]
        %v5554 = vld [vmem:[#allocation2 + $0x168] sm:$0xff]
        %v5555 = vld [vmem:[#allocation2 + $0x170] sm:$0xff]
        %v5556 = vld [vmem:[#allocation2 + $0x178] sm:$0xff]
        %v5557 = vld [vmem:[#allocation2 + $0x180] sm:$0xff]
        %v5558 = vld [vmem:[#allocation2 + $0x188] sm:$0xff]
        %s5559 = scalar_lea.vmem %s3, 120
        %v5560 = vld [vmem:[%s5559] sm:$0xff]
        %v5561 = vld [vmem:[%s5559 + $0x8] sm:$0xff]
        %v5562 = vld [vmem:[%s5559 + $0x10] sm:$0xff]
        %v5564 = vsel %vm3352, %v5519, 0
        %v5567 = vsel %vm3352, %v5520, 0
        %v5570 = vsel %vm3352, %v5521, 0
        %v5573 = vsel %vm3352, %v5522, 0
        %v5576 = vsel %vm3352, %v5523, 0
        %v5579 = vsel %vm3352, %v5524, 0
        %v5582 = vsel %vm3352, %v5525, 0
        %v5585 = vsel %vm3352, %v5526, 0
        %v5588 = vsel %vm3352, %v5527, 0
        %v5591 = vsel %vm3352, %v5528, 0
        %v5594 = vsel %vm3352, %v5529, 0
        %v5597 = vsel %vm3352, %v5530, 0
        %v5600 = vsel %vm3352, %v5531, 0
        %v5603 = vsel %vm3352, %v5532, 0
        %v5606 = vsel %vm3352, %v5533, 0
        %v5609 = vsel %vm3352, %v5534, 0
        %v5612 = vsel %vm3352, %v5535, 0
        %v5615 = vsel %vm3352, %v5536, 0
        %v5618 = vsel %vm3352, %v5537, 0
        %v5621 = vsel %vm3352, %v5538, 0
        %v5624 = vsel %vm3352, %v5539, 0
        %v5627 = vsel %vm3352, %v5540, 0
        %v5630 = vsel %vm3352, %v5541, 0
        %v5633 = vsel %vm3352, %v5542, 0
        %v5636 = vsel %vm3352, %v5543, 0
        %v5639 = vsel %vm3352, %v5544, 0
        %v5642 = vsel %vm3352, %v5545, 0
        %v5645 = vsel %vm3352, %v5546, 0
        %v5648 = vsel %vm3352, %v5547, 0
        %v5651 = vsel %vm3352, %v5548, 0
        %v5654 = vsel %vm3352, %v5549, 0
        %v5657 = vsel %vm3352, %v5550, 0
        %v5660 = vsel %vm3352, %v5551, 0
        %v5663 = vsel %vm3352, %v5552, 0
        %v5666 = vsel %vm3352, %v5553, 0
        %v5669 = vsel %vm3352, %v5554, 0
        %v5672 = vsel %vm3352, %v5555, 0
        %v5675 = vsel %vm3352, %v5556, 0
        %v5678 = vsel %vm3352, %v5557, 0
        %v5681 = vsel %vm3352, %v5558, 0
        %5683 = vmatprep.subr.mxu0 0.0
        %5684 = vmatpush1.msra.mxu0 0.0
        %5685 = vmatprep.subr.mxu0 0.0
        %5686 = vmatpush1.msra.mxu0 0.0
        %5687 = vmatprep.subr.mxu0 0.0
        %5688 = vmatpush1.msra.mxu0 0.0
        %5689 = vmatprep.subr.mxu0 0.0
        %5690 = vmatpush1.msra.mxu0 0.0
        %5691 = vmatprep.subr.mxu0 0.0
        %5692 = vmatpush1.msra.mxu0 0.0
        %5693 = vmatprep.subr.mxu0 0.0
        %5694 = vmatpush1.msra.mxu0 0.0
        %5695 = vmatprep.subr.mxu0 0.0
        %5696 = vmatpush1.msra.mxu0 0.0
        %5697 = vmatprep.subr.mxu0 0.0
        %5698 = vmatpush1.msra.mxu0 0.0
        %5699 = vmatprep.subr.mxu0 0.0
        %5700 = vmatpush1.msra.mxu0 0.0
        %5701 = vmatprep.subr.mxu0 0.0
        %5702 = vmatpush1.msra.mxu0 0.0
        %5703 = vmatprep.subr.mxu0 0.0
        %5704 = vmatpush1.msra.mxu0 0.0
        %5705 = vmatprep.subr.mxu0 0.0
        %5706 = vmatpush1.msra.mxu0 0.0
        %5707 = vmatprep.subr.mxu0 0.0
        %5708 = vmatpush1.msra.mxu0 0.0
        %5709 = vmatprep.subr.mxu0 0.0
        %5710 = vmatpush1.msra.mxu0 %v5562
        %5711 = vmatprep.subr.mxu0 0.0
        %5712 = vmatpush1.msra.mxu0 %v5561
        %5713 = vmatprep.subr.mxu0 0.0
        %5714 = vmatpush1.msra.mxu0 %v5560
        %5715 = vmatprep.subr.mxu0 0.0
        %5716 = vmatpush2.msra.mxu0 0.0
        %5717 = vmatprep.subr.mxu0 0.0
        %5718 = vmatpush2.msra.mxu0 0.0
        %5719 = vmatprep.subr.mxu0 0.0
        %5720 = vmatpush2.msra.mxu0 0.0
        %5721 = vmatprep.subr.mxu0 0.0
        %5722 = vmatpush2.msra.mxu0 0.0
        %5723 = vmatprep.subr.mxu0 0.0
        %5724 = vmatpush2.msra.mxu0 0.0
        %5725 = vmatprep.subr.mxu0 0.0
        %5726 = vmatpush2.msra.mxu0 0.0
        %5727 = vmatprep.subr.mxu0 0.0
        %5728 = vmatpush2.msra.mxu0 0.0
        %5729 = vmatprep.subr.mxu0 0.0
        %5730 = vmatpush2.msra.mxu0 0.0
        %5731 = vmatprep.subr.mxu0 0.0
        %5732 = vmatpush2.msra.mxu0 0.0
        %5733 = vmatprep.subr.mxu0 0.0
        %5734 = vmatpush2.msra.mxu0 0.0
        %5735 = vmatprep.subr.mxu0 0.0
        %5736 = vmatpush2.msra.mxu0 0.0
        %5737 = vmatprep.subr.mxu0 0.0
        %5738 = vmatpush2.msra.mxu0 0.0
        %5739 = vmatprep.subr.mxu0 0.0
        %5740 = vmatpush2.msra.mxu0 0.0
        %5741 = vmatprep.subr.mxu0 0.0
        %5742 = vmatpush2.msra.mxu0 0.0
        %5743 = vmatprep.subr.mxu0 0.0
        %5744 = vmatpush2.msra.mxu0 0.0
        %5745 = vmatprep.subr.mxu0 0.0
        %5746 = vmatpush2.msra.mxu0 0.0
        %5747 = vmatprep.mubr.f32.mxu0 0.0
        %5748 = vmatmul.mubr.f32.gmra.mxu0 %v5564
        %v5749 = vpop.f32.mrf.mxu0
        %v5750 = vadd.f32 0.0, %v5749
        %v5751 = vpop.f32.mrf.mxu0
        %5752 = vmatprep.mubr.f32.mxu0 0.0
        %5753 = vmatmul.mubr.f32.gmra.mxu0 %v5567
        %v5754 = vpop.f32.mrf.mxu0
        %v5755 = vadd.f32 0.0, %v5754
        %v5756 = vpop.f32.mrf.mxu0
        %5757 = vmatprep.mubr.f32.mxu0 0.0
        %5758 = vmatmul.mubr.f32.gmra.mxu0 %v5570
        %v5759 = vpop.f32.mrf.mxu0
        %v5760 = vadd.f32 0.0, %v5759
        %v5761 = vpop.f32.mrf.mxu0
        %5762 = vmatprep.mubr.f32.mxu0 0.0
        %5763 = vmatmul.mubr.f32.gmra.mxu0 %v5573
        %v5764 = vpop.f32.mrf.mxu0
        %v5765 = vadd.f32 0.0, %v5764
        %v5766 = vpop.f32.mrf.mxu0
        %5767 = vmatprep.mubr.f32.mxu0 0.0
        %5768 = vmatmul.mubr.f32.gmra.mxu0 %v5576
        %v5769 = vpop.f32.mrf.mxu0
        %v5770 = vadd.f32 0.0, %v5769
        %v5771 = vpop.f32.mrf.mxu0
        %5772 = vmatprep.mubr.f32.mxu0 0.0
        %5773 = vmatmul.mubr.f32.gmra.mxu0 %v5579
        %v5774 = vpop.f32.mrf.mxu0
        %v5775 = vadd.f32 0.0, %v5774
        %v5776 = vpop.f32.mrf.mxu0
        %5777 = vmatprep.mubr.f32.mxu0 0.0
        %5778 = vmatmul.mubr.f32.gmra.mxu0 %v5582
        %v5779 = vpop.f32.mrf.mxu0
        %v5780 = vadd.f32 0.0, %v5779
        %v5781 = vpop.f32.mrf.mxu0
        %5782 = vmatprep.mubr.f32.mxu0 0.0
        %5783 = vmatmul.mubr.f32.gmra.mxu0 %v5585
        %v5784 = vpop.f32.mrf.mxu0
        %v5785 = vadd.f32 0.0, %v5784
        %v5786 = vpop.f32.mrf.mxu0
        %5787 = vmatprep.mubr.f32.mxu0 0.0
        %5788 = vmatmul.mubr.f32.gmra.mxu0 %v5588
        %v5789 = vpop.f32.mrf.mxu0
        %v5790 = vadd.f32 0.0, %v5789
        %v5791 = vpop.f32.mrf.mxu0
        %5792 = vmatprep.mubr.f32.mxu0 0.0
        %5793 = vmatmul.mubr.f32.gmra.mxu0 %v5591
        %v5794 = vpop.f32.mrf.mxu0
        %v5795 = vadd.f32 0.0, %v5794
        %v5796 = vpop.f32.mrf.mxu0
        %5797 = vmatprep.mubr.f32.mxu0 0.0
        %5798 = vmatmul.mubr.f32.gmra.mxu0 %v5594
        %v5799 = vpop.f32.mrf.mxu0
        %v5800 = vadd.f32 0.0, %v5799
        %v5801 = vpop.f32.mrf.mxu0
        %5802 = vmatprep.mubr.f32.mxu0 0.0
        %5803 = vmatmul.mubr.f32.gmra.mxu0 %v5597
        %v5804 = vpop.f32.mrf.mxu0
        %v5805 = vadd.f32 0.0, %v5804
        %v5806 = vpop.f32.mrf.mxu0
        %5807 = vmatprep.mubr.f32.mxu0 0.0
        %5808 = vmatmul.mubr.f32.gmra.mxu0 %v5600
        %v5809 = vpop.f32.mrf.mxu0
        %v5810 = vadd.f32 0.0, %v5809
        %v5811 = vpop.f32.mrf.mxu0
        %5812 = vmatprep.mubr.f32.mxu0 0.0
        %5813 = vmatmul.mubr.f32.gmra.mxu0 %v5603
        %v5814 = vpop.f32.mrf.mxu0
        %v5815 = vadd.f32 0.0, %v5814
        %v5816 = vpop.f32.mrf.mxu0
        %5817 = vmatprep.mubr.f32.mxu0 0.0
        %5818 = vmatmul.mubr.f32.gmra.mxu0 %v5606
        %v5819 = vpop.f32.mrf.mxu0
        %v5820 = vadd.f32 0.0, %v5819
        %v5821 = vpop.f32.mrf.mxu0
        %5822 = vmatprep.mubr.f32.mxu0 0.0
        %5823 = vmatmul.mubr.f32.gmra.mxu0 %v5609
        %v5824 = vpop.f32.mrf.mxu0
        %v5825 = vadd.f32 0.0, %v5824
        %v5826 = vpop.f32.mrf.mxu0
        %5827 = vmatprep.mubr.f32.mxu0 0.0
        %5828 = vmatmul.mubr.f32.gmra.mxu0 %v5612
        %v5829 = vpop.f32.mrf.mxu0
        %v5830 = vadd.f32 0.0, %v5829
        %v5831 = vpop.f32.mrf.mxu0
        %5832 = vmatprep.mubr.f32.mxu0 0.0
        %5833 = vmatmul.mubr.f32.gmra.mxu0 %v5615
        %v5834 = vpop.f32.mrf.mxu0
        %v5835 = vadd.f32 0.0, %v5834
        %v5836 = vpop.f32.mrf.mxu0
        %5837 = vmatprep.mubr.f32.mxu0 0.0
        %5838 = vmatmul.mubr.f32.gmra.mxu0 %v5618
        %v5839 = vpop.f32.mrf.mxu0
        %v5840 = vadd.f32 0.0, %v5839
        %v5841 = vpop.f32.mrf.mxu0
        %5842 = vmatprep.mubr.f32.mxu0 0.0
        %5843 = vmatmul.mubr.f32.gmra.mxu0 %v5621
        %v5844 = vpop.f32.mrf.mxu0
        %v5845 = vadd.f32 0.0, %v5844
        %v5846 = vpop.f32.mrf.mxu0
        %5847 = vmatprep.mubr.f32.mxu0 0.0
        %5848 = vmatmul.mubr.f32.gmra.mxu0 %v5624
        %v5849 = vpop.f32.mrf.mxu0
        %v5850 = vadd.f32 0.0, %v5849
        %v5851 = vpop.f32.mrf.mxu0
        %5852 = vmatprep.mubr.f32.mxu0 0.0
        %5853 = vmatmul.mubr.f32.gmra.mxu0 %v5627
        %v5854 = vpop.f32.mrf.mxu0
        %v5855 = vadd.f32 0.0, %v5854
        %v5856 = vpop.f32.mrf.mxu0
        %5857 = vmatprep.mubr.f32.mxu0 0.0
        %5858 = vmatmul.mubr.f32.gmra.mxu0 %v5630
        %v5859 = vpop.f32.mrf.mxu0
        %v5860 = vadd.f32 0.0, %v5859
        %v5861 = vpop.f32.mrf.mxu0
        %5862 = vmatprep.mubr.f32.mxu0 0.0
        %5863 = vmatmul.mubr.f32.gmra.mxu0 %v5633
        %v5864 = vpop.f32.mrf.mxu0
        %v5865 = vadd.f32 0.0, %v5864
        %v5866 = vpop.f32.mrf.mxu0
        %5867 = vmatprep.mubr.f32.mxu0 0.0
        %5868 = vmatmul.mubr.f32.gmra.mxu0 %v5636
        %v5869 = vpop.f32.mrf.mxu0
        %v5870 = vadd.f32 0.0, %v5869
        %v5871 = vpop.f32.mrf.mxu0
        %5872 = vmatprep.mubr.f32.mxu0 0.0
        %5873 = vmatmul.mubr.f32.gmra.mxu0 %v5639
        %v5874 = vpop.f32.mrf.mxu0
        %v5875 = vadd.f32 0.0, %v5874
        %v5876 = vpop.f32.mrf.mxu0
        %5877 = vmatprep.mubr.f32.mxu0 0.0
        %5878 = vmatmul.mubr.f32.gmra.mxu0 %v5642
        %v5879 = vpop.f32.mrf.mxu0
        %v5880 = vadd.f32 0.0, %v5879
        %v5881 = vpop.f32.mrf.mxu0
        %5882 = vmatprep.mubr.f32.mxu0 0.0
        %5883 = vmatmul.mubr.f32.gmra.mxu0 %v5645
        %v5884 = vpop.f32.mrf.mxu0
        %v5885 = vadd.f32 0.0, %v5884
        %v5886 = vpop.f32.mrf.mxu0
        %5887 = vmatprep.mubr.f32.mxu0 0.0
        %5888 = vmatmul.mubr.f32.gmra.mxu0 %v5648
        %v5889 = vpop.f32.mrf.mxu0
        %v5890 = vadd.f32 0.0, %v5889
        %v5891 = vpop.f32.mrf.mxu0
        %5892 = vmatprep.mubr.f32.mxu0 0.0
        %5893 = vmatmul.mubr.f32.gmra.mxu0 %v5651
        %v5894 = vpop.f32.mrf.mxu0
        %v5895 = vadd.f32 0.0, %v5894
        %v5896 = vpop.f32.mrf.mxu0
        %5897 = vmatprep.mubr.f32.mxu0 0.0
        %5898 = vmatmul.mubr.f32.gmra.mxu0 %v5654
        %v5899 = vpop.f32.mrf.mxu0
        %v5900 = vadd.f32 0.0, %v5899
        %v5901 = vpop.f32.mrf.mxu0
        %5902 = vmatprep.mubr.f32.mxu0 0.0
        %5903 = vmatmul.mubr.f32.gmra.mxu0 %v5657
        %v5904 = vpop.f32.mrf.mxu0
        %v5905 = vadd.f32 0.0, %v5904
        %v5906 = vpop.f32.mrf.mxu0
        %5907 = vmatprep.mubr.f32.mxu0 0.0
        %5908 = vmatmul.mubr.f32.gmra.mxu0 %v5660
        %v5909 = vpop.f32.mrf.mxu0
        %v5910 = vadd.f32 0.0, %v5909
        %v5911 = vpop.f32.mrf.mxu0
        %5912 = vmatprep.mubr.f32.mxu0 0.0
        %5913 = vmatmul.mubr.f32.gmra.mxu0 %v5663
        %v5914 = vpop.f32.mrf.mxu0
        %v5915 = vadd.f32 0.0, %v5914
        %v5916 = vpop.f32.mrf.mxu0
        %5917 = vmatprep.mubr.f32.mxu0 0.0
        %5918 = vmatmul.mubr.f32.gmra.mxu0 %v5666
        %v5919 = vpop.f32.mrf.mxu0
        %v5920 = vadd.f32 0.0, %v5919
        %v5921 = vpop.f32.mrf.mxu0
        %5922 = vmatprep.mubr.f32.mxu0 0.0
        %5923 = vmatmul.mubr.f32.gmra.mxu0 %v5669
        %v5924 = vpop.f32.mrf.mxu0
        %v5925 = vadd.f32 0.0, %v5924
        %v5926 = vpop.f32.mrf.mxu0
        %5927 = vmatprep.mubr.f32.mxu0 0.0
        %5928 = vmatmul.mubr.f32.gmra.mxu0 %v5672
        %v5929 = vpop.f32.mrf.mxu0
        %v5930 = vadd.f32 0.0, %v5929
        %v5931 = vpop.f32.mrf.mxu0
        %5932 = vmatprep.mubr.f32.mxu0 0.0
        %5933 = vmatmul.mubr.f32.gmra.mxu0 %v5675
        %v5934 = vpop.f32.mrf.mxu0
        %v5935 = vadd.f32 0.0, %v5934
        %v5936 = vpop.f32.mrf.mxu0
        %5937 = vmatprep.mubr.f32.mxu0 0.0
        %5938 = vmatmul.mubr.f32.gmra.mxu0 %v5678
        %v5939 = vpop.f32.mrf.mxu0
        %v5940 = vadd.f32 0.0, %v5939
        %v5941 = vpop.f32.mrf.mxu0
        %5942 = vmatprep.mubr.f32.mxu0 0.0
        %5943 = vmatmul.mubr.f32.gmra.mxu0 %v5681
        %v5944 = vpop.f32.mrf.mxu0
        %v5945 = vadd.f32 0.0, %v5944
        %v5946 = vpop.f32.mrf.mxu0
        %5947 = vdwg.mxu0
        %v5948 = vadd.f32 %v5479, %v5750
        %v5949 = vadd.f32 %v5480, %v5755
        %v5950 = vadd.f32 %v5481, %v5760
        %v5951 = vadd.f32 %v5482, %v5765
        %v5952 = vadd.f32 %v5483, %v5770
        %v5953 = vadd.f32 %v5484, %v5775
        %v5954 = vadd.f32 %v5485, %v5780
        %v5955 = vadd.f32 %v5486, %v5785
        %v5956 = vadd.f32 %v5487, %v5790
        %v5957 = vadd.f32 %v5488, %v5795
        %v5958 = vadd.f32 %v5489, %v5800
        %v5959 = vadd.f32 %v5490, %v5805
        %v5960 = vadd.f32 %v5491, %v5810
        %v5961 = vadd.f32 %v5492, %v5815
        %v5962 = vadd.f32 %v5493, %v5820
        %v5963 = vadd.f32 %v5494, %v5825
        %v5964 = vadd.f32 %v5495, %v5830
        %v5965 = vadd.f32 %v5496, %v5835
        %v5966 = vadd.f32 %v5497, %v5840
        %v5967 = vadd.f32 %v5498, %v5845
        %v5968 = vadd.f32 %v5499, %v5850
        %v5969 = vadd.f32 %v5500, %v5855
        %v5970 = vadd.f32 %v5501, %v5860
        %v5971 = vadd.f32 %v5502, %v5865
        %v5972 = vadd.f32 %v5503, %v5870
        %v5973 = vadd.f32 %v5504, %v5875
        %v5974 = vadd.f32 %v5505, %v5880
        %v5975 = vadd.f32 %v5506, %v5885
        %v5976 = vadd.f32 %v5507, %v5890
        %v5977 = vadd.f32 %v5508, %v5895
        %v5978 = vadd.f32 %v5509, %v5900
        %v5979 = vadd.f32 %v5510, %v5905
        %v5980 = vadd.f32 %v5511, %v5910
        %v5981 = vadd.f32 %v5512, %v5915
        %v5982 = vadd.f32 %v5513, %v5920
        %v5983 = vadd.f32 %v5514, %v5925
        %v5984 = vadd.f32 %v5515, %v5930
        %v5985 = vadd.f32 %v5516, %v5935
        %v5986 = vadd.f32 %v5517, %v5940
        %v5987 = vadd.f32 %v5518, %v5945
        %v5988 = vld [vmem:[#allocation2 + $0x80] sm:$0xff]
        %v5989 = vld [vmem:[#allocation2 + $0x88] sm:$0xff]
        %v5990 = vld [vmem:[#allocation2 + $0x90] sm:$0xff]
        %v5991 = vld [vmem:[#allocation2 + $0x98] sm:$0xff]
        %v5992 = vld [vmem:[#allocation2 + $0xa0] sm:$0xff]
        %v5993 = vld [vmem:[#allocation2 + $0xa8] sm:$0xff]
        %v5994 = vld [vmem:[#allocation2 + $0xb0] sm:$0xff]
        %v5995 = vld [vmem:[#allocation2 + $0xb8] sm:$0xff]
        %v5996 = vld [vmem:[#allocation2 + $0xc0] sm:$0xff]
        %v5997 = vld [vmem:[#allocation2 + $0xc8] sm:$0xff]
        %v5998 = vld [vmem:[#allocation2 + $0xd0] sm:$0xff]
        %v5999 = vld [vmem:[#allocation2 + $0xd8] sm:$0xff]
        %v6000 = vld [vmem:[#allocation2 + $0xe0] sm:$0xff]
        %v6001 = vld [vmem:[#allocation2 + $0xe8] sm:$0xff]
        %v6002 = vld [vmem:[#allocation2 + $0xf0] sm:$0xff]
        %v6003 = vld [vmem:[#allocation2 + $0xf8] sm:$0xff]
        %v6004 = vld [vmem:[#allocation2 + $0x100] sm:$0xff]
        %v6005 = vld [vmem:[#allocation2 + $0x108] sm:$0xff]
        %v6006 = vld [vmem:[#allocation2 + $0x110] sm:$0xff]
        %v6007 = vld [vmem:[#allocation2 + $0x118] sm:$0xff]
        %v6008 = vld [vmem:[#allocation2 + $0x120] sm:$0xff]
        %v6009 = vld [vmem:[#allocation2 + $0x128] sm:$0xff]
        %v6010 = vld [vmem:[#allocation2 + $0x130] sm:$0xff]
        %v6011 = vld [vmem:[#allocation2 + $0x138] sm:$0xff]
        %v6012 = vld [vmem:[#allocation2 + $0x140] sm:$0xff]
        %v6013 = vld [vmem:[#allocation2 + $0x148] sm:$0xff]
        %v6014 = vld [vmem:[#allocation2 + $0x150] sm:$0xff]
        %v6015 = vld [vmem:[#allocation2 + $0x158] sm:$0xff]
        %v6016 = vld [vmem:[#allocation2 + $0x160] sm:$0xff]
        %v6017 = vld [vmem:[#allocation2 + $0x168] sm:$0xff]
        %v6018 = vld [vmem:[#allocation2 + $0x170] sm:$0xff]
        %v6019 = vld [vmem:[#allocation2 + $0x178] sm:$0xff]
        %v6020 = vld [vmem:[#allocation2 + $0x180] sm:$0xff]
        %v6021 = vld [vmem:[#allocation2 + $0x188] sm:$0xff]
        %v6022 = vld [vmem:[#allocation2 + $0x190] sm:$0xff]
        %v6023 = vld [vmem:[#allocation2 + $0x198] sm:$0xff]
        %v6024 = vld [vmem:[#allocation2 + $0x1a0] sm:$0xff]
        %v6025 = vld [vmem:[#allocation2 + $0x1a8] sm:$0xff]
        %v6026 = vld [vmem:[#allocation2 + $0x1b0] sm:$0xff]
        %v6027 = vld [vmem:[#allocation2 + $0x1b8] sm:$0xff]
        %s6028 = scalar_lea.vmem %s3, 144
        %v6029 = vld [vmem:[%s6028] sm:$0xff]
        %v6030 = vld [vmem:[%s6028 + $0x8] sm:$0xff]
        %v6031 = vld [vmem:[%s6028 + $0x10] sm:$0xff]
        %v6033 = vsel %vm3352, %v5988, 0
        %v6036 = vsel %vm3352, %v5989, 0
        %v6039 = vsel %vm3352, %v5990, 0
        %v6042 = vsel %vm3352, %v5991, 0
        %v6045 = vsel %vm3352, %v5992, 0
        %v6048 = vsel %vm3352, %v5993, 0
        %v6051 = vsel %vm3352, %v5994, 0
        %v6054 = vsel %vm3352, %v5995, 0
        %v6057 = vsel %vm3352, %v5996, 0
        %v6060 = vsel %vm3352, %v5997, 0
        %v6063 = vsel %vm3352, %v5998, 0
        %v6066 = vsel %vm3352, %v5999, 0
        %v6069 = vsel %vm3352, %v6000, 0
        %v6072 = vsel %vm3352, %v6001, 0
        %v6075 = vsel %vm3352, %v6002, 0
        %v6078 = vsel %vm3352, %v6003, 0
        %v6081 = vsel %vm3352, %v6004, 0
        %v6084 = vsel %vm3352, %v6005, 0
        %v6087 = vsel %vm3352, %v6006, 0
        %v6090 = vsel %vm3352, %v6007, 0
        %v6093 = vsel %vm3352, %v6008, 0
        %v6096 = vsel %vm3352, %v6009, 0
        %v6099 = vsel %vm3352, %v6010, 0
        %v6102 = vsel %vm3352, %v6011, 0
        %v6105 = vsel %vm3352, %v6012, 0
        %v6108 = vsel %vm3352, %v6013, 0
        %v6111 = vsel %vm3352, %v6014, 0
        %v6114 = vsel %vm3352, %v6015, 0
        %v6117 = vsel %vm3352, %v6016, 0
        %v6120 = vsel %vm3352, %v6017, 0
        %v6123 = vsel %vm3352, %v6018, 0
        %v6126 = vsel %vm3352, %v6019, 0
        %v6129 = vsel %vm3352, %v6020, 0
        %v6132 = vsel %vm3352, %v6021, 0
        %v6135 = vsel %vm3352, %v6022, 0
        %v6138 = vsel %vm3352, %v6023, 0
        %v6141 = vsel %vm3352, %v6024, 0
        %v6144 = vsel %vm3352, %v6025, 0
        %v6147 = vsel %vm3352, %v6026, 0
        %v6150 = vsel %vm3352, %v6027, 0
        %6152 = vmatprep.subr.mxu0 0.0
        %6153 = vmatpush1.msra.mxu0 0.0
        %6154 = vmatprep.subr.mxu0 0.0
        %6155 = vmatpush1.msra.mxu0 0.0
        %6156 = vmatprep.subr.mxu0 0.0
        %6157 = vmatpush1.msra.mxu0 0.0
        %6158 = vmatprep.subr.mxu0 0.0
        %6159 = vmatpush1.msra.mxu0 0.0
        %6160 = vmatprep.subr.mxu0 0.0
        %6161 = vmatpush1.msra.mxu0 0.0
        %6162 = vmatprep.subr.mxu0 0.0
        %6163 = vmatpush1.msra.mxu0 0.0
        %6164 = vmatprep.subr.mxu0 0.0
        %6165 = vmatpush1.msra.mxu0 0.0
        %6166 = vmatprep.subr.mxu0 0.0
        %6167 = vmatpush1.msra.mxu0 0.0
        %6168 = vmatprep.subr.mxu0 0.0
        %6169 = vmatpush1.msra.mxu0 0.0
        %6170 = vmatprep.subr.mxu0 0.0
        %6171 = vmatpush1.msra.mxu0 0.0
        %6172 = vmatprep.subr.mxu0 0.0
        %6173 = vmatpush1.msra.mxu0 0.0
        %6174 = vmatprep.subr.mxu0 0.0
        %6175 = vmatpush1.msra.mxu0 0.0
        %6176 = vmatprep.subr.mxu0 0.0
        %6177 = vmatpush1.msra.mxu0 0.0
        %6178 = vmatprep.subr.mxu0 0.0
        %6179 = vmatpush1.msra.mxu0 %v6031
        %6180 = vmatprep.subr.mxu0 0.0
        %6181 = vmatpush1.msra.mxu0 %v6030
        %6182 = vmatprep.subr.mxu0 0.0
        %6183 = vmatpush1.msra.mxu0 %v6029
        %6184 = vmatprep.subr.mxu0 0.0
        %6185 = vmatpush2.msra.mxu0 0.0
        %6186 = vmatprep.subr.mxu0 0.0
        %6187 = vmatpush2.msra.mxu0 0.0
        %6188 = vmatprep.subr.mxu0 0.0
        %6189 = vmatpush2.msra.mxu0 0.0
        %6190 = vmatprep.subr.mxu0 0.0
        %6191 = vmatpush2.msra.mxu0 0.0
        %6192 = vmatprep.subr.mxu0 0.0
        %6193 = vmatpush2.msra.mxu0 0.0
        %6194 = vmatprep.subr.mxu0 0.0
        %6195 = vmatpush2.msra.mxu0 0.0
        %6196 = vmatprep.subr.mxu0 0.0
        %6197 = vmatpush2.msra.mxu0 0.0
        %6198 = vmatprep.subr.mxu0 0.0
        %6199 = vmatpush2.msra.mxu0 0.0
        %6200 = vmatprep.subr.mxu0 0.0
        %6201 = vmatpush2.msra.mxu0 0.0
        %6202 = vmatprep.subr.mxu0 0.0
        %6203 = vmatpush2.msra.mxu0 0.0
        %6204 = vmatprep.subr.mxu0 0.0
        %6205 = vmatpush2.msra.mxu0 0.0
        %6206 = vmatprep.subr.mxu0 0.0
        %6207 = vmatpush2.msra.mxu0 0.0
        %6208 = vmatprep.subr.mxu0 0.0
        %6209 = vmatpush2.msra.mxu0 0.0
        %6210 = vmatprep.subr.mxu0 0.0
        %6211 = vmatpush2.msra.mxu0 0.0
        %6212 = vmatprep.subr.mxu0 0.0
        %6213 = vmatpush2.msra.mxu0 0.0
        %6214 = vmatprep.subr.mxu0 0.0
        %6215 = vmatpush2.msra.mxu0 0.0
        %6216 = vmatprep.mubr.f32.mxu0 0.0
        %6217 = vmatmul.mubr.f32.gmra.mxu0 %v6033
        %v6218 = vpop.f32.mrf.mxu0
        %v6219 = vadd.f32 0.0, %v6218
        %v6220 = vpop.f32.mrf.mxu0
        %6221 = vmatprep.mubr.f32.mxu0 0.0
        %6222 = vmatmul.mubr.f32.gmra.mxu0 %v6036
        %v6223 = vpop.f32.mrf.mxu0
        %v6224 = vadd.f32 0.0, %v6223
        %v6225 = vpop.f32.mrf.mxu0
        %6226 = vmatprep.mubr.f32.mxu0 0.0
        %6227 = vmatmul.mubr.f32.gmra.mxu0 %v6039
        %v6228 = vpop.f32.mrf.mxu0
        %v6229 = vadd.f32 0.0, %v6228
        %v6230 = vpop.f32.mrf.mxu0
        %6231 = vmatprep.mubr.f32.mxu0 0.0
        %6232 = vmatmul.mubr.f32.gmra.mxu0 %v6042
        %v6233 = vpop.f32.mrf.mxu0
        %v6234 = vadd.f32 0.0, %v6233
        %v6235 = vpop.f32.mrf.mxu0
        %6236 = vmatprep.mubr.f32.mxu0 0.0
        %6237 = vmatmul.mubr.f32.gmra.mxu0 %v6045
        %v6238 = vpop.f32.mrf.mxu0
        %v6239 = vadd.f32 0.0, %v6238
        %v6240 = vpop.f32.mrf.mxu0
        %6241 = vmatprep.mubr.f32.mxu0 0.0
        %6242 = vmatmul.mubr.f32.gmra.mxu0 %v6048
        %v6243 = vpop.f32.mrf.mxu0
        %v6244 = vadd.f32 0.0, %v6243
        %v6245 = vpop.f32.mrf.mxu0
        %6246 = vmatprep.mubr.f32.mxu0 0.0
        %6247 = vmatmul.mubr.f32.gmra.mxu0 %v6051
        %v6248 = vpop.f32.mrf.mxu0
        %v6249 = vadd.f32 0.0, %v6248
        %v6250 = vpop.f32.mrf.mxu0
        %6251 = vmatprep.mubr.f32.mxu0 0.0
        %6252 = vmatmul.mubr.f32.gmra.mxu0 %v6054
        %v6253 = vpop.f32.mrf.mxu0
        %v6254 = vadd.f32 0.0, %v6253
        %v6255 = vpop.f32.mrf.mxu0
        %6256 = vmatprep.mubr.f32.mxu0 0.0
        %6257 = vmatmul.mubr.f32.gmra.mxu0 %v6057
        %v6258 = vpop.f32.mrf.mxu0
        %v6259 = vadd.f32 0.0, %v6258
        %v6260 = vpop.f32.mrf.mxu0
        %6261 = vmatprep.mubr.f32.mxu0 0.0
        %6262 = vmatmul.mubr.f32.gmra.mxu0 %v6060
        %v6263 = vpop.f32.mrf.mxu0
        %v6264 = vadd.f32 0.0, %v6263
        %v6265 = vpop.f32.mrf.mxu0
        %6266 = vmatprep.mubr.f32.mxu0 0.0
        %6267 = vmatmul.mubr.f32.gmra.mxu0 %v6063
        %v6268 = vpop.f32.mrf.mxu0
        %v6269 = vadd.f32 0.0, %v6268
        %v6270 = vpop.f32.mrf.mxu0
        %6271 = vmatprep.mubr.f32.mxu0 0.0
        %6272 = vmatmul.mubr.f32.gmra.mxu0 %v6066
        %v6273 = vpop.f32.mrf.mxu0
        %v6274 = vadd.f32 0.0, %v6273
        %v6275 = vpop.f32.mrf.mxu0
        %6276 = vmatprep.mubr.f32.mxu0 0.0
        %6277 = vmatmul.mubr.f32.gmra.mxu0 %v6069
        %v6278 = vpop.f32.mrf.mxu0
        %v6279 = vadd.f32 0.0, %v6278
        %v6280 = vpop.f32.mrf.mxu0
        %6281 = vmatprep.mubr.f32.mxu0 0.0
        %6282 = vmatmul.mubr.f32.gmra.mxu0 %v6072
        %v6283 = vpop.f32.mrf.mxu0
        %v6284 = vadd.f32 0.0, %v6283
        %v6285 = vpop.f32.mrf.mxu0
        %6286 = vmatprep.mubr.f32.mxu0 0.0
        %6287 = vmatmul.mubr.f32.gmra.mxu0 %v6075
        %v6288 = vpop.f32.mrf.mxu0
        %v6289 = vadd.f32 0.0, %v6288
        %v6290 = vpop.f32.mrf.mxu0
        %6291 = vmatprep.mubr.f32.mxu0 0.0
        %6292 = vmatmul.mubr.f32.gmra.mxu0 %v6078
        %v6293 = vpop.f32.mrf.mxu0
        %v6294 = vadd.f32 0.0, %v6293
        %v6295 = vpop.f32.mrf.mxu0
        %6296 = vmatprep.mubr.f32.mxu0 0.0
        %6297 = vmatmul.mubr.f32.gmra.mxu0 %v6081
        %v6298 = vpop.f32.mrf.mxu0
        %v6299 = vadd.f32 0.0, %v6298
        %v6300 = vpop.f32.mrf.mxu0
        %6301 = vmatprep.mubr.f32.mxu0 0.0
        %6302 = vmatmul.mubr.f32.gmra.mxu0 %v6084
        %v6303 = vpop.f32.mrf.mxu0
        %v6304 = vadd.f32 0.0, %v6303
        %v6305 = vpop.f32.mrf.mxu0
        %6306 = vmatprep.mubr.f32.mxu0 0.0
        %6307 = vmatmul.mubr.f32.gmra.mxu0 %v6087
        %v6308 = vpop.f32.mrf.mxu0
        %v6309 = vadd.f32 0.0, %v6308
        %v6310 = vpop.f32.mrf.mxu0
        %6311 = vmatprep.mubr.f32.mxu0 0.0
        %6312 = vmatmul.mubr.f32.gmra.mxu0 %v6090
        %v6313 = vpop.f32.mrf.mxu0
        %v6314 = vadd.f32 0.0, %v6313
        %v6315 = vpop.f32.mrf.mxu0
        %6316 = vmatprep.mubr.f32.mxu0 0.0
        %6317 = vmatmul.mubr.f32.gmra.mxu0 %v6093
        %v6318 = vpop.f32.mrf.mxu0
        %v6319 = vadd.f32 0.0, %v6318
        %v6320 = vpop.f32.mrf.mxu0
        %6321 = vmatprep.mubr.f32.mxu0 0.0
        %6322 = vmatmul.mubr.f32.gmra.mxu0 %v6096
        %v6323 = vpop.f32.mrf.mxu0
        %v6324 = vadd.f32 0.0, %v6323
        %v6325 = vpop.f32.mrf.mxu0
        %6326 = vmatprep.mubr.f32.mxu0 0.0
        %6327 = vmatmul.mubr.f32.gmra.mxu0 %v6099
        %v6328 = vpop.f32.mrf.mxu0
        %v6329 = vadd.f32 0.0, %v6328
        %v6330 = vpop.f32.mrf.mxu0
        %6331 = vmatprep.mubr.f32.mxu0 0.0
        %6332 = vmatmul.mubr.f32.gmra.mxu0 %v6102
        %v6333 = vpop.f32.mrf.mxu0
        %v6334 = vadd.f32 0.0, %v6333
        %v6335 = vpop.f32.mrf.mxu0
        %6336 = vmatprep.mubr.f32.mxu0 0.0
        %6337 = vmatmul.mubr.f32.gmra.mxu0 %v6105
        %v6338 = vpop.f32.mrf.mxu0
        %v6339 = vadd.f32 0.0, %v6338
        %v6340 = vpop.f32.mrf.mxu0
        %6341 = vmatprep.mubr.f32.mxu0 0.0
        %6342 = vmatmul.mubr.f32.gmra.mxu0 %v6108
        %v6343 = vpop.f32.mrf.mxu0
        %v6344 = vadd.f32 0.0, %v6343
        %v6345 = vpop.f32.mrf.mxu0
        %6346 = vmatprep.mubr.f32.mxu0 0.0
        %6347 = vmatmul.mubr.f32.gmra.mxu0 %v6111
        %v6348 = vpop.f32.mrf.mxu0
        %v6349 = vadd.f32 0.0, %v6348
        %v6350 = vpop.f32.mrf.mxu0
        %6351 = vmatprep.mubr.f32.mxu0 0.0
        %6352 = vmatmul.mubr.f32.gmra.mxu0 %v6114
        %v6353 = vpop.f32.mrf.mxu0
        %v6354 = vadd.f32 0.0, %v6353
        %v6355 = vpop.f32.mrf.mxu0
        %6356 = vmatprep.mubr.f32.mxu0 0.0
        %6357 = vmatmul.mubr.f32.gmra.mxu0 %v6117
        %v6358 = vpop.f32.mrf.mxu0
        %v6359 = vadd.f32 0.0, %v6358
        %v6360 = vpop.f32.mrf.mxu0
        %6361 = vmatprep.mubr.f32.mxu0 0.0
        %6362 = vmatmul.mubr.f32.gmra.mxu0 %v6120
        %v6363 = vpop.f32.mrf.mxu0
        %v6364 = vadd.f32 0.0, %v6363
        %v6365 = vpop.f32.mrf.mxu0
        %6366 = vmatprep.mubr.f32.mxu0 0.0
        %6367 = vmatmul.mubr.f32.gmra.mxu0 %v6123
        %v6368 = vpop.f32.mrf.mxu0
        %v6369 = vadd.f32 0.0, %v6368
        %v6370 = vpop.f32.mrf.mxu0
        %6371 = vmatprep.mubr.f32.mxu0 0.0
        %6372 = vmatmul.mubr.f32.gmra.mxu0 %v6126
        %v6373 = vpop.f32.mrf.mxu0
        %v6374 = vadd.f32 0.0, %v6373
        %v6375 = vpop.f32.mrf.mxu0
        %6376 = vmatprep.mubr.f32.mxu0 0.0
        %6377 = vmatmul.mubr.f32.gmra.mxu0 %v6129
        %v6378 = vpop.f32.mrf.mxu0
        %v6379 = vadd.f32 0.0, %v6378
        %v6380 = vpop.f32.mrf.mxu0
        %6381 = vmatprep.mubr.f32.mxu0 0.0
        %6382 = vmatmul.mubr.f32.gmra.mxu0 %v6132
        %v6383 = vpop.f32.mrf.mxu0
        %v6384 = vadd.f32 0.0, %v6383
        %v6385 = vpop.f32.mrf.mxu0
        %6386 = vmatprep.mubr.f32.mxu0 0.0
        %6387 = vmatmul.mubr.f32.gmra.mxu0 %v6135
        %v6388 = vpop.f32.mrf.mxu0
        %v6389 = vadd.f32 0.0, %v6388
        %v6390 = vpop.f32.mrf.mxu0
        %6391 = vmatprep.mubr.f32.mxu0 0.0
        %6392 = vmatmul.mubr.f32.gmra.mxu0 %v6138
        %v6393 = vpop.f32.mrf.mxu0
        %v6394 = vadd.f32 0.0, %v6393
        %v6395 = vpop.f32.mrf.mxu0
        %6396 = vmatprep.mubr.f32.mxu0 0.0
        %6397 = vmatmul.mubr.f32.gmra.mxu0 %v6141
        %v6398 = vpop.f32.mrf.mxu0
        %v6399 = vadd.f32 0.0, %v6398
        %v6400 = vpop.f32.mrf.mxu0
        %6401 = vmatprep.mubr.f32.mxu0 0.0
        %6402 = vmatmul.mubr.f32.gmra.mxu0 %v6144
        %v6403 = vpop.f32.mrf.mxu0
        %v6404 = vadd.f32 0.0, %v6403
        %v6405 = vpop.f32.mrf.mxu0
        %6406 = vmatprep.mubr.f32.mxu0 0.0
        %6407 = vmatmul.mubr.f32.gmra.mxu0 %v6147
        %v6408 = vpop.f32.mrf.mxu0
        %v6409 = vadd.f32 0.0, %v6408
        %v6410 = vpop.f32.mrf.mxu0
        %6411 = vmatprep.mubr.f32.mxu0 0.0
        %6412 = vmatmul.mubr.f32.gmra.mxu0 %v6150
        %v6413 = vpop.f32.mrf.mxu0
        %v6414 = vadd.f32 0.0, %v6413
        %v6415 = vpop.f32.mrf.mxu0
        %6416 = vdwg.mxu0
        %v6417 = vadd.f32 %v5948, %v6219
        %v6418 = vadd.f32 %v5949, %v6224
        %v6419 = vadd.f32 %v5950, %v6229
        %v6420 = vadd.f32 %v5951, %v6234
        %v6421 = vadd.f32 %v5952, %v6239
        %v6422 = vadd.f32 %v5953, %v6244
        %v6423 = vadd.f32 %v5954, %v6249
        %v6424 = vadd.f32 %v5955, %v6254
        %v6425 = vadd.f32 %v5956, %v6259
        %v6426 = vadd.f32 %v5957, %v6264
        %v6427 = vadd.f32 %v5958, %v6269
        %v6428 = vadd.f32 %v5959, %v6274
        %v6429 = vadd.f32 %v5960, %v6279
        %v6430 = vadd.f32 %v5961, %v6284
        %v6431 = vadd.f32 %v5962, %v6289
        %v6432 = vadd.f32 %v5963, %v6294
        %v6433 = vadd.f32 %v5964, %v6299
        %v6434 = vadd.f32 %v5965, %v6304
        %v6435 = vadd.f32 %v5966, %v6309
        %v6436 = vadd.f32 %v5967, %v6314
        %v6437 = vadd.f32 %v5968, %v6319
        %v6438 = vadd.f32 %v5969, %v6324
        %v6439 = vadd.f32 %v5970, %v6329
        %v6440 = vadd.f32 %v5971, %v6334
        %v6441 = vadd.f32 %v5972, %v6339
        %v6442 = vadd.f32 %v5973, %v6344
        %v6443 = vadd.f32 %v5974, %v6349
        %v6444 = vadd.f32 %v5975, %v6354
        %v6445 = vadd.f32 %v5976, %v6359
        %v6446 = vadd.f32 %v5977, %v6364
        %v6447 = vadd.f32 %v5978, %v6369
        %v6448 = vadd.f32 %v5979, %v6374
        %v6449 = vadd.f32 %v5980, %v6379
        %v6450 = vadd.f32 %v5981, %v6384
        %v6451 = vadd.f32 %v5982, %v6389
        %v6452 = vadd.f32 %v5983, %v6394
        %v6453 = vadd.f32 %v5984, %v6399
        %v6454 = vadd.f32 %v5985, %v6404
        %v6455 = vadd.f32 %v5986, %v6409
        %v6456 = vadd.f32 %v5987, %v6414
        %v6457 = vld [vmem:[#allocation2 + $0x88] sm:$0xff]
        %v6458 = vld [vmem:[#allocation2 + $0x90] sm:$0xff]
        %v6459 = vld [vmem:[#allocation2 + $0x98] sm:$0xff]
        %v6460 = vld [vmem:[#allocation2 + $0xa0] sm:$0xff]
        %v6461 = vld [vmem:[#allocation2 + $0xa8] sm:$0xff]
        %v6462 = vld [vmem:[#allocation2 + $0xb0] sm:$0xff]
        %v6463 = vld [vmem:[#allocation2 + $0xb8] sm:$0xff]
        %v6464 = vld [vmem:[#allocation2 + $0xc0] sm:$0xff]
        %v6465 = vld [vmem:[#allocation2 + $0xc8] sm:$0xff]
        %v6466 = vld [vmem:[#allocation2 + $0xd0] sm:$0xff]
        %v6467 = vld [vmem:[#allocation2 + $0xd8] sm:$0xff]
        %v6468 = vld [vmem:[#allocation2 + $0xe0] sm:$0xff]
        %v6469 = vld [vmem:[#allocation2 + $0xe8] sm:$0xff]
        %v6470 = vld [vmem:[#allocation2 + $0xf0] sm:$0xff]
        %v6471 = vld [vmem:[#allocation2 + $0xf8] sm:$0xff]
        %v6472 = vld [vmem:[#allocation2 + $0x100] sm:$0xff]
        %v6473 = vld [vmem:[#allocation2 + $0x108] sm:$0xff]
        %v6474 = vld [vmem:[#allocation2 + $0x110] sm:$0xff]
        %v6475 = vld [vmem:[#allocation2 + $0x118] sm:$0xff]
        %v6476 = vld [vmem:[#allocation2 + $0x120] sm:$0xff]
        %v6477 = vld [vmem:[#allocation2 + $0x128] sm:$0xff]
        %v6478 = vld [vmem:[#allocation2 + $0x130] sm:$0xff]
        %v6479 = vld [vmem:[#allocation2 + $0x138] sm:$0xff]
        %v6480 = vld [vmem:[#allocation2 + $0x140] sm:$0xff]
        %v6481 = vld [vmem:[#allocation2 + $0x148] sm:$0xff]
        %v6482 = vld [vmem:[#allocation2 + $0x150] sm:$0xff]
        %v6483 = vld [vmem:[#allocation2 + $0x158] sm:$0xff]
        %v6484 = vld [vmem:[#allocation2 + $0x160] sm:$0xff]
        %v6485 = vld [vmem:[#allocation2 + $0x168] sm:$0xff]
        %v6486 = vld [vmem:[#allocation2 + $0x170] sm:$0xff]
        %v6487 = vld [vmem:[#allocation2 + $0x178] sm:$0xff]
        %v6488 = vld [vmem:[#allocation2 + $0x180] sm:$0xff]
        %v6489 = vld [vmem:[#allocation2 + $0x188] sm:$0xff]
        %v6490 = vld [vmem:[#allocation2 + $0x190] sm:$0xff]
        %v6491 = vld [vmem:[#allocation2 + $0x198] sm:$0xff]
        %v6492 = vld [vmem:[#allocation2 + $0x1a0] sm:$0xff]
        %v6493 = vld [vmem:[#allocation2 + $0x1a8] sm:$0xff]
        %v6494 = vld [vmem:[#allocation2 + $0x1b0] sm:$0xff]
        %v6495 = vld [vmem:[#allocation2 + $0x1b8] sm:$0xff]
        %v6496 = vld [vmem:[#allocation2 + $0x1c0] sm:$0xff]
        %s6497 = scalar_lea.vmem %s3, 168
        %v6498 = vld [vmem:[%s6497] sm:$0xff]
        %v6499 = vld [vmem:[%s6497 + $0x8] sm:$0xff]
        %v6500 = vld [vmem:[%s6497 + $0x10] sm:$0xff]
        %v6502 = vsel %vm3352, %v6457, 0
        %v6505 = vsel %vm3352, %v6458, 0
        %v6508 = vsel %vm3352, %v6459, 0
        %v6511 = vsel %vm3352, %v6460, 0
        %v6514 = vsel %vm3352, %v6461, 0
        %v6517 = vsel %vm3352, %v6462, 0
        %v6520 = vsel %vm3352, %v6463, 0
        %v6523 = vsel %vm3352, %v6464, 0
        %v6526 = vsel %vm3352, %v6465, 0
        %v6529 = vsel %vm3352, %v6466, 0
        %v6532 = vsel %vm3352, %v6467, 0
        %v6535 = vsel %vm3352, %v6468, 0
        %v6538 = vsel %vm3352, %v6469, 0
        %v6541 = vsel %vm3352, %v6470, 0
        %v6544 = vsel %vm3352, %v6471, 0
        %v6547 = vsel %vm3352, %v6472, 0
        %v6550 = vsel %vm3352, %v6473, 0
        %v6553 = vsel %vm3352, %v6474, 0
        %v6556 = vsel %vm3352, %v6475, 0
        %v6559 = vsel %vm3352, %v6476, 0
        %v6562 = vsel %vm3352, %v6477, 0
        %v6565 = vsel %vm3352, %v6478, 0
        %v6568 = vsel %vm3352, %v6479, 0
        %v6571 = vsel %vm3352, %v6480, 0
        %v6574 = vsel %vm3352, %v6481, 0
        %v6577 = vsel %vm3352, %v6482, 0
        %v6580 = vsel %vm3352, %v6483, 0
        %v6583 = vsel %vm3352, %v6484, 0
        %v6586 = vsel %vm3352, %v6485, 0
        %v6589 = vsel %vm3352, %v6486, 0
        %v6592 = vsel %vm3352, %v6487, 0
        %v6595 = vsel %vm3352, %v6488, 0
        %v6598 = vsel %vm3352, %v6489, 0
        %v6601 = vsel %vm3352, %v6490, 0
        %v6604 = vsel %vm3352, %v6491, 0
        %v6607 = vsel %vm3352, %v6492, 0
        %v6610 = vsel %vm3352, %v6493, 0
        %v6613 = vsel %vm3352, %v6494, 0
        %v6616 = vsel %vm3352, %v6495, 0
        %v6619 = vsel %vm3352, %v6496, 0
        %6621 = vmatprep.subr.mxu0 0.0
        %6622 = vmatpush1.msra.mxu0 0.0
        %6623 = vmatprep.subr.mxu0 0.0
        %6624 = vmatpush1.msra.mxu0 0.0
        %6625 = vmatprep.subr.mxu0 0.0
        %6626 = vmatpush1.msra.mxu0 0.0
        %6627 = vmatprep.subr.mxu0 0.0
        %6628 = vmatpush1.msra.mxu0 0.0
        %6629 = vmatprep.subr.mxu0 0.0
        %6630 = vmatpush1.msra.mxu0 0.0
        %6631 = vmatprep.subr.mxu0 0.0
        %6632 = vmatpush1.msra.mxu0 0.0
        %6633 = vmatprep.subr.mxu0 0.0
        %6634 = vmatpush1.msra.mxu0 0.0
        %6635 = vmatprep.subr.mxu0 0.0
        %6636 = vmatpush1.msra.mxu0 0.0
        %6637 = vmatprep.subr.mxu0 0.0
        %6638 = vmatpush1.msra.mxu0 0.0
        %6639 = vmatprep.subr.mxu0 0.0
        %6640 = vmatpush1.msra.mxu0 0.0
        %6641 = vmatprep.subr.mxu0 0.0
        %6642 = vmatpush1.msra.mxu0 0.0
        %6643 = vmatprep.subr.mxu0 0.0
        %6644 = vmatpush1.msra.mxu0 0.0
        %6645 = vmatprep.subr.mxu0 0.0
        %6646 = vmatpush1.msra.mxu0 0.0
        %6647 = vmatprep.subr.mxu0 0.0
        %6648 = vmatpush1.msra.mxu0 %v6500
        %6649 = vmatprep.subr.mxu0 0.0
        %6650 = vmatpush1.msra.mxu0 %v6499
        %6651 = vmatprep.subr.mxu0 0.0
        %6652 = vmatpush1.msra.mxu0 %v6498
        %6653 = vmatprep.subr.mxu0 0.0
        %6654 = vmatpush2.msra.mxu0 0.0
        %6655 = vmatprep.subr.mxu0 0.0
        %6656 = vmatpush2.msra.mxu0 0.0
        %6657 = vmatprep.subr.mxu0 0.0
        %6658 = vmatpush2.msra.mxu0 0.0
        %6659 = vmatprep.subr.mxu0 0.0
        %6660 = vmatpush2.msra.mxu0 0.0
        %6661 = vmatprep.subr.mxu0 0.0
        %6662 = vmatpush2.msra.mxu0 0.0
        %6663 = vmatprep.subr.mxu0 0.0
        %6664 = vmatpush2.msra.mxu0 0.0
        %6665 = vmatprep.subr.mxu0 0.0
        %6666 = vmatpush2.msra.mxu0 0.0
        %6667 = vmatprep.subr.mxu0 0.0
        %6668 = vmatpush2.msra.mxu0 0.0
        %6669 = vmatprep.subr.mxu0 0.0
        %6670 = vmatpush2.msra.mxu0 0.0
        %6671 = vmatprep.subr.mxu0 0.0
        %6672 = vmatpush2.msra.mxu0 0.0
        %6673 = vmatprep.subr.mxu0 0.0
        %6674 = vmatpush2.msra.mxu0 0.0
        %6675 = vmatprep.subr.mxu0 0.0
        %6676 = vmatpush2.msra.mxu0 0.0
        %6677 = vmatprep.subr.mxu0 0.0
        %6678 = vmatpush2.msra.mxu0 0.0
        %6679 = vmatprep.subr.mxu0 0.0
        %6680 = vmatpush2.msra.mxu0 0.0
        %6681 = vmatprep.subr.mxu0 0.0
        %6682 = vmatpush2.msra.mxu0 0.0
        %6683 = vmatprep.subr.mxu0 0.0
        %6684 = vmatpush2.msra.mxu0 0.0
        %6685 = vmatprep.mubr.f32.mxu0 0.0
        %6686 = vmatmul.mubr.f32.gmra.mxu0 %v6502
        %v6687 = vpop.f32.mrf.mxu0
        %v6688 = vadd.f32 0.0, %v6687
        %v6689 = vpop.f32.mrf.mxu0
        %6690 = vmatprep.mubr.f32.mxu0 0.0
        %6691 = vmatmul.mubr.f32.gmra.mxu0 %v6505
        %v6692 = vpop.f32.mrf.mxu0
        %v6693 = vadd.f32 0.0, %v6692
        %v6694 = vpop.f32.mrf.mxu0
        %6695 = vmatprep.mubr.f32.mxu0 0.0
        %6696 = vmatmul.mubr.f32.gmra.mxu0 %v6508
        %v6697 = vpop.f32.mrf.mxu0
        %v6698 = vadd.f32 0.0, %v6697
        %v6699 = vpop.f32.mrf.mxu0
        %6700 = vmatprep.mubr.f32.mxu0 0.0
        %6701 = vmatmul.mubr.f32.gmra.mxu0 %v6511
        %v6702 = vpop.f32.mrf.mxu0
        %v6703 = vadd.f32 0.0, %v6702
        %v6704 = vpop.f32.mrf.mxu0
        %6705 = vmatprep.mubr.f32.mxu0 0.0
        %6706 = vmatmul.mubr.f32.gmra.mxu0 %v6514
        %v6707 = vpop.f32.mrf.mxu0
        %v6708 = vadd.f32 0.0, %v6707
        %v6709 = vpop.f32.mrf.mxu0
        %6710 = vmatprep.mubr.f32.mxu0 0.0
        %6711 = vmatmul.mubr.f32.gmra.mxu0 %v6517
        %v6712 = vpop.f32.mrf.mxu0
        %v6713 = vadd.f32 0.0, %v6712
        %v6714 = vpop.f32.mrf.mxu0
        %6715 = vmatprep.mubr.f32.mxu0 0.0
        %6716 = vmatmul.mubr.f32.gmra.mxu0 %v6520
        %v6717 = vpop.f32.mrf.mxu0
        %v6718 = vadd.f32 0.0, %v6717
        %v6719 = vpop.f32.mrf.mxu0
        %6720 = vmatprep.mubr.f32.mxu0 0.0
        %6721 = vmatmul.mubr.f32.gmra.mxu0 %v6523
        %v6722 = vpop.f32.mrf.mxu0
        %v6723 = vadd.f32 0.0, %v6722
        %v6724 = vpop.f32.mrf.mxu0
        %6725 = vmatprep.mubr.f32.mxu0 0.0
        %6726 = vmatmul.mubr.f32.gmra.mxu0 %v6526
        %v6727 = vpop.f32.mrf.mxu0
        %v6728 = vadd.f32 0.0, %v6727
        %v6729 = vpop.f32.mrf.mxu0
        %6730 = vmatprep.mubr.f32.mxu0 0.0
        %6731 = vmatmul.mubr.f32.gmra.mxu0 %v6529
        %v6732 = vpop.f32.mrf.mxu0
        %v6733 = vadd.f32 0.0, %v6732
        %v6734 = vpop.f32.mrf.mxu0
        %6735 = vmatprep.mubr.f32.mxu0 0.0
        %6736 = vmatmul.mubr.f32.gmra.mxu0 %v6532
        %v6737 = vpop.f32.mrf.mxu0
        %v6738 = vadd.f32 0.0, %v6737
        %v6739 = vpop.f32.mrf.mxu0
        %6740 = vmatprep.mubr.f32.mxu0 0.0
        %6741 = vmatmul.mubr.f32.gmra.mxu0 %v6535
        %v6742 = vpop.f32.mrf.mxu0
        %v6743 = vadd.f32 0.0, %v6742
        %v6744 = vpop.f32.mrf.mxu0
        %6745 = vmatprep.mubr.f32.mxu0 0.0
        %6746 = vmatmul.mubr.f32.gmra.mxu0 %v6538
        %v6747 = vpop.f32.mrf.mxu0
        %v6748 = vadd.f32 0.0, %v6747
        %v6749 = vpop.f32.mrf.mxu0
        %6750 = vmatprep.mubr.f32.mxu0 0.0
        %6751 = vmatmul.mubr.f32.gmra.mxu0 %v6541
        %v6752 = vpop.f32.mrf.mxu0
        %v6753 = vadd.f32 0.0, %v6752
        %v6754 = vpop.f32.mrf.mxu0
        %6755 = vmatprep.mubr.f32.mxu0 0.0
        %6756 = vmatmul.mubr.f32.gmra.mxu0 %v6544
        %v6757 = vpop.f32.mrf.mxu0
        %v6758 = vadd.f32 0.0, %v6757
        %v6759 = vpop.f32.mrf.mxu0
        %6760 = vmatprep.mubr.f32.mxu0 0.0
        %6761 = vmatmul.mubr.f32.gmra.mxu0 %v6547
        %v6762 = vpop.f32.mrf.mxu0
        %v6763 = vadd.f32 0.0, %v6762
        %v6764 = vpop.f32.mrf.mxu0
        %6765 = vmatprep.mubr.f32.mxu0 0.0
        %6766 = vmatmul.mubr.f32.gmra.mxu0 %v6550
        %v6767 = vpop.f32.mrf.mxu0
        %v6768 = vadd.f32 0.0, %v6767
        %v6769 = vpop.f32.mrf.mxu0
        %6770 = vmatprep.mubr.f32.mxu0 0.0
        %6771 = vmatmul.mubr.f32.gmra.mxu0 %v6553
        %v6772 = vpop.f32.mrf.mxu0
        %v6773 = vadd.f32 0.0, %v6772
        %v6774 = vpop.f32.mrf.mxu0
        %6775 = vmatprep.mubr.f32.mxu0 0.0
        %6776 = vmatmul.mubr.f32.gmra.mxu0 %v6556
        %v6777 = vpop.f32.mrf.mxu0
        %v6778 = vadd.f32 0.0, %v6777
        %v6779 = vpop.f32.mrf.mxu0
        %6780 = vmatprep.mubr.f32.mxu0 0.0
        %6781 = vmatmul.mubr.f32.gmra.mxu0 %v6559
        %v6782 = vpop.f32.mrf.mxu0
        %v6783 = vadd.f32 0.0, %v6782
        %v6784 = vpop.f32.mrf.mxu0
        %6785 = vmatprep.mubr.f32.mxu0 0.0
        %6786 = vmatmul.mubr.f32.gmra.mxu0 %v6562
        %v6787 = vpop.f32.mrf.mxu0
        %v6788 = vadd.f32 0.0, %v6787
        %v6789 = vpop.f32.mrf.mxu0
        %6790 = vmatprep.mubr.f32.mxu0 0.0
        %6791 = vmatmul.mubr.f32.gmra.mxu0 %v6565
        %v6792 = vpop.f32.mrf.mxu0
        %v6793 = vadd.f32 0.0, %v6792
        %v6794 = vpop.f32.mrf.mxu0
        %6795 = vmatprep.mubr.f32.mxu0 0.0
        %6796 = vmatmul.mubr.f32.gmra.mxu0 %v6568
        %v6797 = vpop.f32.mrf.mxu0
        %v6798 = vadd.f32 0.0, %v6797
        %v6799 = vpop.f32.mrf.mxu0
        %6800 = vmatprep.mubr.f32.mxu0 0.0
        %6801 = vmatmul.mubr.f32.gmra.mxu0 %v6571
        %v6802 = vpop.f32.mrf.mxu0
        %v6803 = vadd.f32 0.0, %v6802
        %v6804 = vpop.f32.mrf.mxu0
        %6805 = vmatprep.mubr.f32.mxu0 0.0
        %6806 = vmatmul.mubr.f32.gmra.mxu0 %v6574
        %v6807 = vpop.f32.mrf.mxu0
        %v6808 = vadd.f32 0.0, %v6807
        %v6809 = vpop.f32.mrf.mxu0
        %6810 = vmatprep.mubr.f32.mxu0 0.0
        %6811 = vmatmul.mubr.f32.gmra.mxu0 %v6577
        %v6812 = vpop.f32.mrf.mxu0
        %v6813 = vadd.f32 0.0, %v6812
        %v6814 = vpop.f32.mrf.mxu0
        %6815 = vmatprep.mubr.f32.mxu0 0.0
        %6816 = vmatmul.mubr.f32.gmra.mxu0 %v6580
        %v6817 = vpop.f32.mrf.mxu0
        %v6818 = vadd.f32 0.0, %v6817
        %v6819 = vpop.f32.mrf.mxu0
        %6820 = vmatprep.mubr.f32.mxu0 0.0
        %6821 = vmatmul.mubr.f32.gmra.mxu0 %v6583
        %v6822 = vpop.f32.mrf.mxu0
        %v6823 = vadd.f32 0.0, %v6822
        %v6824 = vpop.f32.mrf.mxu0
        %6825 = vmatprep.mubr.f32.mxu0 0.0
        %6826 = vmatmul.mubr.f32.gmra.mxu0 %v6586
        %v6827 = vpop.f32.mrf.mxu0
        %v6828 = vadd.f32 0.0, %v6827
        %v6829 = vpop.f32.mrf.mxu0
        %6830 = vmatprep.mubr.f32.mxu0 0.0
        %6831 = vmatmul.mubr.f32.gmra.mxu0 %v6589
        %v6832 = vpop.f32.mrf.mxu0
        %v6833 = vadd.f32 0.0, %v6832
        %v6834 = vpop.f32.mrf.mxu0
        %6835 = vmatprep.mubr.f32.mxu0 0.0
        %6836 = vmatmul.mubr.f32.gmra.mxu0 %v6592
        %v6837 = vpop.f32.mrf.mxu0
        %v6838 = vadd.f32 0.0, %v6837
        %v6839 = vpop.f32.mrf.mxu0
        %6840 = vmatprep.mubr.f32.mxu0 0.0
        %6841 = vmatmul.mubr.f32.gmra.mxu0 %v6595
        %v6842 = vpop.f32.mrf.mxu0
        %v6843 = vadd.f32 0.0, %v6842
        %v6844 = vpop.f32.mrf.mxu0
        %6845 = vmatprep.mubr.f32.mxu0 0.0
        %6846 = vmatmul.mubr.f32.gmra.mxu0 %v6598
        %v6847 = vpop.f32.mrf.mxu0
        %v6848 = vadd.f32 0.0, %v6847
        %v6849 = vpop.f32.mrf.mxu0
        %6850 = vmatprep.mubr.f32.mxu0 0.0
        %6851 = vmatmul.mubr.f32.gmra.mxu0 %v6601
        %v6852 = vpop.f32.mrf.mxu0
        %v6853 = vadd.f32 0.0, %v6852
        %v6854 = vpop.f32.mrf.mxu0
        %6855 = vmatprep.mubr.f32.mxu0 0.0
        %6856 = vmatmul.mubr.f32.gmra.mxu0 %v6604
        %v6857 = vpop.f32.mrf.mxu0
        %v6858 = vadd.f32 0.0, %v6857
        %v6859 = vpop.f32.mrf.mxu0
        %6860 = vmatprep.mubr.f32.mxu0 0.0
        %6861 = vmatmul.mubr.f32.gmra.mxu0 %v6607
        %v6862 = vpop.f32.mrf.mxu0
        %v6863 = vadd.f32 0.0, %v6862
        %v6864 = vpop.f32.mrf.mxu0
        %6865 = vmatprep.mubr.f32.mxu0 0.0
        %6866 = vmatmul.mubr.f32.gmra.mxu0 %v6610
        %v6867 = vpop.f32.mrf.mxu0
        %v6868 = vadd.f32 0.0, %v6867
        %v6869 = vpop.f32.mrf.mxu0
        %6870 = vmatprep.mubr.f32.mxu0 0.0
        %6871 = vmatmul.mubr.f32.gmra.mxu0 %v6613
        %v6872 = vpop.f32.mrf.mxu0
        %v6873 = vadd.f32 0.0, %v6872
        %v6874 = vpop.f32.mrf.mxu0
        %6875 = vmatprep.mubr.f32.mxu0 0.0
        %6876 = vmatmul.mubr.f32.gmra.mxu0 %v6616
        %v6877 = vpop.f32.mrf.mxu0
        %v6878 = vadd.f32 0.0, %v6877
        %v6879 = vpop.f32.mrf.mxu0
        %6880 = vmatprep.mubr.f32.mxu0 0.0
        %6881 = vmatmul.mubr.f32.gmra.mxu0 %v6619
        %v6882 = vpop.f32.mrf.mxu0
        %v6883 = vadd.f32 0.0, %v6882
        %v6884 = vpop.f32.mrf.mxu0
        %6885 = vdwg.mxu0
        %v6886 = vadd.f32 %v6417, %v6688
        %v6887 = vadd.f32 %v6418, %v6693
        %v6888 = vadd.f32 %v6419, %v6698
        %v6889 = vadd.f32 %v6420, %v6703
        %v6890 = vadd.f32 %v6421, %v6708
        %v6891 = vadd.f32 %v6422, %v6713
        %v6892 = vadd.f32 %v6423, %v6718
        %v6893 = vadd.f32 %v6424, %v6723
        %v6894 = vadd.f32 %v6425, %v6728
        %v6895 = vadd.f32 %v6426, %v6733
        %v6896 = vadd.f32 %v6427, %v6738
        %v6897 = vadd.f32 %v6428, %v6743
        %v6898 = vadd.f32 %v6429, %v6748
        %v6899 = vadd.f32 %v6430, %v6753
        %v6900 = vadd.f32 %v6431, %v6758
        %v6901 = vadd.f32 %v6432, %v6763
        %v6902 = vadd.f32 %v6433, %v6768
        %v6903 = vadd.f32 %v6434, %v6773
        %v6904 = vadd.f32 %v6435, %v6778
        %v6905 = vadd.f32 %v6436, %v6783
        %v6906 = vadd.f32 %v6437, %v6788
        %v6907 = vadd.f32 %v6438, %v6793
        %v6908 = vadd.f32 %v6439, %v6798
        %v6909 = vadd.f32 %v6440, %v6803
        %v6910 = vadd.f32 %v6441, %v6808
        %v6911 = vadd.f32 %v6442, %v6813
        %v6912 = vadd.f32 %v6443, %v6818
        %v6913 = vadd.f32 %v6444, %v6823
        %v6914 = vadd.f32 %v6445, %v6828
        %v6915 = vadd.f32 %v6446, %v6833
        %v6916 = vadd.f32 %v6447, %v6838
        %v6917 = vadd.f32 %v6448, %v6843
        %v6918 = vadd.f32 %v6449, %v6848
        %v6919 = vadd.f32 %v6450, %v6853
        %v6920 = vadd.f32 %v6451, %v6858
        %v6921 = vadd.f32 %v6452, %v6863
        %v6922 = vadd.f32 %v6453, %v6868
        %v6923 = vadd.f32 %v6454, %v6873
        %v6924 = vadd.f32 %v6455, %v6878
        %v6925 = vadd.f32 %v6456, %v6883
        %v6926 = vld [vmem:[#allocation2 + $0x90] sm:$0xff]
        %v6927 = vld [vmem:[#allocation2 + $0x98] sm:$0xff]
        %v6928 = vld [vmem:[#allocation2 + $0xa0] sm:$0xff]
        %v6929 = vld [vmem:[#allocation2 + $0xa8] sm:$0xff]
        %v6930 = vld [vmem:[#allocation2 + $0xb0] sm:$0xff]
        %v6931 = vld [vmem:[#allocation2 + $0xb8] sm:$0xff]
        %v6932 = vld [vmem:[#allocation2 + $0xc0] sm:$0xff]
        %v6933 = vld [vmem:[#allocation2 + $0xc8] sm:$0xff]
        %v6934 = vld [vmem:[#allocation2 + $0xd0] sm:$0xff]
        %v6935 = vld [vmem:[#allocation2 + $0xd8] sm:$0xff]
        %v6936 = vld [vmem:[#allocation2 + $0xe0] sm:$0xff]
        %v6937 = vld [vmem:[#allocation2 + $0xe8] sm:$0xff]
        %v6938 = vld [vmem:[#allocation2 + $0xf0] sm:$0xff]
        %v6939 = vld [vmem:[#allocation2 + $0xf8] sm:$0xff]
        %v6940 = vld [vmem:[#allocation2 + $0x100] sm:$0xff]
        %v6941 = vld [vmem:[#allocation2 + $0x108] sm:$0xff]
        %v6942 = vld [vmem:[#allocation2 + $0x110] sm:$0xff]
        %v6943 = vld [vmem:[#allocation2 + $0x118] sm:$0xff]
        %v6944 = vld [vmem:[#allocation2 + $0x120] sm:$0xff]
        %v6945 = vld [vmem:[#allocation2 + $0x128] sm:$0xff]
        %v6946 = vld [vmem:[#allocation2 + $0x130] sm:$0xff]
        %v6947 = vld [vmem:[#allocation2 + $0x138] sm:$0xff]
        %v6948 = vld [vmem:[#allocation2 + $0x140] sm:$0xff]
        %v6949 = vld [vmem:[#allocation2 + $0x148] sm:$0xff]
        %v6950 = vld [vmem:[#allocation2 + $0x150] sm:$0xff]
        %v6951 = vld [vmem:[#allocation2 + $0x158] sm:$0xff]
        %v6952 = vld [vmem:[#allocation2 + $0x160] sm:$0xff]
        %v6953 = vld [vmem:[#allocation2 + $0x168] sm:$0xff]
        %v6954 = vld [vmem:[#allocation2 + $0x170] sm:$0xff]
        %v6955 = vld [vmem:[#allocation2 + $0x178] sm:$0xff]
        %v6956 = vld [vmem:[#allocation2 + $0x180] sm:$0xff]
        %v6957 = vld [vmem:[#allocation2 + $0x188] sm:$0xff]
        %v6958 = vld [vmem:[#allocation2 + $0x190] sm:$0xff]
        %v6959 = vld [vmem:[#allocation2 + $0x198] sm:$0xff]
        %v6960 = vld [vmem:[#allocation2 + $0x1a0] sm:$0xff]
        %v6961 = vld [vmem:[#allocation2 + $0x1a8] sm:$0xff]
        %v6962 = vld [vmem:[#allocation2 + $0x1b0] sm:$0xff]
        %v6963 = vld [vmem:[#allocation2 + $0x1b8] sm:$0xff]
        %v6964 = vld [vmem:[#allocation2 + $0x1c0] sm:$0xff]
        %v6965 = vld [vmem:[#allocation2 + $0x1c8] sm:$0xff]
        %s6966 = scalar_lea.vmem %s3, 192
        %v6967 = vld [vmem:[%s6966] sm:$0xff]
        %v6968 = vld [vmem:[%s6966 + $0x8] sm:$0xff]
        %v6969 = vld [vmem:[%s6966 + $0x10] sm:$0xff]
        %v6971 = vsel %vm3352, %v6926, 0
        %v6974 = vsel %vm3352, %v6927, 0
        %v6977 = vsel %vm3352, %v6928, 0
        %v6980 = vsel %vm3352, %v6929, 0
        %v6983 = vsel %vm3352, %v6930, 0
        %v6986 = vsel %vm3352, %v6931, 0
        %v6989 = vsel %vm3352, %v6932, 0
        %v6992 = vsel %vm3352, %v6933, 0
        %v6995 = vsel %vm3352, %v6934, 0
        %v6998 = vsel %vm3352, %v6935, 0
        %v7001 = vsel %vm3352, %v6936, 0
        %v7004 = vsel %vm3352, %v6937, 0
        %v7007 = vsel %vm3352, %v6938, 0
        %v7010 = vsel %vm3352, %v6939, 0
        %v7013 = vsel %vm3352, %v6940, 0
        %v7016 = vsel %vm3352, %v6941, 0
        %v7019 = vsel %vm3352, %v6942, 0
        %v7022 = vsel %vm3352, %v6943, 0
        %v7025 = vsel %vm3352, %v6944, 0
        %v7028 = vsel %vm3352, %v6945, 0
        %v7031 = vsel %vm3352, %v6946, 0
        %v7034 = vsel %vm3352, %v6947, 0
        %v7037 = vsel %vm3352, %v6948, 0
        %v7040 = vsel %vm3352, %v6949, 0
        %v7043 = vsel %vm3352, %v6950, 0
        %v7046 = vsel %vm3352, %v6951, 0
        %v7049 = vsel %vm3352, %v6952, 0
        %v7052 = vsel %vm3352, %v6953, 0
        %v7055 = vsel %vm3352, %v6954, 0
        %v7058 = vsel %vm3352, %v6955, 0
        %v7061 = vsel %vm3352, %v6956, 0
        %v7064 = vsel %vm3352, %v6957, 0
        %v7067 = vsel %vm3352, %v6958, 0
        %v7070 = vsel %vm3352, %v6959, 0
        %v7073 = vsel %vm3352, %v6960, 0
        %v7076 = vsel %vm3352, %v6961, 0
        %v7079 = vsel %vm3352, %v6962, 0
        %v7082 = vsel %vm3352, %v6963, 0
        %v7085 = vsel %vm3352, %v6964, 0
        %v7088 = vsel %vm3352, %v6965, 0
        %7090 = vmatprep.subr.mxu0 0.0
        %7091 = vmatpush1.msra.mxu0 0.0
        %7092 = vmatprep.subr.mxu0 0.0
        %7093 = vmatpush1.msra.mxu0 0.0
        %7094 = vmatprep.subr.mxu0 0.0
        %7095 = vmatpush1.msra.mxu0 0.0
        %7096 = vmatprep.subr.mxu0 0.0
        %7097 = vmatpush1.msra.mxu0 0.0
        %7098 = vmatprep.subr.mxu0 0.0
        %7099 = vmatpush1.msra.mxu0 0.0
        %7100 = vmatprep.subr.mxu0 0.0
        %7101 = vmatpush1.msra.mxu0 0.0
        %7102 = vmatprep.subr.mxu0 0.0
        %7103 = vmatpush1.msra.mxu0 0.0
        %7104 = vmatprep.subr.mxu0 0.0
        %7105 = vmatpush1.msra.mxu0 0.0
        %7106 = vmatprep.subr.mxu0 0.0
        %7107 = vmatpush1.msra.mxu0 0.0
        %7108 = vmatprep.subr.mxu0 0.0
        %7109 = vmatpush1.msra.mxu0 0.0
        %7110 = vmatprep.subr.mxu0 0.0
        %7111 = vmatpush1.msra.mxu0 0.0
        %7112 = vmatprep.subr.mxu0 0.0
        %7113 = vmatpush1.msra.mxu0 0.0
        %7114 = vmatprep.subr.mxu0 0.0
        %7115 = vmatpush1.msra.mxu0 0.0
        %7116 = vmatprep.subr.mxu0 0.0
        %7117 = vmatpush1.msra.mxu0 %v6969
        %7118 = vmatprep.subr.mxu0 0.0
        %7119 = vmatpush1.msra.mxu0 %v6968
        %7120 = vmatprep.subr.mxu0 0.0
        %7121 = vmatpush1.msra.mxu0 %v6967
        %7122 = vmatprep.subr.mxu0 0.0
        %7123 = vmatpush2.msra.mxu0 0.0
        %7124 = vmatprep.subr.mxu0 0.0
        %7125 = vmatpush2.msra.mxu0 0.0
        %7126 = vmatprep.subr.mxu0 0.0
        %7127 = vmatpush2.msra.mxu0 0.0
        %7128 = vmatprep.subr.mxu0 0.0
        %7129 = vmatpush2.msra.mxu0 0.0
        %7130 = vmatprep.subr.mxu0 0.0
        %7131 = vmatpush2.msra.mxu0 0.0
        %7132 = vmatprep.subr.mxu0 0.0
        %7133 = vmatpush2.msra.mxu0 0.0
        %7134 = vmatprep.subr.mxu0 0.0
        %7135 = vmatpush2.msra.mxu0 0.0
        %7136 = vmatprep.subr.mxu0 0.0
        %7137 = vmatpush2.msra.mxu0 0.0
        %7138 = vmatprep.subr.mxu0 0.0
        %7139 = vmatpush2.msra.mxu0 0.0
        %7140 = vmatprep.subr.mxu0 0.0
        %7141 = vmatpush2.msra.mxu0 0.0
        %7142 = vmatprep.subr.mxu0 0.0
        %7143 = vmatpush2.msra.mxu0 0.0
        %7144 = vmatprep.subr.mxu0 0.0
        %7145 = vmatpush2.msra.mxu0 0.0
        %7146 = vmatprep.subr.mxu0 0.0
        %7147 = vmatpush2.msra.mxu0 0.0
        %7148 = vmatprep.subr.mxu0 0.0
        %7149 = vmatpush2.msra.mxu0 0.0
        %7150 = vmatprep.subr.mxu0 0.0
        %7151 = vmatpush2.msra.mxu0 0.0
        %7152 = vmatprep.subr.mxu0 0.0
        %7153 = vmatpush2.msra.mxu0 0.0
        %7154 = vmatprep.mubr.f32.mxu0 0.0
        %7155 = vmatmul.mubr.f32.gmra.mxu0 %v6971
        %v7156 = vpop.f32.mrf.mxu0
        %v7157 = vadd.f32 0.0, %v7156
        %v7158 = vpop.f32.mrf.mxu0
        %7159 = vmatprep.mubr.f32.mxu0 0.0
        %7160 = vmatmul.mubr.f32.gmra.mxu0 %v6974
        %v7161 = vpop.f32.mrf.mxu0
        %v7162 = vadd.f32 0.0, %v7161
        %v7163 = vpop.f32.mrf.mxu0
        %7164 = vmatprep.mubr.f32.mxu0 0.0
        %7165 = vmatmul.mubr.f32.gmra.mxu0 %v6977
        %v7166 = vpop.f32.mrf.mxu0
        %v7167 = vadd.f32 0.0, %v7166
        %v7168 = vpop.f32.mrf.mxu0
        %7169 = vmatprep.mubr.f32.mxu0 0.0
        %7170 = vmatmul.mubr.f32.gmra.mxu0 %v6980
        %v7171 = vpop.f32.mrf.mxu0
        %v7172 = vadd.f32 0.0, %v7171
        %v7173 = vpop.f32.mrf.mxu0
        %7174 = vmatprep.mubr.f32.mxu0 0.0
        %7175 = vmatmul.mubr.f32.gmra.mxu0 %v6983
        %v7176 = vpop.f32.mrf.mxu0
        %v7177 = vadd.f32 0.0, %v7176
        %v7178 = vpop.f32.mrf.mxu0
        %7179 = vmatprep.mubr.f32.mxu0 0.0
        %7180 = vmatmul.mubr.f32.gmra.mxu0 %v6986
        %v7181 = vpop.f32.mrf.mxu0
        %v7182 = vadd.f32 0.0, %v7181
        %v7183 = vpop.f32.mrf.mxu0
        %7184 = vmatprep.mubr.f32.mxu0 0.0
        %7185 = vmatmul.mubr.f32.gmra.mxu0 %v6989
        %v7186 = vpop.f32.mrf.mxu0
        %v7187 = vadd.f32 0.0, %v7186
        %v7188 = vpop.f32.mrf.mxu0
        %7189 = vmatprep.mubr.f32.mxu0 0.0
        %7190 = vmatmul.mubr.f32.gmra.mxu0 %v6992
        %v7191 = vpop.f32.mrf.mxu0
        %v7192 = vadd.f32 0.0, %v7191
        %v7193 = vpop.f32.mrf.mxu0
        %7194 = vmatprep.mubr.f32.mxu0 0.0
        %7195 = vmatmul.mubr.f32.gmra.mxu0 %v6995
        %v7196 = vpop.f32.mrf.mxu0
        %v7197 = vadd.f32 0.0, %v7196
        %v7198 = vpop.f32.mrf.mxu0
        %7199 = vmatprep.mubr.f32.mxu0 0.0
        %7200 = vmatmul.mubr.f32.gmra.mxu0 %v6998
        %v7201 = vpop.f32.mrf.mxu0
        %v7202 = vadd.f32 0.0, %v7201
        %v7203 = vpop.f32.mrf.mxu0
        %7204 = vmatprep.mubr.f32.mxu0 0.0
        %7205 = vmatmul.mubr.f32.gmra.mxu0 %v7001
        %v7206 = vpop.f32.mrf.mxu0
        %v7207 = vadd.f32 0.0, %v7206
        %v7208 = vpop.f32.mrf.mxu0
        %7209 = vmatprep.mubr.f32.mxu0 0.0
        %7210 = vmatmul.mubr.f32.gmra.mxu0 %v7004
        %v7211 = vpop.f32.mrf.mxu0
        %v7212 = vadd.f32 0.0, %v7211
        %v7213 = vpop.f32.mrf.mxu0
        %7214 = vmatprep.mubr.f32.mxu0 0.0
        %7215 = vmatmul.mubr.f32.gmra.mxu0 %v7007
        %v7216 = vpop.f32.mrf.mxu0
        %v7217 = vadd.f32 0.0, %v7216
        %v7218 = vpop.f32.mrf.mxu0
        %7219 = vmatprep.mubr.f32.mxu0 0.0
        %7220 = vmatmul.mubr.f32.gmra.mxu0 %v7010
        %v7221 = vpop.f32.mrf.mxu0
        %v7222 = vadd.f32 0.0, %v7221
        %v7223 = vpop.f32.mrf.mxu0
        %7224 = vmatprep.mubr.f32.mxu0 0.0
        %7225 = vmatmul.mubr.f32.gmra.mxu0 %v7013
        %v7226 = vpop.f32.mrf.mxu0
        %v7227 = vadd.f32 0.0, %v7226
        %v7228 = vpop.f32.mrf.mxu0
        %7229 = vmatprep.mubr.f32.mxu0 0.0
        %7230 = vmatmul.mubr.f32.gmra.mxu0 %v7016
        %v7231 = vpop.f32.mrf.mxu0
        %v7232 = vadd.f32 0.0, %v7231
        %v7233 = vpop.f32.mrf.mxu0
        %7234 = vmatprep.mubr.f32.mxu0 0.0
        %7235 = vmatmul.mubr.f32.gmra.mxu0 %v7019
        %v7236 = vpop.f32.mrf.mxu0
        %v7237 = vadd.f32 0.0, %v7236
        %v7238 = vpop.f32.mrf.mxu0
        %7239 = vmatprep.mubr.f32.mxu0 0.0
        %7240 = vmatmul.mubr.f32.gmra.mxu0 %v7022
        %v7241 = vpop.f32.mrf.mxu0
        %v7242 = vadd.f32 0.0, %v7241
        %v7243 = vpop.f32.mrf.mxu0
        %7244 = vmatprep.mubr.f32.mxu0 0.0
        %7245 = vmatmul.mubr.f32.gmra.mxu0 %v7025
        %v7246 = vpop.f32.mrf.mxu0
        %v7247 = vadd.f32 0.0, %v7246
        %v7248 = vpop.f32.mrf.mxu0
        %7249 = vmatprep.mubr.f32.mxu0 0.0
        %7250 = vmatmul.mubr.f32.gmra.mxu0 %v7028
        %v7251 = vpop.f32.mrf.mxu0
        %v7252 = vadd.f32 0.0, %v7251
        %v7253 = vpop.f32.mrf.mxu0
        %7254 = vmatprep.mubr.f32.mxu0 0.0
        %7255 = vmatmul.mubr.f32.gmra.mxu0 %v7031
        %v7256 = vpop.f32.mrf.mxu0
        %v7257 = vadd.f32 0.0, %v7256
        %v7258 = vpop.f32.mrf.mxu0
        %7259 = vmatprep.mubr.f32.mxu0 0.0
        %7260 = vmatmul.mubr.f32.gmra.mxu0 %v7034
        %v7261 = vpop.f32.mrf.mxu0
        %v7262 = vadd.f32 0.0, %v7261
        %v7263 = vpop.f32.mrf.mxu0
        %7264 = vmatprep.mubr.f32.mxu0 0.0
        %7265 = vmatmul.mubr.f32.gmra.mxu0 %v7037
        %v7266 = vpop.f32.mrf.mxu0
        %v7267 = vadd.f32 0.0, %v7266
        %v7268 = vpop.f32.mrf.mxu0
        %7269 = vmatprep.mubr.f32.mxu0 0.0
        %7270 = vmatmul.mubr.f32.gmra.mxu0 %v7040
        %v7271 = vpop.f32.mrf.mxu0
        %v7272 = vadd.f32 0.0, %v7271
        %v7273 = vpop.f32.mrf.mxu0
        %7274 = vmatprep.mubr.f32.mxu0 0.0
        %7275 = vmatmul.mubr.f32.gmra.mxu0 %v7043
        %v7276 = vpop.f32.mrf.mxu0
        %v7277 = vadd.f32 0.0, %v7276
        %v7278 = vpop.f32.mrf.mxu0
        %7279 = vmatprep.mubr.f32.mxu0 0.0
        %7280 = vmatmul.mubr.f32.gmra.mxu0 %v7046
        %v7281 = vpop.f32.mrf.mxu0
        %v7282 = vadd.f32 0.0, %v7281
        %v7283 = vpop.f32.mrf.mxu0
        %7284 = vmatprep.mubr.f32.mxu0 0.0
        %7285 = vmatmul.mubr.f32.gmra.mxu0 %v7049
        %v7286 = vpop.f32.mrf.mxu0
        %v7287 = vadd.f32 0.0, %v7286
        %v7288 = vpop.f32.mrf.mxu0
        %7289 = vmatprep.mubr.f32.mxu0 0.0
        %7290 = vmatmul.mubr.f32.gmra.mxu0 %v7052
        %v7291 = vpop.f32.mrf.mxu0
        %v7292 = vadd.f32 0.0, %v7291
        %v7293 = vpop.f32.mrf.mxu0
        %7294 = vmatprep.mubr.f32.mxu0 0.0
        %7295 = vmatmul.mubr.f32.gmra.mxu0 %v7055
        %v7296 = vpop.f32.mrf.mxu0
        %v7297 = vadd.f32 0.0, %v7296
        %v7298 = vpop.f32.mrf.mxu0
        %7299 = vmatprep.mubr.f32.mxu0 0.0
        %7300 = vmatmul.mubr.f32.gmra.mxu0 %v7058
        %v7301 = vpop.f32.mrf.mxu0
        %v7302 = vadd.f32 0.0, %v7301
        %v7303 = vpop.f32.mrf.mxu0
        %7304 = vmatprep.mubr.f32.mxu0 0.0
        %7305 = vmatmul.mubr.f32.gmra.mxu0 %v7061
        %v7306 = vpop.f32.mrf.mxu0
        %v7307 = vadd.f32 0.0, %v7306
        %v7308 = vpop.f32.mrf.mxu0
        %7309 = vmatprep.mubr.f32.mxu0 0.0
        %7310 = vmatmul.mubr.f32.gmra.mxu0 %v7064
        %v7311 = vpop.f32.mrf.mxu0
        %v7312 = vadd.f32 0.0, %v7311
        %v7313 = vpop.f32.mrf.mxu0
        %7314 = vmatprep.mubr.f32.mxu0 0.0
        %7315 = vmatmul.mubr.f32.gmra.mxu0 %v7067
        %v7316 = vpop.f32.mrf.mxu0
        %v7317 = vadd.f32 0.0, %v7316
        %v7318 = vpop.f32.mrf.mxu0
        %7319 = vmatprep.mubr.f32.mxu0 0.0
        %7320 = vmatmul.mubr.f32.gmra.mxu0 %v7070
        %v7321 = vpop.f32.mrf.mxu0
        %v7322 = vadd.f32 0.0, %v7321
        %v7323 = vpop.f32.mrf.mxu0
        %7324 = vmatprep.mubr.f32.mxu0 0.0
        %7325 = vmatmul.mubr.f32.gmra.mxu0 %v7073
        %v7326 = vpop.f32.mrf.mxu0
        %v7327 = vadd.f32 0.0, %v7326
        %v7328 = vpop.f32.mrf.mxu0
        %7329 = vmatprep.mubr.f32.mxu0 0.0
        %7330 = vmatmul.mubr.f32.gmra.mxu0 %v7076
        %v7331 = vpop.f32.mrf.mxu0
        %v7332 = vadd.f32 0.0, %v7331
        %v7333 = vpop.f32.mrf.mxu0
        %7334 = vmatprep.mubr.f32.mxu0 0.0
        %7335 = vmatmul.mubr.f32.gmra.mxu0 %v7079
        %v7336 = vpop.f32.mrf.mxu0
        %v7337 = vadd.f32 0.0, %v7336
        %v7338 = vpop.f32.mrf.mxu0
        %7339 = vmatprep.mubr.f32.mxu0 0.0
        %7340 = vmatmul.mubr.f32.gmra.mxu0 %v7082
        %v7341 = vpop.f32.mrf.mxu0
        %v7342 = vadd.f32 0.0, %v7341
        %v7343 = vpop.f32.mrf.mxu0
        %7344 = vmatprep.mubr.f32.mxu0 0.0
        %7345 = vmatmul.mubr.f32.gmra.mxu0 %v7085
        %v7346 = vpop.f32.mrf.mxu0
        %v7347 = vadd.f32 0.0, %v7346
        %v7348 = vpop.f32.mrf.mxu0
        %7349 = vmatprep.mubr.f32.mxu0 0.0
        %7350 = vmatmul.mubr.f32.gmra.mxu0 %v7088
        %v7351 = vpop.f32.mrf.mxu0
        %v7352 = vadd.f32 0.0, %v7351
        %v7353 = vpop.f32.mrf.mxu0
        %7354 = vdwg.mxu0
        %v7355 = vadd.f32 %v6886, %v7157
        %v7356 = vadd.f32 %v6887, %v7162
        %v7357 = vadd.f32 %v6888, %v7167
        %v7358 = vadd.f32 %v6889, %v7172
        %v7359 = vadd.f32 %v6890, %v7177
        %v7360 = vadd.f32 %v6891, %v7182
        %v7361 = vadd.f32 %v6892, %v7187
        %v7362 = vadd.f32 %v6893, %v7192
        %v7363 = vadd.f32 %v6894, %v7197
        %v7364 = vadd.f32 %v6895, %v7202
        %v7365 = vadd.f32 %v6896, %v7207
        %v7366 = vadd.f32 %v6897, %v7212
        %v7367 = vadd.f32 %v6898, %v7217
        %v7368 = vadd.f32 %v6899, %v7222
        %v7369 = vadd.f32 %v6900, %v7227
        %v7370 = vadd.f32 %v6901, %v7232
        %v7371 = vadd.f32 %v6902, %v7237
        %v7372 = vadd.f32 %v6903, %v7242
        %v7373 = vadd.f32 %v6904, %v7247
        %v7374 = vadd.f32 %v6905, %v7252
        %v7375 = vadd.f32 %v6906, %v7257
        %v7376 = vadd.f32 %v6907, %v7262
        %v7377 = vadd.f32 %v6908, %v7267
        %v7378 = vadd.f32 %v6909, %v7272
        %v7379 = vadd.f32 %v6910, %v7277
        %v7380 = vadd.f32 %v6911, %v7282
        %v7381 = vadd.f32 %v6912, %v7287
        %v7382 = vadd.f32 %v6913, %v7292
        %v7383 = vadd.f32 %v6914, %v7297
        %v7384 = vadd.f32 %v6915, %v7302
        %v7385 = vadd.f32 %v6916, %v7307
        %v7386 = vadd.f32 %v6917, %v7312
        %v7387 = vadd.f32 %v6918, %v7317
        %v7388 = vadd.f32 %v6919, %v7322
        %v7389 = vadd.f32 %v6920, %v7327
        %v7390 = vadd.f32 %v6921, %v7332
        %v7391 = vadd.f32 %v6922, %v7337
        %v7392 = vadd.f32 %v6923, %v7342
        %v7393 = vadd.f32 %v6924, %v7347
        %v7394 = vadd.f32 %v6925, %v7352
        %v7395 = vld [vmem:[%s4] sm:$0x1]
        %v7397 = vlaneseq
        %v7398 = vshrl.u32 %v7397, 7
        %v7399 = vsub.s32 0, %v7398
        %v7400 = vrot.slane %v7395, %v7399
        %v7402 = vadd.f32 %v7355, %v7400
        %v7403 = vadd.f32 %v7356, %v7400
        %v7404 = vadd.f32 %v7357, %v7400
        %v7405 = vadd.f32 %v7358, %v7400
        %v7406 = vadd.f32 %v7359, %v7400
        %v7407 = vadd.f32 %v7360, %v7400
        %v7408 = vadd.f32 %v7361, %v7400
        %v7409 = vadd.f32 %v7362, %v7400
        %v7410 = vadd.f32 %v7363, %v7400
        %v7411 = vadd.f32 %v7364, %v7400
        %v7412 = vadd.f32 %v7365, %v7400
        %v7413 = vadd.f32 %v7366, %v7400
        %v7414 = vadd.f32 %v7367, %v7400
        %v7415 = vadd.f32 %v7368, %v7400
        %v7416 = vadd.f32 %v7369, %v7400
        %v7417 = vadd.f32 %v7370, %v7400
        %v7418 = vadd.f32 %v7371, %v7400
        %v7419 = vadd.f32 %v7372, %v7400
        %v7420 = vadd.f32 %v7373, %v7400
        %v7421 = vadd.f32 %v7374, %v7400
        %v7422 = vadd.f32 %v7375, %v7400
        %v7423 = vadd.f32 %v7376, %v7400
        %v7424 = vadd.f32 %v7377, %v7400
        %v7425 = vadd.f32 %v7378, %v7400
        %v7426 = vadd.f32 %v7379, %v7400
        %v7427 = vadd.f32 %v7380, %v7400
        %v7428 = vadd.f32 %v7381, %v7400
        %v7429 = vadd.f32 %v7382, %v7400
        %v7430 = vadd.f32 %v7383, %v7400
        %v7431 = vadd.f32 %v7384, %v7400
        %v7432 = vadd.f32 %v7385, %v7400
        %v7433 = vadd.f32 %v7386, %v7400
        %v7434 = vadd.f32 %v7387, %v7400
        %v7435 = vadd.f32 %v7388, %v7400
        %v7436 = vadd.f32 %v7389, %v7400
        %v7437 = vadd.f32 %v7390, %v7400
        %v7438 = vadd.f32 %v7391, %v7400
        %v7439 = vadd.f32 %v7392, %v7400
        %v7440 = vadd.f32 %v7393, %v7400
        %v7441 = vadd.f32 %v7394, %v7400
        %v7442 = vmax.f32 %v7402, 0.0
        %v7443 = vmax.f32 %v7403, 0.0
        %v7444 = vmax.f32 %v7404, 0.0
        %v7445 = vmax.f32 %v7405, 0.0
        %v7446 = vmax.f32 %v7406, 0.0
        %v7447 = vmax.f32 %v7407, 0.0
        %v7448 = vmax.f32 %v7408, 0.0
        %v7449 = vmax.f32 %v7409, 0.0
        %v7450 = vmax.f32 %v7410, 0.0
        %v7451 = vmax.f32 %v7411, 0.0
        %v7452 = vmax.f32 %v7412, 0.0
        %v7453 = vmax.f32 %v7413, 0.0
        %v7454 = vmax.f32 %v7414, 0.0
        %v7455 = vmax.f32 %v7415, 0.0
        %v7456 = vmax.f32 %v7416, 0.0
        %v7457 = vmax.f32 %v7417, 0.0
        %v7458 = vmax.f32 %v7418, 0.0
        %v7459 = vmax.f32 %v7419, 0.0
        %v7460 = vmax.f32 %v7420, 0.0
        %v7461 = vmax.f32 %v7421, 0.0
        %v7462 = vmax.f32 %v7422, 0.0
        %v7463 = vmax.f32 %v7423, 0.0
        %v7464 = vmax.f32 %v7424, 0.0
        %v7465 = vmax.f32 %v7425, 0.0
        %v7466 = vmax.f32 %v7426, 0.0
        %v7467 = vmax.f32 %v7427, 0.0
        %v7468 = vmax.f32 %v7428, 0.0
        %v7469 = vmax.f32 %v7429, 0.0
        %v7470 = vmax.f32 %v7430, 0.0
        %v7471 = vmax.f32 %v7431, 0.0
        %v7472 = vmax.f32 %v7432, 0.0
        %v7473 = vmax.f32 %v7433, 0.0
        %v7474 = vmax.f32 %v7434, 0.0
        %v7475 = vmax.f32 %v7435, 0.0
        %v7476 = vmax.f32 %v7436, 0.0
        %v7477 = vmax.f32 %v7437, 0.0
        %v7478 = vmax.f32 %v7438, 0.0
        %v7479 = vmax.f32 %v7439, 0.0
        %v7480 = vmax.f32 %v7440, 0.0
        %v7481 = vmax.f32 %v7441, 0.0
        %7522 = vrot.lane.b32.xlu0 %v7442, 112
        %v7523 = vpop.permute.xlu0 %7522
        %7524 = vrot.lane.b32.xlu0 %v7443, 112
        %v7525 = vpop.permute.xlu0 %7524
        %7526 = vrot.lane.b32.xlu0 %v7444, 112
        %v7527 = vpop.permute.xlu0 %7526
        %7528 = vrot.lane.b32.xlu0 %v7445, 112
        %v7529 = vpop.permute.xlu0 %7528
        %7530 = vrot.lane.b32.xlu0 %v7446, 112
        %v7531 = vpop.permute.xlu0 %7530
        %7532 = vrot.lane.b32.xlu0 %v7447, 112
        %v7533 = vpop.permute.xlu0 %7532
        %7534 = vrot.lane.b32.xlu0 %v7448, 112
        %v7535 = vpop.permute.xlu0 %7534
        %7536 = vrot.lane.b32.xlu0 %v7449, 112
        %v7537 = vpop.permute.xlu0 %7536
        %7538 = vrot.lane.b32.xlu0 %v7450, 112
        %v7539 = vpop.permute.xlu0 %7538
        %7540 = vrot.lane.b32.xlu0 %v7451, 112
        %v7541 = vpop.permute.xlu0 %7540
        %7542 = vrot.lane.b32.xlu0 %v7452, 112
        %v7543 = vpop.permute.xlu0 %7542
        %7544 = vrot.lane.b32.xlu0 %v7453, 112
        %v7545 = vpop.permute.xlu0 %7544
        %7546 = vrot.lane.b32.xlu0 %v7454, 112
        %v7547 = vpop.permute.xlu0 %7546
        %7548 = vrot.lane.b32.xlu0 %v7455, 112
        %v7549 = vpop.permute.xlu0 %7548
        %7550 = vrot.lane.b32.xlu0 %v7456, 112
        %v7551 = vpop.permute.xlu0 %7550
        %7552 = vrot.lane.b32.xlu0 %v7457, 112
        %v7553 = vpop.permute.xlu0 %7552
        %7554 = vrot.lane.b32.xlu0 %v7458, 112
        %v7555 = vpop.permute.xlu0 %7554
        %7556 = vrot.lane.b32.xlu0 %v7459, 112
        %v7557 = vpop.permute.xlu0 %7556
        %7558 = vrot.lane.b32.xlu0 %v7460, 112
        %v7559 = vpop.permute.xlu0 %7558
        %7560 = vrot.lane.b32.xlu0 %v7461, 112
        %v7561 = vpop.permute.xlu0 %7560
        %7562 = vrot.lane.b32.xlu0 %v7462, 112
        %v7563 = vpop.permute.xlu0 %7562
        %7564 = vrot.lane.b32.xlu0 %v7463, 112
        %v7565 = vpop.permute.xlu0 %7564
        %7566 = vrot.lane.b32.xlu0 %v7464, 112
        %v7567 = vpop.permute.xlu0 %7566
        %7568 = vrot.lane.b32.xlu0 %v7465, 112
        %v7569 = vpop.permute.xlu0 %7568
        %7570 = vrot.lane.b32.xlu0 %v7466, 112
        %v7571 = vpop.permute.xlu0 %7570
        %7572 = vrot.lane.b32.xlu0 %v7467, 112
        %v7573 = vpop.permute.xlu0 %7572
        %7574 = vrot.lane.b32.xlu0 %v7468, 112
        %v7575 = vpop.permute.xlu0 %7574
        %7576 = vrot.lane.b32.xlu0 %v7469, 112
        %v7577 = vpop.permute.xlu0 %7576
        %7578 = vrot.lane.b32.xlu0 %v7470, 112
        %v7579 = vpop.permute.xlu0 %7578
        %7580 = vrot.lane.b32.xlu0 %v7471, 112
        %v7581 = vpop.permute.xlu0 %7580
        %7582 = vrot.lane.b32.xlu0 %v7472, 112
        %v7583 = vpop.permute.xlu0 %7582
        %7584 = vrot.lane.b32.xlu0 %v7473, 112
        %v7585 = vpop.permute.xlu0 %7584
        %7586 = vrot.lane.b32.xlu0 %v7474, 112
        %v7587 = vpop.permute.xlu0 %7586
        %7588 = vrot.lane.b32.xlu0 %v7475, 112
        %v7589 = vpop.permute.xlu0 %7588
        %7590 = vrot.lane.b32.xlu0 %v7476, 112
        %v7591 = vpop.permute.xlu0 %7590
        %7592 = vrot.lane.b32.xlu0 %v7477, 112
        %v7593 = vpop.permute.xlu0 %7592
        %7594 = vrot.lane.b32.xlu0 %v7478, 112
        %v7595 = vpop.permute.xlu0 %7594
        %7596 = vrot.lane.b32.xlu0 %v7479, 112
        %v7597 = vpop.permute.xlu0 %7596
        %7598 = vrot.lane.b32.xlu0 %v7480, 112
        %v7599 = vpop.permute.xlu0 %7598
        %7600 = vrot.lane.b32.xlu0 %v7481, 112
        %v7601 = vpop.permute.xlu0 %7600
        %v7642 = vmax.f32 %v7442, %v7523
        %v7643 = vmax.f32 %v7443, %v7525
        %v7644 = vmax.f32 %v7444, %v7527
        %v7645 = vmax.f32 %v7445, %v7529
        %v7646 = vmax.f32 %v7446, %v7531
        %v7647 = vmax.f32 %v7447, %v7533
        %v7648 = vmax.f32 %v7448, %v7535
        %v7649 = vmax.f32 %v7449, %v7537
        %v7650 = vmax.f32 %v7450, %v7539
        %v7651 = vmax.f32 %v7451, %v7541
        %v7652 = vmax.f32 %v7452, %v7543
        %v7653 = vmax.f32 %v7453, %v7545
        %v7654 = vmax.f32 %v7454, %v7547
        %v7655 = vmax.f32 %v7455, %v7549
        %v7656 = vmax.f32 %v7456, %v7551
        %v7657 = vmax.f32 %v7457, %v7553
        %v7658 = vmax.f32 %v7458, %v7555
        %v7659 = vmax.f32 %v7459, %v7557
        %v7660 = vmax.f32 %v7460, %v7559
        %v7661 = vmax.f32 %v7461, %v7561
        %v7662 = vmax.f32 %v7462, %v7563
        %v7663 = vmax.f32 %v7463, %v7565
        %v7664 = vmax.f32 %v7464, %v7567
        %v7665 = vmax.f32 %v7465, %v7569
        %v7666 = vmax.f32 %v7466, %v7571
        %v7667 = vmax.f32 %v7467, %v7573
        %v7668 = vmax.f32 %v7468, %v7575
        %v7669 = vmax.f32 %v7469, %v7577
        %v7670 = vmax.f32 %v7470, %v7579
        %v7671 = vmax.f32 %v7471, %v7581
        %v7672 = vmax.f32 %v7472, %v7583
        %v7673 = vmax.f32 %v7473, %v7585
        %v7674 = vmax.f32 %v7474, %v7587
        %v7675 = vmax.f32 %v7475, %v7589
        %v7676 = vmax.f32 %v7476, %v7591
        %v7677 = vmax.f32 %v7477, %v7593
        %v7678 = vmax.f32 %v7478, %v7595
        %v7679 = vmax.f32 %v7479, %v7597
        %v7680 = vmax.f32 %v7480, %v7599
        %v7681 = vmax.f32 %v7481, %v7601
        %7722 = vrot.lane.b32.xlu0 %v7642, 96
        %v7723 = vpop.permute.xlu0 %7722
        %7724 = vrot.lane.b32.xlu0 %v7643, 96
        %v7725 = vpop.permute.xlu0 %7724
        %7726 = vrot.lane.b32.xlu0 %v7644, 96
        %v7727 = vpop.permute.xlu0 %7726
        %7728 = vrot.lane.b32.xlu0 %v7645, 96
        %v7729 = vpop.permute.xlu0 %7728
        %7730 = vrot.lane.b32.xlu0 %v7646, 96
        %v7731 = vpop.permute.xlu0 %7730
        %7732 = vrot.lane.b32.xlu0 %v7647, 96
        %v7733 = vpop.permute.xlu0 %7732
        %7734 = vrot.lane.b32.xlu0 %v7648, 96
        %v7735 = vpop.permute.xlu0 %7734
        %7736 = vrot.lane.b32.xlu0 %v7649, 96
        %v7737 = vpop.permute.xlu0 %7736
        %7738 = vrot.lane.b32.xlu0 %v7650, 96
        %v7739 = vpop.permute.xlu0 %7738
        %7740 = vrot.lane.b32.xlu0 %v7651, 96
        %v7741 = vpop.permute.xlu0 %7740
        %7742 = vrot.lane.b32.xlu0 %v7652, 96
        %v7743 = vpop.permute.xlu0 %7742
        %7744 = vrot.lane.b32.xlu0 %v7653, 96
        %v7745 = vpop.permute.xlu0 %7744
        %7746 = vrot.lane.b32.xlu0 %v7654, 96
        %v7747 = vpop.permute.xlu0 %7746
        %7748 = vrot.lane.b32.xlu0 %v7655, 96
        %v7749 = vpop.permute.xlu0 %7748
        %7750 = vrot.lane.b32.xlu0 %v7656, 96
        %v7751 = vpop.permute.xlu0 %7750
        %7752 = vrot.lane.b32.xlu0 %v7657, 96
        %v7753 = vpop.permute.xlu0 %7752
        %7754 = vrot.lane.b32.xlu0 %v7658, 96
        %v7755 = vpop.permute.xlu0 %7754
        %7756 = vrot.lane.b32.xlu0 %v7659, 96
        %v7757 = vpop.permute.xlu0 %7756
        %7758 = vrot.lane.b32.xlu0 %v7660, 96
        %v7759 = vpop.permute.xlu0 %7758
        %7760 = vrot.lane.b32.xlu0 %v7661, 96
        %v7761 = vpop.permute.xlu0 %7760
        %7762 = vrot.lane.b32.xlu0 %v7662, 96
        %v7763 = vpop.permute.xlu0 %7762
        %7764 = vrot.lane.b32.xlu0 %v7663, 96
        %v7765 = vpop.permute.xlu0 %7764
        %7766 = vrot.lane.b32.xlu0 %v7664, 96
        %v7767 = vpop.permute.xlu0 %7766
        %7768 = vrot.lane.b32.xlu0 %v7665, 96
        %v7769 = vpop.permute.xlu0 %7768
        %7770 = vrot.lane.b32.xlu0 %v7666, 96
        %v7771 = vpop.permute.xlu0 %7770
        %7772 = vrot.lane.b32.xlu0 %v7667, 96
        %v7773 = vpop.permute.xlu0 %7772
        %7774 = vrot.lane.b32.xlu0 %v7668, 96
        %v7775 = vpop.permute.xlu0 %7774
        %7776 = vrot.lane.b32.xlu0 %v7669, 96
        %v7777 = vpop.permute.xlu0 %7776
        %7778 = vrot.lane.b32.xlu0 %v7670, 96
        %v7779 = vpop.permute.xlu0 %7778
        %7780 = vrot.lane.b32.xlu0 %v7671, 96
        %v7781 = vpop.permute.xlu0 %7780
        %7782 = vrot.lane.b32.xlu0 %v7672, 96
        %v7783 = vpop.permute.xlu0 %7782
        %7784 = vrot.lane.b32.xlu0 %v7673, 96
        %v7785 = vpop.permute.xlu0 %7784
        %7786 = vrot.lane.b32.xlu0 %v7674, 96
        %v7787 = vpop.permute.xlu0 %7786
        %7788 = vrot.lane.b32.xlu0 %v7675, 96
        %v7789 = vpop.permute.xlu0 %7788
        %7790 = vrot.lane.b32.xlu0 %v7676, 96
        %v7791 = vpop.permute.xlu0 %7790
        %7792 = vrot.lane.b32.xlu0 %v7677, 96
        %v7793 = vpop.permute.xlu0 %7792
        %7794 = vrot.lane.b32.xlu0 %v7678, 96
        %v7795 = vpop.permute.xlu0 %7794
        %7796 = vrot.lane.b32.xlu0 %v7679, 96
        %v7797 = vpop.permute.xlu0 %7796
        %7798 = vrot.lane.b32.xlu0 %v7680, 96
        %v7799 = vpop.permute.xlu0 %7798
        %7800 = vrot.lane.b32.xlu0 %v7681, 96
        %v7801 = vpop.permute.xlu0 %7800
        %v7842 = vmax.f32 %v7642, %v7723
        %v7843 = vmax.f32 %v7643, %v7725
        %v7844 = vmax.f32 %v7644, %v7727
        %v7845 = vmax.f32 %v7645, %v7729
        %v7846 = vmax.f32 %v7646, %v7731
        %v7847 = vmax.f32 %v7647, %v7733
        %v7848 = vmax.f32 %v7648, %v7735
        %v7849 = vmax.f32 %v7649, %v7737
        %v7850 = vmax.f32 %v7650, %v7739
        %v7851 = vmax.f32 %v7651, %v7741
        %v7852 = vmax.f32 %v7652, %v7743
        %v7853 = vmax.f32 %v7653, %v7745
        %v7854 = vmax.f32 %v7654, %v7747
        %v7855 = vmax.f32 %v7655, %v7749
        %v7856 = vmax.f32 %v7656, %v7751
        %v7857 = vmax.f32 %v7657, %v7753
        %v7858 = vmax.f32 %v7658, %v7755
        %v7859 = vmax.f32 %v7659, %v7757
        %v7860 = vmax.f32 %v7660, %v7759
        %v7861 = vmax.f32 %v7661, %v7761
        %v7862 = vmax.f32 %v7662, %v7763
        %v7863 = vmax.f32 %v7663, %v7765
        %v7864 = vmax.f32 %v7664, %v7767
        %v7865 = vmax.f32 %v7665, %v7769
        %v7866 = vmax.f32 %v7666, %v7771
        %v7867 = vmax.f32 %v7667, %v7773
        %v7868 = vmax.f32 %v7668, %v7775
        %v7869 = vmax.f32 %v7669, %v7777
        %v7870 = vmax.f32 %v7670, %v7779
        %v7871 = vmax.f32 %v7671, %v7781
        %v7872 = vmax.f32 %v7672, %v7783
        %v7873 = vmax.f32 %v7673, %v7785
        %v7874 = vmax.f32 %v7674, %v7787
        %v7875 = vmax.f32 %v7675, %v7789
        %v7876 = vmax.f32 %v7676, %v7791
        %v7877 = vmax.f32 %v7677, %v7793
        %v7878 = vmax.f32 %v7678, %v7795
        %v7879 = vmax.f32 %v7679, %v7797
        %v7880 = vmax.f32 %v7680, %v7799
        %v7881 = vmax.f32 %v7681, %v7801
        %vm7882 = vcmask 130048
        %7883 = vst.msk [vmem:[#allocation3] sm:$0xff] %vm7882, %v7842
        %7884 = vst.msk [vmem:[#allocation3 + $0x8] sm:$0xff] %vm7882, %v7843
        %7885 = vst.msk [vmem:[#allocation3 + $0x10] sm:$0xff] %vm7882, %v7844
        %7886 = vst.msk [vmem:[#allocation3 + $0x18] sm:$0xff] %vm7882, %v7845
        %7887 = vst.msk [vmem:[#allocation3 + $0x20] sm:$0xff] %vm7882, %v7846
        %7888 = vst.msk [vmem:[#allocation3 + $0x28] sm:$0xff] %vm7882, %v7847
        %7889 = vst.msk [vmem:[#allocation3 + $0x30] sm:$0xff] %vm7882, %v7848
        %7890 = vst.msk [vmem:[#allocation3 + $0x38] sm:$0xff] %vm7882, %v7849
        %7891 = vst.msk [vmem:[#allocation3 + $0x40] sm:$0xff] %vm7882, %v7850
        %7892 = vst.msk [vmem:[#allocation3 + $0x48] sm:$0xff] %vm7882, %v7851
        %7893 = vst.msk [vmem:[#allocation3 + $0x50] sm:$0xff] %vm7882, %v7852
        %7894 = vst.msk [vmem:[#allocation3 + $0x58] sm:$0xff] %vm7882, %v7853
        %7895 = vst.msk [vmem:[#allocation3 + $0x60] sm:$0xff] %vm7882, %v7854
        %7896 = vst.msk [vmem:[#allocation3 + $0x68] sm:$0xff] %vm7882, %v7855
        %7897 = vst.msk [vmem:[#allocation3 + $0x70] sm:$0xff] %vm7882, %v7856
        %7898 = vst.msk [vmem:[#allocation3 + $0x78] sm:$0xff] %vm7882, %v7857
        %7899 = vst.msk [vmem:[#allocation3 + $0x80] sm:$0xff] %vm7882, %v7858
        %7900 = vst.msk [vmem:[#allocation3 + $0x88] sm:$0xff] %vm7882, %v7859
        %7901 = vst.msk [vmem:[#allocation3 + $0x90] sm:$0xff] %vm7882, %v7860
        %7902 = vst.msk [vmem:[#allocation3 + $0x98] sm:$0xff] %vm7882, %v7861
        %7903 = vst.msk [vmem:[#allocation3 + $0xa0] sm:$0xff] %vm7882, %v7862
        %7904 = vst.msk [vmem:[#allocation3 + $0xa8] sm:$0xff] %vm7882, %v7863
        %7905 = vst.msk [vmem:[#allocation3 + $0xb0] sm:$0xff] %vm7882, %v7864
        %7906 = vst.msk [vmem:[#allocation3 + $0xb8] sm:$0xff] %vm7882, %v7865
        %7907 = vst.msk [vmem:[#allocation3 + $0xc0] sm:$0xff] %vm7882, %v7866
        %7908 = vst.msk [vmem:[#allocation3 + $0xc8] sm:$0xff] %vm7882, %v7867
        %7909 = vst.msk [vmem:[#allocation3 + $0xd0] sm:$0xff] %vm7882, %v7868
        %7910 = vst.msk [vmem:[#allocation3 + $0xd8] sm:$0xff] %vm7882, %v7869
        %7911 = vst.msk [vmem:[#allocation3 + $0xe0] sm:$0xff] %vm7882, %v7870
        %7912 = vst.msk [vmem:[#allocation3 + $0xe8] sm:$0xff] %vm7882, %v7871
        %7913 = vst.msk [vmem:[#allocation3 + $0xf0] sm:$0xff] %vm7882, %v7872
        %7914 = vst.msk [vmem:[#allocation3 + $0xf8] sm:$0xff] %vm7882, %v7873
        %7915 = vst.msk [vmem:[#allocation3 + $0x100] sm:$0xff] %vm7882, %v7874
        %7916 = vst.msk [vmem:[#allocation3 + $0x108] sm:$0xff] %vm7882, %v7875
        %7917 = vst.msk [vmem:[#allocation3 + $0x110] sm:$0xff] %vm7882, %v7876
        %7918 = vst.msk [vmem:[#allocation3 + $0x118] sm:$0xff] %vm7882, %v7877
        %7919 = vst.msk [vmem:[#allocation3 + $0x120] sm:$0xff] %vm7882, %v7878
        %7920 = vst.msk [vmem:[#allocation3 + $0x128] sm:$0xff] %vm7882, %v7879
        %7921 = vst.msk [vmem:[#allocation3 + $0x130] sm:$0xff] %vm7882, %v7880
        %7922 = vst.msk [vmem:[#allocation3 + $0x138] sm:$0xff] %vm7882, %v7881
        %v7923 = vld [vmem:[#allocation3] sm:$0xff]
        %v7924 = vld [vmem:[%s5] sm:$0xff]
        %v7925 = vld [vmem:[%s5 + $0x8] sm:$0xff]
        %v7926 = vld [vmem:[#allocation3 + $0x8] sm:$0xff]
        %s7927 = scalar_lea.vmem %s5, 16
        %v7928 = vld [vmem:[%s7927] sm:$0xff]
        %v7929 = vld [vmem:[%s7927 + $0x8] sm:$0xff]
        %v7931 = vsel %vm7882, %v7926, 0
        %7933 = vmatprep.subr.mxu0 0.0
        %7934 = vmatpush1.msra.mxu0 0.0
        %7935 = vmatprep.subr.mxu0 0.0
        %7936 = vmatpush1.msra.mxu0 0.0
        %7937 = vmatprep.subr.mxu0 0.0
        %7938 = vmatpush1.msra.mxu0 0.0
        %7939 = vmatprep.subr.mxu0 0.0
        %7940 = vmatpush1.msra.mxu0 0.0
        %7941 = vmatprep.subr.mxu0 0.0
        %7942 = vmatpush1.msra.mxu0 0.0
        %7943 = vmatprep.subr.mxu0 0.0
        %7944 = vmatpush1.msra.mxu0 0.0
        %7945 = vmatprep.subr.mxu0 0.0
        %7946 = vmatpush1.msra.mxu0 0.0
        %7947 = vmatprep.subr.mxu0 0.0
        %7948 = vmatpush1.msra.mxu0 0.0
        %7949 = vmatprep.subr.mxu0 0.0
        %7950 = vmatpush1.msra.mxu0 0.0
        %7951 = vmatprep.subr.mxu0 0.0
        %7952 = vmatpush1.msra.mxu0 0.0
        %7953 = vmatprep.subr.mxu0 0.0
        %7954 = vmatpush1.msra.mxu0 0.0
        %7955 = vmatprep.subr.mxu0 0.0
        %7956 = vmatpush1.msra.mxu0 0.0
        %7957 = vmatprep.subr.mxu0 0.0
        %7958 = vmatpush1.msra.mxu0 0.0
        %7959 = vmatprep.subr.mxu0 0.0
        %7960 = vmatpush1.msra.mxu0 0.0
        %7961 = vmatprep.subr.mxu0 0.0
        %7962 = vmatpush1.msra.mxu0 %v7929
        %7963 = vmatprep.subr.mxu0 0.0
        %7964 = vmatpush1.msra.mxu0 %v7928
        %7965 = vmatprep.subr.mxu0 0.0
        %7966 = vmatpush2.msra.mxu0 0.0
        %7967 = vmatprep.subr.mxu0 0.0
        %7968 = vmatpush2.msra.mxu0 0.0
        %7969 = vmatprep.subr.mxu0 0.0
        %7970 = vmatpush2.msra.mxu0 0.0
        %7971 = vmatprep.subr.mxu0 0.0
        %7972 = vmatpush2.msra.mxu0 0.0
        %7973 = vmatprep.subr.mxu0 0.0
        %7974 = vmatpush2.msra.mxu0 0.0
        %7975 = vmatprep.subr.mxu0 0.0
        %7976 = vmatpush2.msra.mxu0 0.0
        %7977 = vmatprep.subr.mxu0 0.0
        %7978 = vmatpush2.msra.mxu0 0.0
        %7979 = vmatprep.subr.mxu0 0.0
        %7980 = vmatpush2.msra.mxu0 0.0
        %7981 = vmatprep.subr.mxu0 0.0
        %7982 = vmatpush2.msra.mxu0 0.0
        %7983 = vmatprep.subr.mxu0 0.0
        %7984 = vmatpush2.msra.mxu0 0.0
        %7985 = vmatprep.subr.mxu0 0.0
        %7986 = vmatpush2.msra.mxu0 0.0
        %7987 = vmatprep.subr.mxu0 0.0
        %7988 = vmatpush2.msra.mxu0 0.0
        %7989 = vmatprep.subr.mxu0 0.0
        %7990 = vmatpush2.msra.mxu0 0.0
        %7991 = vmatprep.subr.mxu0 0.0
        %7992 = vmatpush2.msra.mxu0 0.0
        %7993 = vmatprep.subr.mxu0 0.0
        %7994 = vmatpush2.msra.mxu0 0.0
        %7995 = vmatprep.subr.mxu0 0.0
        %7996 = vmatpush2.msra.mxu0 0.0
        %7997 = vmatprep.mubr.f32.mxu0 0.0
        %7998 = vmatmul.mubr.f32.gmra.mxu0 %v7931
        %v7999 = vpop.f32.mrf.mxu0
        %v8000 = vadd.f32 0.0, %v7999
        %v8001 = vpop.f32.mrf.mxu0
        %8002 = vdwg.mxu0
        %v8004 = vsel %vm7882, %v7923, 0
        %8006 = vmatprep.subr.mxu0 0.0
        %8007 = vmatpush1.msra.mxu0 0.0
        %8008 = vmatprep.subr.mxu0 0.0
        %8009 = vmatpush1.msra.mxu0 0.0
        %8010 = vmatprep.subr.mxu0 0.0
        %8011 = vmatpush1.msra.mxu0 0.0
        %8012 = vmatprep.subr.mxu0 0.0
        %8013 = vmatpush1.msra.mxu0 0.0
        %8014 = vmatprep.subr.mxu0 0.0
        %8015 = vmatpush1.msra.mxu0 0.0
        %8016 = vmatprep.subr.mxu0 0.0
        %8017 = vmatpush1.msra.mxu0 0.0
        %8018 = vmatprep.subr.mxu0 0.0
        %8019 = vmatpush1.msra.mxu0 0.0
        %8020 = vmatprep.subr.mxu0 0.0
        %8021 = vmatpush1.msra.mxu0 0.0
        %8022 = vmatprep.subr.mxu0 0.0
        %8023 = vmatpush1.msra.mxu0 0.0
        %8024 = vmatprep.subr.mxu0 0.0
        %8025 = vmatpush1.msra.mxu0 0.0
        %8026 = vmatprep.subr.mxu0 0.0
        %8027 = vmatpush1.msra.mxu0 0.0
        %8028 = vmatprep.subr.mxu0 0.0
        %8029 = vmatpush1.msra.mxu0 0.0
        %8030 = vmatprep.subr.mxu0 0.0
        %8031 = vmatpush1.msra.mxu0 0.0
        %8032 = vmatprep.subr.mxu0 0.0
        %8033 = vmatpush1.msra.mxu0 0.0
        %8034 = vmatprep.subr.mxu0 0.0
        %8035 = vmatpush1.msra.mxu0 %v7925
        %8036 = vmatprep.subr.mxu0 0.0
        %8037 = vmatpush1.msra.mxu0 %v7924
        %8038 = vmatprep.subr.mxu0 0.0
        %8039 = vmatpush2.msra.mxu0 0.0
        %8040 = vmatprep.subr.mxu0 0.0
        %8041 = vmatpush2.msra.mxu0 0.0
        %8042 = vmatprep.subr.mxu0 0.0
        %8043 = vmatpush2.msra.mxu0 0.0
        %8044 = vmatprep.subr.mxu0 0.0
        %8045 = vmatpush2.msra.mxu0 0.0
        %8046 = vmatprep.subr.mxu0 0.0
        %8047 = vmatpush2.msra.mxu0 0.0
        %8048 = vmatprep.subr.mxu0 0.0
        %8049 = vmatpush2.msra.mxu0 0.0
        %8050 = vmatprep.subr.mxu0 0.0
        %8051 = vmatpush2.msra.mxu0 0.0
        %8052 = vmatprep.subr.mxu0 0.0
        %8053 = vmatpush2.msra.mxu0 0.0
        %8054 = vmatprep.subr.mxu0 0.0
        %8055 = vmatpush2.msra.mxu0 0.0
        %8056 = vmatprep.subr.mxu0 0.0
        %8057 = vmatpush2.msra.mxu0 0.0
        %8058 = vmatprep.subr.mxu0 0.0
        %8059 = vmatpush2.msra.mxu0 0.0
        %8060 = vmatprep.subr.mxu0 0.0
        %8061 = vmatpush2.msra.mxu0 0.0
        %8062 = vmatprep.subr.mxu0 0.0
        %8063 = vmatpush2.msra.mxu0 0.0
        %8064 = vmatprep.subr.mxu0 0.0
        %8065 = vmatpush2.msra.mxu0 0.0
        %8066 = vmatprep.subr.mxu0 0.0
        %8067 = vmatpush2.msra.mxu0 0.0
        %8068 = vmatprep.subr.mxu0 0.0
        %8069 = vmatpush2.msra.mxu0 0.0
        %8070 = vmatprep.mubr.f32.mxu0 0.0
        %8071 = vmatmul.mubr.f32.gmra.mxu0 %v8004
        %v8072 = vpop.f32.mrf.mxu0
        %v8073 = vadd.f32 %v8000, %v8072
        %v8074 = vpop.f32.mrf.mxu0
        %8075 = vdwg.mxu0
        %v8076 = vld [vmem:[#allocation3 + $0x10] sm:$0xff]
        %s8077 = scalar_lea.vmem %s5, 32
        %v8078 = vld [vmem:[%s8077] sm:$0xff]
        %v8079 = vld [vmem:[%s8077 + $0x8] sm:$0xff]
        %v8081 = vsel %vm7882, %v8076, 0
        %8083 = vmatprep.subr.mxu0 0.0
        %8084 = vmatpush1.msra.mxu0 0.0
        %8085 = vmatprep.subr.mxu0 0.0
        %8086 = vmatpush1.msra.mxu0 0.0
        %8087 = vmatprep.subr.mxu0 0.0
        %8088 = vmatpush1.msra.mxu0 0.0
        %8089 = vmatprep.subr.mxu0 0.0
        %8090 = vmatpush1.msra.mxu0 0.0
        %8091 = vmatprep.subr.mxu0 0.0
        %8092 = vmatpush1.msra.mxu0 0.0
        %8093 = vmatprep.subr.mxu0 0.0
        %8094 = vmatpush1.msra.mxu0 0.0
        %8095 = vmatprep.subr.mxu0 0.0
        %8096 = vmatpush1.msra.mxu0 0.0
        %8097 = vmatprep.subr.mxu0 0.0
        %8098 = vmatpush1.msra.mxu0 0.0
        %8099 = vmatprep.subr.mxu0 0.0
        %8100 = vmatpush1.msra.mxu0 0.0
        %8101 = vmatprep.subr.mxu0 0.0
        %8102 = vmatpush1.msra.mxu0 0.0
        %8103 = vmatprep.subr.mxu0 0.0
        %8104 = vmatpush1.msra.mxu0 0.0
        %8105 = vmatprep.subr.mxu0 0.0
        %8106 = vmatpush1.msra.mxu0 0.0
        %8107 = vmatprep.subr.mxu0 0.0
        %8108 = vmatpush1.msra.mxu0 0.0
        %8109 = vmatprep.subr.mxu0 0.0
        %8110 = vmatpush1.msra.mxu0 0.0
        %8111 = vmatprep.subr.mxu0 0.0
        %8112 = vmatpush1.msra.mxu0 %v8079
        %8113 = vmatprep.subr.mxu0 0.0
        %8114 = vmatpush1.msra.mxu0 %v8078
        %8115 = vmatprep.subr.mxu0 0.0
        %8116 = vmatpush2.msra.mxu0 0.0
        %8117 = vmatprep.subr.mxu0 0.0
        %8118 = vmatpush2.msra.mxu0 0.0
        %8119 = vmatprep.subr.mxu0 0.0
        %8120 = vmatpush2.msra.mxu0 0.0
        %8121 = vmatprep.subr.mxu0 0.0
        %8122 = vmatpush2.msra.mxu0 0.0
        %8123 = vmatprep.subr.mxu0 0.0
        %8124 = vmatpush2.msra.mxu0 0.0
        %8125 = vmatprep.subr.mxu0 0.0
        %8126 = vmatpush2.msra.mxu0 0.0
        %8127 = vmatprep.subr.mxu0 0.0
        %8128 = vmatpush2.msra.mxu0 0.0
        %8129 = vmatprep.subr.mxu0 0.0
        %8130 = vmatpush2.msra.mxu0 0.0
        %8131 = vmatprep.subr.mxu0 0.0
        %8132 = vmatpush2.msra.mxu0 0.0
        %8133 = vmatprep.subr.mxu0 0.0
        %8134 = vmatpush2.msra.mxu0 0.0
        %8135 = vmatprep.subr.mxu0 0.0
        %8136 = vmatpush2.msra.mxu0 0.0
        %8137 = vmatprep.subr.mxu0 0.0
        %8138 = vmatpush2.msra.mxu0 0.0
        %8139 = vmatprep.subr.mxu0 0.0
        %8140 = vmatpush2.msra.mxu0 0.0
        %8141 = vmatprep.subr.mxu0 0.0
        %8142 = vmatpush2.msra.mxu0 0.0
        %8143 = vmatprep.subr.mxu0 0.0
        %8144 = vmatpush2.msra.mxu0 0.0
        %8145 = vmatprep.subr.mxu0 0.0
        %8146 = vmatpush2.msra.mxu0 0.0
        %8147 = vmatprep.mubr.f32.mxu0 0.0
        %8148 = vmatmul.mubr.f32.gmra.mxu0 %v8081
        %v8149 = vpop.f32.mrf.mxu0
        %v8150 = vadd.f32 0.0, %v8149
        %v8151 = vpop.f32.mrf.mxu0
        %8152 = vdwg.mxu0
        %v8153 = vadd.f32 %v8073, %v8150
        %v8154 = vld [vmem:[#allocation3 + $0x18] sm:$0xff]
        %s8155 = scalar_lea.vmem %s5, 48
        %v8156 = vld [vmem:[%s8155] sm:$0xff]
        %v8157 = vld [vmem:[%s8155 + $0x8] sm:$0xff]
        %v8159 = vsel %vm7882, %v8154, 0
        %8161 = vmatprep.subr.mxu0 0.0
        %8162 = vmatpush1.msra.mxu0 0.0
        %8163 = vmatprep.subr.mxu0 0.0
        %8164 = vmatpush1.msra.mxu0 0.0
        %8165 = vmatprep.subr.mxu0 0.0
        %8166 = vmatpush1.msra.mxu0 0.0
        %8167 = vmatprep.subr.mxu0 0.0
        %8168 = vmatpush1.msra.mxu0 0.0
        %8169 = vmatprep.subr.mxu0 0.0
        %8170 = vmatpush1.msra.mxu0 0.0
        %8171 = vmatprep.subr.mxu0 0.0
        %8172 = vmatpush1.msra.mxu0 0.0
        %8173 = vmatprep.subr.mxu0 0.0
        %8174 = vmatpush1.msra.mxu0 0.0
        %8175 = vmatprep.subr.mxu0 0.0
        %8176 = vmatpush1.msra.mxu0 0.0
        %8177 = vmatprep.subr.mxu0 0.0
        %8178 = vmatpush1.msra.mxu0 0.0
        %8179 = vmatprep.subr.mxu0 0.0
        %8180 = vmatpush1.msra.mxu0 0.0
        %8181 = vmatprep.subr.mxu0 0.0
        %8182 = vmatpush1.msra.mxu0 0.0
        %8183 = vmatprep.subr.mxu0 0.0
        %8184 = vmatpush1.msra.mxu0 0.0
        %8185 = vmatprep.subr.mxu0 0.0
        %8186 = vmatpush1.msra.mxu0 0.0
        %8187 = vmatprep.subr.mxu0 0.0
        %8188 = vmatpush1.msra.mxu0 0.0
        %8189 = vmatprep.subr.mxu0 0.0
        %8190 = vmatpush1.msra.mxu0 %v8157
        %8191 = vmatprep.subr.mxu0 0.0
        %8192 = vmatpush1.msra.mxu0 %v8156
        %8193 = vmatprep.subr.mxu0 0.0
        %8194 = vmatpush2.msra.mxu0 0.0
        %8195 = vmatprep.subr.mxu0 0.0
        %8196 = vmatpush2.msra.mxu0 0.0
        %8197 = vmatprep.subr.mxu0 0.0
        %8198 = vmatpush2.msra.mxu0 0.0
        %8199 = vmatprep.subr.mxu0 0.0
        %8200 = vmatpush2.msra.mxu0 0.0
        %8201 = vmatprep.subr.mxu0 0.0
        %8202 = vmatpush2.msra.mxu0 0.0
        %8203 = vmatprep.subr.mxu0 0.0
        %8204 = vmatpush2.msra.mxu0 0.0
        %8205 = vmatprep.subr.mxu0 0.0
        %8206 = vmatpush2.msra.mxu0 0.0
        %8207 = vmatprep.subr.mxu0 0.0
        %8208 = vmatpush2.msra.mxu0 0.0
        %8209 = vmatprep.subr.mxu0 0.0
        %8210 = vmatpush2.msra.mxu0 0.0
        %8211 = vmatprep.subr.mxu0 0.0
        %8212 = vmatpush2.msra.mxu0 0.0
        %8213 = vmatprep.subr.mxu0 0.0
        %8214 = vmatpush2.msra.mxu0 0.0
        %8215 = vmatprep.subr.mxu0 0.0
        %8216 = vmatpush2.msra.mxu0 0.0
        %8217 = vmatprep.subr.mxu0 0.0
        %8218 = vmatpush2.msra.mxu0 0.0
        %8219 = vmatprep.subr.mxu0 0.0
        %8220 = vmatpush2.msra.mxu0 0.0
        %8221 = vmatprep.subr.mxu0 0.0
        %8222 = vmatpush2.msra.mxu0 0.0
        %8223 = vmatprep.subr.mxu0 0.0
        %8224 = vmatpush2.msra.mxu0 0.0
        %8225 = vmatprep.mubr.f32.mxu0 0.0
        %8226 = vmatmul.mubr.f32.gmra.mxu0 %v8159
        %v8227 = vpop.f32.mrf.mxu0
        %v8228 = vadd.f32 0.0, %v8227
        %v8229 = vpop.f32.mrf.mxu0
        %8230 = vdwg.mxu0
        %v8231 = vadd.f32 %v8153, %v8228
        %v8232 = vld [vmem:[#allocation3 + $0x20] sm:$0xff]
        %s8233 = scalar_lea.vmem %s5, 64
        %v8234 = vld [vmem:[%s8233] sm:$0xff]
        %v8235 = vld [vmem:[%s8233 + $0x8] sm:$0xff]
        %v8237 = vsel %vm7882, %v8232, 0
        %8239 = vmatprep.subr.mxu0 0.0
        %8240 = vmatpush1.msra.mxu0 0.0
        %8241 = vmatprep.subr.mxu0 0.0
        %8242 = vmatpush1.msra.mxu0 0.0
        %8243 = vmatprep.subr.mxu0 0.0
        %8244 = vmatpush1.msra.mxu0 0.0
        %8245 = vmatprep.subr.mxu0 0.0
        %8246 = vmatpush1.msra.mxu0 0.0
        %8247 = vmatprep.subr.mxu0 0.0
        %8248 = vmatpush1.msra.mxu0 0.0
        %8249 = vmatprep.subr.mxu0 0.0
        %8250 = vmatpush1.msra.mxu0 0.0
        %8251 = vmatprep.subr.mxu0 0.0
        %8252 = vmatpush1.msra.mxu0 0.0
        %8253 = vmatprep.subr.mxu0 0.0
        %8254 = vmatpush1.msra.mxu0 0.0
        %8255 = vmatprep.subr.mxu0 0.0
        %8256 = vmatpush1.msra.mxu0 0.0
        %8257 = vmatprep.subr.mxu0 0.0
        %8258 = vmatpush1.msra.mxu0 0.0
        %8259 = vmatprep.subr.mxu0 0.0
        %8260 = vmatpush1.msra.mxu0 0.0
        %8261 = vmatprep.subr.mxu0 0.0
        %8262 = vmatpush1.msra.mxu0 0.0
        %8263 = vmatprep.subr.mxu0 0.0
        %8264 = vmatpush1.msra.mxu0 0.0
        %8265 = vmatprep.subr.mxu0 0.0
        %8266 = vmatpush1.msra.mxu0 0.0
        %8267 = vmatprep.subr.mxu0 0.0
        %8268 = vmatpush1.msra.mxu0 %v8235
        %8269 = vmatprep.subr.mxu0 0.0
        %8270 = vmatpush1.msra.mxu0 %v8234
        %8271 = vmatprep.subr.mxu0 0.0
        %8272 = vmatpush2.msra.mxu0 0.0
        %8273 = vmatprep.subr.mxu0 0.0
        %8274 = vmatpush2.msra.mxu0 0.0
        %8275 = vmatprep.subr.mxu0 0.0
        %8276 = vmatpush2.msra.mxu0 0.0
        %8277 = vmatprep.subr.mxu0 0.0
        %8278 = vmatpush2.msra.mxu0 0.0
        %8279 = vmatprep.subr.mxu0 0.0
        %8280 = vmatpush2.msra.mxu0 0.0
        %8281 = vmatprep.subr.mxu0 0.0
        %8282 = vmatpush2.msra.mxu0 0.0
        %8283 = vmatprep.subr.mxu0 0.0
        %8284 = vmatpush2.msra.mxu0 0.0
        %8285 = vmatprep.subr.mxu0 0.0
        %8286 = vmatpush2.msra.mxu0 0.0
        %8287 = vmatprep.subr.mxu0 0.0
        %8288 = vmatpush2.msra.mxu0 0.0
        %8289 = vmatprep.subr.mxu0 0.0
        %8290 = vmatpush2.msra.mxu0 0.0
        %8291 = vmatprep.subr.mxu0 0.0
        %8292 = vmatpush2.msra.mxu0 0.0
        %8293 = vmatprep.subr.mxu0 0.0
        %8294 = vmatpush2.msra.mxu0 0.0
        %8295 = vmatprep.subr.mxu0 0.0
        %8296 = vmatpush2.msra.mxu0 0.0
        %8297 = vmatprep.subr.mxu0 0.0
        %8298 = vmatpush2.msra.mxu0 0.0
        %8299 = vmatprep.subr.mxu0 0.0
        %8300 = vmatpush2.msra.mxu0 0.0
        %8301 = vmatprep.subr.mxu0 0.0
        %8302 = vmatpush2.msra.mxu0 0.0
        %8303 = vmatprep.mubr.f32.mxu0 0.0
        %8304 = vmatmul.mubr.f32.gmra.mxu0 %v8237
        %v8305 = vpop.f32.mrf.mxu0
        %v8306 = vadd.f32 0.0, %v8305
        %v8307 = vpop.f32.mrf.mxu0
        %8308 = vdwg.mxu0
        %v8309 = vadd.f32 %v8231, %v8306
        %v8310 = vld [vmem:[#allocation3 + $0x40] sm:$0xff]
        %s8311 = scalar_lea.vmem %s5, 80
        %v8312 = vld [vmem:[%s8311] sm:$0xff]
        %v8313 = vld [vmem:[%s8311 + $0x8] sm:$0xff]
        %v8315 = vsel %vm7882, %v8310, 0
        %8317 = vmatprep.subr.mxu0 0.0
        %8318 = vmatpush1.msra.mxu0 0.0
        %8319 = vmatprep.subr.mxu0 0.0
        %8320 = vmatpush1.msra.mxu0 0.0
        %8321 = vmatprep.subr.mxu0 0.0
        %8322 = vmatpush1.msra.mxu0 0.0
        %8323 = vmatprep.subr.mxu0 0.0
        %8324 = vmatpush1.msra.mxu0 0.0
        %8325 = vmatprep.subr.mxu0 0.0
        %8326 = vmatpush1.msra.mxu0 0.0
        %8327 = vmatprep.subr.mxu0 0.0
        %8328 = vmatpush1.msra.mxu0 0.0
        %8329 = vmatprep.subr.mxu0 0.0
        %8330 = vmatpush1.msra.mxu0 0.0
        %8331 = vmatprep.subr.mxu0 0.0
        %8332 = vmatpush1.msra.mxu0 0.0
        %8333 = vmatprep.subr.mxu0 0.0
        %8334 = vmatpush1.msra.mxu0 0.0
        %8335 = vmatprep.subr.mxu0 0.0
        %8336 = vmatpush1.msra.mxu0 0.0
        %8337 = vmatprep.subr.mxu0 0.0
        %8338 = vmatpush1.msra.mxu0 0.0
        %8339 = vmatprep.subr.mxu0 0.0
        %8340 = vmatpush1.msra.mxu0 0.0
        %8341 = vmatprep.subr.mxu0 0.0
        %8342 = vmatpush1.msra.mxu0 0.0
        %8343 = vmatprep.subr.mxu0 0.0
        %8344 = vmatpush1.msra.mxu0 0.0
        %8345 = vmatprep.subr.mxu0 0.0
        %8346 = vmatpush1.msra.mxu0 %v8313
        %8347 = vmatprep.subr.mxu0 0.0
        %8348 = vmatpush1.msra.mxu0 %v8312
        %8349 = vmatprep.subr.mxu0 0.0
        %8350 = vmatpush2.msra.mxu0 0.0
        %8351 = vmatprep.subr.mxu0 0.0
        %8352 = vmatpush2.msra.mxu0 0.0
        %8353 = vmatprep.subr.mxu0 0.0
        %8354 = vmatpush2.msra.mxu0 0.0
        %8355 = vmatprep.subr.mxu0 0.0
        %8356 = vmatpush2.msra.mxu0 0.0
        %8357 = vmatprep.subr.mxu0 0.0
        %8358 = vmatpush2.msra.mxu0 0.0
        %8359 = vmatprep.subr.mxu0 0.0
        %8360 = vmatpush2.msra.mxu0 0.0
        %8361 = vmatprep.subr.mxu0 0.0
        %8362 = vmatpush2.msra.mxu0 0.0
        %8363 = vmatprep.subr.mxu0 0.0
        %8364 = vmatpush2.msra.mxu0 0.0
        %8365 = vmatprep.subr.mxu0 0.0
        %8366 = vmatpush2.msra.mxu0 0.0
        %8367 = vmatprep.subr.mxu0 0.0
        %8368 = vmatpush2.msra.mxu0 0.0
        %8369 = vmatprep.subr.mxu0 0.0
        %8370 = vmatpush2.msra.mxu0 0.0
        %8371 = vmatprep.subr.mxu0 0.0
        %8372 = vmatpush2.msra.mxu0 0.0
        %8373 = vmatprep.subr.mxu0 0.0
        %8374 = vmatpush2.msra.mxu0 0.0
        %8375 = vmatprep.subr.mxu0 0.0
        %8376 = vmatpush2.msra.mxu0 0.0
        %8377 = vmatprep.subr.mxu0 0.0
        %8378 = vmatpush2.msra.mxu0 0.0
        %8379 = vmatprep.subr.mxu0 0.0
        %8380 = vmatpush2.msra.mxu0 0.0
        %8381 = vmatprep.mubr.f32.mxu0 0.0
        %8382 = vmatmul.mubr.f32.gmra.mxu0 %v8315
        %v8383 = vpop.f32.mrf.mxu0
        %v8384 = vadd.f32 0.0, %v8383
        %v8385 = vpop.f32.mrf.mxu0
        %8386 = vdwg.mxu0
        %v8387 = vadd.f32 %v8309, %v8384
        %v8388 = vld [vmem:[#allocation3 + $0x48] sm:$0xff]
        %s8389 = scalar_lea.vmem %s5, 96
        %v8390 = vld [vmem:[%s8389] sm:$0xff]
        %v8391 = vld [vmem:[%s8389 + $0x8] sm:$0xff]
        %v8393 = vsel %vm7882, %v8388, 0
        %8395 = vmatprep.subr.mxu0 0.0
        %8396 = vmatpush1.msra.mxu0 0.0
        %8397 = vmatprep.subr.mxu0 0.0
        %8398 = vmatpush1.msra.mxu0 0.0
        %8399 = vmatprep.subr.mxu0 0.0
        %8400 = vmatpush1.msra.mxu0 0.0
        %8401 = vmatprep.subr.mxu0 0.0
        %8402 = vmatpush1.msra.mxu0 0.0
        %8403 = vmatprep.subr.mxu0 0.0
        %8404 = vmatpush1.msra.mxu0 0.0
        %8405 = vmatprep.subr.mxu0 0.0
        %8406 = vmatpush1.msra.mxu0 0.0
        %8407 = vmatprep.subr.mxu0 0.0
        %8408 = vmatpush1.msra.mxu0 0.0
        %8409 = vmatprep.subr.mxu0 0.0
        %8410 = vmatpush1.msra.mxu0 0.0
        %8411 = vmatprep.subr.mxu0 0.0
        %8412 = vmatpush1.msra.mxu0 0.0
        %8413 = vmatprep.subr.mxu0 0.0
        %8414 = vmatpush1.msra.mxu0 0.0
        %8415 = vmatprep.subr.mxu0 0.0
        %8416 = vmatpush1.msra.mxu0 0.0
        %8417 = vmatprep.subr.mxu0 0.0
        %8418 = vmatpush1.msra.mxu0 0.0
        %8419 = vmatprep.subr.mxu0 0.0
        %8420 = vmatpush1.msra.mxu0 0.0
        %8421 = vmatprep.subr.mxu0 0.0
        %8422 = vmatpush1.msra.mxu0 0.0
        %8423 = vmatprep.subr.mxu0 0.0
        %8424 = vmatpush1.msra.mxu0 %v8391
        %8425 = vmatprep.subr.mxu0 0.0
        %8426 = vmatpush1.msra.mxu0 %v8390
        %8427 = vmatprep.subr.mxu0 0.0
        %8428 = vmatpush2.msra.mxu0 0.0
        %8429 = vmatprep.subr.mxu0 0.0
        %8430 = vmatpush2.msra.mxu0 0.0
        %8431 = vmatprep.subr.mxu0 0.0
        %8432 = vmatpush2.msra.mxu0 0.0
        %8433 = vmatprep.subr.mxu0 0.0
        %8434 = vmatpush2.msra.mxu0 0.0
        %8435 = vmatprep.subr.mxu0 0.0
        %8436 = vmatpush2.msra.mxu0 0.0
        %8437 = vmatprep.subr.mxu0 0.0
        %8438 = vmatpush2.msra.mxu0 0.0
        %8439 = vmatprep.subr.mxu0 0.0
        %8440 = vmatpush2.msra.mxu0 0.0
        %8441 = vmatprep.subr.mxu0 0.0
        %8442 = vmatpush2.msra.mxu0 0.0
        %8443 = vmatprep.subr.mxu0 0.0
        %8444 = vmatpush2.msra.mxu0 0.0
        %8445 = vmatprep.subr.mxu0 0.0
        %8446 = vmatpush2.msra.mxu0 0.0
        %8447 = vmatprep.subr.mxu0 0.0
        %8448 = vmatpush2.msra.mxu0 0.0
        %8449 = vmatprep.subr.mxu0 0.0
        %8450 = vmatpush2.msra.mxu0 0.0
        %8451 = vmatprep.subr.mxu0 0.0
        %8452 = vmatpush2.msra.mxu0 0.0
        %8453 = vmatprep.subr.mxu0 0.0
        %8454 = vmatpush2.msra.mxu0 0.0
        %8455 = vmatprep.subr.mxu0 0.0
        %8456 = vmatpush2.msra.mxu0 0.0
        %8457 = vmatprep.subr.mxu0 0.0
        %8458 = vmatpush2.msra.mxu0 0.0
        %8459 = vmatprep.mubr.f32.mxu0 0.0
        %8460 = vmatmul.mubr.f32.gmra.mxu0 %v8393
        %v8461 = vpop.f32.mrf.mxu0
        %v8462 = vadd.f32 0.0, %v8461
        %v8463 = vpop.f32.mrf.mxu0
        %8464 = vdwg.mxu0
        %v8465 = vadd.f32 %v8387, %v8462
        %v8466 = vld [vmem:[#allocation3 + $0x50] sm:$0xff]
        %s8467 = scalar_lea.vmem %s5, 112
        %v8468 = vld [vmem:[%s8467] sm:$0xff]
        %v8469 = vld [vmem:[%s8467 + $0x8] sm:$0xff]
        %v8471 = vsel %vm7882, %v8466, 0
        %8473 = vmatprep.subr.mxu0 0.0
        %8474 = vmatpush1.msra.mxu0 0.0
        %8475 = vmatprep.subr.mxu0 0.0
        %8476 = vmatpush1.msra.mxu0 0.0
        %8477 = vmatprep.subr.mxu0 0.0
        %8478 = vmatpush1.msra.mxu0 0.0
        %8479 = vmatprep.subr.mxu0 0.0
        %8480 = vmatpush1.msra.mxu0 0.0
        %8481 = vmatprep.subr.mxu0 0.0
        %8482 = vmatpush1.msra.mxu0 0.0
        %8483 = vmatprep.subr.mxu0 0.0
        %8484 = vmatpush1.msra.mxu0 0.0
        %8485 = vmatprep.subr.mxu0 0.0
        %8486 = vmatpush1.msra.mxu0 0.0
        %8487 = vmatprep.subr.mxu0 0.0
        %8488 = vmatpush1.msra.mxu0 0.0
        %8489 = vmatprep.subr.mxu0 0.0
        %8490 = vmatpush1.msra.mxu0 0.0
        %8491 = vmatprep.subr.mxu0 0.0
        %8492 = vmatpush1.msra.mxu0 0.0
        %8493 = vmatprep.subr.mxu0 0.0
        %8494 = vmatpush1.msra.mxu0 0.0
        %8495 = vmatprep.subr.mxu0 0.0
        %8496 = vmatpush1.msra.mxu0 0.0
        %8497 = vmatprep.subr.mxu0 0.0
        %8498 = vmatpush1.msra.mxu0 0.0
        %8499 = vmatprep.subr.mxu0 0.0
        %8500 = vmatpush1.msra.mxu0 0.0
        %8501 = vmatprep.subr.mxu0 0.0
        %8502 = vmatpush1.msra.mxu0 %v8469
        %8503 = vmatprep.subr.mxu0 0.0
        %8504 = vmatpush1.msra.mxu0 %v8468
        %8505 = vmatprep.subr.mxu0 0.0
        %8506 = vmatpush2.msra.mxu0 0.0
        %8507 = vmatprep.subr.mxu0 0.0
        %8508 = vmatpush2.msra.mxu0 0.0
        %8509 = vmatprep.subr.mxu0 0.0
        %8510 = vmatpush2.msra.mxu0 0.0
        %8511 = vmatprep.subr.mxu0 0.0
        %8512 = vmatpush2.msra.mxu0 0.0
        %8513 = vmatprep.subr.mxu0 0.0
        %8514 = vmatpush2.msra.mxu0 0.0
        %8515 = vmatprep.subr.mxu0 0.0
        %8516 = vmatpush2.msra.mxu0 0.0
        %8517 = vmatprep.subr.mxu0 0.0
        %8518 = vmatpush2.msra.mxu0 0.0
        %8519 = vmatprep.subr.mxu0 0.0
        %8520 = vmatpush2.msra.mxu0 0.0
        %8521 = vmatprep.subr.mxu0 0.0
        %8522 = vmatpush2.msra.mxu0 0.0
        %8523 = vmatprep.subr.mxu0 0.0
        %8524 = vmatpush2.msra.mxu0 0.0
        %8525 = vmatprep.subr.mxu0 0.0
        %8526 = vmatpush2.msra.mxu0 0.0
        %8527 = vmatprep.subr.mxu0 0.0
        %8528 = vmatpush2.msra.mxu0 0.0
        %8529 = vmatprep.subr.mxu0 0.0
        %8530 = vmatpush2.msra.mxu0 0.0
        %8531 = vmatprep.subr.mxu0 0.0
        %8532 = vmatpush2.msra.mxu0 0.0
        %8533 = vmatprep.subr.mxu0 0.0
        %8534 = vmatpush2.msra.mxu0 0.0
        %8535 = vmatprep.subr.mxu0 0.0
        %8536 = vmatpush2.msra.mxu0 0.0
        %8537 = vmatprep.mubr.f32.mxu0 0.0
        %8538 = vmatmul.mubr.f32.gmra.mxu0 %v8471
        %v8539 = vpop.f32.mrf.mxu0
        %v8540 = vadd.f32 0.0, %v8539
        %v8541 = vpop.f32.mrf.mxu0
        %8542 = vdwg.mxu0
        %v8543 = vadd.f32 %v8465, %v8540
        %v8544 = vld [vmem:[#allocation3 + $0x58] sm:$0xff]
        %s8545 = scalar_lea.vmem %s5, 128
        %v8546 = vld [vmem:[%s8545] sm:$0xff]
        %v8547 = vld [vmem:[%s8545 + $0x8] sm:$0xff]
        %v8549 = vsel %vm7882, %v8544, 0
        %8551 = vmatprep.subr.mxu0 0.0
        %8552 = vmatpush1.msra.mxu0 0.0
        %8553 = vmatprep.subr.mxu0 0.0
        %8554 = vmatpush1.msra.mxu0 0.0
        %8555 = vmatprep.subr.mxu0 0.0
        %8556 = vmatpush1.msra.mxu0 0.0
        %8557 = vmatprep.subr.mxu0 0.0
        %8558 = vmatpush1.msra.mxu0 0.0
        %8559 = vmatprep.subr.mxu0 0.0
        %8560 = vmatpush1.msra.mxu0 0.0
        %8561 = vmatprep.subr.mxu0 0.0
        %8562 = vmatpush1.msra.mxu0 0.0
        %8563 = vmatprep.subr.mxu0 0.0
        %8564 = vmatpush1.msra.mxu0 0.0
        %8565 = vmatprep.subr.mxu0 0.0
        %8566 = vmatpush1.msra.mxu0 0.0
        %8567 = vmatprep.subr.mxu0 0.0
        %8568 = vmatpush1.msra.mxu0 0.0
        %8569 = vmatprep.subr.mxu0 0.0
        %8570 = vmatpush1.msra.mxu0 0.0
        %8571 = vmatprep.subr.mxu0 0.0
        %8572 = vmatpush1.msra.mxu0 0.0
        %8573 = vmatprep.subr.mxu0 0.0
        %8574 = vmatpush1.msra.mxu0 0.0
        %8575 = vmatprep.subr.mxu0 0.0
        %8576 = vmatpush1.msra.mxu0 0.0
        %8577 = vmatprep.subr.mxu0 0.0
        %8578 = vmatpush1.msra.mxu0 0.0
        %8579 = vmatprep.subr.mxu0 0.0
        %8580 = vmatpush1.msra.mxu0 %v8547
        %8581 = vmatprep.subr.mxu0 0.0
        %8582 = vmatpush1.msra.mxu0 %v8546
        %8583 = vmatprep.subr.mxu0 0.0
        %8584 = vmatpush2.msra.mxu0 0.0
        %8585 = vmatprep.subr.mxu0 0.0
        %8586 = vmatpush2.msra.mxu0 0.0
        %8587 = vmatprep.subr.mxu0 0.0
        %8588 = vmatpush2.msra.mxu0 0.0
        %8589 = vmatprep.subr.mxu0 0.0
        %8590 = vmatpush2.msra.mxu0 0.0
        %8591 = vmatprep.subr.mxu0 0.0
        %8592 = vmatpush2.msra.mxu0 0.0
        %8593 = vmatprep.subr.mxu0 0.0
        %8594 = vmatpush2.msra.mxu0 0.0
        %8595 = vmatprep.subr.mxu0 0.0
        %8596 = vmatpush2.msra.mxu0 0.0
        %8597 = vmatprep.subr.mxu0 0.0
        %8598 = vmatpush2.msra.mxu0 0.0
        %8599 = vmatprep.subr.mxu0 0.0
        %8600 = vmatpush2.msra.mxu0 0.0
        %8601 = vmatprep.subr.mxu0 0.0
        %8602 = vmatpush2.msra.mxu0 0.0
        %8603 = vmatprep.subr.mxu0 0.0
        %8604 = vmatpush2.msra.mxu0 0.0
        %8605 = vmatprep.subr.mxu0 0.0
        %8606 = vmatpush2.msra.mxu0 0.0
        %8607 = vmatprep.subr.mxu0 0.0
        %8608 = vmatpush2.msra.mxu0 0.0
        %8609 = vmatprep.subr.mxu0 0.0
        %8610 = vmatpush2.msra.mxu0 0.0
        %8611 = vmatprep.subr.mxu0 0.0
        %8612 = vmatpush2.msra.mxu0 0.0
        %8613 = vmatprep.subr.mxu0 0.0
        %8614 = vmatpush2.msra.mxu0 0.0
        %8615 = vmatprep.mubr.f32.mxu0 0.0
        %8616 = vmatmul.mubr.f32.gmra.mxu0 %v8549
        %v8617 = vpop.f32.mrf.mxu0
        %v8618 = vadd.f32 0.0, %v8617
        %v8619 = vpop.f32.mrf.mxu0
        %8620 = vdwg.mxu0
        %v8621 = vadd.f32 %v8543, %v8618
        %v8622 = vld [vmem:[#allocation3 + $0x60] sm:$0xff]
        %s8623 = scalar_lea.vmem %s5, 144
        %v8624 = vld [vmem:[%s8623] sm:$0xff]
        %v8625 = vld [vmem:[%s8623 + $0x8] sm:$0xff]
        %v8627 = vsel %vm7882, %v8622, 0
        %8629 = vmatprep.subr.mxu0 0.0
        %8630 = vmatpush1.msra.mxu0 0.0
        %8631 = vmatprep.subr.mxu0 0.0
        %8632 = vmatpush1.msra.mxu0 0.0
        %8633 = vmatprep.subr.mxu0 0.0
        %8634 = vmatpush1.msra.mxu0 0.0
        %8635 = vmatprep.subr.mxu0 0.0
        %8636 = vmatpush1.msra.mxu0 0.0
        %8637 = vmatprep.subr.mxu0 0.0
        %8638 = vmatpush1.msra.mxu0 0.0
        %8639 = vmatprep.subr.mxu0 0.0
        %8640 = vmatpush1.msra.mxu0 0.0
        %8641 = vmatprep.subr.mxu0 0.0
        %8642 = vmatpush1.msra.mxu0 0.0
        %8643 = vmatprep.subr.mxu0 0.0
        %8644 = vmatpush1.msra.mxu0 0.0
        %8645 = vmatprep.subr.mxu0 0.0
        %8646 = vmatpush1.msra.mxu0 0.0
        %8647 = vmatprep.subr.mxu0 0.0
        %8648 = vmatpush1.msra.mxu0 0.0
        %8649 = vmatprep.subr.mxu0 0.0
        %8650 = vmatpush1.msra.mxu0 0.0
        %8651 = vmatprep.subr.mxu0 0.0
        %8652 = vmatpush1.msra.mxu0 0.0
        %8653 = vmatprep.subr.mxu0 0.0
        %8654 = vmatpush1.msra.mxu0 0.0
        %8655 = vmatprep.subr.mxu0 0.0
        %8656 = vmatpush1.msra.mxu0 0.0
        %8657 = vmatprep.subr.mxu0 0.0
        %8658 = vmatpush1.msra.mxu0 %v8625
        %8659 = vmatprep.subr.mxu0 0.0
        %8660 = vmatpush1.msra.mxu0 %v8624
        %8661 = vmatprep.subr.mxu0 0.0
        %8662 = vmatpush2.msra.mxu0 0.0
        %8663 = vmatprep.subr.mxu0 0.0
        %8664 = vmatpush2.msra.mxu0 0.0
        %8665 = vmatprep.subr.mxu0 0.0
        %8666 = vmatpush2.msra.mxu0 0.0
        %8667 = vmatprep.subr.mxu0 0.0
        %8668 = vmatpush2.msra.mxu0 0.0
        %8669 = vmatprep.subr.mxu0 0.0
        %8670 = vmatpush2.msra.mxu0 0.0
        %8671 = vmatprep.subr.mxu0 0.0
        %8672 = vmatpush2.msra.mxu0 0.0
        %8673 = vmatprep.subr.mxu0 0.0
        %8674 = vmatpush2.msra.mxu0 0.0
        %8675 = vmatprep.subr.mxu0 0.0
        %8676 = vmatpush2.msra.mxu0 0.0
        %8677 = vmatprep.subr.mxu0 0.0
        %8678 = vmatpush2.msra.mxu0 0.0
        %8679 = vmatprep.subr.mxu0 0.0
        %8680 = vmatpush2.msra.mxu0 0.0
        %8681 = vmatprep.subr.mxu0 0.0
        %8682 = vmatpush2.msra.mxu0 0.0
        %8683 = vmatprep.subr.mxu0 0.0
        %8684 = vmatpush2.msra.mxu0 0.0
        %8685 = vmatprep.subr.mxu0 0.0
        %8686 = vmatpush2.msra.mxu0 0.0
        %8687 = vmatprep.subr.mxu0 0.0
        %8688 = vmatpush2.msra.mxu0 0.0
        %8689 = vmatprep.subr.mxu0 0.0
        %8690 = vmatpush2.msra.mxu0 0.0
        %8691 = vmatprep.subr.mxu0 0.0
        %8692 = vmatpush2.msra.mxu0 0.0
        %8693 = vmatprep.mubr.f32.mxu0 0.0
        %8694 = vmatmul.mubr.f32.gmra.mxu0 %v8627
        %v8695 = vpop.f32.mrf.mxu0
        %v8696 = vadd.f32 0.0, %v8695
        %v8697 = vpop.f32.mrf.mxu0
        %8698 = vdwg.mxu0
        %v8699 = vadd.f32 %v8621, %v8696
        %v8700 = vld [vmem:[#allocation3 + $0x80] sm:$0xff]
        %s8701 = scalar_lea.vmem %s5, 160
        %v8702 = vld [vmem:[%s8701] sm:$0xff]
        %v8703 = vld [vmem:[%s8701 + $0x8] sm:$0xff]
        %v8705 = vsel %vm7882, %v8700, 0
        %8707 = vmatprep.subr.mxu0 0.0
        %8708 = vmatpush1.msra.mxu0 0.0
        %8709 = vmatprep.subr.mxu0 0.0
        %8710 = vmatpush1.msra.mxu0 0.0
        %8711 = vmatprep.subr.mxu0 0.0
        %8712 = vmatpush1.msra.mxu0 0.0
        %8713 = vmatprep.subr.mxu0 0.0
        %8714 = vmatpush1.msra.mxu0 0.0
        %8715 = vmatprep.subr.mxu0 0.0
        %8716 = vmatpush1.msra.mxu0 0.0
        %8717 = vmatprep.subr.mxu0 0.0
        %8718 = vmatpush1.msra.mxu0 0.0
        %8719 = vmatprep.subr.mxu0 0.0
        %8720 = vmatpush1.msra.mxu0 0.0
        %8721 = vmatprep.subr.mxu0 0.0
        %8722 = vmatpush1.msra.mxu0 0.0
        %8723 = vmatprep.subr.mxu0 0.0
        %8724 = vmatpush1.msra.mxu0 0.0
        %8725 = vmatprep.subr.mxu0 0.0
        %8726 = vmatpush1.msra.mxu0 0.0
        %8727 = vmatprep.subr.mxu0 0.0
        %8728 = vmatpush1.msra.mxu0 0.0
        %8729 = vmatprep.subr.mxu0 0.0
        %8730 = vmatpush1.msra.mxu0 0.0
        %8731 = vmatprep.subr.mxu0 0.0
        %8732 = vmatpush1.msra.mxu0 0.0
        %8733 = vmatprep.subr.mxu0 0.0
        %8734 = vmatpush1.msra.mxu0 0.0
        %8735 = vmatprep.subr.mxu0 0.0
        %8736 = vmatpush1.msra.mxu0 %v8703
        %8737 = vmatprep.subr.mxu0 0.0
        %8738 = vmatpush1.msra.mxu0 %v8702
        %8739 = vmatprep.subr.mxu0 0.0
        %8740 = vmatpush2.msra.mxu0 0.0
        %8741 = vmatprep.subr.mxu0 0.0
        %8742 = vmatpush2.msra.mxu0 0.0
        %8743 = vmatprep.subr.mxu0 0.0
        %8744 = vmatpush2.msra.mxu0 0.0
        %8745 = vmatprep.subr.mxu0 0.0
        %8746 = vmatpush2.msra.mxu0 0.0
        %8747 = vmatprep.subr.mxu0 0.0
        %8748 = vmatpush2.msra.mxu0 0.0
        %8749 = vmatprep.subr.mxu0 0.0
        %8750 = vmatpush2.msra.mxu0 0.0
        %8751 = vmatprep.subr.mxu0 0.0
        %8752 = vmatpush2.msra.mxu0 0.0
        %8753 = vmatprep.subr.mxu0 0.0
        %8754 = vmatpush2.msra.mxu0 0.0
        %8755 = vmatprep.subr.mxu0 0.0
        %8756 = vmatpush2.msra.mxu0 0.0
        %8757 = vmatprep.subr.mxu0 0.0
        %8758 = vmatpush2.msra.mxu0 0.0
        %8759 = vmatprep.subr.mxu0 0.0
        %8760 = vmatpush2.msra.mxu0 0.0
        %8761 = vmatprep.subr.mxu0 0.0
        %8762 = vmatpush2.msra.mxu0 0.0
        %8763 = vmatprep.subr.mxu0 0.0
        %8764 = vmatpush2.msra.mxu0 0.0
        %8765 = vmatprep.subr.mxu0 0.0
        %8766 = vmatpush2.msra.mxu0 0.0
        %8767 = vmatprep.subr.mxu0 0.0
        %8768 = vmatpush2.msra.mxu0 0.0
        %8769 = vmatprep.subr.mxu0 0.0
        %8770 = vmatpush2.msra.mxu0 0.0
        %8771 = vmatprep.mubr.f32.mxu0 0.0
        %8772 = vmatmul.mubr.f32.gmra.mxu0 %v8705
        %v8773 = vpop.f32.mrf.mxu0
        %v8774 = vadd.f32 0.0, %v8773
        %v8775 = vpop.f32.mrf.mxu0
        %8776 = vdwg.mxu0
        %v8777 = vadd.f32 %v8699, %v8774
        %v8778 = vld [vmem:[#allocation3 + $0x88] sm:$0xff]
        %s8779 = scalar_lea.vmem %s5, 176
        %v8780 = vld [vmem:[%s8779] sm:$0xff]
        %v8781 = vld [vmem:[%s8779 + $0x8] sm:$0xff]
        %v8783 = vsel %vm7882, %v8778, 0
        %8785 = vmatprep.subr.mxu0 0.0
        %8786 = vmatpush1.msra.mxu0 0.0
        %8787 = vmatprep.subr.mxu0 0.0
        %8788 = vmatpush1.msra.mxu0 0.0
        %8789 = vmatprep.subr.mxu0 0.0
        %8790 = vmatpush1.msra.mxu0 0.0
        %8791 = vmatprep.subr.mxu0 0.0
        %8792 = vmatpush1.msra.mxu0 0.0
        %8793 = vmatprep.subr.mxu0 0.0
        %8794 = vmatpush1.msra.mxu0 0.0
        %8795 = vmatprep.subr.mxu0 0.0
        %8796 = vmatpush1.msra.mxu0 0.0
        %8797 = vmatprep.subr.mxu0 0.0
        %8798 = vmatpush1.msra.mxu0 0.0
        %8799 = vmatprep.subr.mxu0 0.0
        %8800 = vmatpush1.msra.mxu0 0.0
        %8801 = vmatprep.subr.mxu0 0.0
        %8802 = vmatpush1.msra.mxu0 0.0
        %8803 = vmatprep.subr.mxu0 0.0
        %8804 = vmatpush1.msra.mxu0 0.0
        %8805 = vmatprep.subr.mxu0 0.0
        %8806 = vmatpush1.msra.mxu0 0.0
        %8807 = vmatprep.subr.mxu0 0.0
        %8808 = vmatpush1.msra.mxu0 0.0
        %8809 = vmatprep.subr.mxu0 0.0
        %8810 = vmatpush1.msra.mxu0 0.0
        %8811 = vmatprep.subr.mxu0 0.0
        %8812 = vmatpush1.msra.mxu0 0.0
        %8813 = vmatprep.subr.mxu0 0.0
        %8814 = vmatpush1.msra.mxu0 %v8781
        %8815 = vmatprep.subr.mxu0 0.0
        %8816 = vmatpush1.msra.mxu0 %v8780
        %8817 = vmatprep.subr.mxu0 0.0
        %8818 = vmatpush2.msra.mxu0 0.0
        %8819 = vmatprep.subr.mxu0 0.0
        %8820 = vmatpush2.msra.mxu0 0.0
        %8821 = vmatprep.subr.mxu0 0.0
        %8822 = vmatpush2.msra.mxu0 0.0
        %8823 = vmatprep.subr.mxu0 0.0
        %8824 = vmatpush2.msra.mxu0 0.0
        %8825 = vmatprep.subr.mxu0 0.0
        %8826 = vmatpush2.msra.mxu0 0.0
        %8827 = vmatprep.subr.mxu0 0.0
        %8828 = vmatpush2.msra.mxu0 0.0
        %8829 = vmatprep.subr.mxu0 0.0
        %8830 = vmatpush2.msra.mxu0 0.0
        %8831 = vmatprep.subr.mxu0 0.0
        %8832 = vmatpush2.msra.mxu0 0.0
        %8833 = vmatprep.subr.mxu0 0.0
        %8834 = vmatpush2.msra.mxu0 0.0
        %8835 = vmatprep.subr.mxu0 0.0
        %8836 = vmatpush2.msra.mxu0 0.0
        %8837 = vmatprep.subr.mxu0 0.0
        %8838 = vmatpush2.msra.mxu0 0.0
        %8839 = vmatprep.subr.mxu0 0.0
        %8840 = vmatpush2.msra.mxu0 0.0
        %8841 = vmatprep.subr.mxu0 0.0
        %8842 = vmatpush2.msra.mxu0 0.0
        %8843 = vmatprep.subr.mxu0 0.0
        %8844 = vmatpush2.msra.mxu0 0.0
        %8845 = vmatprep.subr.mxu0 0.0
        %8846 = vmatpush2.msra.mxu0 0.0
        %8847 = vmatprep.subr.mxu0 0.0
        %8848 = vmatpush2.msra.mxu0 0.0
        %8849 = vmatprep.mubr.f32.mxu0 0.0
        %8850 = vmatmul.mubr.f32.gmra.mxu0 %v8783
        %v8851 = vpop.f32.mrf.mxu0
        %v8852 = vadd.f32 0.0, %v8851
        %v8853 = vpop.f32.mrf.mxu0
        %8854 = vdwg.mxu0
        %v8855 = vadd.f32 %v8777, %v8852
        %v8856 = vld [vmem:[#allocation3 + $0x90] sm:$0xff]
        %s8857 = scalar_lea.vmem %s5, 192
        %v8858 = vld [vmem:[%s8857] sm:$0xff]
        %v8859 = vld [vmem:[%s8857 + $0x8] sm:$0xff]
        %v8861 = vsel %vm7882, %v8856, 0
        %8863 = vmatprep.subr.mxu0 0.0
        %8864 = vmatpush1.msra.mxu0 0.0
        %8865 = vmatprep.subr.mxu0 0.0
        %8866 = vmatpush1.msra.mxu0 0.0
        %8867 = vmatprep.subr.mxu0 0.0
        %8868 = vmatpush1.msra.mxu0 0.0
        %8869 = vmatprep.subr.mxu0 0.0
        %8870 = vmatpush1.msra.mxu0 0.0
        %8871 = vmatprep.subr.mxu0 0.0
        %8872 = vmatpush1.msra.mxu0 0.0
        %8873 = vmatprep.subr.mxu0 0.0
        %8874 = vmatpush1.msra.mxu0 0.0
        %8875 = vmatprep.subr.mxu0 0.0
        %8876 = vmatpush1.msra.mxu0 0.0
        %8877 = vmatprep.subr.mxu0 0.0
        %8878 = vmatpush1.msra.mxu0 0.0
        %8879 = vmatprep.subr.mxu0 0.0
        %8880 = vmatpush1.msra.mxu0 0.0
        %8881 = vmatprep.subr.mxu0 0.0
        %8882 = vmatpush1.msra.mxu0 0.0
        %8883 = vmatprep.subr.mxu0 0.0
        %8884 = vmatpush1.msra.mxu0 0.0
        %8885 = vmatprep.subr.mxu0 0.0
        %8886 = vmatpush1.msra.mxu0 0.0
        %8887 = vmatprep.subr.mxu0 0.0
        %8888 = vmatpush1.msra.mxu0 0.0
        %8889 = vmatprep.subr.mxu0 0.0
        %8890 = vmatpush1.msra.mxu0 0.0
        %8891 = vmatprep.subr.mxu0 0.0
        %8892 = vmatpush1.msra.mxu0 %v8859
        %8893 = vmatprep.subr.mxu0 0.0
        %8894 = vmatpush1.msra.mxu0 %v8858
        %8895 = vmatprep.subr.mxu0 0.0
        %8896 = vmatpush2.msra.mxu0 0.0
        %8897 = vmatprep.subr.mxu0 0.0
        %8898 = vmatpush2.msra.mxu0 0.0
        %8899 = vmatprep.subr.mxu0 0.0
        %8900 = vmatpush2.msra.mxu0 0.0
        %8901 = vmatprep.subr.mxu0 0.0
        %8902 = vmatpush2.msra.mxu0 0.0
        %8903 = vmatprep.subr.mxu0 0.0
        %8904 = vmatpush2.msra.mxu0 0.0
        %8905 = vmatprep.subr.mxu0 0.0
        %8906 = vmatpush2.msra.mxu0 0.0
        %8907 = vmatprep.subr.mxu0 0.0
        %8908 = vmatpush2.msra.mxu0 0.0
        %8909 = vmatprep.subr.mxu0 0.0
        %8910 = vmatpush2.msra.mxu0 0.0
        %8911 = vmatprep.subr.mxu0 0.0
        %8912 = vmatpush2.msra.mxu0 0.0
        %8913 = vmatprep.subr.mxu0 0.0
        %8914 = vmatpush2.msra.mxu0 0.0
        %8915 = vmatprep.subr.mxu0 0.0
        %8916 = vmatpush2.msra.mxu0 0.0
        %8917 = vmatprep.subr.mxu0 0.0
        %8918 = vmatpush2.msra.mxu0 0.0
        %8919 = vmatprep.subr.mxu0 0.0
        %8920 = vmatpush2.msra.mxu0 0.0
        %8921 = vmatprep.subr.mxu0 0.0
        %8922 = vmatpush2.msra.mxu0 0.0
        %8923 = vmatprep.subr.mxu0 0.0
        %8924 = vmatpush2.msra.mxu0 0.0
        %8925 = vmatprep.subr.mxu0 0.0
        %8926 = vmatpush2.msra.mxu0 0.0
        %8927 = vmatprep.mubr.f32.mxu0 0.0
        %8928 = vmatmul.mubr.f32.gmra.mxu0 %v8861
        %v8929 = vpop.f32.mrf.mxu0
        %v8930 = vadd.f32 0.0, %v8929
        %v8931 = vpop.f32.mrf.mxu0
        %8932 = vdwg.mxu0
        %v8933 = vadd.f32 %v8855, %v8930
        %v8934 = vld [vmem:[#allocation3 + $0x98] sm:$0xff]
        %s8935 = scalar_lea.vmem %s5, 208
        %v8936 = vld [vmem:[%s8935] sm:$0xff]
        %v8937 = vld [vmem:[%s8935 + $0x8] sm:$0xff]
        %v8939 = vsel %vm7882, %v8934, 0
        %8941 = vmatprep.subr.mxu0 0.0
        %8942 = vmatpush1.msra.mxu0 0.0
        %8943 = vmatprep.subr.mxu0 0.0
        %8944 = vmatpush1.msra.mxu0 0.0
        %8945 = vmatprep.subr.mxu0 0.0
        %8946 = vmatpush1.msra.mxu0 0.0
        %8947 = vmatprep.subr.mxu0 0.0
        %8948 = vmatpush1.msra.mxu0 0.0
        %8949 = vmatprep.subr.mxu0 0.0
        %8950 = vmatpush1.msra.mxu0 0.0
        %8951 = vmatprep.subr.mxu0 0.0
        %8952 = vmatpush1.msra.mxu0 0.0
        %8953 = vmatprep.subr.mxu0 0.0
        %8954 = vmatpush1.msra.mxu0 0.0
        %8955 = vmatprep.subr.mxu0 0.0
        %8956 = vmatpush1.msra.mxu0 0.0
        %8957 = vmatprep.subr.mxu0 0.0
        %8958 = vmatpush1.msra.mxu0 0.0
        %8959 = vmatprep.subr.mxu0 0.0
        %8960 = vmatpush1.msra.mxu0 0.0
        %8961 = vmatprep.subr.mxu0 0.0
        %8962 = vmatpush1.msra.mxu0 0.0
        %8963 = vmatprep.subr.mxu0 0.0
        %8964 = vmatpush1.msra.mxu0 0.0
        %8965 = vmatprep.subr.mxu0 0.0
        %8966 = vmatpush1.msra.mxu0 0.0
        %8967 = vmatprep.subr.mxu0 0.0
        %8968 = vmatpush1.msra.mxu0 0.0
        %8969 = vmatprep.subr.mxu0 0.0
        %8970 = vmatpush1.msra.mxu0 %v8937
        %8971 = vmatprep.subr.mxu0 0.0
        %8972 = vmatpush1.msra.mxu0 %v8936
        %8973 = vmatprep.subr.mxu0 0.0
        %8974 = vmatpush2.msra.mxu0 0.0
        %8975 = vmatprep.subr.mxu0 0.0
        %8976 = vmatpush2.msra.mxu0 0.0
        %8977 = vmatprep.subr.mxu0 0.0
        %8978 = vmatpush2.msra.mxu0 0.0
        %8979 = vmatprep.subr.mxu0 0.0
        %8980 = vmatpush2.msra.mxu0 0.0
        %8981 = vmatprep.subr.mxu0 0.0
        %8982 = vmatpush2.msra.mxu0 0.0
        %8983 = vmatprep.subr.mxu0 0.0
        %8984 = vmatpush2.msra.mxu0 0.0
        %8985 = vmatprep.subr.mxu0 0.0
        %8986 = vmatpush2.msra.mxu0 0.0
        %8987 = vmatprep.subr.mxu0 0.0
        %8988 = vmatpush2.msra.mxu0 0.0
        %8989 = vmatprep.subr.mxu0 0.0
        %8990 = vmatpush2.msra.mxu0 0.0
        %8991 = vmatprep.subr.mxu0 0.0
        %8992 = vmatpush2.msra.mxu0 0.0
        %8993 = vmatprep.subr.mxu0 0.0
        %8994 = vmatpush2.msra.mxu0 0.0
        %8995 = vmatprep.subr.mxu0 0.0
        %8996 = vmatpush2.msra.mxu0 0.0
        %8997 = vmatprep.subr.mxu0 0.0
        %8998 = vmatpush2.msra.mxu0 0.0
        %8999 = vmatprep.subr.mxu0 0.0
        %9000 = vmatpush2.msra.mxu0 0.0
        %9001 = vmatprep.subr.mxu0 0.0
        %9002 = vmatpush2.msra.mxu0 0.0
        %9003 = vmatprep.subr.mxu0 0.0
        %9004 = vmatpush2.msra.mxu0 0.0
        %9005 = vmatprep.mubr.f32.mxu0 0.0
        %9006 = vmatmul.mubr.f32.gmra.mxu0 %v8939
        %v9007 = vpop.f32.mrf.mxu0
        %v9008 = vadd.f32 0.0, %v9007
        %v9009 = vpop.f32.mrf.mxu0
        %9010 = vdwg.mxu0
        %v9011 = vadd.f32 %v8933, %v9008
        %v9012 = vld [vmem:[#allocation3 + $0xa0] sm:$0xff]
        %s9013 = scalar_lea.vmem %s5, 224
        %v9014 = vld [vmem:[%s9013] sm:$0xff]
        %v9015 = vld [vmem:[%s9013 + $0x8] sm:$0xff]
        %v9017 = vsel %vm7882, %v9012, 0
        %9019 = vmatprep.subr.mxu0 0.0
        %9020 = vmatpush1.msra.mxu0 0.0
        %9021 = vmatprep.subr.mxu0 0.0
        %9022 = vmatpush1.msra.mxu0 0.0
        %9023 = vmatprep.subr.mxu0 0.0
        %9024 = vmatpush1.msra.mxu0 0.0
        %9025 = vmatprep.subr.mxu0 0.0
        %9026 = vmatpush1.msra.mxu0 0.0
        %9027 = vmatprep.subr.mxu0 0.0
        %9028 = vmatpush1.msra.mxu0 0.0
        %9029 = vmatprep.subr.mxu0 0.0
        %9030 = vmatpush1.msra.mxu0 0.0
        %9031 = vmatprep.subr.mxu0 0.0
        %9032 = vmatpush1.msra.mxu0 0.0
        %9033 = vmatprep.subr.mxu0 0.0
        %9034 = vmatpush1.msra.mxu0 0.0
        %9035 = vmatprep.subr.mxu0 0.0
        %9036 = vmatpush1.msra.mxu0 0.0
        %9037 = vmatprep.subr.mxu0 0.0
        %9038 = vmatpush1.msra.mxu0 0.0
        %9039 = vmatprep.subr.mxu0 0.0
        %9040 = vmatpush1.msra.mxu0 0.0
        %9041 = vmatprep.subr.mxu0 0.0
        %9042 = vmatpush1.msra.mxu0 0.0
        %9043 = vmatprep.subr.mxu0 0.0
        %9044 = vmatpush1.msra.mxu0 0.0
        %9045 = vmatprep.subr.mxu0 0.0
        %9046 = vmatpush1.msra.mxu0 0.0
        %9047 = vmatprep.subr.mxu0 0.0
        %9048 = vmatpush1.msra.mxu0 %v9015
        %9049 = vmatprep.subr.mxu0 0.0
        %9050 = vmatpush1.msra.mxu0 %v9014
        %9051 = vmatprep.subr.mxu0 0.0
        %9052 = vmatpush2.msra.mxu0 0.0
        %9053 = vmatprep.subr.mxu0 0.0
        %9054 = vmatpush2.msra.mxu0 0.0
        %9055 = vmatprep.subr.mxu0 0.0
        %9056 = vmatpush2.msra.mxu0 0.0
        %9057 = vmatprep.subr.mxu0 0.0
        %9058 = vmatpush2.msra.mxu0 0.0
        %9059 = vmatprep.subr.mxu0 0.0
        %9060 = vmatpush2.msra.mxu0 0.0
        %9061 = vmatprep.subr.mxu0 0.0
        %9062 = vmatpush2.msra.mxu0 0.0
        %9063 = vmatprep.subr.mxu0 0.0
        %9064 = vmatpush2.msra.mxu0 0.0
        %9065 = vmatprep.subr.mxu0 0.0
        %9066 = vmatpush2.msra.mxu0 0.0
        %9067 = vmatprep.subr.mxu0 0.0
        %9068 = vmatpush2.msra.mxu0 0.0
        %9069 = vmatprep.subr.mxu0 0.0
        %9070 = vmatpush2.msra.mxu0 0.0
        %9071 = vmatprep.subr.mxu0 0.0
        %9072 = vmatpush2.msra.mxu0 0.0
        %9073 = vmatprep.subr.mxu0 0.0
        %9074 = vmatpush2.msra.mxu0 0.0
        %9075 = vmatprep.subr.mxu0 0.0
        %9076 = vmatpush2.msra.mxu0 0.0
        %9077 = vmatprep.subr.mxu0 0.0
        %9078 = vmatpush2.msra.mxu0 0.0
        %9079 = vmatprep.subr.mxu0 0.0
        %9080 = vmatpush2.msra.mxu0 0.0
        %9081 = vmatprep.subr.mxu0 0.0
        %9082 = vmatpush2.msra.mxu0 0.0
        %9083 = vmatprep.mubr.f32.mxu0 0.0
        %9084 = vmatmul.mubr.f32.gmra.mxu0 %v9017
        %v9085 = vpop.f32.mrf.mxu0
        %v9086 = vadd.f32 0.0, %v9085
        %v9087 = vpop.f32.mrf.mxu0
        %9088 = vdwg.mxu0
        %v9089 = vadd.f32 %v9011, %v9086
        %v9090 = vld [vmem:[#allocation3 + $0xc0] sm:$0xff]
        %s9091 = scalar_lea.vmem %s5, 240
        %v9092 = vld [vmem:[%s9091] sm:$0xff]
        %v9093 = vld [vmem:[%s9091 + $0x8] sm:$0xff]
        %v9095 = vsel %vm7882, %v9090, 0
        %9097 = vmatprep.subr.mxu0 0.0
        %9098 = vmatpush1.msra.mxu0 0.0
        %9099 = vmatprep.subr.mxu0 0.0
        %9100 = vmatpush1.msra.mxu0 0.0
        %9101 = vmatprep.subr.mxu0 0.0
        %9102 = vmatpush1.msra.mxu0 0.0
        %9103 = vmatprep.subr.mxu0 0.0
        %9104 = vmatpush1.msra.mxu0 0.0
        %9105 = vmatprep.subr.mxu0 0.0
        %9106 = vmatpush1.msra.mxu0 0.0
        %9107 = vmatprep.subr.mxu0 0.0
        %9108 = vmatpush1.msra.mxu0 0.0
        %9109 = vmatprep.subr.mxu0 0.0
        %9110 = vmatpush1.msra.mxu0 0.0
        %9111 = vmatprep.subr.mxu0 0.0
        %9112 = vmatpush1.msra.mxu0 0.0
        %9113 = vmatprep.subr.mxu0 0.0
        %9114 = vmatpush1.msra.mxu0 0.0
        %9115 = vmatprep.subr.mxu0 0.0
        %9116 = vmatpush1.msra.mxu0 0.0
        %9117 = vmatprep.subr.mxu0 0.0
        %9118 = vmatpush1.msra.mxu0 0.0
        %9119 = vmatprep.subr.mxu0 0.0
        %9120 = vmatpush1.msra.mxu0 0.0
        %9121 = vmatprep.subr.mxu0 0.0
        %9122 = vmatpush1.msra.mxu0 0.0
        %9123 = vmatprep.subr.mxu0 0.0
        %9124 = vmatpush1.msra.mxu0 0.0
        %9125 = vmatprep.subr.mxu0 0.0
        %9126 = vmatpush1.msra.mxu0 %v9093
        %9127 = vmatprep.subr.mxu0 0.0
        %9128 = vmatpush1.msra.mxu0 %v9092
        %9129 = vmatprep.subr.mxu0 0.0
        %9130 = vmatpush2.msra.mxu0 0.0
        %9131 = vmatprep.subr.mxu0 0.0
        %9132 = vmatpush2.msra.mxu0 0.0
        %9133 = vmatprep.subr.mxu0 0.0
        %9134 = vmatpush2.msra.mxu0 0.0
        %9135 = vmatprep.subr.mxu0 0.0
        %9136 = vmatpush2.msra.mxu0 0.0
        %9137 = vmatprep.subr.mxu0 0.0
        %9138 = vmatpush2.msra.mxu0 0.0
        %9139 = vmatprep.subr.mxu0 0.0
        %9140 = vmatpush2.msra.mxu0 0.0
        %9141 = vmatprep.subr.mxu0 0.0
        %9142 = vmatpush2.msra.mxu0 0.0
        %9143 = vmatprep.subr.mxu0 0.0
        %9144 = vmatpush2.msra.mxu0 0.0
        %9145 = vmatprep.subr.mxu0 0.0
        %9146 = vmatpush2.msra.mxu0 0.0
        %9147 = vmatprep.subr.mxu0 0.0
        %9148 = vmatpush2.msra.mxu0 0.0
        %9149 = vmatprep.subr.mxu0 0.0
        %9150 = vmatpush2.msra.mxu0 0.0
        %9151 = vmatprep.subr.mxu0 0.0
        %9152 = vmatpush2.msra.mxu0 0.0
        %9153 = vmatprep.subr.mxu0 0.0
        %9154 = vmatpush2.msra.mxu0 0.0
        %9155 = vmatprep.subr.mxu0 0.0
        %9156 = vmatpush2.msra.mxu0 0.0
        %9157 = vmatprep.subr.mxu0 0.0
        %9158 = vmatpush2.msra.mxu0 0.0
        %9159 = vmatprep.subr.mxu0 0.0
        %9160 = vmatpush2.msra.mxu0 0.0
        %9161 = vmatprep.mubr.f32.mxu0 0.0
        %9162 = vmatmul.mubr.f32.gmra.mxu0 %v9095
        %v9163 = vpop.f32.mrf.mxu0
        %v9164 = vadd.f32 0.0, %v9163
        %v9165 = vpop.f32.mrf.mxu0
        %9166 = vdwg.mxu0
        %v9167 = vadd.f32 %v9089, %v9164
        %v9168 = vld [vmem:[#allocation3 + $0xc8] sm:$0xff]
        %s9169 = scalar_lea.vmem %s5, 256
        %v9170 = vld [vmem:[%s9169] sm:$0xff]
        %v9171 = vld [vmem:[%s9169 + $0x8] sm:$0xff]
        %v9173 = vsel %vm7882, %v9168, 0
        %9175 = vmatprep.subr.mxu0 0.0
        %9176 = vmatpush1.msra.mxu0 0.0
        %9177 = vmatprep.subr.mxu0 0.0
        %9178 = vmatpush1.msra.mxu0 0.0
        %9179 = vmatprep.subr.mxu0 0.0
        %9180 = vmatpush1.msra.mxu0 0.0
        %9181 = vmatprep.subr.mxu0 0.0
        %9182 = vmatpush1.msra.mxu0 0.0
        %9183 = vmatprep.subr.mxu0 0.0
        %9184 = vmatpush1.msra.mxu0 0.0
        %9185 = vmatprep.subr.mxu0 0.0
        %9186 = vmatpush1.msra.mxu0 0.0
        %9187 = vmatprep.subr.mxu0 0.0
        %9188 = vmatpush1.msra.mxu0 0.0
        %9189 = vmatprep.subr.mxu0 0.0
        %9190 = vmatpush1.msra.mxu0 0.0
        %9191 = vmatprep.subr.mxu0 0.0
        %9192 = vmatpush1.msra.mxu0 0.0
        %9193 = vmatprep.subr.mxu0 0.0
        %9194 = vmatpush1.msra.mxu0 0.0
        %9195 = vmatprep.subr.mxu0 0.0
        %9196 = vmatpush1.msra.mxu0 0.0
        %9197 = vmatprep.subr.mxu0 0.0
        %9198 = vmatpush1.msra.mxu0 0.0
        %9199 = vmatprep.subr.mxu0 0.0
        %9200 = vmatpush1.msra.mxu0 0.0
        %9201 = vmatprep.subr.mxu0 0.0
        %9202 = vmatpush1.msra.mxu0 0.0
        %9203 = vmatprep.subr.mxu0 0.0
        %9204 = vmatpush1.msra.mxu0 %v9171
        %9205 = vmatprep.subr.mxu0 0.0
        %9206 = vmatpush1.msra.mxu0 %v9170
        %9207 = vmatprep.subr.mxu0 0.0
        %9208 = vmatpush2.msra.mxu0 0.0
        %9209 = vmatprep.subr.mxu0 0.0
        %9210 = vmatpush2.msra.mxu0 0.0
        %9211 = vmatprep.subr.mxu0 0.0
        %9212 = vmatpush2.msra.mxu0 0.0
        %9213 = vmatprep.subr.mxu0 0.0
        %9214 = vmatpush2.msra.mxu0 0.0
        %9215 = vmatprep.subr.mxu0 0.0
        %9216 = vmatpush2.msra.mxu0 0.0
        %9217 = vmatprep.subr.mxu0 0.0
        %9218 = vmatpush2.msra.mxu0 0.0
        %9219 = vmatprep.subr.mxu0 0.0
        %9220 = vmatpush2.msra.mxu0 0.0
        %9221 = vmatprep.subr.mxu0 0.0
        %9222 = vmatpush2.msra.mxu0 0.0
        %9223 = vmatprep.subr.mxu0 0.0
        %9224 = vmatpush2.msra.mxu0 0.0
        %9225 = vmatprep.subr.mxu0 0.0
        %9226 = vmatpush2.msra.mxu0 0.0
        %9227 = vmatprep.subr.mxu0 0.0
        %9228 = vmatpush2.msra.mxu0 0.0
        %9229 = vmatprep.subr.mxu0 0.0
        %9230 = vmatpush2.msra.mxu0 0.0
        %9231 = vmatprep.subr.mxu0 0.0
        %9232 = vmatpush2.msra.mxu0 0.0
        %9233 = vmatprep.subr.mxu0 0.0
        %9234 = vmatpush2.msra.mxu0 0.0
        %9235 = vmatprep.subr.mxu0 0.0
        %9236 = vmatpush2.msra.mxu0 0.0
        %9237 = vmatprep.subr.mxu0 0.0
        %9238 = vmatpush2.msra.mxu0 0.0
        %9239 = vmatprep.mubr.f32.mxu0 0.0
        %9240 = vmatmul.mubr.f32.gmra.mxu0 %v9173
        %v9241 = vpop.f32.mrf.mxu0
        %v9242 = vadd.f32 0.0, %v9241
        %v9243 = vpop.f32.mrf.mxu0
        %9244 = vdwg.mxu0
        %v9245 = vadd.f32 %v9167, %v9242
        %v9246 = vld [vmem:[#allocation3 + $0xd0] sm:$0xff]
        %s9247 = scalar_lea.vmem %s5, 272
        %v9248 = vld [vmem:[%s9247] sm:$0xff]
        %v9249 = vld [vmem:[%s9247 + $0x8] sm:$0xff]
        %v9251 = vsel %vm7882, %v9246, 0
        %9253 = vmatprep.subr.mxu0 0.0
        %9254 = vmatpush1.msra.mxu0 0.0
        %9255 = vmatprep.subr.mxu0 0.0
        %9256 = vmatpush1.msra.mxu0 0.0
        %9257 = vmatprep.subr.mxu0 0.0
        %9258 = vmatpush1.msra.mxu0 0.0
        %9259 = vmatprep.subr.mxu0 0.0
        %9260 = vmatpush1.msra.mxu0 0.0
        %9261 = vmatprep.subr.mxu0 0.0
        %9262 = vmatpush1.msra.mxu0 0.0
        %9263 = vmatprep.subr.mxu0 0.0
        %9264 = vmatpush1.msra.mxu0 0.0
        %9265 = vmatprep.subr.mxu0 0.0
        %9266 = vmatpush1.msra.mxu0 0.0
        %9267 = vmatprep.subr.mxu0 0.0
        %9268 = vmatpush1.msra.mxu0 0.0
        %9269 = vmatprep.subr.mxu0 0.0
        %9270 = vmatpush1.msra.mxu0 0.0
        %9271 = vmatprep.subr.mxu0 0.0
        %9272 = vmatpush1.msra.mxu0 0.0
        %9273 = vmatprep.subr.mxu0 0.0
        %9274 = vmatpush1.msra.mxu0 0.0
        %9275 = vmatprep.subr.mxu0 0.0
        %9276 = vmatpush1.msra.mxu0 0.0
        %9277 = vmatprep.subr.mxu0 0.0
        %9278 = vmatpush1.msra.mxu0 0.0
        %9279 = vmatprep.subr.mxu0 0.0
        %9280 = vmatpush1.msra.mxu0 0.0
        %9281 = vmatprep.subr.mxu0 0.0
        %9282 = vmatpush1.msra.mxu0 %v9249
        %9283 = vmatprep.subr.mxu0 0.0
        %9284 = vmatpush1.msra.mxu0 %v9248
        %9285 = vmatprep.subr.mxu0 0.0
        %9286 = vmatpush2.msra.mxu0 0.0
        %9287 = vmatprep.subr.mxu0 0.0
        %9288 = vmatpush2.msra.mxu0 0.0
        %9289 = vmatprep.subr.mxu0 0.0
        %9290 = vmatpush2.msra.mxu0 0.0
        %9291 = vmatprep.subr.mxu0 0.0
        %9292 = vmatpush2.msra.mxu0 0.0
        %9293 = vmatprep.subr.mxu0 0.0
        %9294 = vmatpush2.msra.mxu0 0.0
        %9295 = vmatprep.subr.mxu0 0.0
        %9296 = vmatpush2.msra.mxu0 0.0
        %9297 = vmatprep.subr.mxu0 0.0
        %9298 = vmatpush2.msra.mxu0 0.0
        %9299 = vmatprep.subr.mxu0 0.0
        %9300 = vmatpush2.msra.mxu0 0.0
        %9301 = vmatprep.subr.mxu0 0.0
        %9302 = vmatpush2.msra.mxu0 0.0
        %9303 = vmatprep.subr.mxu0 0.0
        %9304 = vmatpush2.msra.mxu0 0.0
        %9305 = vmatprep.subr.mxu0 0.0
        %9306 = vmatpush2.msra.mxu0 0.0
        %9307 = vmatprep.subr.mxu0 0.0
        %9308 = vmatpush2.msra.mxu0 0.0
        %9309 = vmatprep.subr.mxu0 0.0
        %9310 = vmatpush2.msra.mxu0 0.0
        %9311 = vmatprep.subr.mxu0 0.0
        %9312 = vmatpush2.msra.mxu0 0.0
        %9313 = vmatprep.subr.mxu0 0.0
        %9314 = vmatpush2.msra.mxu0 0.0
        %9315 = vmatprep.subr.mxu0 0.0
        %9316 = vmatpush2.msra.mxu0 0.0
        %9317 = vmatprep.mubr.f32.mxu0 0.0
        %9318 = vmatmul.mubr.f32.gmra.mxu0 %v9251
        %v9319 = vpop.f32.mrf.mxu0
        %v9320 = vadd.f32 0.0, %v9319
        %v9321 = vpop.f32.mrf.mxu0
        %9322 = vdwg.mxu0
        %v9323 = vadd.f32 %v9245, %v9320
        %v9324 = vld [vmem:[#allocation3 + $0xd8] sm:$0xff]
        %s9325 = scalar_lea.vmem %s5, 288
        %v9326 = vld [vmem:[%s9325] sm:$0xff]
        %v9327 = vld [vmem:[%s9325 + $0x8] sm:$0xff]
        %v9329 = vsel %vm7882, %v9324, 0
        %9331 = vmatprep.subr.mxu0 0.0
        %9332 = vmatpush1.msra.mxu0 0.0
        %9333 = vmatprep.subr.mxu0 0.0
        %9334 = vmatpush1.msra.mxu0 0.0
        %9335 = vmatprep.subr.mxu0 0.0
        %9336 = vmatpush1.msra.mxu0 0.0
        %9337 = vmatprep.subr.mxu0 0.0
        %9338 = vmatpush1.msra.mxu0 0.0
        %9339 = vmatprep.subr.mxu0 0.0
        %9340 = vmatpush1.msra.mxu0 0.0
        %9341 = vmatprep.subr.mxu0 0.0
        %9342 = vmatpush1.msra.mxu0 0.0
        %9343 = vmatprep.subr.mxu0 0.0
        %9344 = vmatpush1.msra.mxu0 0.0
        %9345 = vmatprep.subr.mxu0 0.0
        %9346 = vmatpush1.msra.mxu0 0.0
        %9347 = vmatprep.subr.mxu0 0.0
        %9348 = vmatpush1.msra.mxu0 0.0
        %9349 = vmatprep.subr.mxu0 0.0
        %9350 = vmatpush1.msra.mxu0 0.0
        %9351 = vmatprep.subr.mxu0 0.0
        %9352 = vmatpush1.msra.mxu0 0.0
        %9353 = vmatprep.subr.mxu0 0.0
        %9354 = vmatpush1.msra.mxu0 0.0
        %9355 = vmatprep.subr.mxu0 0.0
        %9356 = vmatpush1.msra.mxu0 0.0
        %9357 = vmatprep.subr.mxu0 0.0
        %9358 = vmatpush1.msra.mxu0 0.0
        %9359 = vmatprep.subr.mxu0 0.0
        %9360 = vmatpush1.msra.mxu0 %v9327
        %9361 = vmatprep.subr.mxu0 0.0
        %9362 = vmatpush1.msra.mxu0 %v9326
        %9363 = vmatprep.subr.mxu0 0.0
        %9364 = vmatpush2.msra.mxu0 0.0
        %9365 = vmatprep.subr.mxu0 0.0
        %9366 = vmatpush2.msra.mxu0 0.0
        %9367 = vmatprep.subr.mxu0 0.0
        %9368 = vmatpush2.msra.mxu0 0.0
        %9369 = vmatprep.subr.mxu0 0.0
        %9370 = vmatpush2.msra.mxu0 0.0
        %9371 = vmatprep.subr.mxu0 0.0
        %9372 = vmatpush2.msra.mxu0 0.0
        %9373 = vmatprep.subr.mxu0 0.0
        %9374 = vmatpush2.msra.mxu0 0.0
        %9375 = vmatprep.subr.mxu0 0.0
        %9376 = vmatpush2.msra.mxu0 0.0
        %9377 = vmatprep.subr.mxu0 0.0
        %9378 = vmatpush2.msra.mxu0 0.0
        %9379 = vmatprep.subr.mxu0 0.0
        %9380 = vmatpush2.msra.mxu0 0.0
        %9381 = vmatprep.subr.mxu0 0.0
        %9382 = vmatpush2.msra.mxu0 0.0
        %9383 = vmatprep.subr.mxu0 0.0
        %9384 = vmatpush2.msra.mxu0 0.0
        %9385 = vmatprep.subr.mxu0 0.0
        %9386 = vmatpush2.msra.mxu0 0.0
        %9387 = vmatprep.subr.mxu0 0.0
        %9388 = vmatpush2.msra.mxu0 0.0
        %9389 = vmatprep.subr.mxu0 0.0
        %9390 = vmatpush2.msra.mxu0 0.0
        %9391 = vmatprep.subr.mxu0 0.0
        %9392 = vmatpush2.msra.mxu0 0.0
        %9393 = vmatprep.subr.mxu0 0.0
        %9394 = vmatpush2.msra.mxu0 0.0
        %9395 = vmatprep.mubr.f32.mxu0 0.0
        %9396 = vmatmul.mubr.f32.gmra.mxu0 %v9329
        %v9397 = vpop.f32.mrf.mxu0
        %v9398 = vadd.f32 0.0, %v9397
        %v9399 = vpop.f32.mrf.mxu0
        %9400 = vdwg.mxu0
        %v9401 = vadd.f32 %v9323, %v9398
        %v9402 = vld [vmem:[#allocation3 + $0xe0] sm:$0xff]
        %s9403 = scalar_lea.vmem %s5, 304
        %v9404 = vld [vmem:[%s9403] sm:$0xff]
        %v9405 = vld [vmem:[%s9403 + $0x8] sm:$0xff]
        %v9407 = vsel %vm7882, %v9402, 0
        %9409 = vmatprep.subr.mxu0 0.0
        %9410 = vmatpush1.msra.mxu0 0.0
        %9411 = vmatprep.subr.mxu0 0.0
        %9412 = vmatpush1.msra.mxu0 0.0
        %9413 = vmatprep.subr.mxu0 0.0
        %9414 = vmatpush1.msra.mxu0 0.0
        %9415 = vmatprep.subr.mxu0 0.0
        %9416 = vmatpush1.msra.mxu0 0.0
        %9417 = vmatprep.subr.mxu0 0.0
        %9418 = vmatpush1.msra.mxu0 0.0
        %9419 = vmatprep.subr.mxu0 0.0
        %9420 = vmatpush1.msra.mxu0 0.0
        %9421 = vmatprep.subr.mxu0 0.0
        %9422 = vmatpush1.msra.mxu0 0.0
        %9423 = vmatprep.subr.mxu0 0.0
        %9424 = vmatpush1.msra.mxu0 0.0
        %9425 = vmatprep.subr.mxu0 0.0
        %9426 = vmatpush1.msra.mxu0 0.0
        %9427 = vmatprep.subr.mxu0 0.0
        %9428 = vmatpush1.msra.mxu0 0.0
        %9429 = vmatprep.subr.mxu0 0.0
        %9430 = vmatpush1.msra.mxu0 0.0
        %9431 = vmatprep.subr.mxu0 0.0
        %9432 = vmatpush1.msra.mxu0 0.0
        %9433 = vmatprep.subr.mxu0 0.0
        %9434 = vmatpush1.msra.mxu0 0.0
        %9435 = vmatprep.subr.mxu0 0.0
        %9436 = vmatpush1.msra.mxu0 0.0
        %9437 = vmatprep.subr.mxu0 0.0
        %9438 = vmatpush1.msra.mxu0 %v9405
        %9439 = vmatprep.subr.mxu0 0.0
        %9440 = vmatpush1.msra.mxu0 %v9404
        %9441 = vmatprep.subr.mxu0 0.0
        %9442 = vmatpush2.msra.mxu0 0.0
        %9443 = vmatprep.subr.mxu0 0.0
        %9444 = vmatpush2.msra.mxu0 0.0
        %9445 = vmatprep.subr.mxu0 0.0
        %9446 = vmatpush2.msra.mxu0 0.0
        %9447 = vmatprep.subr.mxu0 0.0
        %9448 = vmatpush2.msra.mxu0 0.0
        %9449 = vmatprep.subr.mxu0 0.0
        %9450 = vmatpush2.msra.mxu0 0.0
        %9451 = vmatprep.subr.mxu0 0.0
        %9452 = vmatpush2.msra.mxu0 0.0
        %9453 = vmatprep.subr.mxu0 0.0
        %9454 = vmatpush2.msra.mxu0 0.0
        %9455 = vmatprep.subr.mxu0 0.0
        %9456 = vmatpush2.msra.mxu0 0.0
        %9457 = vmatprep.subr.mxu0 0.0
        %9458 = vmatpush2.msra.mxu0 0.0
        %9459 = vmatprep.subr.mxu0 0.0
        %9460 = vmatpush2.msra.mxu0 0.0
        %9461 = vmatprep.subr.mxu0 0.0
        %9462 = vmatpush2.msra.mxu0 0.0
        %9463 = vmatprep.subr.mxu0 0.0
        %9464 = vmatpush2.msra.mxu0 0.0
        %9465 = vmatprep.subr.mxu0 0.0
        %9466 = vmatpush2.msra.mxu0 0.0
        %9467 = vmatprep.subr.mxu0 0.0
        %9468 = vmatpush2.msra.mxu0 0.0
        %9469 = vmatprep.subr.mxu0 0.0
        %9470 = vmatpush2.msra.mxu0 0.0
        %9471 = vmatprep.subr.mxu0 0.0
        %9472 = vmatpush2.msra.mxu0 0.0
        %9473 = vmatprep.mubr.f32.mxu0 0.0
        %9474 = vmatmul.mubr.f32.gmra.mxu0 %v9407
        %v9475 = vpop.f32.mrf.mxu0
        %v9476 = vadd.f32 0.0, %v9475
        %v9477 = vpop.f32.mrf.mxu0
        %9478 = vdwg.mxu0
        %v9479 = vadd.f32 %v9401, %v9476
        %v9480 = vld [vmem:[#allocation3 + $0x100] sm:$0xff]
        %s9481 = scalar_lea.vmem %s5, 320
        %v9482 = vld [vmem:[%s9481] sm:$0xff]
        %v9483 = vld [vmem:[%s9481 + $0x8] sm:$0xff]
        %v9485 = vsel %vm7882, %v9480, 0
        %9487 = vmatprep.subr.mxu0 0.0
        %9488 = vmatpush1.msra.mxu0 0.0
        %9489 = vmatprep.subr.mxu0 0.0
        %9490 = vmatpush1.msra.mxu0 0.0
        %9491 = vmatprep.subr.mxu0 0.0
        %9492 = vmatpush1.msra.mxu0 0.0
        %9493 = vmatprep.subr.mxu0 0.0
        %9494 = vmatpush1.msra.mxu0 0.0
        %9495 = vmatprep.subr.mxu0 0.0
        %9496 = vmatpush1.msra.mxu0 0.0
        %9497 = vmatprep.subr.mxu0 0.0
        %9498 = vmatpush1.msra.mxu0 0.0
        %9499 = vmatprep.subr.mxu0 0.0
        %9500 = vmatpush1.msra.mxu0 0.0
        %9501 = vmatprep.subr.mxu0 0.0
        %9502 = vmatpush1.msra.mxu0 0.0
        %9503 = vmatprep.subr.mxu0 0.0
        %9504 = vmatpush1.msra.mxu0 0.0
        %9505 = vmatprep.subr.mxu0 0.0
        %9506 = vmatpush1.msra.mxu0 0.0
        %9507 = vmatprep.subr.mxu0 0.0
        %9508 = vmatpush1.msra.mxu0 0.0
        %9509 = vmatprep.subr.mxu0 0.0
        %9510 = vmatpush1.msra.mxu0 0.0
        %9511 = vmatprep.subr.mxu0 0.0
        %9512 = vmatpush1.msra.mxu0 0.0
        %9513 = vmatprep.subr.mxu0 0.0
        %9514 = vmatpush1.msra.mxu0 0.0
        %9515 = vmatprep.subr.mxu0 0.0
        %9516 = vmatpush1.msra.mxu0 %v9483
        %9517 = vmatprep.subr.mxu0 0.0
        %9518 = vmatpush1.msra.mxu0 %v9482
        %9519 = vmatprep.subr.mxu0 0.0
        %9520 = vmatpush2.msra.mxu0 0.0
        %9521 = vmatprep.subr.mxu0 0.0
        %9522 = vmatpush2.msra.mxu0 0.0
        %9523 = vmatprep.subr.mxu0 0.0
        %9524 = vmatpush2.msra.mxu0 0.0
        %9525 = vmatprep.subr.mxu0 0.0
        %9526 = vmatpush2.msra.mxu0 0.0
        %9527 = vmatprep.subr.mxu0 0.0
        %9528 = vmatpush2.msra.mxu0 0.0
        %9529 = vmatprep.subr.mxu0 0.0
        %9530 = vmatpush2.msra.mxu0 0.0
        %9531 = vmatprep.subr.mxu0 0.0
        %9532 = vmatpush2.msra.mxu0 0.0
        %9533 = vmatprep.subr.mxu0 0.0
        %9534 = vmatpush2.msra.mxu0 0.0
        %9535 = vmatprep.subr.mxu0 0.0
        %9536 = vmatpush2.msra.mxu0 0.0
        %9537 = vmatprep.subr.mxu0 0.0
        %9538 = vmatpush2.msra.mxu0 0.0
        %9539 = vmatprep.subr.mxu0 0.0
        %9540 = vmatpush2.msra.mxu0 0.0
        %9541 = vmatprep.subr.mxu0 0.0
        %9542 = vmatpush2.msra.mxu0 0.0
        %9543 = vmatprep.subr.mxu0 0.0
        %9544 = vmatpush2.msra.mxu0 0.0
        %9545 = vmatprep.subr.mxu0 0.0
        %9546 = vmatpush2.msra.mxu0 0.0
        %9547 = vmatprep.subr.mxu0 0.0
        %9548 = vmatpush2.msra.mxu0 0.0
        %9549 = vmatprep.subr.mxu0 0.0
        %9550 = vmatpush2.msra.mxu0 0.0
        %9551 = vmatprep.mubr.f32.mxu0 0.0
        %9552 = vmatmul.mubr.f32.gmra.mxu0 %v9485
        %v9553 = vpop.f32.mrf.mxu0
        %v9554 = vadd.f32 0.0, %v9553
        %v9555 = vpop.f32.mrf.mxu0
        %9556 = vdwg.mxu0
        %v9557 = vadd.f32 %v9479, %v9554
        %v9558 = vld [vmem:[#allocation3 + $0x108] sm:$0xff]
        %s9559 = scalar_lea.vmem %s5, 336
        %v9560 = vld [vmem:[%s9559] sm:$0xff]
        %v9561 = vld [vmem:[%s9559 + $0x8] sm:$0xff]
        %v9563 = vsel %vm7882, %v9558, 0
        %9565 = vmatprep.subr.mxu0 0.0
        %9566 = vmatpush1.msra.mxu0 0.0
        %9567 = vmatprep.subr.mxu0 0.0
        %9568 = vmatpush1.msra.mxu0 0.0
        %9569 = vmatprep.subr.mxu0 0.0
        %9570 = vmatpush1.msra.mxu0 0.0
        %9571 = vmatprep.subr.mxu0 0.0
        %9572 = vmatpush1.msra.mxu0 0.0
        %9573 = vmatprep.subr.mxu0 0.0
        %9574 = vmatpush1.msra.mxu0 0.0
        %9575 = vmatprep.subr.mxu0 0.0
        %9576 = vmatpush1.msra.mxu0 0.0
        %9577 = vmatprep.subr.mxu0 0.0
        %9578 = vmatpush1.msra.mxu0 0.0
        %9579 = vmatprep.subr.mxu0 0.0
        %9580 = vmatpush1.msra.mxu0 0.0
        %9581 = vmatprep.subr.mxu0 0.0
        %9582 = vmatpush1.msra.mxu0 0.0
        %9583 = vmatprep.subr.mxu0 0.0
        %9584 = vmatpush1.msra.mxu0 0.0
        %9585 = vmatprep.subr.mxu0 0.0
        %9586 = vmatpush1.msra.mxu0 0.0
        %9587 = vmatprep.subr.mxu0 0.0
        %9588 = vmatpush1.msra.mxu0 0.0
        %9589 = vmatprep.subr.mxu0 0.0
        %9590 = vmatpush1.msra.mxu0 0.0
        %9591 = vmatprep.subr.mxu0 0.0
        %9592 = vmatpush1.msra.mxu0 0.0
        %9593 = vmatprep.subr.mxu0 0.0
        %9594 = vmatpush1.msra.mxu0 %v9561
        %9595 = vmatprep.subr.mxu0 0.0
        %9596 = vmatpush1.msra.mxu0 %v9560
        %9597 = vmatprep.subr.mxu0 0.0
        %9598 = vmatpush2.msra.mxu0 0.0
        %9599 = vmatprep.subr.mxu0 0.0
        %9600 = vmatpush2.msra.mxu0 0.0
        %9601 = vmatprep.subr.mxu0 0.0
        %9602 = vmatpush2.msra.mxu0 0.0
        %9603 = vmatprep.subr.mxu0 0.0
        %9604 = vmatpush2.msra.mxu0 0.0
        %9605 = vmatprep.subr.mxu0 0.0
        %9606 = vmatpush2.msra.mxu0 0.0
        %9607 = vmatprep.subr.mxu0 0.0
        %9608 = vmatpush2.msra.mxu0 0.0
        %9609 = vmatprep.subr.mxu0 0.0
        %9610 = vmatpush2.msra.mxu0 0.0
        %9611 = vmatprep.subr.mxu0 0.0
        %9612 = vmatpush2.msra.mxu0 0.0
        %9613 = vmatprep.subr.mxu0 0.0
        %9614 = vmatpush2.msra.mxu0 0.0
        %9615 = vmatprep.subr.mxu0 0.0
        %9616 = vmatpush2.msra.mxu0 0.0
        %9617 = vmatprep.subr.mxu0 0.0
        %9618 = vmatpush2.msra.mxu0 0.0
        %9619 = vmatprep.subr.mxu0 0.0
        %9620 = vmatpush2.msra.mxu0 0.0
        %9621 = vmatprep.subr.mxu0 0.0
        %9622 = vmatpush2.msra.mxu0 0.0
        %9623 = vmatprep.subr.mxu0 0.0
        %9624 = vmatpush2.msra.mxu0 0.0
        %9625 = vmatprep.subr.mxu0 0.0
        %9626 = vmatpush2.msra.mxu0 0.0
        %9627 = vmatprep.subr.mxu0 0.0
        %9628 = vmatpush2.msra.mxu0 0.0
        %9629 = vmatprep.mubr.f32.mxu0 0.0
        %9630 = vmatmul.mubr.f32.gmra.mxu0 %v9563
        %v9631 = vpop.f32.mrf.mxu0
        %v9632 = vadd.f32 0.0, %v9631
        %v9633 = vpop.f32.mrf.mxu0
        %9634 = vdwg.mxu0
        %v9635 = vadd.f32 %v9557, %v9632
        %v9636 = vld [vmem:[#allocation3 + $0x110] sm:$0xff]
        %s9637 = scalar_lea.vmem %s5, 352
        %v9638 = vld [vmem:[%s9637] sm:$0xff]
        %v9639 = vld [vmem:[%s9637 + $0x8] sm:$0xff]
        %v9641 = vsel %vm7882, %v9636, 0
        %9643 = vmatprep.subr.mxu0 0.0
        %9644 = vmatpush1.msra.mxu0 0.0
        %9645 = vmatprep.subr.mxu0 0.0
        %9646 = vmatpush1.msra.mxu0 0.0
        %9647 = vmatprep.subr.mxu0 0.0
        %9648 = vmatpush1.msra.mxu0 0.0
        %9649 = vmatprep.subr.mxu0 0.0
        %9650 = vmatpush1.msra.mxu0 0.0
        %9651 = vmatprep.subr.mxu0 0.0
        %9652 = vmatpush1.msra.mxu0 0.0
        %9653 = vmatprep.subr.mxu0 0.0
        %9654 = vmatpush1.msra.mxu0 0.0
        %9655 = vmatprep.subr.mxu0 0.0
        %9656 = vmatpush1.msra.mxu0 0.0
        %9657 = vmatprep.subr.mxu0 0.0
        %9658 = vmatpush1.msra.mxu0 0.0
        %9659 = vmatprep.subr.mxu0 0.0
        %9660 = vmatpush1.msra.mxu0 0.0
        %9661 = vmatprep.subr.mxu0 0.0
        %9662 = vmatpush1.msra.mxu0 0.0
        %9663 = vmatprep.subr.mxu0 0.0
        %9664 = vmatpush1.msra.mxu0 0.0
        %9665 = vmatprep.subr.mxu0 0.0
        %9666 = vmatpush1.msra.mxu0 0.0
        %9667 = vmatprep.subr.mxu0 0.0
        %9668 = vmatpush1.msra.mxu0 0.0
        %9669 = vmatprep.subr.mxu0 0.0
        %9670 = vmatpush1.msra.mxu0 0.0
        %9671 = vmatprep.subr.mxu0 0.0
        %9672 = vmatpush1.msra.mxu0 %v9639
        %9673 = vmatprep.subr.mxu0 0.0
        %9674 = vmatpush1.msra.mxu0 %v9638
        %9675 = vmatprep.subr.mxu0 0.0
        %9676 = vmatpush2.msra.mxu0 0.0
        %9677 = vmatprep.subr.mxu0 0.0
        %9678 = vmatpush2.msra.mxu0 0.0
        %9679 = vmatprep.subr.mxu0 0.0
        %9680 = vmatpush2.msra.mxu0 0.0
        %9681 = vmatprep.subr.mxu0 0.0
        %9682 = vmatpush2.msra.mxu0 0.0
        %9683 = vmatprep.subr.mxu0 0.0
        %9684 = vmatpush2.msra.mxu0 0.0
        %9685 = vmatprep.subr.mxu0 0.0
        %9686 = vmatpush2.msra.mxu0 0.0
        %9687 = vmatprep.subr.mxu0 0.0
        %9688 = vmatpush2.msra.mxu0 0.0
        %9689 = vmatprep.subr.mxu0 0.0
        %9690 = vmatpush2.msra.mxu0 0.0
        %9691 = vmatprep.subr.mxu0 0.0
        %9692 = vmatpush2.msra.mxu0 0.0
        %9693 = vmatprep.subr.mxu0 0.0
        %9694 = vmatpush2.msra.mxu0 0.0
        %9695 = vmatprep.subr.mxu0 0.0
        %9696 = vmatpush2.msra.mxu0 0.0
        %9697 = vmatprep.subr.mxu0 0.0
        %9698 = vmatpush2.msra.mxu0 0.0
        %9699 = vmatprep.subr.mxu0 0.0
        %9700 = vmatpush2.msra.mxu0 0.0
        %9701 = vmatprep.subr.mxu0 0.0
        %9702 = vmatpush2.msra.mxu0 0.0
        %9703 = vmatprep.subr.mxu0 0.0
        %9704 = vmatpush2.msra.mxu0 0.0
        %9705 = vmatprep.subr.mxu0 0.0
        %9706 = vmatpush2.msra.mxu0 0.0
        %9707 = vmatprep.mubr.f32.mxu0 0.0
        %9708 = vmatmul.mubr.f32.gmra.mxu0 %v9641
        %v9709 = vpop.f32.mrf.mxu0
        %v9710 = vadd.f32 0.0, %v9709
        %v9711 = vpop.f32.mrf.mxu0
        %9712 = vdwg.mxu0
        %v9713 = vadd.f32 %v9635, %v9710
        %v9714 = vld [vmem:[#allocation3 + $0x118] sm:$0xff]
        %s9715 = scalar_lea.vmem %s5, 368
        %v9716 = vld [vmem:[%s9715] sm:$0xff]
        %v9717 = vld [vmem:[%s9715 + $0x8] sm:$0xff]
        %v9719 = vsel %vm7882, %v9714, 0
        %9721 = vmatprep.subr.mxu0 0.0
        %9722 = vmatpush1.msra.mxu0 0.0
        %9723 = vmatprep.subr.mxu0 0.0
        %9724 = vmatpush1.msra.mxu0 0.0
        %9725 = vmatprep.subr.mxu0 0.0
        %9726 = vmatpush1.msra.mxu0 0.0
        %9727 = vmatprep.subr.mxu0 0.0
        %9728 = vmatpush1.msra.mxu0 0.0
        %9729 = vmatprep.subr.mxu0 0.0
        %9730 = vmatpush1.msra.mxu0 0.0
        %9731 = vmatprep.subr.mxu0 0.0
        %9732 = vmatpush1.msra.mxu0 0.0
        %9733 = vmatprep.subr.mxu0 0.0
        %9734 = vmatpush1.msra.mxu0 0.0
        %9735 = vmatprep.subr.mxu0 0.0
        %9736 = vmatpush1.msra.mxu0 0.0
        %9737 = vmatprep.subr.mxu0 0.0
        %9738 = vmatpush1.msra.mxu0 0.0
        %9739 = vmatprep.subr.mxu0 0.0
        %9740 = vmatpush1.msra.mxu0 0.0
        %9741 = vmatprep.subr.mxu0 0.0
        %9742 = vmatpush1.msra.mxu0 0.0
        %9743 = vmatprep.subr.mxu0 0.0
        %9744 = vmatpush1.msra.mxu0 0.0
        %9745 = vmatprep.subr.mxu0 0.0
        %9746 = vmatpush1.msra.mxu0 0.0
        %9747 = vmatprep.subr.mxu0 0.0
        %9748 = vmatpush1.msra.mxu0 0.0
        %9749 = vmatprep.subr.mxu0 0.0
        %9750 = vmatpush1.msra.mxu0 %v9717
        %9751 = vmatprep.subr.mxu0 0.0
        %9752 = vmatpush1.msra.mxu0 %v9716
        %9753 = vmatprep.subr.mxu0 0.0
        %9754 = vmatpush2.msra.mxu0 0.0
        %9755 = vmatprep.subr.mxu0 0.0
        %9756 = vmatpush2.msra.mxu0 0.0
        %9757 = vmatprep.subr.mxu0 0.0
        %9758 = vmatpush2.msra.mxu0 0.0
        %9759 = vmatprep.subr.mxu0 0.0
        %9760 = vmatpush2.msra.mxu0 0.0
        %9761 = vmatprep.subr.mxu0 0.0
        %9762 = vmatpush2.msra.mxu0 0.0
        %9763 = vmatprep.subr.mxu0 0.0
        %9764 = vmatpush2.msra.mxu0 0.0
        %9765 = vmatprep.subr.mxu0 0.0
        %9766 = vmatpush2.msra.mxu0 0.0
        %9767 = vmatprep.subr.mxu0 0.0
        %9768 = vmatpush2.msra.mxu0 0.0
        %9769 = vmatprep.subr.mxu0 0.0
        %9770 = vmatpush2.msra.mxu0 0.0
        %9771 = vmatprep.subr.mxu0 0.0
        %9772 = vmatpush2.msra.mxu0 0.0
        %9773 = vmatprep.subr.mxu0 0.0
        %9774 = vmatpush2.msra.mxu0 0.0
        %9775 = vmatprep.subr.mxu0 0.0
        %9776 = vmatpush2.msra.mxu0 0.0
        %9777 = vmatprep.subr.mxu0 0.0
        %9778 = vmatpush2.msra.mxu0 0.0
        %9779 = vmatprep.subr.mxu0 0.0
        %9780 = vmatpush2.msra.mxu0 0.0
        %9781 = vmatprep.subr.mxu0 0.0
        %9782 = vmatpush2.msra.mxu0 0.0
        %9783 = vmatprep.subr.mxu0 0.0
        %9784 = vmatpush2.msra.mxu0 0.0
        %9785 = vmatprep.mubr.f32.mxu0 0.0
        %9786 = vmatmul.mubr.f32.gmra.mxu0 %v9719
        %v9787 = vpop.f32.mrf.mxu0
        %v9788 = vadd.f32 0.0, %v9787
        %v9789 = vpop.f32.mrf.mxu0
        %9790 = vdwg.mxu0
        %v9791 = vadd.f32 %v9713, %v9788
        %v9792 = vld [vmem:[#allocation3 + $0x120] sm:$0xff]
        %s9793 = scalar_lea.vmem %s5, 384
        %v9794 = vld [vmem:[%s9793] sm:$0xff]
        %v9795 = vld [vmem:[%s9793 + $0x8] sm:$0xff]
        %v9797 = vsel %vm7882, %v9792, 0
        %9799 = vmatprep.subr.mxu0 0.0
        %9800 = vmatpush1.msra.mxu0 0.0
        %9801 = vmatprep.subr.mxu0 0.0
        %9802 = vmatpush1.msra.mxu0 0.0
        %9803 = vmatprep.subr.mxu0 0.0
        %9804 = vmatpush1.msra.mxu0 0.0
        %9805 = vmatprep.subr.mxu0 0.0
        %9806 = vmatpush1.msra.mxu0 0.0
        %9807 = vmatprep.subr.mxu0 0.0
        %9808 = vmatpush1.msra.mxu0 0.0
        %9809 = vmatprep.subr.mxu0 0.0
        %9810 = vmatpush1.msra.mxu0 0.0
        %9811 = vmatprep.subr.mxu0 0.0
        %9812 = vmatpush1.msra.mxu0 0.0
        %9813 = vmatprep.subr.mxu0 0.0
        %9814 = vmatpush1.msra.mxu0 0.0
        %9815 = vmatprep.subr.mxu0 0.0
        %9816 = vmatpush1.msra.mxu0 0.0
        %9817 = vmatprep.subr.mxu0 0.0
        %9818 = vmatpush1.msra.mxu0 0.0
        %9819 = vmatprep.subr.mxu0 0.0
        %9820 = vmatpush1.msra.mxu0 0.0
        %9821 = vmatprep.subr.mxu0 0.0
        %9822 = vmatpush1.msra.mxu0 0.0
        %9823 = vmatprep.subr.mxu0 0.0
        %9824 = vmatpush1.msra.mxu0 0.0
        %9825 = vmatprep.subr.mxu0 0.0
        %9826 = vmatpush1.msra.mxu0 0.0
        %9827 = vmatprep.subr.mxu0 0.0
        %9828 = vmatpush1.msra.mxu0 %v9795
        %9829 = vmatprep.subr.mxu0 0.0
        %9830 = vmatpush1.msra.mxu0 %v9794
        %9831 = vmatprep.subr.mxu0 0.0
        %9832 = vmatpush2.msra.mxu0 0.0
        %9833 = vmatprep.subr.mxu0 0.0
        %9834 = vmatpush2.msra.mxu0 0.0
        %9835 = vmatprep.subr.mxu0 0.0
        %9836 = vmatpush2.msra.mxu0 0.0
        %9837 = vmatprep.subr.mxu0 0.0
        %9838 = vmatpush2.msra.mxu0 0.0
        %9839 = vmatprep.subr.mxu0 0.0
        %9840 = vmatpush2.msra.mxu0 0.0
        %9841 = vmatprep.subr.mxu0 0.0
        %9842 = vmatpush2.msra.mxu0 0.0
        %9843 = vmatprep.subr.mxu0 0.0
        %9844 = vmatpush2.msra.mxu0 0.0
        %9845 = vmatprep.subr.mxu0 0.0
        %9846 = vmatpush2.msra.mxu0 0.0
        %9847 = vmatprep.subr.mxu0 0.0
        %9848 = vmatpush2.msra.mxu0 0.0
        %9849 = vmatprep.subr.mxu0 0.0
        %9850 = vmatpush2.msra.mxu0 0.0
        %9851 = vmatprep.subr.mxu0 0.0
        %9852 = vmatpush2.msra.mxu0 0.0
        %9853 = vmatprep.subr.mxu0 0.0
        %9854 = vmatpush2.msra.mxu0 0.0
        %9855 = vmatprep.subr.mxu0 0.0
        %9856 = vmatpush2.msra.mxu0 0.0
        %9857 = vmatprep.subr.mxu0 0.0
        %9858 = vmatpush2.msra.mxu0 0.0
        %9859 = vmatprep.subr.mxu0 0.0
        %9860 = vmatpush2.msra.mxu0 0.0
        %9861 = vmatprep.subr.mxu0 0.0
        %9862 = vmatpush2.msra.mxu0 0.0
        %9863 = vmatprep.mubr.f32.mxu0 0.0
        %9864 = vmatmul.mubr.f32.gmra.mxu0 %v9797
        %v9865 = vpop.f32.mrf.mxu0
        %v9866 = vadd.f32 0.0, %v9865
        %v9867 = vpop.f32.mrf.mxu0
        %9868 = vdwg.mxu0
        %v9869 = vadd.f32 %v9791, %v9866
        %v9870 = vld [vmem:[%s6] sm:$0x1]
        %v9872 = vlaneseq
        %v9873 = vshrl.u32 %v9872, 7
        %v9874 = vsub.s32 0, %v9873
        %v9875 = vrot.slane %v9870, %v9874
        %v9877 = vadd.f32 %v9869, %v9875
        %v9878 = vmax.f32 %v9877, 0.0
        %v9879 = vld [vmem:[%s7] sm:$0xff]
        %v9880 = vld [vmem:[%s7 + $0x8] sm:$0xff]
        %v9881 = vld [vmem:[%s7 + $0x10] sm:$0xff]
        %v9882 = vld [vmem:[%s7 + $0x18] sm:$0xff]
        %v9883 = vld [vmem:[%s7 + $0x20] sm:$0xff]
        %v9884 = vld [vmem:[%s7 + $0x28] sm:$0xff]
        %v9885 = vld [vmem:[%s7 + $0x30] sm:$0xff]
        %v9886 = vld [vmem:[%s7 + $0x38] sm:$0xff]
        %v9887 = vld [vmem:[%s7 + $0x40] sm:$0xff]
        %v9888 = vld [vmem:[%s7 + $0x48] sm:$0xff]
        %v9889 = vld [vmem:[%s7 + $0x50] sm:$0xff]
        %v9890 = vld [vmem:[%s7 + $0x58] sm:$0xff]
        %v9891 = vld [vmem:[%s7 + $0x60] sm:$0xff]
        %v9892 = vld [vmem:[%s7 + $0x68] sm:$0xff]
        %v9893 = vld [vmem:[%s7 + $0x70] sm:$0xff]
        %v9894 = vld [vmem:[%s7 + $0x78] sm:$0xff]
        %v9895 = vld [vmem:[%s8] sm:$0x1]
        %v9897 = vlaneseq
        %v9898 = vshrl.u32 %v9897, 7
        %v9899 = vsub.s32 0, %v9898
        %v9900 = vrot.slane %v9895, %v9899
        %9902 = vmatprep.subr.mxu0 0.0
        %9903 = vmatpush1.msra.mxu0 %v9894
        %9904 = vmatprep.subr.mxu0 0.0
        %9905 = vmatpush1.msra.mxu0 %v9893
        %9906 = vmatprep.subr.mxu0 0.0
        %9907 = vmatpush1.msra.mxu0 %v9892
        %9908 = vmatprep.subr.mxu0 0.0
        %9909 = vmatpush1.msra.mxu0 %v9891
        %9910 = vmatprep.subr.mxu0 0.0
        %9911 = vmatpush1.msra.mxu0 %v9890
        %9912 = vmatprep.subr.mxu0 0.0
        %9913 = vmatpush1.msra.mxu0 %v9889
        %9914 = vmatprep.subr.mxu0 0.0
        %9915 = vmatpush1.msra.mxu0 %v9888
        %9916 = vmatprep.subr.mxu0 0.0
        %9917 = vmatpush1.msra.mxu0 %v9887
        %9918 = vmatprep.subr.mxu0 0.0
        %9919 = vmatpush1.msra.mxu0 %v9886
        %9920 = vmatprep.subr.mxu0 0.0
        %9921 = vmatpush1.msra.mxu0 %v9885
        %9922 = vmatprep.subr.mxu0 0.0
        %9923 = vmatpush1.msra.mxu0 %v9884
        %9924 = vmatprep.subr.mxu0 0.0
        %9925 = vmatpush1.msra.mxu0 %v9883
        %9926 = vmatprep.subr.mxu0 0.0
        %9927 = vmatpush1.msra.mxu0 %v9882
        %9928 = vmatprep.subr.mxu0 0.0
        %9929 = vmatpush1.msra.mxu0 %v9881
        %9930 = vmatprep.subr.mxu0 0.0
        %9931 = vmatpush1.msra.mxu0 %v9880
        %9932 = vmatprep.subr.mxu0 0.0
        %9933 = vmatpush1.msra.mxu0 %v9879
        %9934 = vmatprep.subr.mxu0 0.0
        %9935 = vmatpush2.msra.mxu0 0.0
        %9936 = vmatprep.subr.mxu0 0.0
        %9937 = vmatpush2.msra.mxu0 0.0
        %9938 = vmatprep.subr.mxu0 0.0
        %9939 = vmatpush2.msra.mxu0 0.0
        %9940 = vmatprep.subr.mxu0 0.0
        %9941 = vmatpush2.msra.mxu0 0.0
        %9942 = vmatprep.subr.mxu0 0.0
        %9943 = vmatpush2.msra.mxu0 0.0
        %9944 = vmatprep.subr.mxu0 0.0
        %9945 = vmatpush2.msra.mxu0 0.0
        %9946 = vmatprep.subr.mxu0 0.0
        %9947 = vmatpush2.msra.mxu0 0.0
        %9948 = vmatprep.subr.mxu0 0.0
        %9949 = vmatpush2.msra.mxu0 0.0
        %9950 = vmatprep.subr.mxu0 0.0
        %9951 = vmatpush2.msra.mxu0 0.0
        %9952 = vmatprep.subr.mxu0 0.0
        %9953 = vmatpush2.msra.mxu0 0.0
        %9954 = vmatprep.subr.mxu0 0.0
        %9955 = vmatpush2.msra.mxu0 0.0
        %9956 = vmatprep.subr.mxu0 0.0
        %9957 = vmatpush2.msra.mxu0 0.0
        %9958 = vmatprep.subr.mxu0 0.0
        %9959 = vmatpush2.msra.mxu0 0.0
        %9960 = vmatprep.subr.mxu0 0.0
        %9961 = vmatpush2.msra.mxu0 0.0
        %9962 = vmatprep.subr.mxu0 0.0
        %9963 = vmatpush2.msra.mxu0 0.0
        %9964 = vmatprep.subr.mxu0 0.0
        %9965 = vmatpush2.msra.mxu0 0.0
        %9966 = vmatprep.mubr.f32.mxu0 0.0
        %9967 = vmatmul.mubr.f32.gmra.mxu0 %v9878
        %v9968 = vpop.f32.mrf.mxu0
        %v9969 = vadd.f32 %v9900, %v9968
        %v9970 = vpop.f32.mrf.mxu0
        %9971 = vdwg.mxu0
        %v9972 = vmax.f32 %v9969, 0.0
        %v9973 = vld [vmem:[%s9] sm:$0xff]
        %v9974 = vld [vmem:[%s9 + $0x8] sm:$0xff]
        %v9975 = vld [vmem:[%s9 + $0x10] sm:$0xff]
        %v9976 = vld [vmem:[%s9 + $0x18] sm:$0xff]
        %v9977 = vld [vmem:[%s9 + $0x20] sm:$0xff]
        %v9978 = vld [vmem:[%s9 + $0x28] sm:$0xff]
        %v9979 = vld [vmem:[%s9 + $0x30] sm:$0xff]
        %v9980 = vld [vmem:[%s9 + $0x38] sm:$0xff]
        %v9981 = vld [vmem:[%s9 + $0x40] sm:$0xff]
        %v9982 = vld [vmem:[%s9 + $0x48] sm:$0xff]
        %v9983 = vld [vmem:[%s9 + $0x50] sm:$0xff]
        %v9984 = vld [vmem:[%s9 + $0x58] sm:$0xff]
        %v9985 = vld [vmem:[%s9 + $0x60] sm:$0xff]
        %v9986 = vld [vmem:[%s9 + $0x68] sm:$0xff]
        %v9987 = vld [vmem:[%s9 + $0x70] sm:$0xff]
        %v9988 = vld [vmem:[%s9 + $0x78] sm:$0xff]
        %v9989 = vld [vmem:[%s10] sm:$0x1]
        %v9991 = vlaneseq
        %v9992 = vshrl.u32 %v9991, 7
        %v9993 = vsub.s32 0, %v9992
        %v9994 = vrot.slane %v9989, %v9993
        %9996 = vmatprep.subr.mxu0 0.0
        %9997 = vmatpush1.msra.mxu0 %v9988
        %9998 = vmatprep.subr.mxu0 0.0
        %9999 = vmatpush1.msra.mxu0 %v9987
        %10000 = vmatprep.subr.mxu0 0.0
        %10001 = vmatpush1.msra.mxu0 %v9986
        %10002 = vmatprep.subr.mxu0 0.0
        %10003 = vmatpush1.msra.mxu0 %v9985
        %10004 = vmatprep.subr.mxu0 0.0
        %10005 = vmatpush1.msra.mxu0 %v9984
        %10006 = vmatprep.subr.mxu0 0.0
        %10007 = vmatpush1.msra.mxu0 %v9983
        %10008 = vmatprep.subr.mxu0 0.0
        %10009 = vmatpush1.msra.mxu0 %v9982
        %10010 = vmatprep.subr.mxu0 0.0
        %10011 = vmatpush1.msra.mxu0 %v9981
        %10012 = vmatprep.subr.mxu0 0.0
        %10013 = vmatpush1.msra.mxu0 %v9980
        %10014 = vmatprep.subr.mxu0 0.0
        %10015 = vmatpush1.msra.mxu0 %v9979
        %10016 = vmatprep.subr.mxu0 0.0
        %10017 = vmatpush1.msra.mxu0 %v9978
        %10018 = vmatprep.subr.mxu0 0.0
        %10019 = vmatpush1.msra.mxu0 %v9977
        %10020 = vmatprep.subr.mxu0 0.0
        %10021 = vmatpush1.msra.mxu0 %v9976
        %10022 = vmatprep.subr.mxu0 0.0
        %10023 = vmatpush1.msra.mxu0 %v9975
        %10024 = vmatprep.subr.mxu0 0.0
        %10025 = vmatpush1.msra.mxu0 %v9974
        %10026 = vmatprep.subr.mxu0 0.0
        %10027 = vmatpush1.msra.mxu0 %v9973
        %10028 = vmatprep.subr.mxu0 0.0
        %10029 = vmatpush2.msra.mxu0 0.0
        %10030 = vmatprep.subr.mxu0 0.0
        %10031 = vmatpush2.msra.mxu0 0.0
        %10032 = vmatprep.subr.mxu0 0.0
        %10033 = vmatpush2.msra.mxu0 0.0
        %10034 = vmatprep.subr.mxu0 0.0
        %10035 = vmatpush2.msra.mxu0 0.0
        %10036 = vmatprep.subr.mxu0 0.0
        %10037 = vmatpush2.msra.mxu0 0.0
        %10038 = vmatprep.subr.mxu0 0.0
        %10039 = vmatpush2.msra.mxu0 0.0
        %10040 = vmatprep.subr.mxu0 0.0
        %10041 = vmatpush2.msra.mxu0 0.0
        %10042 = vmatprep.subr.mxu0 0.0
        %10043 = vmatpush2.msra.mxu0 0.0
        %10044 = vmatprep.subr.mxu0 0.0
        %10045 = vmatpush2.msra.mxu0 0.0
        %10046 = vmatprep.subr.mxu0 0.0
        %10047 = vmatpush2.msra.mxu0 0.0
        %10048 = vmatprep.subr.mxu0 0.0
        %10049 = vmatpush2.msra.mxu0 0.0
        %10050 = vmatprep.subr.mxu0 0.0
        %10051 = vmatpush2.msra.mxu0 0.0
        %10052 = vmatprep.subr.mxu0 0.0
        %10053 = vmatpush2.msra.mxu0 0.0
        %10054 = vmatprep.subr.mxu0 0.0
        %10055 = vmatpush2.msra.mxu0 0.0
        %10056 = vmatprep.subr.mxu0 0.0
        %10057 = vmatpush2.msra.mxu0 0.0
        %10058 = vmatprep.subr.mxu0 0.0
        %10059 = vmatpush2.msra.mxu0 0.0
        %10060 = vmatprep.mubr.f32.mxu0 0.0
        %10061 = vmatmul.mubr.f32.gmra.mxu0 %v9972
        %v10062 = vpop.f32.mrf.mxu0
        %v10063 = vadd.f32 %v9994, %v10062
        %v10064 = vpop.f32.mrf.mxu0
        %10065 = vdwg.mxu0
        %vm10066 = vcmask 80896
        %10067 = vst.msk [vmem:[%s379] sm:$0xff] %vm10066, %v10063
        %s10068 = sand.u32 %s269, 1
        %s10069 = scalar_lea.sflag [#allocation5], %s10068
        %s10070 = sand.u32 %s269, 1
        %s10071 = smul.addr %s10070, 8
        %s10072 = scalar_lea.vmem [#allocation4], %s10071
        // Predicated region
        $region65: #{lenet_forward.1} parent=63 // pred_check
          %p10073 = pneg %p279
        $region66: #{lenet_forward.1} parent=63 // pred_check_branch
          %10075 = sbr.rel (%p10073) target = $region68
        $region67: #{lenet_forward.1} parent=63 // pred_region
          %s10077 = ssub.s32 128, 128
          %10078 = vsyncadd %s10069, %s10077
          %s10079 = smul.addr %s25, 128
          %s10080 = scalar_lea.hbm %s11, %s10079
          %s10082 = sshll.u32 %s10072, 4
          %s10083 = int_to_ptr.vmem [resolvable:$true] %s10082
          %10085 = dma.vmem_to_hbm [thread:$0]  %s10083, 128, %s10080, %s10069
        $region68: #{lenet_forward.1} parent=63 // pred_fallthru
          _
      $region64: #{lenet_forward.1} parent=5 // pred_fallthru
        _
      %p10086 = scmp.le.s32.totalorder 2, %s20
      // Predicated region
      $region69: #{lenet_forward.1} parent=5 // pred_check
        %p10087 = pneg %p10086
      $region70: #{lenet_forward.1} parent=5 // pred_check_branch
        %10089 = sbr.rel (%p10087) target = $region72
      $region71: #{lenet_forward.1} parent=5 // pred_region
        %s10090 = ssub.s32 %s20, 2
        // Predicated region
        $region73: #{lenet_forward.1} parent=71 // pred_check
          %p10091 = pneg %p285
        $region74: #{lenet_forward.1} parent=71 // pred_check_branch
          %10093 = sbr.rel (%p10091) target = $region76
        $region75: #{lenet_forward.1} parent=71 // pred_region
          %s10094 = sand.u32 %s270, 1
          %s10095 = scalar_lea.sflag [#allocation5], %s10094
          %s10096 = sand.u32 %s270, 1
          %s10097 = smul.addr %s10096, 8
          %s10098 = scalar_lea.vmem [#allocation4], %s10097
          %10099 = dma.done %s10095, 128
        $region76: #{lenet_forward.1} parent=71 // pred_fallthru
          _
      $region72: #{lenet_forward.1} parent=5 // pred_fallthru
        _
    $region6: #{lenet_forward.1} parent=1 // loop_footer
      %s24 = sadd.s32 1, %s20
    $region7: #{lenet_forward.1} parent=1 // loop_footer_branch
      %19 = sbr.rel target = $region3
    $region8: #{lenet_forward.1} parent=1 // loop_exit
      _
    %10100 = vsyncpa [#allocation5], 1
    %s10101 = scalar_lea.sflag [#allocation5], 1
    %10102 = vsyncpa %s10101, 1

</llo_original>
